<compile_context>
chip_gen: v5e
topology: v5e:2x2
jax: 0.10.0
libtpu: 0.0.40
codegen_flags: <defaults>
</compile_context>

<pallas_src>
import functools
from typing import NamedTuple

import jax
import jax.numpy as jnp
from jax.experimental import pallas as pl
from jax.experimental.pallas import tpu as pltpu

INPUT_DIM = 28 * 28                # 784
HIDDEN_DIM = int(INPUT_DIM * 1.5)  # 1176
OUTPUT_DIM = INPUT_DIM             # 784
LEAKY_SLOPE = 0.01                 # F.leaky_relu default negative_slope


def _round_up(x, m):
    return (x + m - 1) // m * m


# ----------------------------------------------------------------------------
# Kernel
# ----------------------------------------------------------------------------
def _autoencoder_kernel(x_ref, w1_ref, b1_ref, w2_ref, b2_ref, o_ref):
    # fc1: (tm, Din_p)bf16 @ (Din_p, H_p)bf16 -> f32 accumulate on the MXU
    h = jnp.dot(x_ref[...], w1_ref[...], preferred_element_type=jnp.float32)
    h = h + b1_ref[...]
    # leaky_relu as a single VPU max (f32 math is v5e-safe)
    h = jnp.maximum(h, LEAKY_SLOPE * h)
    # fc2: (tm, H_p)bf16 @ (H_p, Dout_p)bf16 -> f32 accumulate
    o = jnp.dot(h.astype(jnp.bfloat16), w2_ref[...],
                preferred_element_type=jnp.float32)
    o = o + b2_ref[...]
    # sigmoid(o) = 0.5*tanh(0.5*o) + 0.5  -> single EUP transcendental per elem
    o_ref[...] = (0.5 * jnp.tanh(0.5 * o) + 0.5).astype(o_ref.dtype)


# ----------------------------------------------------------------------------
# One-time parameter preparation (padding + bf16 cast), done ONCE per model.
# ----------------------------------------------------------------------------
class AEParams(NamedTuple):
    w1_p: jax.Array   # (Din_p, H_p)   bf16
    b1_p: jax.Array   # (1, H_p)       f32
    w2_p: jax.Array   # (H_p, Dout_p)  bf16
    b2_p: jax.Array   # (1, Dout_p)    f32
    d_out: int        # un-padded output dim (static)


def prepare_params(w1_t, b1, w2_t, b2) -> AEParams:
    """Pad feature dims to lane multiples of 128 and cast weights to bf16.

    Weights are expected pre-transposed relative to torch's (out, in) layout so
    the kernel computes plain x @ W + b.  Zero-padding the contraction dims is
    numerically exact; padded output columns are sliced off in the forward.
    """
    d_in, d_hidden = w1_t.shape
    d_out = w2_t.shape[1]
    d_in_p = _round_up(d_in, 128)
    d_h_p = _round_up(d_hidden, 128)
    d_out_p = _round_up(d_out, 128)

    bf16 = jnp.bfloat16
    w1_p = jnp.zeros((d_in_p, d_h_p), bf16).at[:d_in, :d_hidden].set(
        w1_t.astype(bf16))
    b1_p = jnp.zeros((1, d_h_p), jnp.float32).at[0, :d_hidden].set(b1)
    w2_p = jnp.zeros((d_h_p, d_out_p), bf16).at[:d_hidden, :d_out].set(
        w2_t.astype(bf16))
    b2_p = jnp.zeros((1, d_out_p), jnp.float32).at[0, :d_out].set(b2)
    return AEParams(w1_p, b1_p, w2_p, b2_p, d_out)


# ----------------------------------------------------------------------------
# Tile-size selection (static, from shapes)
# ----------------------------------------------------------------------------
def _pick_tile(batch, tm_max):
    """Batch tile: 16-sublane aligned (bf16), 256-multiples for the MXU,
    and >=2 grid steps once the padded batch reaches 512 rows (v7x megacore)."""
    b16 = _round_up(batch, 16)
    if b16 <= 256:
        return b16                       # small batch: single grid step
    tm = min(tm_max, max(256, _round_up(b16 // 2, 256)))
    return tm


# ----------------------------------------------------------------------------
# Jitted forward on pre-padded params
# ----------------------------------------------------------------------------
@functools.partial(jax.jit, static_argnames=("d_out", "out_dtype", "tm_max"))
def _forward_padded(x, w1_p, b1_p, w2_p, b2_p, *, d_out,
                    out_dtype=jnp.float32, tm_max=1024):
    B, d_in = x.shape
    d_in_p, d_h_p = w1_p.shape
    d_out_p = w2_p.shape[1]

    tm = _pick_tile(B, tm_max)
    B_p = _round_up(B, tm)
    grid = (B_p // tm,)

    bf16 = jnp.bfloat16
    x_p = jnp.zeros((B_p, d_in_p), bf16).at[:B, :d_in].set(x.astype(bf16))

    out_bytes = jnp.dtype(out_dtype).itemsize
    cost = pl.CostEstimate(
        flops=2 * B_p * (d_in_p * d_h_p + d_h_p * d_out_p),
        transcendentals=B_p * d_out_p,
        bytes_accessed=(x_p.size * 2 + w1_p.size * 2 + w2_p.size * 2
                        + b1_p.size * 4 + b2_p.size * 4
                        + B_p * d_out_p * out_bytes),
    )

    out_p = pl.pallas_call(
        _autoencoder_kernel,
        out_shape=jax.ShapeDtypeStruct((B_p, d_out_p), out_dtype),
        grid=grid,
        in_specs=[
            pl.BlockSpec((tm, d_in_p), lambda i: (i, 0)),      # x streams per tile
            pl.BlockSpec((d_in_p, d_h_p), lambda i: (0, 0)),   # w1 VMEM-resident
            pl.BlockSpec((1, d_h_p), lambda i: (0, 0)),        # b1 resident
            pl.BlockSpec((d_h_p, d_out_p), lambda i: (0, 0)),  # w2 resident
            pl.BlockSpec((1, d_out_p), lambda i: (0, 0)),      # b2 resident
        ],
        out_specs=pl.BlockSpec((tm, d_out_p), lambda i: (i, 0)),
        compiler_params=pltpu.CompilerParams(
            dimension_semantics=("parallel",),   # batch axis shards across v7x TCs
            vmem_limit_bytes=48 << 20,           # <= v7x 64 MiB physical VMEM
        ),
        cost_estimate=cost,
    )(x_p, w1_p, b1_p, w2_p, b2_p)

    return out_p[:B, :d_out]


def autoencoder_forward(x, params: AEParams, *, out_dtype=jnp.float32,
                        tm_max=1024):
    """x: (B, Din) f32; params: output of prepare_params (padded, bf16 weights).

    Set out_dtype=jnp.bfloat16 on v7x (near the memory roofline) if downstream
    tolerates it — halves the output store stream.
    """
    return _forward_padded(x, params.w1_p, params.b1_p, params.w2_p,
                           params.b2_p, d_out=params.d_out,
                           out_dtype=out_dtype, tm_max=tm_max)


# ----------------------------------------------------------------------------
# Parameter init + pure-JAX reference
# ----------------------------------------------------------------------------
def init_params(key, d_in, d_hidden, d_out):
    """Mimics torch.nn.Linear default init U[-1/sqrt(fan_in), +1/sqrt(fan_in)]."""
    k1, k2, k3, k4 = jax.random.split(key, 4)
    lim1 = 1.0 / jnp.sqrt(jnp.float32(d_in))
    lim2 = 1.0 / jnp.sqrt(jnp.float32(d_hidden))
    # Stored pre-transposed relative to torch's (out, in) convention.
    w1_t = jax.random.uniform(k1, (d_in, d_hidden), jnp.float32, -lim1, lim1)
    b1 = jax.random.uniform(k2, (d_hidden,), jnp.float32, -lim1, lim1)
    w2_t = jax.random.uniform(k3, (d_hidden, d_out), jnp.float32, -lim2, lim2)
    b2 = jax.random.uniform(k4, (d_out,), jnp.float32, -lim2, lim2)
    return w1_t, b1, w2_t, b2


def reference_forward(x, w1_t, b1, w2_t, b2):
    h = x @ w1_t + b1
    h = jnp.where(h >= 0.0, h, LEAKY_SLOPE * h)
    o = h @ w2_t + b2
    return jax.nn.sigmoid(o)


if __name__ == "__main__":
    key = jax.random.PRNGKey(0)
    k_x, k_p, k_x2 = jax.random.split(key, 3)

    w1_t, b1, w2_t, b2 = init_params(k_p, INPUT_DIM, HIDDEN_DIM, OUTPUT_DIM)
    params = prepare_params(w1_t, b1, w2_t, b2)   # one-time pad + bf16 cast

    # Case 1: small batch -> single grid step (tm = 16).
    batch = 8
    x = jax.random.normal(k_x, (batch, INPUT_DIM), jnp.float32)
    out = jax.block_until_ready(autoencoder_forward(x, params))
    ref = reference_forward(x, w1_t, b1, w2_t, b2)
    assert out.shape == (batch, OUTPUT_DIM)
    # bf16 matmul operands (f32 accumulate) -> loose absolute tolerance.
    assert jnp.allclose(out, ref, atol=2e-2, rtol=0.0), \
        float(jnp.max(jnp.abs(out - ref)))

    # Case 2: batch not a tile multiple -> tm=256, padded B=512, grid=(2,)
    # (exercises batch padding and the multi-step / megacore-parallel path).
    batch2 = 300
    x2 = jax.random.normal(k_x2, (batch2, INPUT_DIM), jnp.float32)
    out2 = jax.block_until_ready(autoencoder_forward(x2, params))
    ref2 = reference_forward(x2, w1_t, b1, w2_t, b2)
    assert out2.shape == (batch2, OUTPUT_DIM)
    assert jnp.allclose(out2, ref2, atol=2e-2, rtol=0.0), \
        float(jnp.max(jnp.abs(out2 - ref2)))

    print("KERNEL_OK")
</pallas_src>

<mosaic_0001>
module attributes {stable_mosaic.version = 11 : i64} {
  func.func @_autoencoder_kernel(%arg0: i32, %arg1: memref<16x896xbf16, #tpu.memory_space<vmem>>, %arg2: memref<896x1280xbf16, #tpu.memory_space<vmem>>, %arg3: memref<1x1280xf32, #tpu.memory_space<vmem>>, %arg4: memref<1280x896xbf16, #tpu.memory_space<vmem>>, %arg5: memref<1x896xf32, #tpu.memory_space<vmem>>, %arg6: memref<16x896xf32, #tpu.memory_space<vmem>>) attributes {dimension_semantics = [#tpu.dimension_semantics<parallel>], iteration_bounds = array<i64: 1>, scalar_prefetch = 0 : i64, scratch_operands = 0 : i64, tpu.core_type = #tpu.core_type<tc>, window_params = [{transform_indices = @transform_0, window_bounds = array<i64: 16, 896>}, {pipeline_mode = #tpu.pipeline_mode<synchronous>, transform_indices = @transform_1, window_bounds = array<i64: 896, 1280>}, {pipeline_mode = #tpu.pipeline_mode<synchronous>, transform_indices = @transform_2, window_bounds = array<i64: 1, 1280>}, {pipeline_mode = #tpu.pipeline_mode<synchronous>, transform_indices = @transform_3, window_bounds = array<i64: 1280, 896>}, {pipeline_mode = #tpu.pipeline_mode<synchronous>, transform_indices = @transform_4, window_bounds = array<i64: 1, 896>}, {transform_indices = @transform_5, window_bounds = array<i64: 16, 896>}]} {
    %c0 = arith.constant 0 : index
    %c0_0 = arith.constant 0 : index
    %0 = vector.load %arg1[%c0, %c0_0] : memref<16x896xbf16, #tpu.memory_space<vmem>>, vector<16x896xbf16>
    %c0_1 = arith.constant 0 : index
    %c0_2 = arith.constant 0 : index
    %1 = vector.load %arg2[%c0_1, %c0_2] : memref<896x1280xbf16, #tpu.memory_space<vmem>>, vector<896x1280xbf16>
    %cst = arith.constant dense<0.000000e+00> : vector<16x1280xf32>
    %2 = tpu.matmul %0, %1, %cst {dimension_numbers = #tpu.dot_dimension_numbers<[1], [0], [0], [1], [0, 0, 1, 1], [], []>} : vector<16x896xbf16>, vector<896x1280xbf16>, vector<16x1280xf32> -> vector<16x1280xf32>
    %c0_3 = arith.constant 0 : index
    %c0_4 = arith.constant 0 : index
    %3 = vector.load %arg3[%c0_3, %c0_4] : memref<1x1280xf32, #tpu.memory_space<vmem>>, vector<1x1280xf32>
    %4 = vector.broadcast %3 : vector<1x1280xf32> to vector<16x1280xf32>
    %5 = arith.addf %2, %4 : vector<16x1280xf32>
    %cst_5 = arith.constant 0.00999999977 : f32
    %6 = vector.broadcast %cst_5 : f32 to vector<16x1280xf32>
    %7 = arith.mulf %6, %5 : vector<16x1280xf32>
    %8 = arith.maximumf %5, %7 : vector<16x1280xf32>
    %9 = arith.truncf %8 : vector<16x1280xf32> to vector<16x1280xbf16>
    %c0_6 = arith.constant 0 : index
    %c0_7 = arith.constant 0 : index
    %10 = vector.load %arg4[%c0_6, %c0_7] : memref<1280x896xbf16, #tpu.memory_space<vmem>>, vector<1280x896xbf16>
    %cst_8 = arith.constant dense<0.000000e+00> : vector<16x896xf32>
    %11 = tpu.matmul %9, %10, %cst_8 {dimension_numbers = #tpu.dot_dimension_numbers<[1], [0], [0], [1], [0, 0, 1, 1], [], []>} : vector<16x1280xbf16>, vector<1280x896xbf16>, vector<16x896xf32> -> vector<16x896xf32>
    %c0_9 = arith.constant 0 : index
    %c0_10 = arith.constant 0 : index
    %12 = vector.load %arg5[%c0_9, %c0_10] : memref<1x896xf32, #tpu.memory_space<vmem>>, vector<1x896xf32>
    %13 = vector.broadcast %12 : vector<1x896xf32> to vector<16x896xf32>
    %14 = arith.addf %11, %13 : vector<16x896xf32>
    %cst_11 = arith.constant 5.000000e-01 : f32
    %15 = vector.broadcast %cst_11 : f32 to vector<16x896xf32>
    %16 = arith.mulf %15, %14 : vector<16x896xf32>
    %17 = math.tanh %16 : vector<16x896xf32>
    %cst_12 = arith.constant 5.000000e-01 : f32
    %18 = vector.broadcast %cst_12 : f32 to vector<16x896xf32>
    %19 = arith.mulf %18, %17 : vector<16x896xf32>
    %cst_13 = arith.constant 5.000000e-01 : f32
    %20 = vector.broadcast %cst_13 : f32 to vector<16x896xf32>
    %21 = arith.addf %19, %20 : vector<16x896xf32>
    %c0_14 = arith.constant 0 : index
    %c0_15 = arith.constant 0 : index
    %22 = vector.load %arg6[%c0_14, %c0_15] : memref<16x896xf32, #tpu.memory_space<vmem>>, vector<16x896xf32>
    tpu.vector_store %arg6[%c0_14, %c0_15], %21 {strides = array<i32>} : memref<16x896xf32, #tpu.memory_space<vmem>>, vector<16x896xf32>,
    return
  }
  func.func @transform_0(%arg0: i32) -> (i32, i32) {
    %c0_i32 = arith.constant 0 : i32
    %c0_i32_0 = arith.constant 0 : i32
    return %arg0, %c0_i32 : i32, i32
  }
  func.func @transform_1(%arg0: i32) -> (i32, i32) {
    %c0_i32 = arith.constant 0 : i32
    %c0_i32_0 = arith.constant 0 : i32
    %c0_i32_1 = arith.constant 0 : i32
    return %c0_i32, %c0_i32_0 : i32, i32
  }
  func.func @transform_2(%arg0: i32) -> (i32, i32) {
    %c0_i32 = arith.constant 0 : i32
    %c0_i32_0 = arith.constant 0 : i32
    %c0_i32_1 = arith.constant 0 : i32
    return %c0_i32, %c0_i32_0 : i32, i32
  }
  func.func @transform_3(%arg0: i32) -> (i32, i32) {
    %c0_i32 = arith.constant 0 : i32
    %c0_i32_0 = arith.constant 0 : i32
    %c0_i32_1 = arith.constant 0 : i32
    return %c0_i32, %c0_i32_0 : i32, i32
  }
  func.func @transform_4(%arg0: i32) -> (i32, i32) {
    %c0_i32 = arith.constant 0 : i32
    %c0_i32_0 = arith.constant 0 : i32
    %c0_i32_1 = arith.constant 0 : i32
    return %c0_i32, %c0_i32_0 : i32, i32
  }
  func.func @transform_5(%arg0: i32) -> (i32, i32) {
    %c0_i32 = arith.constant 0 : i32
    %c0_i32_0 = arith.constant 0 : i32
    return %arg0, %c0_i32 : i32, i32
  }
}

</mosaic_0001>

<llo_original>
// kernel: _forward_padded.1
$region0: #{_forward_padded.1}
  #allocation0 [shape = 'u32[]', space=smem, size = 0x4, offset = 0x4, fixed_abs, tag = 'smem constant byte address 0x4 - core index']
  #allocation1 [shape = 'u32[72,128]{1,0:T(1,128)}', space=vmem, size = 0x9000, scoped, tag = 'internal scratch']
  %s0 = inlined_call_operand.vmem [shape: bf16[16,896], index: 0, kind: input, shape index: {}]
  %s1 = inlined_call_operand.hbm [shape: bf16[896,1280], index: 1, kind: input, shape index: {}]
  %s2 = inlined_call_operand.hbm [shape: f32[1,1280], index: 2, kind: input, shape index: {}]
  %s3 = inlined_call_operand.hbm [shape: bf16[1280,896], index: 3, kind: input, shape index: {}]
  %s4 = inlined_call_operand.hbm [shape: f32[1,896], index: 4, kind: input, shape index: {}]
  %s5 = inlined_call_operand.vmem [shape: f32[16,896], index: 5, kind: output, shape index: {}]
  %s6 = sld [smem:[#allocation0]]
  $region46: #{_forward_padded.1} parent=0
    _
  %s8 = ssub.s32 1, %s6
  %s9 = scalar_select 0, %s8, %s6
  $region1: #{_forward_padded.1} parent=0
    #allocation2 [shape = 'u8[2293760]{0}', space=vmem, size = 0x230000, scoped, tag = 'input window, operand 1, single buffered']
    #allocation3 [shape = 's32[1]{0}', space=sflag, size = 0x4, scoped, tag = 'scoped memory for _forward_padded.1']
    #allocation4 [shape = 'u8[5120]{0}', space=vmem, size = 0x1400, scoped, tag = 'input window, operand 2, single buffered']
    #allocation5 [shape = 's32[1]{0}', space=sflag, size = 0x4, scoped, tag = 'scoped memory for _forward_padded.1']
    #allocation6 [shape = 'u8[2293760]{0}', space=vmem, size = 0x230000, scoped, tag = 'input window, operand 3, single buffered']
    #allocation7 [shape = 'u8[3584]{0}', space=vmem, size = 0x1000, scoped, tag = 'input window, operand 4, single buffered']
    #allocation8 [shape = 's32[1]{0}', space=sflag, size = 0x4, scoped, tag = 'scoped memory for _forward_padded.1']
    %10 = vsyncpa [#allocation3], 0
    %11 = vsyncpa [#allocation5], 0
    %12 = vsyncpa [#allocation8], 0
    // Predicated region
    $region2: #{_forward_padded.1} parent=1 // pred_check
      _
    $region3: #{_forward_padded.1} parent=1 // pred_check_branch
      %14 = sbr.rel (0) target = $region5
    $region4: #{_forward_padded.1} parent=1 // pred_region
      _
    $region5: #{_forward_padded.1} parent=1 // pred_fallthru
      _
    // Predicated region
    $region6: #{_forward_padded.1} parent=1 // pred_check
      _
    $region7: #{_forward_padded.1} parent=1 // pred_check_branch
      %16 = sbr.rel (0) target = $region9
    $region8: #{_forward_padded.1} parent=1 // pred_region
      %18 = vsyncadd [#allocation3], 0
      %s19 = sshll.u32 %s1, 4
      %s20 = int_to_ptr.hbm [resolvable:$true] %s19
      %s21 = sshll.u32 [#allocation2], 4
      %s22 = int_to_ptr.vmem [resolvable:$true] %s21
      %27 = dma.hbm_to_vmem [thread:$0]  %s20, 71680, %s22, [#allocation3], 640, 640, 40
    $region9: #{_forward_padded.1} parent=1 // pred_fallthru
      _
    // Predicated region
    $region10: #{_forward_padded.1} parent=1 // pred_check
      _
    $region11: #{_forward_padded.1} parent=1 // pred_check_branch
      %29 = sbr.rel (0) target = $region13
    $region12: #{_forward_padded.1} parent=1 // pred_region
      %31 = vsyncadd [#allocation5], 0
      %s33 = sshll.u32 %s2, 4
      %s34 = int_to_ptr.hbm [resolvable:$true] %s33
      %s35 = sshll.u32 [#allocation4], 4
      %s36 = int_to_ptr.vmem [resolvable:$true] %s35
      %38 = dma.hbm_to_vmem [thread:$0]  %s34, 160, %s36, [#allocation5]
    $region13: #{_forward_padded.1} parent=1 // pred_fallthru
      _
    // Predicated region
    $region14: #{_forward_padded.1} parent=1 // pred_check
      _
    $region15: #{_forward_padded.1} parent=1 // pred_check_branch
      %40 = sbr.rel (0) target = $region17
    $region16: #{_forward_padded.1} parent=1 // pred_region
      %42 = vsyncadd [#allocation5], 0
      %s43 = sshll.u32 %s3, 4
      %s44 = int_to_ptr.hbm [resolvable:$true] %s43
      %s45 = sshll.u32 [#allocation6], 4
      %s46 = int_to_ptr.vmem [resolvable:$true] %s45
      %51 = dma.hbm_to_vmem [thread:$0]  %s44, 71680, %s46, [#allocation5], 448, 448, 28
    $region17: #{_forward_padded.1} parent=1 // pred_fallthru
      _
    // Predicated region
    $region18: #{_forward_padded.1} parent=1 // pred_check
      _
    $region19: #{_forward_padded.1} parent=1 // pred_check_branch
      %53 = sbr.rel (0) target = $region21
    $region20: #{_forward_padded.1} parent=1 // pred_region
      %55 = vsyncadd [#allocation8], 0
      %s57 = sshll.u32 %s4, 4
      %s58 = int_to_ptr.hbm [resolvable:$true] %s57
      %s59 = sshll.u32 [#allocation7], 4
      %s60 = int_to_ptr.vmem [resolvable:$true] %s59
      %62 = dma.hbm_to_vmem [thread:$0]  %s58, 112, %s60, [#allocation8]
    $region21: #{_forward_padded.1} parent=1 // pred_fallthru
      _
    // Predicated region
    $region22: #{_forward_padded.1} parent=1 // pred_check
      _
    $region23: #{_forward_padded.1} parent=1 // pred_check_branch
      %64 = sbr.rel (0) target = $region25
    $region24: #{_forward_padded.1} parent=1 // pred_region
      %66 = dma.done [#allocation3], 71680
    $region25: #{_forward_padded.1} parent=1 // pred_fallthru
      _
    // Predicated region
    $region26: #{_forward_padded.1} parent=1 // pred_check
      _
    $region27: #{_forward_padded.1} parent=1 // pred_check_branch
      %68 = sbr.rel (0) target = $region29
    $region28: #{_forward_padded.1} parent=1 // pred_region
      %70 = dma.done [#allocation5], 160
    $region29: #{_forward_padded.1} parent=1 // pred_fallthru
      _
    // Predicated region
    $region30: #{_forward_padded.1} parent=1 // pred_check
      _
    $region31: #{_forward_padded.1} parent=1 // pred_check_branch
      %72 = sbr.rel (0) target = $region33
    $region32: #{_forward_padded.1} parent=1 // pred_region
      %74 = dma.done [#allocation5], 71680
    $region33: #{_forward_padded.1} parent=1 // pred_fallthru
      _
    // Predicated region
    $region34: #{_forward_padded.1} parent=1 // pred_check
      _
    $region35: #{_forward_padded.1} parent=1 // pred_check_branch
      %76 = sbr.rel (0) target = $region37
    $region36: #{_forward_padded.1} parent=1 // pred_region
      %78 = dma.done [#allocation8], 112
    $region37: #{_forward_padded.1} parent=1 // pred_fallthru
      _
    %v79 = vld [vmem:[%s0] sm:$0xff]
    %v80 = vld [vmem:[%s0 + $0x8] sm:$0xff]
    %v81 = vld [vmem:[%s0 + $0x10] sm:$0xff]
    %v82 = vld [vmem:[%s0 + $0x18] sm:$0xf]
    %v83 = vld [vmem:[%s0 + $0x1c] sm:$0xff]
    %v84 = vld [vmem:[%s0 + $0x24] sm:$0xff]
    %v85 = vld [vmem:[%s0 + $0x2c] sm:$0xff]
    %v86 = vld [vmem:[%s0 + $0x34] sm:$0xf]
    %v87 = vld [vmem:[#allocation2] sm:$0xff]
    %v88 = vld [vmem:[#allocation2 + $0x8] sm:$0xff]
    %v89 = vld [vmem:[#allocation2 + $0x10] sm:$0xff]
    %v90 = vld [vmem:[#allocation2 + $0x18] sm:$0xff]
    %v91 = vld [vmem:[#allocation2 + $0x20] sm:$0xff]
    %v92 = vld [vmem:[#allocation2 + $0x28] sm:$0xff]
    %v93 = vld [vmem:[#allocation2 + $0x30] sm:$0xff]
    %v94 = vld [vmem:[#allocation2 + $0x38] sm:$0xff]
    %v95 = vld [vmem:[#allocation2 + $0x40] sm:$0xff]
    %v96 = vld [vmem:[#allocation2 + $0x48] sm:$0xff]
    %v97 = vld [vmem:[#allocation2 + $0x50] sm:$0xff]
    %v98 = vld [vmem:[#allocation2 + $0x58] sm:$0xff]
    %v99 = vld [vmem:[#allocation2 + $0x60] sm:$0xff]
    %v100 = vld [vmem:[#allocation2 + $0x68] sm:$0xff]
    %v101 = vld [vmem:[#allocation2 + $0x70] sm:$0xff]
    %v102 = vld [vmem:[#allocation2 + $0x78] sm:$0xff]
    %v103 = vld [vmem:[#allocation2 + $0x80] sm:$0xff]
    %v104 = vld [vmem:[#allocation2 + $0x88] sm:$0xff]
    %v105 = vld [vmem:[#allocation2 + $0x90] sm:$0xff]
    %v106 = vld [vmem:[#allocation2 + $0x98] sm:$0xff]
    %v107 = vld [vmem:[#allocation2 + $0xa0] sm:$0xff]
    %v108 = vld [vmem:[#allocation2 + $0xa8] sm:$0xff]
    %v109 = vld [vmem:[#allocation2 + $0xb0] sm:$0xff]
    %v110 = vld [vmem:[#allocation2 + $0xb8] sm:$0xff]
    %v111 = vld [vmem:[#allocation2 + $0xc0] sm:$0xff]
    %v112 = vld [vmem:[#allocation2 + $0xc8] sm:$0xff]
    %v113 = vld [vmem:[#allocation2 + $0xd0] sm:$0xff]
    %v114 = vld [vmem:[#allocation2 + $0xd8] sm:$0xff]
    %v115 = vld [vmem:[#allocation2 + $0xe0] sm:$0xff]
    %v116 = vld [vmem:[#allocation2 + $0xe8] sm:$0xff]
    %v117 = vld [vmem:[#allocation2 + $0xf0] sm:$0xff]
    %v118 = vld [vmem:[#allocation2 + $0xf8] sm:$0xff]
    %v119 = vld [vmem:[#allocation2 + $0x100] sm:$0xff]
    %v120 = vld [vmem:[#allocation2 + $0x108] sm:$0xff]
    %v121 = vld [vmem:[#allocation2 + $0x110] sm:$0xff]
    %v122 = vld [vmem:[#allocation2 + $0x118] sm:$0xff]
    %v123 = vld [vmem:[#allocation2 + $0x120] sm:$0xff]
    %v124 = vld [vmem:[#allocation2 + $0x128] sm:$0xff]
    %v125 = vld [vmem:[#allocation2 + $0x130] sm:$0xff]
    %v126 = vld [vmem:[#allocation2 + $0x138] sm:$0xff]
    %v127 = vld [vmem:[#allocation2 + $0x140] sm:$0xff]
    %v128 = vld [vmem:[#allocation2 + $0x148] sm:$0xff]
    %v129 = vld [vmem:[#allocation2 + $0x150] sm:$0xff]
    %v130 = vld [vmem:[#allocation2 + $0x158] sm:$0xff]
    %v131 = vld [vmem:[#allocation2 + $0x160] sm:$0xff]
    %v132 = vld [vmem:[#allocation2 + $0x168] sm:$0xff]
    %v133 = vld [vmem:[#allocation2 + $0x170] sm:$0xff]
    %v134 = vld [vmem:[#allocation2 + $0x178] sm:$0xff]
    %v135 = vld [vmem:[#allocation2 + $0x180] sm:$0xff]
    %v136 = vld [vmem:[#allocation2 + $0x188] sm:$0xff]
    %v137 = vld [vmem:[#allocation2 + $0x190] sm:$0xff]
    %v138 = vld [vmem:[#allocation2 + $0x198] sm:$0xff]
    %v139 = vld [vmem:[#allocation2 + $0x1a0] sm:$0xff]
    %v140 = vld [vmem:[#allocation2 + $0x1a8] sm:$0xff]
    %v141 = vld [vmem:[#allocation2 + $0x1b0] sm:$0xff]
    %v142 = vld [vmem:[#allocation2 + $0x1b8] sm:$0xff]
    %v143 = vld [vmem:[#allocation2 + $0x1c0] sm:$0xff]
    %v144 = vld [vmem:[#allocation2 + $0x1c8] sm:$0xff]
    %v145 = vld [vmem:[#allocation2 + $0x1d0] sm:$0xff]
    %v146 = vld [vmem:[#allocation2 + $0x1d8] sm:$0xff]
    %v147 = vld [vmem:[#allocation2 + $0x1e0] sm:$0xff]
    %v148 = vld [vmem:[#allocation2 + $0x1e8] sm:$0xff]
    %v149 = vld [vmem:[#allocation2 + $0x1f0] sm:$0xff]
    %v150 = vld [vmem:[#allocation2 + $0x1f8] sm:$0xff]
    %v151 = vld [vmem:[#allocation2 + $0x200] sm:$0xff]
    %v152 = vld [vmem:[#allocation2 + $0x208] sm:$0xff]
    %v153 = vld [vmem:[#allocation2 + $0x210] sm:$0xff]
    %v154 = vld [vmem:[#allocation2 + $0x218] sm:$0xff]
    %v155 = vld [vmem:[#allocation2 + $0x220] sm:$0xff]
    %v156 = vld [vmem:[#allocation2 + $0x228] sm:$0xff]
    %v157 = vld [vmem:[#allocation2 + $0x230] sm:$0xff]
    %v158 = vld [vmem:[#allocation2 + $0x238] sm:$0xff]
    %v159 = vld [vmem:[#allocation2 + $0x240] sm:$0xff]
    %v160 = vld [vmem:[#allocation2 + $0x248] sm:$0xff]
    %v161 = vld [vmem:[#allocation2 + $0x250] sm:$0xff]
    %v162 = vld [vmem:[#allocation2 + $0x258] sm:$0xff]
    %v163 = vld [vmem:[#allocation2 + $0x260] sm:$0xff]
    %v164 = vld [vmem:[#allocation2 + $0x268] sm:$0xff]
    %v165 = vld [vmem:[#allocation2 + $0x270] sm:$0xff]
    %v166 = vld [vmem:[#allocation2 + $0x278] sm:$0xff]
    %v167 = vld [vmem:[#allocation2 + $0x280] sm:$0xff]
    %v168 = vld [vmem:[#allocation2 + $0x288] sm:$0xff]
    %v169 = vld [vmem:[#allocation2 + $0x290] sm:$0xff]
    %v170 = vld [vmem:[#allocation2 + $0x298] sm:$0xff]
    %v171 = vld [vmem:[#allocation2 + $0x2a0] sm:$0xff]
    %v172 = vld [vmem:[#allocation2 + $0x2a8] sm:$0xff]
    %v173 = vld [vmem:[#allocation2 + $0x2b0] sm:$0xff]
    %v174 = vld [vmem:[#allocation2 + $0x2b8] sm:$0xff]
    %v175 = vld [vmem:[#allocation2 + $0x2c0] sm:$0xff]
    %v176 = vld [vmem:[#allocation2 + $0x2c8] sm:$0xff]
    %v177 = vld [vmem:[#allocation2 + $0x2d0] sm:$0xff]
    %v178 = vld [vmem:[#allocation2 + $0x2d8] sm:$0xff]
    %v179 = vld [vmem:[#allocation2 + $0x2e0] sm:$0xff]
    %v180 = vld [vmem:[#allocation2 + $0x2e8] sm:$0xff]
    %v181 = vld [vmem:[#allocation2 + $0x2f0] sm:$0xff]
    %v182 = vld [vmem:[#allocation2 + $0x2f8] sm:$0xff]
    %v183 = vld [vmem:[#allocation2 + $0x300] sm:$0xff]
    %v184 = vld [vmem:[#allocation2 + $0x308] sm:$0xff]
    %v185 = vld [vmem:[#allocation2 + $0x310] sm:$0xff]
    %v186 = vld [vmem:[#allocation2 + $0x318] sm:$0xff]
    %v187 = vld [vmem:[#allocation2 + $0x320] sm:$0xff]
    %v188 = vld [vmem:[#allocation2 + $0x328] sm:$0xff]
    %v189 = vld [vmem:[#allocation2 + $0x330] sm:$0xff]
    %v190 = vld [vmem:[#allocation2 + $0x338] sm:$0xff]
    %v191 = vld [vmem:[#allocation2 + $0x340] sm:$0xff]
    %v192 = vld [vmem:[#allocation2 + $0x348] sm:$0xff]
    %v193 = vld [vmem:[#allocation2 + $0x350] sm:$0xff]
    %v194 = vld [vmem:[#allocation2 + $0x358] sm:$0xff]
    %v195 = vld [vmem:[#allocation2 + $0x360] sm:$0xff]
    %v196 = vld [vmem:[#allocation2 + $0x368] sm:$0xff]
    %v197 = vld [vmem:[#allocation2 + $0x370] sm:$0xff]
    %v198 = vld [vmem:[#allocation2 + $0x378] sm:$0xff]
    %v199 = vld [vmem:[#allocation2 + $0x380] sm:$0xff]
    %v200 = vld [vmem:[#allocation2 + $0x388] sm:$0xff]
    %v201 = vld [vmem:[#allocation2 + $0x390] sm:$0xff]
    %v202 = vld [vmem:[#allocation2 + $0x398] sm:$0xff]
    %v203 = vld [vmem:[#allocation2 + $0x3a0] sm:$0xff]
    %v204 = vld [vmem:[#allocation2 + $0x3a8] sm:$0xff]
    %v205 = vld [vmem:[#allocation2 + $0x3b0] sm:$0xff]
    %v206 = vld [vmem:[#allocation2 + $0x3b8] sm:$0xff]
    %v207 = vld [vmem:[#allocation2 + $0x3c0] sm:$0xff]
    %v208 = vld [vmem:[#allocation2 + $0x3c8] sm:$0xff]
    %v209 = vld [vmem:[#allocation2 + $0x3d0] sm:$0xff]
    %v210 = vld [vmem:[#allocation2 + $0x3d8] sm:$0xff]
    %v211 = vld [vmem:[#allocation2 + $0x3e0] sm:$0xff]
    %v212 = vld [vmem:[#allocation2 + $0x3e8] sm:$0xff]
    %v213 = vld [vmem:[#allocation2 + $0x3f0] sm:$0xff]
    %v214 = vld [vmem:[#allocation2 + $0x3f8] sm:$0xff]
    %v215 = vld [vmem:[#allocation2 + $0x400] sm:$0xff]
    %v216 = vld [vmem:[#allocation2 + $0x408] sm:$0xff]
    %v217 = vld [vmem:[#allocation2 + $0x410] sm:$0xff]
    %v218 = vld [vmem:[#allocation2 + $0x418] sm:$0xff]
    %v219 = vld [vmem:[#allocation2 + $0x420] sm:$0xff]
    %v220 = vld [vmem:[#allocation2 + $0x428] sm:$0xff]
    %v221 = vld [vmem:[#allocation2 + $0x430] sm:$0xff]
    %v222 = vld [vmem:[#allocation2 + $0x438] sm:$0xff]
    %v223 = vld [vmem:[#allocation2 + $0x440] sm:$0xff]
    %v224 = vld [vmem:[#allocation2 + $0x448] sm:$0xff]
    %v225 = vld [vmem:[#allocation2 + $0x450] sm:$0xff]
    %v226 = vld [vmem:[#allocation2 + $0x458] sm:$0xff]
    %v227 = vld [vmem:[#allocation2 + $0x460] sm:$0xff]
    %v228 = vld [vmem:[#allocation2 + $0x468] sm:$0xff]
    %v229 = vld [vmem:[#allocation2 + $0x470] sm:$0xff]
    %v230 = vld [vmem:[#allocation2 + $0x478] sm:$0xff]
    %v231 = vld [vmem:[#allocation2 + $0x480] sm:$0xff]
    %v232 = vld [vmem:[#allocation2 + $0x488] sm:$0xff]
    %v233 = vld [vmem:[#allocation2 + $0x490] sm:$0xff]
    %v234 = vld [vmem:[#allocation2 + $0x498] sm:$0xff]
    %v235 = vld [vmem:[#allocation2 + $0x4a0] sm:$0xff]
    %v236 = vld [vmem:[#allocation2 + $0x4a8] sm:$0xff]
    %v237 = vld [vmem:[#allocation2 + $0x4b0] sm:$0xff]
    %v238 = vld [vmem:[#allocation2 + $0x4b8] sm:$0xff]
    %v239 = vld [vmem:[#allocation2 + $0x4c0] sm:$0xff]
    %v240 = vld [vmem:[#allocation2 + $0x4c8] sm:$0xff]
    %v241 = vld [vmem:[#allocation2 + $0x4d0] sm:$0xff]
    %v242 = vld [vmem:[#allocation2 + $0x4d8] sm:$0xff]
    %v243 = vld [vmem:[#allocation2 + $0x4e0] sm:$0xff]
    %v244 = vld [vmem:[#allocation2 + $0x4e8] sm:$0xff]
    %v245 = vld [vmem:[#allocation2 + $0x4f0] sm:$0xff]
    %v246 = vld [vmem:[#allocation2 + $0x4f8] sm:$0xff]
    %v247 = vld [vmem:[#allocation2 + $0x500] sm:$0xff]
    %v248 = vld [vmem:[#allocation2 + $0x508] sm:$0xff]
    %v249 = vld [vmem:[#allocation2 + $0x510] sm:$0xff]
    %v250 = vld [vmem:[#allocation2 + $0x518] sm:$0xff]
    %v251 = vld [vmem:[#allocation2 + $0x520] sm:$0xff]
    %v252 = vld [vmem:[#allocation2 + $0x528] sm:$0xff]
    %v253 = vld [vmem:[#allocation2 + $0x530] sm:$0xff]
    %v254 = vld [vmem:[#allocation2 + $0x538] sm:$0xff]
    %v255 = vld [vmem:[#allocation2 + $0x540] sm:$0xff]
    %v256 = vld [vmem:[#allocation2 + $0x548] sm:$0xff]
    %v257 = vld [vmem:[#allocation2 + $0x550] sm:$0xff]
    %v258 = vld [vmem:[#allocation2 + $0x558] sm:$0xff]
    %v259 = vld [vmem:[#allocation2 + $0x560] sm:$0xff]
    %v260 = vld [vmem:[#allocation2 + $0x568] sm:$0xff]
    %v261 = vld [vmem:[#allocation2 + $0x570] sm:$0xff]
    %v262 = vld [vmem:[#allocation2 + $0x578] sm:$0xff]
    %v263 = vld [vmem:[#allocation2 + $0x580] sm:$0xff]
    %v264 = vld [vmem:[#allocation2 + $0x588] sm:$0xff]
    %v265 = vld [vmem:[#allocation2 + $0x590] sm:$0xff]
    %v266 = vld [vmem:[#allocation2 + $0x598] sm:$0xff]
    %v267 = vld [vmem:[#allocation2 + $0x5a0] sm:$0xff]
    %v268 = vld [vmem:[#allocation2 + $0x5a8] sm:$0xff]
    %v269 = vld [vmem:[#allocation2 + $0x5b0] sm:$0xff]
    %v270 = vld [vmem:[#allocation2 + $0x5b8] sm:$0xff]
    %v271 = vld [vmem:[#allocation2 + $0x5c0] sm:$0xff]
    %v272 = vld [vmem:[#allocation2 + $0x5c8] sm:$0xff]
    %v273 = vld [vmem:[#allocation2 + $0x5d0] sm:$0xff]
    %v274 = vld [vmem:[#allocation2 + $0x5d8] sm:$0xff]
    %v275 = vld [vmem:[#allocation2 + $0x5e0] sm:$0xff]
    %v276 = vld [vmem:[#allocation2 + $0x5e8] sm:$0xff]
    %v277 = vld [vmem:[#allocation2 + $0x5f0] sm:$0xff]
    %v278 = vld [vmem:[#allocation2 + $0x5f8] sm:$0xff]
    %v279 = vld [vmem:[#allocation2 + $0x600] sm:$0xff]
    %v280 = vld [vmem:[#allocation2 + $0x608] sm:$0xff]
    %v281 = vld [vmem:[#allocation2 + $0x610] sm:$0xff]
    %v282 = vld [vmem:[#allocation2 + $0x618] sm:$0xff]
    %v283 = vld [vmem:[#allocation2 + $0x620] sm:$0xff]
    %v284 = vld [vmem:[#allocation2 + $0x628] sm:$0xff]
    %v285 = vld [vmem:[#allocation2 + $0x630] sm:$0xff]
    %v286 = vld [vmem:[#allocation2 + $0x638] sm:$0xff]
    %v287 = vld [vmem:[#allocation2 + $0x640] sm:$0xff]
    %v288 = vld [vmem:[#allocation2 + $0x648] sm:$0xff]
    %v289 = vld [vmem:[#allocation2 + $0x650] sm:$0xff]
    %v290 = vld [vmem:[#allocation2 + $0x658] sm:$0xff]
    %v291 = vld [vmem:[#allocation2 + $0x660] sm:$0xff]
    %v292 = vld [vmem:[#allocation2 + $0x668] sm:$0xff]
    %v293 = vld [vmem:[#allocation2 + $0x670] sm:$0xff]
    %v294 = vld [vmem:[#allocation2 + $0x678] sm:$0xff]
    %v295 = vld [vmem:[#allocation2 + $0x680] sm:$0xff]
    %v296 = vld [vmem:[#allocation2 + $0x688] sm:$0xff]
    %v297 = vld [vmem:[#allocation2 + $0x690] sm:$0xff]
    %v298 = vld [vmem:[#allocation2 + $0x698] sm:$0xff]
    %v299 = vld [vmem:[#allocation2 + $0x6a0] sm:$0xff]
    %v300 = vld [vmem:[#allocation2 + $0x6a8] sm:$0xff]
    %v301 = vld [vmem:[#allocation2 + $0x6b0] sm:$0xff]
    %v302 = vld [vmem:[#allocation2 + $0x6b8] sm:$0xff]
    %v303 = vld [vmem:[#allocation2 + $0x6c0] sm:$0xff]
    %v304 = vld [vmem:[#allocation2 + $0x6c8] sm:$0xff]
    %v305 = vld [vmem:[#allocation2 + $0x6d0] sm:$0xff]
    %v306 = vld [vmem:[#allocation2 + $0x6d8] sm:$0xff]
    %v307 = vld [vmem:[#allocation2 + $0x6e0] sm:$0xff]
    %v308 = vld [vmem:[#allocation2 + $0x6e8] sm:$0xff]
    %v309 = vld [vmem:[#allocation2 + $0x6f0] sm:$0xff]
    %v310 = vld [vmem:[#allocation2 + $0x6f8] sm:$0xff]
    %v311 = vld [vmem:[#allocation2 + $0x700] sm:$0xff]
    %v312 = vld [vmem:[#allocation2 + $0x708] sm:$0xff]
    %v313 = vld [vmem:[#allocation2 + $0x710] sm:$0xff]
    %v314 = vld [vmem:[#allocation2 + $0x718] sm:$0xff]
    %v315 = vld [vmem:[#allocation2 + $0x720] sm:$0xff]
    %v316 = vld [vmem:[#allocation2 + $0x728] sm:$0xff]
    %v317 = vld [vmem:[#allocation2 + $0x730] sm:$0xff]
    %v318 = vld [vmem:[#allocation2 + $0x738] sm:$0xff]
    %v319 = vld [vmem:[#allocation2 + $0x740] sm:$0xff]
    %v320 = vld [vmem:[#allocation2 + $0x748] sm:$0xff]
    %v321 = vld [vmem:[#allocation2 + $0x750] sm:$0xff]
    %v322 = vld [vmem:[#allocation2 + $0x758] sm:$0xff]
    %v323 = vld [vmem:[#allocation2 + $0x760] sm:$0xff]
    %v324 = vld [vmem:[#allocation2 + $0x768] sm:$0xff]
    %v325 = vld [vmem:[#allocation2 + $0x770] sm:$0xff]
    %v326 = vld [vmem:[#allocation2 + $0x778] sm:$0xff]
    %v327 = vld [vmem:[#allocation2 + $0x780] sm:$0xff]
    %v328 = vld [vmem:[#allocation2 + $0x788] sm:$0xff]
    %v329 = vld [vmem:[#allocation2 + $0x790] sm:$0xff]
    %v330 = vld [vmem:[#allocation2 + $0x798] sm:$0xff]
    %v331 = vld [vmem:[#allocation2 + $0x7a0] sm:$0xff]
    %v332 = vld [vmem:[#allocation2 + $0x7a8] sm:$0xff]
    %v333 = vld [vmem:[#allocation2 + $0x7b0] sm:$0xff]
    %v334 = vld [vmem:[#allocation2 + $0x7b8] sm:$0xff]
    %v335 = vld [vmem:[#allocation2 + $0x7c0] sm:$0xff]
    %v336 = vld [vmem:[#allocation2 + $0x7c8] sm:$0xff]
    %v337 = vld [vmem:[#allocation2 + $0x7d0] sm:$0xff]
    %v338 = vld [vmem:[#allocation2 + $0x7d8] sm:$0xff]
    %v339 = vld [vmem:[#allocation2 + $0x7e0] sm:$0xff]
    %v340 = vld [vmem:[#allocation2 + $0x7e8] sm:$0xff]
    %v341 = vld [vmem:[#allocation2 + $0x7f0] sm:$0xff]
    %v342 = vld [vmem:[#allocation2 + $0x7f8] sm:$0xff]
    %v343 = vld [vmem:[#allocation2 + $0x800] sm:$0xff]
    %v344 = vld [vmem:[#allocation2 + $0x808] sm:$0xff]
    %v345 = vld [vmem:[#allocation2 + $0x810] sm:$0xff]
    %v346 = vld [vmem:[#allocation2 + $0x818] sm:$0xff]
    %v347 = vld [vmem:[#allocation2 + $0x820] sm:$0xff]
    %v348 = vld [vmem:[#allocation2 + $0x828] sm:$0xff]
    %v349 = vld [vmem:[#allocation2 + $0x830] sm:$0xff]
    %v350 = vld [vmem:[#allocation2 + $0x838] sm:$0xff]
    %v351 = vld [vmem:[#allocation2 + $0x840] sm:$0xff]
    %v352 = vld [vmem:[#allocation2 + $0x848] sm:$0xff]
    %v353 = vld [vmem:[#allocation2 + $0x850] sm:$0xff]
    %v354 = vld [vmem:[#allocation2 + $0x858] sm:$0xff]
    %v355 = vld [vmem:[#allocation2 + $0x860] sm:$0xff]
    %v356 = vld [vmem:[#allocation2 + $0x868] sm:$0xff]
    %v357 = vld [vmem:[#allocation2 + $0x870] sm:$0xff]
    %v358 = vld [vmem:[#allocation2 + $0x878] sm:$0xff]
    %v359 = vld [vmem:[#allocation2 + $0x880] sm:$0xff]
    %v360 = vld [vmem:[#allocation2 + $0x888] sm:$0xff]
    %v361 = vld [vmem:[#allocation2 + $0x890] sm:$0xff]
    %v362 = vld [vmem:[#allocation2 + $0x898] sm:$0xff]
    %v363 = vld [vmem:[#allocation2 + $0x8a0] sm:$0xff]
    %v364 = vld [vmem:[#allocation2 + $0x8a8] sm:$0xff]
    %v365 = vld [vmem:[#allocation2 + $0x8b0] sm:$0xff]
    %v366 = vld [vmem:[#allocation2 + $0x8b8] sm:$0xff]
    %v367 = vld [vmem:[#allocation2 + $0x8c0] sm:$0xff]
    %v368 = vld [vmem:[#allocation2 + $0x8c8] sm:$0xff]
    %v369 = vld [vmem:[#allocation2 + $0x8d0] sm:$0xff]
    %v370 = vld [vmem:[#allocation2 + $0x8d8] sm:$0xff]
    %v371 = vld [vmem:[#allocation2 + $0x8e0] sm:$0xff]
    %v372 = vld [vmem:[#allocation2 + $0x8e8] sm:$0xff]
    %v373 = vld [vmem:[#allocation2 + $0x8f0] sm:$0xff]
    %v374 = vld [vmem:[#allocation2 + $0x8f8] sm:$0xff]
    %v375 = vld [vmem:[#allocation2 + $0x900] sm:$0xff]
    %v376 = vld [vmem:[#allocation2 + $0x908] sm:$0xff]
    %v377 = vld [vmem:[#allocation2 + $0x910] sm:$0xff]
    %v378 = vld [vmem:[#allocation2 + $0x918] sm:$0xff]
    %v379 = vld [vmem:[#allocation2 + $0x920] sm:$0xff]
    %v380 = vld [vmem:[#allocation2 + $0x928] sm:$0xff]
    %v381 = vld [vmem:[#allocation2 + $0x930] sm:$0xff]
    %v382 = vld [vmem:[#allocation2 + $0x938] sm:$0xff]
    %v383 = vld [vmem:[#allocation2 + $0x940] sm:$0xff]
    %v384 = vld [vmem:[#allocation2 + $0x948] sm:$0xff]
    %v385 = vld [vmem:[#allocation2 + $0x950] sm:$0xff]
    %v386 = vld [vmem:[#allocation2 + $0x958] sm:$0xff]
    %v387 = vld [vmem:[#allocation2 + $0x960] sm:$0xff]
    %v388 = vld [vmem:[#allocation2 + $0x968] sm:$0xff]
    %v389 = vld [vmem:[#allocation2 + $0x970] sm:$0xff]
    %v390 = vld [vmem:[#allocation2 + $0x978] sm:$0xff]
    %v391 = vld [vmem:[#allocation2 + $0x980] sm:$0xff]
    %v392 = vld [vmem:[#allocation2 + $0x988] sm:$0xff]
    %v393 = vld [vmem:[#allocation2 + $0x990] sm:$0xff]
    %v394 = vld [vmem:[#allocation2 + $0x998] sm:$0xff]
    %v395 = vld [vmem:[#allocation2 + $0x9a0] sm:$0xff]
    %v396 = vld [vmem:[#allocation2 + $0x9a8] sm:$0xff]
    %v397 = vld [vmem:[#allocation2 + $0x9b0] sm:$0xff]
    %v398 = vld [vmem:[#allocation2 + $0x9b8] sm:$0xff]
    %v399 = vld [vmem:[#allocation2 + $0x9c0] sm:$0xff]
    %v400 = vld [vmem:[#allocation2 + $0x9c8] sm:$0xff]
    %v401 = vld [vmem:[#allocation2 + $0x9d0] sm:$0xff]
    %v402 = vld [vmem:[#allocation2 + $0x9d8] sm:$0xff]
    %v403 = vld [vmem:[#allocation2 + $0x9e0] sm:$0xff]
    %v404 = vld [vmem:[#allocation2 + $0x9e8] sm:$0xff]
    %v405 = vld [vmem:[#allocation2 + $0x9f0] sm:$0xff]
    %v406 = vld [vmem:[#allocation2 + $0x9f8] sm:$0xff]
    %v407 = vld [vmem:[#allocation2 + $0xa00] sm:$0xff]
    %v408 = vld [vmem:[#allocation2 + $0xa08] sm:$0xff]
    %v409 = vld [vmem:[#allocation2 + $0xa10] sm:$0xff]
    %v410 = vld [vmem:[#allocation2 + $0xa18] sm:$0xff]
    %v411 = vld [vmem:[#allocation2 + $0xa20] sm:$0xff]
    %v412 = vld [vmem:[#allocation2 + $0xa28] sm:$0xff]
    %v413 = vld [vmem:[#allocation2 + $0xa30] sm:$0xff]
    %v414 = vld [vmem:[#allocation2 + $0xa38] sm:$0xff]
    %v415 = vld [vmem:[#allocation2 + $0xa40] sm:$0xff]
    %v416 = vld [vmem:[#allocation2 + $0xa48] sm:$0xff]
    %v417 = vld [vmem:[#allocation2 + $0xa50] sm:$0xff]
    %v418 = vld [vmem:[#allocation2 + $0xa58] sm:$0xff]
    %v419 = vld [vmem:[#allocation2 + $0xa60] sm:$0xff]
    %v420 = vld [vmem:[#allocation2 + $0xa68] sm:$0xff]
    %v421 = vld [vmem:[#allocation2 + $0xa70] sm:$0xff]
    %v422 = vld [vmem:[#allocation2 + $0xa78] sm:$0xff]
    %v423 = vld [vmem:[#allocation2 + $0xa80] sm:$0xff]
    %v424 = vld [vmem:[#allocation2 + $0xa88] sm:$0xff]
    %v425 = vld [vmem:[#allocation2 + $0xa90] sm:$0xff]
    %v426 = vld [vmem:[#allocation2 + $0xa98] sm:$0xff]
    %v427 = vld [vmem:[#allocation2 + $0xaa0] sm:$0xff]
    %v428 = vld [vmem:[#allocation2 + $0xaa8] sm:$0xff]
    %v429 = vld [vmem:[#allocation2 + $0xab0] sm:$0xff]
    %v430 = vld [vmem:[#allocation2 + $0xab8] sm:$0xff]
    %v431 = vld [vmem:[#allocation2 + $0xac0] sm:$0xff]
    %v432 = vld [vmem:[#allocation2 + $0xac8] sm:$0xff]
    %v433 = vld [vmem:[#allocation2 + $0xad0] sm:$0xff]
    %v434 = vld [vmem:[#allocation2 + $0xad8] sm:$0xff]
    %v435 = vld [vmem:[#allocation2 + $0xae0] sm:$0xff]
    %v436 = vld [vmem:[#allocation2 + $0xae8] sm:$0xff]
    %v437 = vld [vmem:[#allocation2 + $0xaf0] sm:$0xff]
    %v438 = vld [vmem:[#allocation2 + $0xaf8] sm:$0xff]
    %v439 = vld [vmem:[#allocation2 + $0xb00] sm:$0xff]
    %v440 = vld [vmem:[#allocation2 + $0xb08] sm:$0xff]
    %v441 = vld [vmem:[#allocation2 + $0xb10] sm:$0xff]
    %v442 = vld [vmem:[#allocation2 + $0xb18] sm:$0xff]
    %v443 = vld [vmem:[#allocation2 + $0xb20] sm:$0xff]
    %v444 = vld [vmem:[#allocation2 + $0xb28] sm:$0xff]
    %v445 = vld [vmem:[#allocation2 + $0xb30] sm:$0xff]
    %v446 = vld [vmem:[#allocation2 + $0xb38] sm:$0xff]
    %v447 = vld [vmem:[#allocation2 + $0xb40] sm:$0xff]
    %v448 = vld [vmem:[#allocation2 + $0xb48] sm:$0xff]
    %v449 = vld [vmem:[#allocation2 + $0xb50] sm:$0xff]
    %v450 = vld [vmem:[#allocation2 + $0xb58] sm:$0xff]
    %v451 = vld [vmem:[#allocation2 + $0xb60] sm:$0xff]
    %v452 = vld [vmem:[#allocation2 + $0xb68] sm:$0xff]
    %v453 = vld [vmem:[#allocation2 + $0xb70] sm:$0xff]
    %v454 = vld [vmem:[#allocation2 + $0xb78] sm:$0xff]
    %v455 = vld [vmem:[#allocation2 + $0xb80] sm:$0xff]
    %v456 = vld [vmem:[#allocation2 + $0xb88] sm:$0xff]
    %v457 = vld [vmem:[#allocation2 + $0xb90] sm:$0xff]
    %v458 = vld [vmem:[#allocation2 + $0xb98] sm:$0xff]
    %v459 = vld [vmem:[#allocation2 + $0xba0] sm:$0xff]
    %v460 = vld [vmem:[#allocation2 + $0xba8] sm:$0xff]
    %v461 = vld [vmem:[#allocation2 + $0xbb0] sm:$0xff]
    %v462 = vld [vmem:[#allocation2 + $0xbb8] sm:$0xff]
    %v463 = vld [vmem:[#allocation2 + $0xbc0] sm:$0xff]
    %v464 = vld [vmem:[#allocation2 + $0xbc8] sm:$0xff]
    %v465 = vld [vmem:[#allocation2 + $0xbd0] sm:$0xff]
    %v466 = vld [vmem:[#allocation2 + $0xbd8] sm:$0xff]
    %v467 = vld [vmem:[#allocation2 + $0xbe0] sm:$0xff]
    %v468 = vld [vmem:[#allocation2 + $0xbe8] sm:$0xff]
    %v469 = vld [vmem:[#allocation2 + $0xbf0] sm:$0xff]
    %v470 = vld [vmem:[#allocation2 + $0xbf8] sm:$0xff]
    %v471 = vld [vmem:[#allocation2 + $0xc00] sm:$0xff]
    %v472 = vld [vmem:[#allocation2 + $0xc08] sm:$0xff]
    %v473 = vld [vmem:[#allocation2 + $0xc10] sm:$0xff]
    %v474 = vld [vmem:[#allocation2 + $0xc18] sm:$0xff]
    %v475 = vld [vmem:[#allocation2 + $0xc20] sm:$0xff]
    %v476 = vld [vmem:[#allocation2 + $0xc28] sm:$0xff]
    %v477 = vld [vmem:[#allocation2 + $0xc30] sm:$0xff]
    %v478 = vld [vmem:[#allocation2 + $0xc38] sm:$0xff]
    %v479 = vld [vmem:[#allocation2 + $0xc40] sm:$0xff]
    %v480 = vld [vmem:[#allocation2 + $0xc48] sm:$0xff]
    %v481 = vld [vmem:[#allocation2 + $0xc50] sm:$0xff]
    %v482 = vld [vmem:[#allocation2 + $0xc58] sm:$0xff]
    %v483 = vld [vmem:[#allocation2 + $0xc60] sm:$0xff]
    %v484 = vld [vmem:[#allocation2 + $0xc68] sm:$0xff]
    %v485 = vld [vmem:[#allocation2 + $0xc70] sm:$0xff]
    %v486 = vld [vmem:[#allocation2 + $0xc78] sm:$0xff]
    %v487 = vld [vmem:[#allocation2 + $0xc80] sm:$0xff]
    %v488 = vld [vmem:[#allocation2 + $0xc88] sm:$0xff]
    %v489 = vld [vmem:[#allocation2 + $0xc90] sm:$0xff]
    %v490 = vld [vmem:[#allocation2 + $0xc98] sm:$0xff]
    %v491 = vld [vmem:[#allocation2 + $0xca0] sm:$0xff]
    %v492 = vld [vmem:[#allocation2 + $0xca8] sm:$0xff]
    %v493 = vld [vmem:[#allocation2 + $0xcb0] sm:$0xff]
    %v494 = vld [vmem:[#allocation2 + $0xcb8] sm:$0xff]
    %v495 = vld [vmem:[#allocation2 + $0xcc0] sm:$0xff]
    %v496 = vld [vmem:[#allocation2 + $0xcc8] sm:$0xff]
    %v497 = vld [vmem:[#allocation2 + $0xcd0] sm:$0xff]
    %v498 = vld [vmem:[#allocation2 + $0xcd8] sm:$0xff]
    %v499 = vld [vmem:[#allocation2 + $0xce0] sm:$0xff]
    %v500 = vld [vmem:[#allocation2 + $0xce8] sm:$0xff]
    %v501 = vld [vmem:[#allocation2 + $0xcf0] sm:$0xff]
    %v502 = vld [vmem:[#allocation2 + $0xcf8] sm:$0xff]
    %v503 = vld [vmem:[#allocation2 + $0xd00] sm:$0xff]
    %v504 = vld [vmem:[#allocation2 + $0xd08] sm:$0xff]
    %v505 = vld [vmem:[#allocation2 + $0xd10] sm:$0xff]
    %v506 = vld [vmem:[#allocation2 + $0xd18] sm:$0xff]
    %v507 = vld [vmem:[#allocation2 + $0xd20] sm:$0xff]
    %v508 = vld [vmem:[#allocation2 + $0xd28] sm:$0xff]
    %v509 = vld [vmem:[#allocation2 + $0xd30] sm:$0xff]
    %v510 = vld [vmem:[#allocation2 + $0xd38] sm:$0xff]
    %v511 = vld [vmem:[#allocation2 + $0xd40] sm:$0xff]
    %v512 = vld [vmem:[#allocation2 + $0xd48] sm:$0xff]
    %v513 = vld [vmem:[#allocation2 + $0xd50] sm:$0xff]
    %v514 = vld [vmem:[#allocation2 + $0xd58] sm:$0xff]
    %v515 = vld [vmem:[#allocation2 + $0xd60] sm:$0xff]
    %v516 = vld [vmem:[#allocation2 + $0xd68] sm:$0xff]
    %v517 = vld [vmem:[#allocation2 + $0xd70] sm:$0xff]
    %v518 = vld [vmem:[#allocation2 + $0xd78] sm:$0xff]
    %v519 = vld [vmem:[#allocation2 + $0xd80] sm:$0xff]
    %v520 = vld [vmem:[#allocation2 + $0xd88] sm:$0xff]
    %v521 = vld [vmem:[#allocation2 + $0xd90] sm:$0xff]
    %v522 = vld [vmem:[#allocation2 + $0xd98] sm:$0xff]
    %v523 = vld [vmem:[#allocation2 + $0xda0] sm:$0xff]
    %v524 = vld [vmem:[#allocation2 + $0xda8] sm:$0xff]
    %v525 = vld [vmem:[#allocation2 + $0xdb0] sm:$0xff]
    %v526 = vld [vmem:[#allocation2 + $0xdb8] sm:$0xff]
    %v527 = vld [vmem:[#allocation2 + $0xdc0] sm:$0xff]
    %v528 = vld [vmem:[#allocation2 + $0xdc8] sm:$0xff]
    %v529 = vld [vmem:[#allocation2 + $0xdd0] sm:$0xff]
    %v530 = vld [vmem:[#allocation2 + $0xdd8] sm:$0xff]
    %v531 = vld [vmem:[#allocation2 + $0xde0] sm:$0xff]
    %v532 = vld [vmem:[#allocation2 + $0xde8] sm:$0xff]
    %v533 = vld [vmem:[#allocation2 + $0xdf0] sm:$0xff]
    %v534 = vld [vmem:[#allocation2 + $0xdf8] sm:$0xff]
    %v535 = vld [vmem:[#allocation2 + $0xe00] sm:$0xff]
    %v536 = vld [vmem:[#allocation2 + $0xe08] sm:$0xff]
    %v537 = vld [vmem:[#allocation2 + $0xe10] sm:$0xff]
    %v538 = vld [vmem:[#allocation2 + $0xe18] sm:$0xff]
    %v539 = vld [vmem:[#allocation2 + $0xe20] sm:$0xff]
    %v540 = vld [vmem:[#allocation2 + $0xe28] sm:$0xff]
    %v541 = vld [vmem:[#allocation2 + $0xe30] sm:$0xff]
    %v542 = vld [vmem:[#allocation2 + $0xe38] sm:$0xff]
    %v543 = vld [vmem:[#allocation2 + $0xe40] sm:$0xff]
    %v544 = vld [vmem:[#allocation2 + $0xe48] sm:$0xff]
    %v545 = vld [vmem:[#allocation2 + $0xe50] sm:$0xff]
    %v546 = vld [vmem:[#allocation2 + $0xe58] sm:$0xff]
    %v547 = vld [vmem:[#allocation2 + $0xe60] sm:$0xff]
    %v548 = vld [vmem:[#allocation2 + $0xe68] sm:$0xff]
    %v549 = vld [vmem:[#allocation2 + $0xe70] sm:$0xff]
    %v550 = vld [vmem:[#allocation2 + $0xe78] sm:$0xff]
    %v551 = vld [vmem:[#allocation2 + $0xe80] sm:$0xff]
    %v552 = vld [vmem:[#allocation2 + $0xe88] sm:$0xff]
    %v553 = vld [vmem:[#allocation2 + $0xe90] sm:$0xff]
    %v554 = vld [vmem:[#allocation2 + $0xe98] sm:$0xff]
    %v555 = vld [vmem:[#allocation2 + $0xea0] sm:$0xff]
    %v556 = vld [vmem:[#allocation2 + $0xea8] sm:$0xff]
    %v557 = vld [vmem:[#allocation2 + $0xeb0] sm:$0xff]
    %v558 = vld [vmem:[#allocation2 + $0xeb8] sm:$0xff]
    %v559 = vld [vmem:[#allocation2 + $0xec0] sm:$0xff]
    %v560 = vld [vmem:[#allocation2 + $0xec8] sm:$0xff]
    %v561 = vld [vmem:[#allocation2 + $0xed0] sm:$0xff]
    %v562 = vld [vmem:[#allocation2 + $0xed8] sm:$0xff]
    %v563 = vld [vmem:[#allocation2 + $0xee0] sm:$0xff]
    %v564 = vld [vmem:[#allocation2 + $0xee8] sm:$0xff]
    %v565 = vld [vmem:[#allocation2 + $0xef0] sm:$0xff]
    %v566 = vld [vmem:[#allocation2 + $0xef8] sm:$0xff]
    %v567 = vld [vmem:[#allocation2 + $0xf00] sm:$0xff]
    %v568 = vld [vmem:[#allocation2 + $0xf08] sm:$0xff]
    %v569 = vld [vmem:[#allocation2 + $0xf10] sm:$0xff]
    %v570 = vld [vmem:[#allocation2 + $0xf18] sm:$0xff]
    %v571 = vld [vmem:[#allocation2 + $0xf20] sm:$0xff]
    %v572 = vld [vmem:[#allocation2 + $0xf28] sm:$0xff]
    %v573 = vld [vmem:[#allocation2 + $0xf30] sm:$0xff]
    %v574 = vld [vmem:[#allocation2 + $0xf38] sm:$0xff]
    %v575 = vld [vmem:[#allocation2 + $0xf40] sm:$0xff]
    %v576 = vld [vmem:[#allocation2 + $0xf48] sm:$0xff]
    %v577 = vld [vmem:[#allocation2 + $0xf50] sm:$0xff]
    %v578 = vld [vmem:[#allocation2 + $0xf58] sm:$0xff]
    %v579 = vld [vmem:[#allocation2 + $0xf60] sm:$0xff]
    %v580 = vld [vmem:[#allocation2 + $0xf68] sm:$0xff]
    %v581 = vld [vmem:[#allocation2 + $0xf70] sm:$0xff]
    %v582 = vld [vmem:[#allocation2 + $0xf78] sm:$0xff]
    %v583 = vld [vmem:[#allocation2 + $0xf80] sm:$0xff]
    %v584 = vld [vmem:[#allocation2 + $0xf88] sm:$0xff]
    %v585 = vld [vmem:[#allocation2 + $0xf90] sm:$0xff]
    %v586 = vld [vmem:[#allocation2 + $0xf98] sm:$0xff]
    %v587 = vld [vmem:[#allocation2 + $0xfa0] sm:$0xff]
    %v588 = vld [vmem:[#allocation2 + $0xfa8] sm:$0xff]
    %v589 = vld [vmem:[#allocation2 + $0xfb0] sm:$0xff]
    %v590 = vld [vmem:[#allocation2 + $0xfb8] sm:$0xff]
    %v591 = vld [vmem:[#allocation2 + $0xfc0] sm:$0xff]
    %v592 = vld [vmem:[#allocation2 + $0xfc8] sm:$0xff]
    %v593 = vld [vmem:[#allocation2 + $0xfd0] sm:$0xff]
    %v594 = vld [vmem:[#allocation2 + $0xfd8] sm:$0xff]
    %v595 = vld [vmem:[#allocation2 + $0xfe0] sm:$0xff]
    %v596 = vld [vmem:[#allocation2 + $0xfe8] sm:$0xff]
    %v597 = vld [vmem:[#allocation2 + $0xff0] sm:$0xff]
    %v598 = vld [vmem:[#allocation2 + $0xff8] sm:$0xff]
    %v599 = vld [vmem:[#allocation2 + $0x1000] sm:$0xff]
    %v600 = vld [vmem:[#allocation2 + $0x1008] sm:$0xff]
    %v601 = vld [vmem:[#allocation2 + $0x1010] sm:$0xff]
    %v602 = vld [vmem:[#allocation2 + $0x1018] sm:$0xff]
    %v603 = vld [vmem:[#allocation2 + $0x1020] sm:$0xff]
    %v604 = vld [vmem:[#allocation2 + $0x1028] sm:$0xff]
    %v605 = vld [vmem:[#allocation2 + $0x1030] sm:$0xff]
    %v606 = vld [vmem:[#allocation2 + $0x1038] sm:$0xff]
    %v607 = vld [vmem:[#allocation2 + $0x1040] sm:$0xff]
    %v608 = vld [vmem:[#allocation2 + $0x1048] sm:$0xff]
    %v609 = vld [vmem:[#allocation2 + $0x1050] sm:$0xff]
    %v610 = vld [vmem:[#allocation2 + $0x1058] sm:$0xff]
    %v611 = vld [vmem:[#allocation2 + $0x1060] sm:$0xff]
    %v612 = vld [vmem:[#allocation2 + $0x1068] sm:$0xff]
    %v613 = vld [vmem:[#allocation2 + $0x1070] sm:$0xff]
    %v614 = vld [vmem:[#allocation2 + $0x1078] sm:$0xff]
    %v615 = vld [vmem:[#allocation2 + $0x1080] sm:$0xff]
    %v616 = vld [vmem:[#allocation2 + $0x1088] sm:$0xff]
    %v617 = vld [vmem:[#allocation2 + $0x1090] sm:$0xff]
    %v618 = vld [vmem:[#allocation2 + $0x1098] sm:$0xff]
    %v619 = vld [vmem:[#allocation2 + $0x10a0] sm:$0xff]
    %v620 = vld [vmem:[#allocation2 + $0x10a8] sm:$0xff]
    %v621 = vld [vmem:[#allocation2 + $0x10b0] sm:$0xff]
    %v622 = vld [vmem:[#allocation2 + $0x10b8] sm:$0xff]
    %v623 = vld [vmem:[#allocation2 + $0x10c0] sm:$0xff]
    %v624 = vld [vmem:[#allocation2 + $0x10c8] sm:$0xff]
    %v625 = vld [vmem:[#allocation2 + $0x10d0] sm:$0xff]
    %v626 = vld [vmem:[#allocation2 + $0x10d8] sm:$0xff]
    %v627 = vld [vmem:[#allocation2 + $0x10e0] sm:$0xff]
    %v628 = vld [vmem:[#allocation2 + $0x10e8] sm:$0xff]
    %v629 = vld [vmem:[#allocation2 + $0x10f0] sm:$0xff]
    %v630 = vld [vmem:[#allocation2 + $0x10f8] sm:$0xff]
    %v631 = vld [vmem:[#allocation2 + $0x1100] sm:$0xff]
    %v632 = vld [vmem:[#allocation2 + $0x1108] sm:$0xff]
    %v633 = vld [vmem:[#allocation2 + $0x1110] sm:$0xff]
    %v634 = vld [vmem:[#allocation2 + $0x1118] sm:$0xff]
    %v635 = vld [vmem:[#allocation2 + $0x1120] sm:$0xff]
    %v636 = vld [vmem:[#allocation2 + $0x1128] sm:$0xff]
    %v637 = vld [vmem:[#allocation2 + $0x1130] sm:$0xff]
    %v638 = vld [vmem:[#allocation2 + $0x1138] sm:$0xff]
    %v639 = vld [vmem:[#allocation2 + $0x1140] sm:$0xff]
    %v640 = vld [vmem:[#allocation2 + $0x1148] sm:$0xff]
    %v641 = vld [vmem:[#allocation2 + $0x1150] sm:$0xff]
    %v642 = vld [vmem:[#allocation2 + $0x1158] sm:$0xff]
    %v643 = vld [vmem:[#allocation2 + $0x1160] sm:$0xff]
    %v644 = vld [vmem:[#allocation2 + $0x1168] sm:$0xff]
    %v645 = vld [vmem:[#allocation2 + $0x1170] sm:$0xff]
    %v646 = vld [vmem:[#allocation2 + $0x1178] sm:$0xff]
    %v647 = vld [vmem:[#allocation4] sm:$0xff]
    %v648 = vld [vmem:[#allocation4 + $0x8] sm:$0x3]
    %v651 = vperm.slane %v647, 0
    %v652 = vperm.slane %v647, 1
    %v653 = vperm.slane %v647, 2
    %v654 = vperm.slane %v647, 3
    %v655 = vperm.slane %v647, 4
    %v656 = vperm.slane %v647, 5
    %v657 = vperm.slane %v647, 6
    %v658 = vperm.slane %v647, 7
    %v659 = vperm.slane %v648, 0
    %v660 = vperm.slane %v648, 1
    %v679 = vunpack.c.l.b16 %v79
    %v680 = vunpack.c.h.b16 %v79
    %v681 = vunpack.c.l.b16 %v80
    %v682 = vunpack.c.h.b16 %v80
    %v683 = vunpack.c.l.b16 %v81
    %v684 = vunpack.c.h.b16 %v81
    %v685 = vunpack.c.l.b16 %v82
    %v686 = vunpack.c.l.b16 %v83
    %v687 = vunpack.c.h.b16 %v83
    %v688 = vunpack.c.l.b16 %v84
    %v689 = vunpack.c.h.b16 %v84
    %v690 = vunpack.c.l.b16 %v85
    %v691 = vunpack.c.h.b16 %v85
    %v692 = vunpack.c.l.b16 %v86
    %v693 = vpack.c.b16 %v686, %v679
    %v694 = vpack.c.b16 %v687, %v680
    %v695 = vpack.c.b16 %v688, %v681
    %v696 = vpack.c.b16 %v689, %v682
    %v697 = vpack.c.b16 %v690, %v683
    %v698 = vpack.c.b16 %v691, %v684
    %v699 = vpack.c.b16 %v692, %v685
    %v1267 = vunpack.c.l.b16 %v87
    %v1268 = vunpack.c.h.b16 %v87
    %v1269 = vunpack.c.l.b16 %v88
    %v1270 = vunpack.c.h.b16 %v88
    %v1271 = vunpack.c.l.b16 %v89
    %v1272 = vunpack.c.h.b16 %v89
    %v1273 = vunpack.c.l.b16 %v90
    %v1274 = vunpack.c.h.b16 %v90
    %v1275 = vunpack.c.l.b16 %v91
    %v1276 = vunpack.c.h.b16 %v91
    %v1277 = vunpack.c.l.b16 %v92
    %v1278 = vunpack.c.h.b16 %v92
    %v1279 = vunpack.c.l.b16 %v93
    %v1280 = vunpack.c.h.b16 %v93
    %v1281 = vunpack.c.l.b16 %v94
    %v1282 = vunpack.c.h.b16 %v94
    %v1283 = vunpack.c.l.b16 %v95
    %v1284 = vunpack.c.h.b16 %v95
    %v1285 = vunpack.c.l.b16 %v96
    %v1286 = vunpack.c.h.b16 %v96
    %v1287 = vunpack.c.l.b16 %v97
    %v1288 = vunpack.c.h.b16 %v97
    %v1289 = vunpack.c.l.b16 %v98
    %v1290 = vunpack.c.h.b16 %v98
    %v1291 = vunpack.c.l.b16 %v99
    %v1292 = vunpack.c.h.b16 %v99
    %v1293 = vunpack.c.l.b16 %v100
    %v1294 = vunpack.c.h.b16 %v100
    %v1295 = vunpack.c.l.b16 %v101
    %v1296 = vunpack.c.h.b16 %v101
    %v1297 = vunpack.c.l.b16 %v102
    %v1298 = vunpack.c.h.b16 %v102
    %v1299 = vunpack.c.l.b16 %v103
    %v1300 = vunpack.c.h.b16 %v103
    %v1301 = vunpack.c.l.b16 %v104
    %v1302 = vunpack.c.h.b16 %v104
    %v1303 = vunpack.c.l.b16 %v105
    %v1304 = vunpack.c.h.b16 %v105
    %v1305 = vunpack.c.l.b16 %v106
    %v1306 = vunpack.c.h.b16 %v106
    %v1307 = vunpack.c.l.b16 %v107
    %v1308 = vunpack.c.h.b16 %v107
    %v1309 = vunpack.c.l.b16 %v108
    %v1310 = vunpack.c.h.b16 %v108
    %v1311 = vunpack.c.l.b16 %v109
    %v1312 = vunpack.c.h.b16 %v109
    %v1313 = vunpack.c.l.b16 %v110
    %v1314 = vunpack.c.h.b16 %v110
    %v1315 = vunpack.c.l.b16 %v111
    %v1316 = vunpack.c.h.b16 %v111
    %v1317 = vunpack.c.l.b16 %v112
    %v1318 = vunpack.c.h.b16 %v112
    %v1319 = vunpack.c.l.b16 %v113
    %v1320 = vunpack.c.h.b16 %v113
    %v1321 = vunpack.c.l.b16 %v114
    %v1322 = vunpack.c.h.b16 %v114
    %v1323 = vunpack.c.l.b16 %v115
    %v1324 = vunpack.c.h.b16 %v115
    %v1325 = vunpack.c.l.b16 %v116
    %v1326 = vunpack.c.h.b16 %v116
    %v1327 = vunpack.c.l.b16 %v117
    %v1328 = vunpack.c.h.b16 %v117
    %v1329 = vunpack.c.l.b16 %v118
    %v1330 = vunpack.c.h.b16 %v118
    %v1331 = vunpack.c.l.b16 %v119
    %v1332 = vunpack.c.h.b16 %v119
    %v1333 = vunpack.c.l.b16 %v120
    %v1334 = vunpack.c.h.b16 %v120
    %v1335 = vunpack.c.l.b16 %v121
    %v1336 = vunpack.c.h.b16 %v121
    %v1337 = vunpack.c.l.b16 %v122
    %v1338 = vunpack.c.h.b16 %v122
    %v1339 = vunpack.c.l.b16 %v123
    %v1340 = vunpack.c.h.b16 %v123
    %v1341 = vunpack.c.l.b16 %v124
    %v1342 = vunpack.c.h.b16 %v124
    %v1343 = vunpack.c.l.b16 %v125
    %v1344 = vunpack.c.h.b16 %v125
    %v1345 = vunpack.c.l.b16 %v126
    %v1346 = vunpack.c.h.b16 %v126
    %v1347 = vunpack.c.l.b16 %v127
    %v1348 = vunpack.c.h.b16 %v127
    %v1349 = vunpack.c.l.b16 %v128
    %v1350 = vunpack.c.h.b16 %v128
    %v1351 = vunpack.c.l.b16 %v129
    %v1352 = vunpack.c.h.b16 %v129
    %v1353 = vunpack.c.l.b16 %v130
    %v1354 = vunpack.c.h.b16 %v130
    %v1355 = vunpack.c.l.b16 %v131
    %v1356 = vunpack.c.h.b16 %v131
    %v1357 = vunpack.c.l.b16 %v132
    %v1358 = vunpack.c.h.b16 %v132
    %v1359 = vunpack.c.l.b16 %v133
    %v1360 = vunpack.c.h.b16 %v133
    %v1361 = vunpack.c.l.b16 %v134
    %v1362 = vunpack.c.h.b16 %v134
    %v1363 = vunpack.c.l.b16 %v135
    %v1364 = vunpack.c.h.b16 %v135
    %v1365 = vunpack.c.l.b16 %v136
    %v1366 = vunpack.c.h.b16 %v136
    %v1367 = vunpack.c.l.b16 %v137
    %v1368 = vunpack.c.h.b16 %v137
    %v1369 = vunpack.c.l.b16 %v138
    %v1370 = vunpack.c.h.b16 %v138
    %v1371 = vunpack.c.l.b16 %v139
    %v1372 = vunpack.c.h.b16 %v139
    %v1373 = vunpack.c.l.b16 %v140
    %v1374 = vunpack.c.h.b16 %v140
    %v1375 = vunpack.c.l.b16 %v141
    %v1376 = vunpack.c.h.b16 %v141
    %v1377 = vunpack.c.l.b16 %v142
    %v1378 = vunpack.c.h.b16 %v142
    %v1379 = vunpack.c.l.b16 %v143
    %v1380 = vunpack.c.h.b16 %v143
    %v1381 = vunpack.c.l.b16 %v144
    %v1382 = vunpack.c.h.b16 %v144
    %v1383 = vunpack.c.l.b16 %v145
    %v1384 = vunpack.c.h.b16 %v145
    %v1385 = vunpack.c.l.b16 %v146
    %v1386 = vunpack.c.h.b16 %v146
    %v1387 = vunpack.c.l.b16 %v147
    %v1388 = vunpack.c.h.b16 %v147
    %v1389 = vunpack.c.l.b16 %v148
    %v1390 = vunpack.c.h.b16 %v148
    %v1391 = vunpack.c.l.b16 %v149
    %v1392 = vunpack.c.h.b16 %v149
    %v1393 = vunpack.c.l.b16 %v150
    %v1394 = vunpack.c.h.b16 %v150
    %v1395 = vunpack.c.l.b16 %v151
    %v1396 = vunpack.c.h.b16 %v151
    %v1397 = vunpack.c.l.b16 %v152
    %v1398 = vunpack.c.h.b16 %v152
    %v1399 = vunpack.c.l.b16 %v153
    %v1400 = vunpack.c.h.b16 %v153
    %v1401 = vunpack.c.l.b16 %v154
    %v1402 = vunpack.c.h.b16 %v154
    %v1403 = vunpack.c.l.b16 %v155
    %v1404 = vunpack.c.h.b16 %v155
    %v1405 = vunpack.c.l.b16 %v156
    %v1406 = vunpack.c.h.b16 %v156
    %v1407 = vunpack.c.l.b16 %v157
    %v1408 = vunpack.c.h.b16 %v157
    %v1409 = vunpack.c.l.b16 %v158
    %v1410 = vunpack.c.h.b16 %v158
    %v1411 = vunpack.c.l.b16 %v159
    %v1412 = vunpack.c.h.b16 %v159
    %v1413 = vunpack.c.l.b16 %v160
    %v1414 = vunpack.c.h.b16 %v160
    %v1415 = vunpack.c.l.b16 %v161
    %v1416 = vunpack.c.h.b16 %v161
    %v1417 = vunpack.c.l.b16 %v162
    %v1418 = vunpack.c.h.b16 %v162
    %v1419 = vunpack.c.l.b16 %v163
    %v1420 = vunpack.c.h.b16 %v163
    %v1421 = vunpack.c.l.b16 %v164
    %v1422 = vunpack.c.h.b16 %v164
    %v1423 = vunpack.c.l.b16 %v165
    %v1424 = vunpack.c.h.b16 %v165
    %v1425 = vunpack.c.l.b16 %v166
    %v1426 = vunpack.c.h.b16 %v166
    %v1427 = vunpack.c.l.b16 %v167
    %v1428 = vunpack.c.h.b16 %v167
    %v1429 = vunpack.c.l.b16 %v168
    %v1430 = vunpack.c.h.b16 %v168
    %v1431 = vunpack.c.l.b16 %v169
    %v1432 = vunpack.c.h.b16 %v169
    %v1433 = vunpack.c.l.b16 %v170
    %v1434 = vunpack.c.h.b16 %v170
    %v1435 = vunpack.c.l.b16 %v171
    %v1436 = vunpack.c.h.b16 %v171
    %v1437 = vunpack.c.l.b16 %v172
    %v1438 = vunpack.c.h.b16 %v172
    %v1439 = vunpack.c.l.b16 %v173
    %v1440 = vunpack.c.h.b16 %v173
    %v1441 = vunpack.c.l.b16 %v174
    %v1442 = vunpack.c.h.b16 %v174
    %v1443 = vunpack.c.l.b16 %v175
    %v1444 = vunpack.c.h.b16 %v175
    %v1445 = vunpack.c.l.b16 %v176
    %v1446 = vunpack.c.h.b16 %v176
    %v1447 = vunpack.c.l.b16 %v177
    %v1448 = vunpack.c.h.b16 %v177
    %v1449 = vunpack.c.l.b16 %v178
    %v1450 = vunpack.c.h.b16 %v178
    %v1451 = vunpack.c.l.b16 %v179
    %v1452 = vunpack.c.h.b16 %v179
    %v1453 = vunpack.c.l.b16 %v180
    %v1454 = vunpack.c.h.b16 %v180
    %v1455 = vunpack.c.l.b16 %v181
    %v1456 = vunpack.c.h.b16 %v181
    %v1457 = vunpack.c.l.b16 %v182
    %v1458 = vunpack.c.h.b16 %v182
    %v1459 = vunpack.c.l.b16 %v183
    %v1460 = vunpack.c.h.b16 %v183
    %v1461 = vunpack.c.l.b16 %v184
    %v1462 = vunpack.c.h.b16 %v184
    %v1463 = vunpack.c.l.b16 %v185
    %v1464 = vunpack.c.h.b16 %v185
    %v1465 = vunpack.c.l.b16 %v186
    %v1466 = vunpack.c.h.b16 %v186
    %v1467 = vunpack.c.l.b16 %v187
    %v1468 = vunpack.c.h.b16 %v187
    %v1469 = vunpack.c.l.b16 %v188
    %v1470 = vunpack.c.h.b16 %v188
    %v1471 = vunpack.c.l.b16 %v189
    %v1472 = vunpack.c.h.b16 %v189
    %v1473 = vunpack.c.l.b16 %v190
    %v1474 = vunpack.c.h.b16 %v190
    %v1475 = vunpack.c.l.b16 %v191
    %v1476 = vunpack.c.h.b16 %v191
    %v1477 = vunpack.c.l.b16 %v192
    %v1478 = vunpack.c.h.b16 %v192
    %v1479 = vunpack.c.l.b16 %v193
    %v1480 = vunpack.c.h.b16 %v193
    %v1481 = vunpack.c.l.b16 %v194
    %v1482 = vunpack.c.h.b16 %v194
    %v1483 = vunpack.c.l.b16 %v195
    %v1484 = vunpack.c.h.b16 %v195
    %v1485 = vunpack.c.l.b16 %v196
    %v1486 = vunpack.c.h.b16 %v196
    %v1487 = vunpack.c.l.b16 %v197
    %v1488 = vunpack.c.h.b16 %v197
    %v1489 = vunpack.c.l.b16 %v198
    %v1490 = vunpack.c.h.b16 %v198
    %v1491 = vunpack.c.l.b16 %v199
    %v1492 = vunpack.c.h.b16 %v199
    %v1493 = vunpack.c.l.b16 %v200
    %v1494 = vunpack.c.h.b16 %v200
    %v1495 = vunpack.c.l.b16 %v201
    %v1496 = vunpack.c.h.b16 %v201
    %v1497 = vunpack.c.l.b16 %v202
    %v1498 = vunpack.c.h.b16 %v202
    %v1499 = vunpack.c.l.b16 %v203
    %v1500 = vunpack.c.h.b16 %v203
    %v1501 = vunpack.c.l.b16 %v204
    %v1502 = vunpack.c.h.b16 %v204
    %v1503 = vunpack.c.l.b16 %v205
    %v1504 = vunpack.c.h.b16 %v205
    %v1505 = vunpack.c.l.b16 %v206
    %v1506 = vunpack.c.h.b16 %v206
    %v1507 = vunpack.c.l.b16 %v207
    %v1508 = vunpack.c.h.b16 %v207
    %v1509 = vunpack.c.l.b16 %v208
    %v1510 = vunpack.c.h.b16 %v208
    %v1511 = vunpack.c.l.b16 %v209
    %v1512 = vunpack.c.h.b16 %v209
    %v1513 = vunpack.c.l.b16 %v210
    %v1514 = vunpack.c.h.b16 %v210
    %v1515 = vunpack.c.l.b16 %v211
    %v1516 = vunpack.c.h.b16 %v211
    %v1517 = vunpack.c.l.b16 %v212
    %v1518 = vunpack.c.h.b16 %v212
    %v1519 = vunpack.c.l.b16 %v213
    %v1520 = vunpack.c.h.b16 %v213
    %v1521 = vunpack.c.l.b16 %v214
    %v1522 = vunpack.c.h.b16 %v214
    %v1523 = vunpack.c.l.b16 %v215
    %v1524 = vunpack.c.h.b16 %v215
    %v1525 = vunpack.c.l.b16 %v216
    %v1526 = vunpack.c.h.b16 %v216
    %v1527 = vunpack.c.l.b16 %v217
    %v1528 = vunpack.c.h.b16 %v217
    %v1529 = vunpack.c.l.b16 %v218
    %v1530 = vunpack.c.h.b16 %v218
    %v1531 = vunpack.c.l.b16 %v219
    %v1532 = vunpack.c.h.b16 %v219
    %v1533 = vunpack.c.l.b16 %v220
    %v1534 = vunpack.c.h.b16 %v220
    %v1535 = vunpack.c.l.b16 %v221
    %v1536 = vunpack.c.h.b16 %v221
    %v1537 = vunpack.c.l.b16 %v222
    %v1538 = vunpack.c.h.b16 %v222
    %v1539 = vunpack.c.l.b16 %v223
    %v1540 = vunpack.c.h.b16 %v223
    %v1541 = vunpack.c.l.b16 %v224
    %v1542 = vunpack.c.h.b16 %v224
    %v1543 = vunpack.c.l.b16 %v225
    %v1544 = vunpack.c.h.b16 %v225
    %v1545 = vunpack.c.l.b16 %v226
    %v1546 = vunpack.c.h.b16 %v226
    %v1547 = vunpack.c.l.b16 %v227
    %v1548 = vunpack.c.h.b16 %v227
    %v1549 = vunpack.c.l.b16 %v228
    %v1550 = vunpack.c.h.b16 %v228
    %v1551 = vunpack.c.l.b16 %v229
    %v1552 = vunpack.c.h.b16 %v229
    %v1553 = vunpack.c.l.b16 %v230
    %v1554 = vunpack.c.h.b16 %v230
    %v1555 = vunpack.c.l.b16 %v231
    %v1556 = vunpack.c.h.b16 %v231
    %v1557 = vunpack.c.l.b16 %v232
    %v1558 = vunpack.c.h.b16 %v232
    %v1559 = vunpack.c.l.b16 %v233
    %v1560 = vunpack.c.h.b16 %v233
    %v1561 = vunpack.c.l.b16 %v234
    %v1562 = vunpack.c.h.b16 %v234
    %v1563 = vunpack.c.l.b16 %v235
    %v1564 = vunpack.c.h.b16 %v235
    %v1565 = vunpack.c.l.b16 %v236
    %v1566 = vunpack.c.h.b16 %v236
    %v1567 = vunpack.c.l.b16 %v237
    %v1568 = vunpack.c.h.b16 %v237
    %v1569 = vunpack.c.l.b16 %v238
    %v1570 = vunpack.c.h.b16 %v238
    %v1571 = vunpack.c.l.b16 %v239
    %v1572 = vunpack.c.h.b16 %v239
    %v1573 = vunpack.c.l.b16 %v240
    %v1574 = vunpack.c.h.b16 %v240
    %v1575 = vunpack.c.l.b16 %v241
    %v1576 = vunpack.c.h.b16 %v241
    %v1577 = vunpack.c.l.b16 %v242
    %v1578 = vunpack.c.h.b16 %v242
    %v1579 = vunpack.c.l.b16 %v243
    %v1580 = vunpack.c.h.b16 %v243
    %v1581 = vunpack.c.l.b16 %v244
    %v1582 = vunpack.c.h.b16 %v244
    %v1583 = vunpack.c.l.b16 %v245
    %v1584 = vunpack.c.h.b16 %v245
    %v1585 = vunpack.c.l.b16 %v246
    %v1586 = vunpack.c.h.b16 %v246
    %v1587 = vunpack.c.l.b16 %v247
    %v1588 = vunpack.c.h.b16 %v247
    %v1589 = vunpack.c.l.b16 %v248
    %v1590 = vunpack.c.h.b16 %v248
    %v1591 = vunpack.c.l.b16 %v249
    %v1592 = vunpack.c.h.b16 %v249
    %v1593 = vunpack.c.l.b16 %v250
    %v1594 = vunpack.c.h.b16 %v250
    %v1595 = vunpack.c.l.b16 %v251
    %v1596 = vunpack.c.h.b16 %v251
    %v1597 = vunpack.c.l.b16 %v252
    %v1598 = vunpack.c.h.b16 %v252
    %v1599 = vunpack.c.l.b16 %v253
    %v1600 = vunpack.c.h.b16 %v253
    %v1601 = vunpack.c.l.b16 %v254
    %v1602 = vunpack.c.h.b16 %v254
    %v1603 = vunpack.c.l.b16 %v255
    %v1604 = vunpack.c.h.b16 %v255
    %v1605 = vunpack.c.l.b16 %v256
    %v1606 = vunpack.c.h.b16 %v256
    %v1607 = vunpack.c.l.b16 %v257
    %v1608 = vunpack.c.h.b16 %v257
    %v1609 = vunpack.c.l.b16 %v258
    %v1610 = vunpack.c.h.b16 %v258
    %v1611 = vunpack.c.l.b16 %v259
    %v1612 = vunpack.c.h.b16 %v259
    %v1613 = vunpack.c.l.b16 %v260
    %v1614 = vunpack.c.h.b16 %v260
    %v1615 = vunpack.c.l.b16 %v261
    %v1616 = vunpack.c.h.b16 %v261
    %v1617 = vunpack.c.l.b16 %v262
    %v1618 = vunpack.c.h.b16 %v262
    %v1619 = vunpack.c.l.b16 %v263
    %v1620 = vunpack.c.h.b16 %v263
    %v1621 = vunpack.c.l.b16 %v264
    %v1622 = vunpack.c.h.b16 %v264
    %v1623 = vunpack.c.l.b16 %v265
    %v1624 = vunpack.c.h.b16 %v265
    %v1625 = vunpack.c.l.b16 %v266
    %v1626 = vunpack.c.h.b16 %v266
    %v1627 = vunpack.c.l.b16 %v267
    %v1628 = vunpack.c.h.b16 %v267
    %v1629 = vunpack.c.l.b16 %v268
    %v1630 = vunpack.c.h.b16 %v268
    %v1631 = vunpack.c.l.b16 %v269
    %v1632 = vunpack.c.h.b16 %v269
    %v1633 = vunpack.c.l.b16 %v270
    %v1634 = vunpack.c.h.b16 %v270
    %v1635 = vunpack.c.l.b16 %v271
    %v1636 = vunpack.c.h.b16 %v271
    %v1637 = vunpack.c.l.b16 %v272
    %v1638 = vunpack.c.h.b16 %v272
    %v1639 = vunpack.c.l.b16 %v273
    %v1640 = vunpack.c.h.b16 %v273
    %v1641 = vunpack.c.l.b16 %v274
    %v1642 = vunpack.c.h.b16 %v274
    %v1643 = vunpack.c.l.b16 %v275
    %v1644 = vunpack.c.h.b16 %v275
    %v1645 = vunpack.c.l.b16 %v276
    %v1646 = vunpack.c.h.b16 %v276
    %v1647 = vunpack.c.l.b16 %v277
    %v1648 = vunpack.c.h.b16 %v277
    %v1649 = vunpack.c.l.b16 %v278
    %v1650 = vunpack.c.h.b16 %v278
    %v1651 = vunpack.c.l.b16 %v279
    %v1652 = vunpack.c.h.b16 %v279
    %v1653 = vunpack.c.l.b16 %v280
    %v1654 = vunpack.c.h.b16 %v280
    %v1655 = vunpack.c.l.b16 %v281
    %v1656 = vunpack.c.h.b16 %v281
    %v1657 = vunpack.c.l.b16 %v282
    %v1658 = vunpack.c.h.b16 %v282
    %v1659 = vunpack.c.l.b16 %v283
    %v1660 = vunpack.c.h.b16 %v283
    %v1661 = vunpack.c.l.b16 %v284
    %v1662 = vunpack.c.h.b16 %v284
    %v1663 = vunpack.c.l.b16 %v285
    %v1664 = vunpack.c.h.b16 %v285
    %v1665 = vunpack.c.l.b16 %v286
    %v1666 = vunpack.c.h.b16 %v286
    %v1667 = vunpack.c.l.b16 %v287
    %v1668 = vunpack.c.h.b16 %v287
    %v1669 = vunpack.c.l.b16 %v288
    %v1670 = vunpack.c.h.b16 %v288
    %v1671 = vunpack.c.l.b16 %v289
    %v1672 = vunpack.c.h.b16 %v289
    %v1673 = vunpack.c.l.b16 %v290
    %v1674 = vunpack.c.h.b16 %v290
    %v1675 = vunpack.c.l.b16 %v291
    %v1676 = vunpack.c.h.b16 %v291
    %v1677 = vunpack.c.l.b16 %v292
    %v1678 = vunpack.c.h.b16 %v292
    %v1679 = vunpack.c.l.b16 %v293
    %v1680 = vunpack.c.h.b16 %v293
    %v1681 = vunpack.c.l.b16 %v294
    %v1682 = vunpack.c.h.b16 %v294
    %v1683 = vunpack.c.l.b16 %v295
    %v1684 = vunpack.c.h.b16 %v295
    %v1685 = vunpack.c.l.b16 %v296
    %v1686 = vunpack.c.h.b16 %v296
    %v1687 = vunpack.c.l.b16 %v297
    %v1688 = vunpack.c.h.b16 %v297
    %v1689 = vunpack.c.l.b16 %v298
    %v1690 = vunpack.c.h.b16 %v298
    %v1691 = vunpack.c.l.b16 %v299
    %v1692 = vunpack.c.h.b16 %v299
    %v1693 = vunpack.c.l.b16 %v300
    %v1694 = vunpack.c.h.b16 %v300
    %v1695 = vunpack.c.l.b16 %v301
    %v1696 = vunpack.c.h.b16 %v301
    %v1697 = vunpack.c.l.b16 %v302
    %v1698 = vunpack.c.h.b16 %v302
    %v1699 = vunpack.c.l.b16 %v303
    %v1700 = vunpack.c.h.b16 %v303
    %v1701 = vunpack.c.l.b16 %v304
    %v1702 = vunpack.c.h.b16 %v304
    %v1703 = vunpack.c.l.b16 %v305
    %v1704 = vunpack.c.h.b16 %v305
    %v1705 = vunpack.c.l.b16 %v306
    %v1706 = vunpack.c.h.b16 %v306
    %v1707 = vunpack.c.l.b16 %v307
    %v1708 = vunpack.c.h.b16 %v307
    %v1709 = vunpack.c.l.b16 %v308
    %v1710 = vunpack.c.h.b16 %v308
    %v1711 = vunpack.c.l.b16 %v309
    %v1712 = vunpack.c.h.b16 %v309
    %v1713 = vunpack.c.l.b16 %v310
    %v1714 = vunpack.c.h.b16 %v310
    %v1715 = vunpack.c.l.b16 %v311
    %v1716 = vunpack.c.h.b16 %v311
    %v1717 = vunpack.c.l.b16 %v312
    %v1718 = vunpack.c.h.b16 %v312
    %v1719 = vunpack.c.l.b16 %v313
    %v1720 = vunpack.c.h.b16 %v313
    %v1721 = vunpack.c.l.b16 %v314
    %v1722 = vunpack.c.h.b16 %v314
    %v1723 = vunpack.c.l.b16 %v315
    %v1724 = vunpack.c.h.b16 %v315
    %v1725 = vunpack.c.l.b16 %v316
    %v1726 = vunpack.c.h.b16 %v316
    %v1727 = vunpack.c.l.b16 %v317
    %v1728 = vunpack.c.h.b16 %v317
    %v1729 = vunpack.c.l.b16 %v318
    %v1730 = vunpack.c.h.b16 %v318
    %v1731 = vunpack.c.l.b16 %v319
    %v1732 = vunpack.c.h.b16 %v319
    %v1733 = vunpack.c.l.b16 %v320
    %v1734 = vunpack.c.h.b16 %v320
    %v1735 = vunpack.c.l.b16 %v321
    %v1736 = vunpack.c.h.b16 %v321
    %v1737 = vunpack.c.l.b16 %v322
    %v1738 = vunpack.c.h.b16 %v322
    %v1739 = vunpack.c.l.b16 %v323
    %v1740 = vunpack.c.h.b16 %v323
    %v1741 = vunpack.c.l.b16 %v324
    %v1742 = vunpack.c.h.b16 %v324
    %v1743 = vunpack.c.l.b16 %v325
    %v1744 = vunpack.c.h.b16 %v325
    %v1745 = vunpack.c.l.b16 %v326
    %v1746 = vunpack.c.h.b16 %v326
    %v1747 = vunpack.c.l.b16 %v327
    %v1748 = vunpack.c.h.b16 %v327
    %v1749 = vunpack.c.l.b16 %v328
    %v1750 = vunpack.c.h.b16 %v328
    %v1751 = vunpack.c.l.b16 %v329
    %v1752 = vunpack.c.h.b16 %v329
    %v1753 = vunpack.c.l.b16 %v330
    %v1754 = vunpack.c.h.b16 %v330
    %v1755 = vunpack.c.l.b16 %v331
    %v1756 = vunpack.c.h.b16 %v331
    %v1757 = vunpack.c.l.b16 %v332
    %v1758 = vunpack.c.h.b16 %v332
    %v1759 = vunpack.c.l.b16 %v333
    %v1760 = vunpack.c.h.b16 %v333
    %v1761 = vunpack.c.l.b16 %v334
    %v1762 = vunpack.c.h.b16 %v334
    %v1763 = vunpack.c.l.b16 %v335
    %v1764 = vunpack.c.h.b16 %v335
    %v1765 = vunpack.c.l.b16 %v336
    %v1766 = vunpack.c.h.b16 %v336
    %v1767 = vunpack.c.l.b16 %v337
    %v1768 = vunpack.c.h.b16 %v337
    %v1769 = vunpack.c.l.b16 %v338
    %v1770 = vunpack.c.h.b16 %v338
    %v1771 = vunpack.c.l.b16 %v339
    %v1772 = vunpack.c.h.b16 %v339
    %v1773 = vunpack.c.l.b16 %v340
    %v1774 = vunpack.c.h.b16 %v340
    %v1775 = vunpack.c.l.b16 %v341
    %v1776 = vunpack.c.h.b16 %v341
    %v1777 = vunpack.c.l.b16 %v342
    %v1778 = vunpack.c.h.b16 %v342
    %v1779 = vunpack.c.l.b16 %v343
    %v1780 = vunpack.c.h.b16 %v343
    %v1781 = vunpack.c.l.b16 %v344
    %v1782 = vunpack.c.h.b16 %v344
    %v1783 = vunpack.c.l.b16 %v345
    %v1784 = vunpack.c.h.b16 %v345
    %v1785 = vunpack.c.l.b16 %v346
    %v1786 = vunpack.c.h.b16 %v346
    %v1787 = vunpack.c.l.b16 %v347
    %v1788 = vunpack.c.h.b16 %v347
    %v1789 = vunpack.c.l.b16 %v348
    %v1790 = vunpack.c.h.b16 %v348
    %v1791 = vunpack.c.l.b16 %v349
    %v1792 = vunpack.c.h.b16 %v349
    %v1793 = vunpack.c.l.b16 %v350
    %v1794 = vunpack.c.h.b16 %v350
    %v1795 = vunpack.c.l.b16 %v351
    %v1796 = vunpack.c.h.b16 %v351
    %v1797 = vunpack.c.l.b16 %v352
    %v1798 = vunpack.c.h.b16 %v352
    %v1799 = vunpack.c.l.b16 %v353
    %v1800 = vunpack.c.h.b16 %v353
    %v1801 = vunpack.c.l.b16 %v354
    %v1802 = vunpack.c.h.b16 %v354
    %v1803 = vunpack.c.l.b16 %v355
    %v1804 = vunpack.c.h.b16 %v355
    %v1805 = vunpack.c.l.b16 %v356
    %v1806 = vunpack.c.h.b16 %v356
    %v1807 = vunpack.c.l.b16 %v357
    %v1808 = vunpack.c.h.b16 %v357
    %v1809 = vunpack.c.l.b16 %v358
    %v1810 = vunpack.c.h.b16 %v358
    %v1811 = vunpack.c.l.b16 %v359
    %v1812 = vunpack.c.h.b16 %v359
    %v1813 = vunpack.c.l.b16 %v360
    %v1814 = vunpack.c.h.b16 %v360
    %v1815 = vunpack.c.l.b16 %v361
    %v1816 = vunpack.c.h.b16 %v361
    %v1817 = vunpack.c.l.b16 %v362
    %v1818 = vunpack.c.h.b16 %v362
    %v1819 = vunpack.c.l.b16 %v363
    %v1820 = vunpack.c.h.b16 %v363
    %v1821 = vunpack.c.l.b16 %v364
    %v1822 = vunpack.c.h.b16 %v364
    %v1823 = vunpack.c.l.b16 %v365
    %v1824 = vunpack.c.h.b16 %v365
    %v1825 = vunpack.c.l.b16 %v366
    %v1826 = vunpack.c.h.b16 %v366
    %v1827 = vunpack.c.l.b16 %v367
    %v1828 = vunpack.c.h.b16 %v367
    %v1829 = vunpack.c.l.b16 %v368
    %v1830 = vunpack.c.h.b16 %v368
    %v1831 = vunpack.c.l.b16 %v369
    %v1832 = vunpack.c.h.b16 %v369
    %v1833 = vunpack.c.l.b16 %v370
    %v1834 = vunpack.c.h.b16 %v370
    %v1835 = vunpack.c.l.b16 %v371
    %v1836 = vunpack.c.h.b16 %v371
    %v1837 = vunpack.c.l.b16 %v372
    %v1838 = vunpack.c.h.b16 %v372
    %v1839 = vunpack.c.l.b16 %v373
    %v1840 = vunpack.c.h.b16 %v373
    %v1841 = vunpack.c.l.b16 %v374
    %v1842 = vunpack.c.h.b16 %v374
    %v1843 = vunpack.c.l.b16 %v375
    %v1844 = vunpack.c.h.b16 %v375
    %v1845 = vunpack.c.l.b16 %v376
    %v1846 = vunpack.c.h.b16 %v376
    %v1847 = vunpack.c.l.b16 %v377
    %v1848 = vunpack.c.h.b16 %v377
    %v1849 = vunpack.c.l.b16 %v378
    %v1850 = vunpack.c.h.b16 %v378
    %v1851 = vunpack.c.l.b16 %v379
    %v1852 = vunpack.c.h.b16 %v379
    %v1853 = vunpack.c.l.b16 %v380
    %v1854 = vunpack.c.h.b16 %v380
    %v1855 = vunpack.c.l.b16 %v381
    %v1856 = vunpack.c.h.b16 %v381
    %v1857 = vunpack.c.l.b16 %v382
    %v1858 = vunpack.c.h.b16 %v382
    %v1859 = vunpack.c.l.b16 %v383
    %v1860 = vunpack.c.h.b16 %v383
    %v1861 = vunpack.c.l.b16 %v384
    %v1862 = vunpack.c.h.b16 %v384
    %v1863 = vunpack.c.l.b16 %v385
    %v1864 = vunpack.c.h.b16 %v385
    %v1865 = vunpack.c.l.b16 %v386
    %v1866 = vunpack.c.h.b16 %v386
    %v1867 = vunpack.c.l.b16 %v387
    %v1868 = vunpack.c.h.b16 %v387
    %v1869 = vunpack.c.l.b16 %v388
    %v1870 = vunpack.c.h.b16 %v388
    %v1871 = vunpack.c.l.b16 %v389
    %v1872 = vunpack.c.h.b16 %v389
    %v1873 = vunpack.c.l.b16 %v390
    %v1874 = vunpack.c.h.b16 %v390
    %v1875 = vunpack.c.l.b16 %v391
    %v1876 = vunpack.c.h.b16 %v391
    %v1877 = vunpack.c.l.b16 %v392
    %v1878 = vunpack.c.h.b16 %v392
    %v1879 = vunpack.c.l.b16 %v393
    %v1880 = vunpack.c.h.b16 %v393
    %v1881 = vunpack.c.l.b16 %v394
    %v1882 = vunpack.c.h.b16 %v394
    %v1883 = vunpack.c.l.b16 %v395
    %v1884 = vunpack.c.h.b16 %v395
    %v1885 = vunpack.c.l.b16 %v396
    %v1886 = vunpack.c.h.b16 %v396
    %v1887 = vunpack.c.l.b16 %v397
    %v1888 = vunpack.c.h.b16 %v397
    %v1889 = vunpack.c.l.b16 %v398
    %v1890 = vunpack.c.h.b16 %v398
    %v1891 = vunpack.c.l.b16 %v399
    %v1892 = vunpack.c.h.b16 %v399
    %v1893 = vunpack.c.l.b16 %v400
    %v1894 = vunpack.c.h.b16 %v400
    %v1895 = vunpack.c.l.b16 %v401
    %v1896 = vunpack.c.h.b16 %v401
    %v1897 = vunpack.c.l.b16 %v402
    %v1898 = vunpack.c.h.b16 %v402
    %v1899 = vunpack.c.l.b16 %v403
    %v1900 = vunpack.c.h.b16 %v403
    %v1901 = vunpack.c.l.b16 %v404
    %v1902 = vunpack.c.h.b16 %v404
    %v1903 = vunpack.c.l.b16 %v405
    %v1904 = vunpack.c.h.b16 %v405
    %v1905 = vunpack.c.l.b16 %v406
    %v1906 = vunpack.c.h.b16 %v406
    %v1907 = vunpack.c.l.b16 %v407
    %v1908 = vunpack.c.h.b16 %v407
    %v1909 = vunpack.c.l.b16 %v408
    %v1910 = vunpack.c.h.b16 %v408
    %v1911 = vunpack.c.l.b16 %v409
    %v1912 = vunpack.c.h.b16 %v409
    %v1913 = vunpack.c.l.b16 %v410
    %v1914 = vunpack.c.h.b16 %v410
    %v1915 = vunpack.c.l.b16 %v411
    %v1916 = vunpack.c.h.b16 %v411
    %v1917 = vunpack.c.l.b16 %v412
    %v1918 = vunpack.c.h.b16 %v412
    %v1919 = vunpack.c.l.b16 %v413
    %v1920 = vunpack.c.h.b16 %v413
    %v1921 = vunpack.c.l.b16 %v414
    %v1922 = vunpack.c.h.b16 %v414
    %v1923 = vunpack.c.l.b16 %v415
    %v1924 = vunpack.c.h.b16 %v415
    %v1925 = vunpack.c.l.b16 %v416
    %v1926 = vunpack.c.h.b16 %v416
    %v1927 = vunpack.c.l.b16 %v417
    %v1928 = vunpack.c.h.b16 %v417
    %v1929 = vunpack.c.l.b16 %v418
    %v1930 = vunpack.c.h.b16 %v418
    %v1931 = vunpack.c.l.b16 %v419
    %v1932 = vunpack.c.h.b16 %v419
    %v1933 = vunpack.c.l.b16 %v420
    %v1934 = vunpack.c.h.b16 %v420
    %v1935 = vunpack.c.l.b16 %v421
    %v1936 = vunpack.c.h.b16 %v421
    %v1937 = vunpack.c.l.b16 %v422
    %v1938 = vunpack.c.h.b16 %v422
    %v1939 = vunpack.c.l.b16 %v423
    %v1940 = vunpack.c.h.b16 %v423
    %v1941 = vunpack.c.l.b16 %v424
    %v1942 = vunpack.c.h.b16 %v424
    %v1943 = vunpack.c.l.b16 %v425
    %v1944 = vunpack.c.h.b16 %v425
    %v1945 = vunpack.c.l.b16 %v426
    %v1946 = vunpack.c.h.b16 %v426
    %v1947 = vunpack.c.l.b16 %v427
    %v1948 = vunpack.c.h.b16 %v427
    %v1949 = vunpack.c.l.b16 %v428
    %v1950 = vunpack.c.h.b16 %v428
    %v1951 = vunpack.c.l.b16 %v429
    %v1952 = vunpack.c.h.b16 %v429
    %v1953 = vunpack.c.l.b16 %v430
    %v1954 = vunpack.c.h.b16 %v430
    %v1955 = vunpack.c.l.b16 %v431
    %v1956 = vunpack.c.h.b16 %v431
    %v1957 = vunpack.c.l.b16 %v432
    %v1958 = vunpack.c.h.b16 %v432
    %v1959 = vunpack.c.l.b16 %v433
    %v1960 = vunpack.c.h.b16 %v433
    %v1961 = vunpack.c.l.b16 %v434
    %v1962 = vunpack.c.h.b16 %v434
    %v1963 = vunpack.c.l.b16 %v435
    %v1964 = vunpack.c.h.b16 %v435
    %v1965 = vunpack.c.l.b16 %v436
    %v1966 = vunpack.c.h.b16 %v436
    %v1967 = vunpack.c.l.b16 %v437
    %v1968 = vunpack.c.h.b16 %v437
    %v1969 = vunpack.c.l.b16 %v438
    %v1970 = vunpack.c.h.b16 %v438
    %v1971 = vunpack.c.l.b16 %v439
    %v1972 = vunpack.c.h.b16 %v439
    %v1973 = vunpack.c.l.b16 %v440
    %v1974 = vunpack.c.h.b16 %v440
    %v1975 = vunpack.c.l.b16 %v441
    %v1976 = vunpack.c.h.b16 %v441
    %v1977 = vunpack.c.l.b16 %v442
    %v1978 = vunpack.c.h.b16 %v442
    %v1979 = vunpack.c.l.b16 %v443
    %v1980 = vunpack.c.h.b16 %v443
    %v1981 = vunpack.c.l.b16 %v444
    %v1982 = vunpack.c.h.b16 %v444
    %v1983 = vunpack.c.l.b16 %v445
    %v1984 = vunpack.c.h.b16 %v445
    %v1985 = vunpack.c.l.b16 %v446
    %v1986 = vunpack.c.h.b16 %v446
    %v1987 = vunpack.c.l.b16 %v447
    %v1988 = vunpack.c.h.b16 %v447
    %v1989 = vunpack.c.l.b16 %v448
    %v1990 = vunpack.c.h.b16 %v448
    %v1991 = vunpack.c.l.b16 %v449
    %v1992 = vunpack.c.h.b16 %v449
    %v1993 = vunpack.c.l.b16 %v450
    %v1994 = vunpack.c.h.b16 %v450
    %v1995 = vunpack.c.l.b16 %v451
    %v1996 = vunpack.c.h.b16 %v451
    %v1997 = vunpack.c.l.b16 %v452
    %v1998 = vunpack.c.h.b16 %v452
    %v1999 = vunpack.c.l.b16 %v453
    %v2000 = vunpack.c.h.b16 %v453
    %v2001 = vunpack.c.l.b16 %v454
    %v2002 = vunpack.c.h.b16 %v454
    %v2003 = vunpack.c.l.b16 %v455
    %v2004 = vunpack.c.h.b16 %v455
    %v2005 = vunpack.c.l.b16 %v456
    %v2006 = vunpack.c.h.b16 %v456
    %v2007 = vunpack.c.l.b16 %v457
    %v2008 = vunpack.c.h.b16 %v457
    %v2009 = vunpack.c.l.b16 %v458
    %v2010 = vunpack.c.h.b16 %v458
    %v2011 = vunpack.c.l.b16 %v459
    %v2012 = vunpack.c.h.b16 %v459
    %v2013 = vunpack.c.l.b16 %v460
    %v2014 = vunpack.c.h.b16 %v460
    %v2015 = vunpack.c.l.b16 %v461
    %v2016 = vunpack.c.h.b16 %v461
    %v2017 = vunpack.c.l.b16 %v462
    %v2018 = vunpack.c.h.b16 %v462
    %v2019 = vunpack.c.l.b16 %v463
    %v2020 = vunpack.c.h.b16 %v463
    %v2021 = vunpack.c.l.b16 %v464
    %v2022 = vunpack.c.h.b16 %v464
    %v2023 = vunpack.c.l.b16 %v465
    %v2024 = vunpack.c.h.b16 %v465
    %v2025 = vunpack.c.l.b16 %v466
    %v2026 = vunpack.c.h.b16 %v466
    %v2027 = vunpack.c.l.b16 %v467
    %v2028 = vunpack.c.h.b16 %v467
    %v2029 = vunpack.c.l.b16 %v468
    %v2030 = vunpack.c.h.b16 %v468
    %v2031 = vunpack.c.l.b16 %v469
    %v2032 = vunpack.c.h.b16 %v469
    %v2033 = vunpack.c.l.b16 %v470
    %v2034 = vunpack.c.h.b16 %v470
    %v2035 = vunpack.c.l.b16 %v471
    %v2036 = vunpack.c.h.b16 %v471
    %v2037 = vunpack.c.l.b16 %v472
    %v2038 = vunpack.c.h.b16 %v472
    %v2039 = vunpack.c.l.b16 %v473
    %v2040 = vunpack.c.h.b16 %v473
    %v2041 = vunpack.c.l.b16 %v474
    %v2042 = vunpack.c.h.b16 %v474
    %v2043 = vunpack.c.l.b16 %v475
    %v2044 = vunpack.c.h.b16 %v475
    %v2045 = vunpack.c.l.b16 %v476
    %v2046 = vunpack.c.h.b16 %v476
    %v2047 = vunpack.c.l.b16 %v477
    %v2048 = vunpack.c.h.b16 %v477
    %v2049 = vunpack.c.l.b16 %v478
    %v2050 = vunpack.c.h.b16 %v478
    %v2051 = vunpack.c.l.b16 %v479
    %v2052 = vunpack.c.h.b16 %v479
    %v2053 = vunpack.c.l.b16 %v480
    %v2054 = vunpack.c.h.b16 %v480
    %v2055 = vunpack.c.l.b16 %v481
    %v2056 = vunpack.c.h.b16 %v481
    %v2057 = vunpack.c.l.b16 %v482
    %v2058 = vunpack.c.h.b16 %v482
    %v2059 = vunpack.c.l.b16 %v483
    %v2060 = vunpack.c.h.b16 %v483
    %v2061 = vunpack.c.l.b16 %v484
    %v2062 = vunpack.c.h.b16 %v484
    %v2063 = vunpack.c.l.b16 %v485
    %v2064 = vunpack.c.h.b16 %v485
    %v2065 = vunpack.c.l.b16 %v486
    %v2066 = vunpack.c.h.b16 %v486
    %v2067 = vunpack.c.l.b16 %v487
    %v2068 = vunpack.c.h.b16 %v487
    %v2069 = vunpack.c.l.b16 %v488
    %v2070 = vunpack.c.h.b16 %v488
    %v2071 = vunpack.c.l.b16 %v489
    %v2072 = vunpack.c.h.b16 %v489
    %v2073 = vunpack.c.l.b16 %v490
    %v2074 = vunpack.c.h.b16 %v490
    %v2075 = vunpack.c.l.b16 %v491
    %v2076 = vunpack.c.h.b16 %v491
    %v2077 = vunpack.c.l.b16 %v492
    %v2078 = vunpack.c.h.b16 %v492
    %v2079 = vunpack.c.l.b16 %v493
    %v2080 = vunpack.c.h.b16 %v493
    %v2081 = vunpack.c.l.b16 %v494
    %v2082 = vunpack.c.h.b16 %v494
    %v2083 = vunpack.c.l.b16 %v495
    %v2084 = vunpack.c.h.b16 %v495
    %v2085 = vunpack.c.l.b16 %v496
    %v2086 = vunpack.c.h.b16 %v496
    %v2087 = vunpack.c.l.b16 %v497
    %v2088 = vunpack.c.h.b16 %v497
    %v2089 = vunpack.c.l.b16 %v498
    %v2090 = vunpack.c.h.b16 %v498
    %v2091 = vunpack.c.l.b16 %v499
    %v2092 = vunpack.c.h.b16 %v499
    %v2093 = vunpack.c.l.b16 %v500
    %v2094 = vunpack.c.h.b16 %v500
    %v2095 = vunpack.c.l.b16 %v501
    %v2096 = vunpack.c.h.b16 %v501
    %v2097 = vunpack.c.l.b16 %v502
    %v2098 = vunpack.c.h.b16 %v502
    %v2099 = vunpack.c.l.b16 %v503
    %v2100 = vunpack.c.h.b16 %v503
    %v2101 = vunpack.c.l.b16 %v504
    %v2102 = vunpack.c.h.b16 %v504
    %v2103 = vunpack.c.l.b16 %v505
    %v2104 = vunpack.c.h.b16 %v505
    %v2105 = vunpack.c.l.b16 %v506
    %v2106 = vunpack.c.h.b16 %v506
    %v2107 = vunpack.c.l.b16 %v507
    %v2108 = vunpack.c.h.b16 %v507
    %v2109 = vunpack.c.l.b16 %v508
    %v2110 = vunpack.c.h.b16 %v508
    %v2111 = vunpack.c.l.b16 %v509
    %v2112 = vunpack.c.h.b16 %v509
    %v2113 = vunpack.c.l.b16 %v510
    %v2114 = vunpack.c.h.b16 %v510
    %v2115 = vunpack.c.l.b16 %v511
    %v2116 = vunpack.c.h.b16 %v511
    %v2117 = vunpack.c.l.b16 %v512
    %v2118 = vunpack.c.h.b16 %v512
    %v2119 = vunpack.c.l.b16 %v513
    %v2120 = vunpack.c.h.b16 %v513
    %v2121 = vunpack.c.l.b16 %v514
    %v2122 = vunpack.c.h.b16 %v514
    %v2123 = vunpack.c.l.b16 %v515
    %v2124 = vunpack.c.h.b16 %v515
    %v2125 = vunpack.c.l.b16 %v516
    %v2126 = vunpack.c.h.b16 %v516
    %v2127 = vunpack.c.l.b16 %v517
    %v2128 = vunpack.c.h.b16 %v517
    %v2129 = vunpack.c.l.b16 %v518
    %v2130 = vunpack.c.h.b16 %v518
    %v2131 = vunpack.c.l.b16 %v519
    %v2132 = vunpack.c.h.b16 %v519
    %v2133 = vunpack.c.l.b16 %v520
    %v2134 = vunpack.c.h.b16 %v520
    %v2135 = vunpack.c.l.b16 %v521
    %v2136 = vunpack.c.h.b16 %v521
    %v2137 = vunpack.c.l.b16 %v522
    %v2138 = vunpack.c.h.b16 %v522
    %v2139 = vunpack.c.l.b16 %v523
    %v2140 = vunpack.c.h.b16 %v523
    %v2141 = vunpack.c.l.b16 %v524
    %v2142 = vunpack.c.h.b16 %v524
    %v2143 = vunpack.c.l.b16 %v525
    %v2144 = vunpack.c.h.b16 %v525
    %v2145 = vunpack.c.l.b16 %v526
    %v2146 = vunpack.c.h.b16 %v526
    %v2147 = vunpack.c.l.b16 %v527
    %v2148 = vunpack.c.h.b16 %v527
    %v2149 = vunpack.c.l.b16 %v528
    %v2150 = vunpack.c.h.b16 %v528
    %v2151 = vunpack.c.l.b16 %v529
    %v2152 = vunpack.c.h.b16 %v529
    %v2153 = vunpack.c.l.b16 %v530
    %v2154 = vunpack.c.h.b16 %v530
    %v2155 = vunpack.c.l.b16 %v531
    %v2156 = vunpack.c.h.b16 %v531
    %v2157 = vunpack.c.l.b16 %v532
    %v2158 = vunpack.c.h.b16 %v532
    %v2159 = vunpack.c.l.b16 %v533
    %v2160 = vunpack.c.h.b16 %v533
    %v2161 = vunpack.c.l.b16 %v534
    %v2162 = vunpack.c.h.b16 %v534
    %v2163 = vunpack.c.l.b16 %v535
    %v2164 = vunpack.c.h.b16 %v535
    %v2165 = vunpack.c.l.b16 %v536
    %v2166 = vunpack.c.h.b16 %v536
    %v2167 = vunpack.c.l.b16 %v537
    %v2168 = vunpack.c.h.b16 %v537
    %v2169 = vunpack.c.l.b16 %v538
    %v2170 = vunpack.c.h.b16 %v538
    %v2171 = vunpack.c.l.b16 %v539
    %v2172 = vunpack.c.h.b16 %v539
    %v2173 = vunpack.c.l.b16 %v540
    %v2174 = vunpack.c.h.b16 %v540
    %v2175 = vunpack.c.l.b16 %v541
    %v2176 = vunpack.c.h.b16 %v541
    %v2177 = vunpack.c.l.b16 %v542
    %v2178 = vunpack.c.h.b16 %v542
    %v2179 = vunpack.c.l.b16 %v543
    %v2180 = vunpack.c.h.b16 %v543
    %v2181 = vunpack.c.l.b16 %v544
    %v2182 = vunpack.c.h.b16 %v544
    %v2183 = vunpack.c.l.b16 %v545
    %v2184 = vunpack.c.h.b16 %v545
    %v2185 = vunpack.c.l.b16 %v546
    %v2186 = vunpack.c.h.b16 %v546
    %v2187 = vunpack.c.l.b16 %v547
    %v2188 = vunpack.c.h.b16 %v547
    %v2189 = vunpack.c.l.b16 %v548
    %v2190 = vunpack.c.h.b16 %v548
    %v2191 = vunpack.c.l.b16 %v549
    %v2192 = vunpack.c.h.b16 %v549
    %v2193 = vunpack.c.l.b16 %v550
    %v2194 = vunpack.c.h.b16 %v550
    %v2195 = vunpack.c.l.b16 %v551
    %v2196 = vunpack.c.h.b16 %v551
    %v2197 = vunpack.c.l.b16 %v552
    %v2198 = vunpack.c.h.b16 %v552
    %v2199 = vunpack.c.l.b16 %v553
    %v2200 = vunpack.c.h.b16 %v553
    %v2201 = vunpack.c.l.b16 %v554
    %v2202 = vunpack.c.h.b16 %v554
    %v2203 = vunpack.c.l.b16 %v555
    %v2204 = vunpack.c.h.b16 %v555
    %v2205 = vunpack.c.l.b16 %v556
    %v2206 = vunpack.c.h.b16 %v556
    %v2207 = vunpack.c.l.b16 %v557
    %v2208 = vunpack.c.h.b16 %v557
    %v2209 = vunpack.c.l.b16 %v558
    %v2210 = vunpack.c.h.b16 %v558
    %v2211 = vunpack.c.l.b16 %v559
    %v2212 = vunpack.c.h.b16 %v559
    %v2213 = vunpack.c.l.b16 %v560
    %v2214 = vunpack.c.h.b16 %v560
    %v2215 = vunpack.c.l.b16 %v561
    %v2216 = vunpack.c.h.b16 %v561
    %v2217 = vunpack.c.l.b16 %v562
    %v2218 = vunpack.c.h.b16 %v562
    %v2219 = vunpack.c.l.b16 %v563
    %v2220 = vunpack.c.h.b16 %v563
    %v2221 = vunpack.c.l.b16 %v564
    %v2222 = vunpack.c.h.b16 %v564
    %v2223 = vunpack.c.l.b16 %v565
    %v2224 = vunpack.c.h.b16 %v565
    %v2225 = vunpack.c.l.b16 %v566
    %v2226 = vunpack.c.h.b16 %v566
    %v2227 = vunpack.c.l.b16 %v567
    %v2228 = vunpack.c.h.b16 %v567
    %v2229 = vunpack.c.l.b16 %v568
    %v2230 = vunpack.c.h.b16 %v568
    %v2231 = vunpack.c.l.b16 %v569
    %v2232 = vunpack.c.h.b16 %v569
    %v2233 = vunpack.c.l.b16 %v570
    %v2234 = vunpack.c.h.b16 %v570
    %v2235 = vunpack.c.l.b16 %v571
    %v2236 = vunpack.c.h.b16 %v571
    %v2237 = vunpack.c.l.b16 %v572
    %v2238 = vunpack.c.h.b16 %v572
    %v2239 = vunpack.c.l.b16 %v573
    %v2240 = vunpack.c.h.b16 %v573
    %v2241 = vunpack.c.l.b16 %v574
    %v2242 = vunpack.c.h.b16 %v574
    %v2243 = vunpack.c.l.b16 %v575
    %v2244 = vunpack.c.h.b16 %v575
    %v2245 = vunpack.c.l.b16 %v576
    %v2246 = vunpack.c.h.b16 %v576
    %v2247 = vunpack.c.l.b16 %v577
    %v2248 = vunpack.c.h.b16 %v577
    %v2249 = vunpack.c.l.b16 %v578
    %v2250 = vunpack.c.h.b16 %v578
    %v2251 = vunpack.c.l.b16 %v579
    %v2252 = vunpack.c.h.b16 %v579
    %v2253 = vunpack.c.l.b16 %v580
    %v2254 = vunpack.c.h.b16 %v580
    %v2255 = vunpack.c.l.b16 %v581
    %v2256 = vunpack.c.h.b16 %v581
    %v2257 = vunpack.c.l.b16 %v582
    %v2258 = vunpack.c.h.b16 %v582
    %v2259 = vunpack.c.l.b16 %v583
    %v2260 = vunpack.c.h.b16 %v583
    %v2261 = vunpack.c.l.b16 %v584
    %v2262 = vunpack.c.h.b16 %v584
    %v2263 = vunpack.c.l.b16 %v585
    %v2264 = vunpack.c.h.b16 %v585
    %v2265 = vunpack.c.l.b16 %v586
    %v2266 = vunpack.c.h.b16 %v586
    %v2267 = vunpack.c.l.b16 %v587
    %v2268 = vunpack.c.h.b16 %v587
    %v2269 = vunpack.c.l.b16 %v588
    %v2270 = vunpack.c.h.b16 %v588
    %v2271 = vunpack.c.l.b16 %v589
    %v2272 = vunpack.c.h.b16 %v589
    %v2273 = vunpack.c.l.b16 %v590
    %v2274 = vunpack.c.h.b16 %v590
    %v2275 = vunpack.c.l.b16 %v591
    %v2276 = vunpack.c.h.b16 %v591
    %v2277 = vunpack.c.l.b16 %v592
    %v2278 = vunpack.c.h.b16 %v592
    %v2279 = vunpack.c.l.b16 %v593
    %v2280 = vunpack.c.h.b16 %v593
    %v2281 = vunpack.c.l.b16 %v594
    %v2282 = vunpack.c.h.b16 %v594
    %v2283 = vunpack.c.l.b16 %v595
    %v2284 = vunpack.c.h.b16 %v595
    %v2285 = vunpack.c.l.b16 %v596
    %v2286 = vunpack.c.h.b16 %v596
    %v2287 = vunpack.c.l.b16 %v597
    %v2288 = vunpack.c.h.b16 %v597
    %v2289 = vunpack.c.l.b16 %v598
    %v2290 = vunpack.c.h.b16 %v598
    %v2291 = vunpack.c.l.b16 %v599
    %v2292 = vunpack.c.h.b16 %v599
    %v2293 = vunpack.c.l.b16 %v600
    %v2294 = vunpack.c.h.b16 %v600
    %v2295 = vunpack.c.l.b16 %v601
    %v2296 = vunpack.c.h.b16 %v601
    %v2297 = vunpack.c.l.b16 %v602
    %v2298 = vunpack.c.h.b16 %v602
    %v2299 = vunpack.c.l.b16 %v603
    %v2300 = vunpack.c.h.b16 %v603
    %v2301 = vunpack.c.l.b16 %v604
    %v2302 = vunpack.c.h.b16 %v604
    %v2303 = vunpack.c.l.b16 %v605
    %v2304 = vunpack.c.h.b16 %v605
    %v2305 = vunpack.c.l.b16 %v606
    %v2306 = vunpack.c.h.b16 %v606
    %v2307 = vunpack.c.l.b16 %v607
    %v2308 = vunpack.c.h.b16 %v607
    %v2309 = vunpack.c.l.b16 %v608
    %v2310 = vunpack.c.h.b16 %v608
    %v2311 = vunpack.c.l.b16 %v609
    %v2312 = vunpack.c.h.b16 %v609
    %v2313 = vunpack.c.l.b16 %v610
    %v2314 = vunpack.c.h.b16 %v610
    %v2315 = vunpack.c.l.b16 %v611
    %v2316 = vunpack.c.h.b16 %v611
    %v2317 = vunpack.c.l.b16 %v612
    %v2318 = vunpack.c.h.b16 %v612
    %v2319 = vunpack.c.l.b16 %v613
    %v2320 = vunpack.c.h.b16 %v613
    %v2321 = vunpack.c.l.b16 %v614
    %v2322 = vunpack.c.h.b16 %v614
    %v2323 = vunpack.c.l.b16 %v615
    %v2324 = vunpack.c.h.b16 %v615
    %v2325 = vunpack.c.l.b16 %v616
    %v2326 = vunpack.c.h.b16 %v616
    %v2327 = vunpack.c.l.b16 %v617
    %v2328 = vunpack.c.h.b16 %v617
    %v2329 = vunpack.c.l.b16 %v618
    %v2330 = vunpack.c.h.b16 %v618
    %v2331 = vunpack.c.l.b16 %v619
    %v2332 = vunpack.c.h.b16 %v619
    %v2333 = vunpack.c.l.b16 %v620
    %v2334 = vunpack.c.h.b16 %v620
    %v2335 = vunpack.c.l.b16 %v621
    %v2336 = vunpack.c.h.b16 %v621
    %v2337 = vunpack.c.l.b16 %v622
    %v2338 = vunpack.c.h.b16 %v622
    %v2339 = vunpack.c.l.b16 %v623
    %v2340 = vunpack.c.h.b16 %v623
    %v2341 = vunpack.c.l.b16 %v624
    %v2342 = vunpack.c.h.b16 %v624
    %v2343 = vunpack.c.l.b16 %v625
    %v2344 = vunpack.c.h.b16 %v625
    %v2345 = vunpack.c.l.b16 %v626
    %v2346 = vunpack.c.h.b16 %v626
    %v2347 = vunpack.c.l.b16 %v627
    %v2348 = vunpack.c.h.b16 %v627
    %v2349 = vunpack.c.l.b16 %v628
    %v2350 = vunpack.c.h.b16 %v628
    %v2351 = vunpack.c.l.b16 %v629
    %v2352 = vunpack.c.h.b16 %v629
    %v2353 = vunpack.c.l.b16 %v630
    %v2354 = vunpack.c.h.b16 %v630
    %v2355 = vunpack.c.l.b16 %v631
    %v2356 = vunpack.c.h.b16 %v631
    %v2357 = vunpack.c.l.b16 %v632
    %v2358 = vunpack.c.h.b16 %v632
    %v2359 = vunpack.c.l.b16 %v633
    %v2360 = vunpack.c.h.b16 %v633
    %v2361 = vunpack.c.l.b16 %v634
    %v2362 = vunpack.c.h.b16 %v634
    %v2363 = vunpack.c.l.b16 %v635
    %v2364 = vunpack.c.h.b16 %v635
    %v2365 = vunpack.c.l.b16 %v636
    %v2366 = vunpack.c.h.b16 %v636
    %v2367 = vunpack.c.l.b16 %v637
    %v2368 = vunpack.c.h.b16 %v637
    %v2369 = vunpack.c.l.b16 %v638
    %v2370 = vunpack.c.h.b16 %v638
    %v2371 = vunpack.c.l.b16 %v639
    %v2372 = vunpack.c.h.b16 %v639
    %v2373 = vunpack.c.l.b16 %v640
    %v2374 = vunpack.c.h.b16 %v640
    %v2375 = vunpack.c.l.b16 %v641
    %v2376 = vunpack.c.h.b16 %v641
    %v2377 = vunpack.c.l.b16 %v642
    %v2378 = vunpack.c.h.b16 %v642
    %v2379 = vunpack.c.l.b16 %v643
    %v2380 = vunpack.c.h.b16 %v643
    %v2381 = vunpack.c.l.b16 %v644
    %v2382 = vunpack.c.h.b16 %v644
    %v2383 = vunpack.c.l.b16 %v645
    %v2384 = vunpack.c.h.b16 %v645
    %v2385 = vunpack.c.l.b16 %v646
    %v2386 = vunpack.c.h.b16 %v646
    %v2387 = vpack.c.b16 %v1277, %v1267
    %v2388 = vpack.c.b16 %v1278, %v1268
    %v2389 = vpack.c.b16 %v1279, %v1269
    %v2390 = vpack.c.b16 %v1280, %v1270
    %v2391 = vpack.c.b16 %v1281, %v1271
    %v2392 = vpack.c.b16 %v1282, %v1272
    %v2393 = vpack.c.b16 %v1283, %v1273
    %v2394 = vpack.c.b16 %v1284, %v1274
    %v2395 = vpack.c.b16 %v1285, %v1275
    %v2396 = vpack.c.b16 %v1286, %v1276
    %v2397 = vpack.c.b16 %v1297, %v1287
    %v2398 = vpack.c.b16 %v1298, %v1288
    %v2399 = vpack.c.b16 %v1299, %v1289
    %v2400 = vpack.c.b16 %v1300, %v1290
    %v2401 = vpack.c.b16 %v1301, %v1291
    %v2402 = vpack.c.b16 %v1302, %v1292
    %v2403 = vpack.c.b16 %v1303, %v1293
    %v2404 = vpack.c.b16 %v1304, %v1294
    %v2405 = vpack.c.b16 %v1305, %v1295
    %v2406 = vpack.c.b16 %v1306, %v1296
    %v2407 = vpack.c.b16 %v1317, %v1307
    %v2408 = vpack.c.b16 %v1318, %v1308
    %v2409 = vpack.c.b16 %v1319, %v1309
    %v2410 = vpack.c.b16 %v1320, %v1310
    %v2411 = vpack.c.b16 %v1321, %v1311
    %v2412 = vpack.c.b16 %v1322, %v1312
    %v2413 = vpack.c.b16 %v1323, %v1313
    %v2414 = vpack.c.b16 %v1324, %v1314
    %v2415 = vpack.c.b16 %v1325, %v1315
    %v2416 = vpack.c.b16 %v1326, %v1316
    %v2417 = vpack.c.b16 %v1337, %v1327
    %v2418 = vpack.c.b16 %v1338, %v1328
    %v2419 = vpack.c.b16 %v1339, %v1329
    %v2420 = vpack.c.b16 %v1340, %v1330
    %v2421 = vpack.c.b16 %v1341, %v1331
    %v2422 = vpack.c.b16 %v1342, %v1332
    %v2423 = vpack.c.b16 %v1343, %v1333
    %v2424 = vpack.c.b16 %v1344, %v1334
    %v2425 = vpack.c.b16 %v1345, %v1335
    %v2426 = vpack.c.b16 %v1346, %v1336
    %v2427 = vpack.c.b16 %v1357, %v1347
    %v2428 = vpack.c.b16 %v1358, %v1348
    %v2429 = vpack.c.b16 %v1359, %v1349
    %v2430 = vpack.c.b16 %v1360, %v1350
    %v2431 = vpack.c.b16 %v1361, %v1351
    %v2432 = vpack.c.b16 %v1362, %v1352
    %v2433 = vpack.c.b16 %v1363, %v1353
    %v2434 = vpack.c.b16 %v1364, %v1354
    %v2435 = vpack.c.b16 %v1365, %v1355
    %v2436 = vpack.c.b16 %v1366, %v1356
    %v2437 = vpack.c.b16 %v1377, %v1367
    %v2438 = vpack.c.b16 %v1378, %v1368
    %v2439 = vpack.c.b16 %v1379, %v1369
    %v2440 = vpack.c.b16 %v1380, %v1370
    %v2441 = vpack.c.b16 %v1381, %v1371
    %v2442 = vpack.c.b16 %v1382, %v1372
    %v2443 = vpack.c.b16 %v1383, %v1373
    %v2444 = vpack.c.b16 %v1384, %v1374
    %v2445 = vpack.c.b16 %v1385, %v1375
    %v2446 = vpack.c.b16 %v1386, %v1376
    %v2447 = vpack.c.b16 %v1397, %v1387
    %v2448 = vpack.c.b16 %v1398, %v1388
    %v2449 = vpack.c.b16 %v1399, %v1389
    %v2450 = vpack.c.b16 %v1400, %v1390
    %v2451 = vpack.c.b16 %v1401, %v1391
    %v2452 = vpack.c.b16 %v1402, %v1392
    %v2453 = vpack.c.b16 %v1403, %v1393
    %v2454 = vpack.c.b16 %v1404, %v1394
    %v2455 = vpack.c.b16 %v1405, %v1395
    %v2456 = vpack.c.b16 %v1406, %v1396
    %v2457 = vpack.c.b16 %v1417, %v1407
    %v2458 = vpack.c.b16 %v1418, %v1408
    %v2459 = vpack.c.b16 %v1419, %v1409
    %v2460 = vpack.c.b16 %v1420, %v1410
    %v2461 = vpack.c.b16 %v1421, %v1411
    %v2462 = vpack.c.b16 %v1422, %v1412
    %v2463 = vpack.c.b16 %v1423, %v1413
    %v2464 = vpack.c.b16 %v1424, %v1414
    %v2465 = vpack.c.b16 %v1425, %v1415
    %v2466 = vpack.c.b16 %v1426, %v1416
    %v2467 = vpack.c.b16 %v1437, %v1427
    %v2468 = vpack.c.b16 %v1438, %v1428
    %v2469 = vpack.c.b16 %v1439, %v1429
    %v2470 = vpack.c.b16 %v1440, %v1430
    %v2471 = vpack.c.b16 %v1441, %v1431
    %v2472 = vpack.c.b16 %v1442, %v1432
    %v2473 = vpack.c.b16 %v1443, %v1433
    %v2474 = vpack.c.b16 %v1444, %v1434
    %v2475 = vpack.c.b16 %v1445, %v1435
    %v2476 = vpack.c.b16 %v1446, %v1436
    %v2477 = vpack.c.b16 %v1457, %v1447
    %v2478 = vpack.c.b16 %v1458, %v1448
    %v2479 = vpack.c.b16 %v1459, %v1449
    %v2480 = vpack.c.b16 %v1460, %v1450
    %v2481 = vpack.c.b16 %v1461, %v1451
    %v2482 = vpack.c.b16 %v1462, %v1452
    %v2483 = vpack.c.b16 %v1463, %v1453
    %v2484 = vpack.c.b16 %v1464, %v1454
    %v2485 = vpack.c.b16 %v1465, %v1455
    %v2486 = vpack.c.b16 %v1466, %v1456
    %v2487 = vpack.c.b16 %v1477, %v1467
    %v2488 = vpack.c.b16 %v1478, %v1468
    %v2489 = vpack.c.b16 %v1479, %v1469
    %v2490 = vpack.c.b16 %v1480, %v1470
    %v2491 = vpack.c.b16 %v1481, %v1471
    %v2492 = vpack.c.b16 %v1482, %v1472
    %v2493 = vpack.c.b16 %v1483, %v1473
    %v2494 = vpack.c.b16 %v1484, %v1474
    %v2495 = vpack.c.b16 %v1485, %v1475
    %v2496 = vpack.c.b16 %v1486, %v1476
    %v2497 = vpack.c.b16 %v1497, %v1487
    %v2498 = vpack.c.b16 %v1498, %v1488
    %v2499 = vpack.c.b16 %v1499, %v1489
    %v2500 = vpack.c.b16 %v1500, %v1490
    %v2501 = vpack.c.b16 %v1501, %v1491
    %v2502 = vpack.c.b16 %v1502, %v1492
    %v2503 = vpack.c.b16 %v1503, %v1493
    %v2504 = vpack.c.b16 %v1504, %v1494
    %v2505 = vpack.c.b16 %v1505, %v1495
    %v2506 = vpack.c.b16 %v1506, %v1496
    %v2507 = vpack.c.b16 %v1517, %v1507
    %v2508 = vpack.c.b16 %v1518, %v1508
    %v2509 = vpack.c.b16 %v1519, %v1509
    %v2510 = vpack.c.b16 %v1520, %v1510
    %v2511 = vpack.c.b16 %v1521, %v1511
    %v2512 = vpack.c.b16 %v1522, %v1512
    %v2513 = vpack.c.b16 %v1523, %v1513
    %v2514 = vpack.c.b16 %v1524, %v1514
    %v2515 = vpack.c.b16 %v1525, %v1515
    %v2516 = vpack.c.b16 %v1526, %v1516
    %v2517 = vpack.c.b16 %v1537, %v1527
    %v2518 = vpack.c.b16 %v1538, %v1528
    %v2519 = vpack.c.b16 %v1539, %v1529
    %v2520 = vpack.c.b16 %v1540, %v1530
    %v2521 = vpack.c.b16 %v1541, %v1531
    %v2522 = vpack.c.b16 %v1542, %v1532
    %v2523 = vpack.c.b16 %v1543, %v1533
    %v2524 = vpack.c.b16 %v1544, %v1534
    %v2525 = vpack.c.b16 %v1545, %v1535
    %v2526 = vpack.c.b16 %v1546, %v1536
    %v2527 = vpack.c.b16 %v1557, %v1547
    %v2528 = vpack.c.b16 %v1558, %v1548
    %v2529 = vpack.c.b16 %v1559, %v1549
    %v2530 = vpack.c.b16 %v1560, %v1550
    %v2531 = vpack.c.b16 %v1561, %v1551
    %v2532 = vpack.c.b16 %v1562, %v1552
    %v2533 = vpack.c.b16 %v1563, %v1553
    %v2534 = vpack.c.b16 %v1564, %v1554
    %v2535 = vpack.c.b16 %v1565, %v1555
    %v2536 = vpack.c.b16 %v1566, %v1556
    %v2537 = vpack.c.b16 %v1577, %v1567
    %v2538 = vpack.c.b16 %v1578, %v1568
    %v2539 = vpack.c.b16 %v1579, %v1569
    %v2540 = vpack.c.b16 %v1580, %v1570
    %v2541 = vpack.c.b16 %v1581, %v1571
    %v2542 = vpack.c.b16 %v1582, %v1572
    %v2543 = vpack.c.b16 %v1583, %v1573
    %v2544 = vpack.c.b16 %v1584, %v1574
    %v2545 = vpack.c.b16 %v1585, %v1575
    %v2546 = vpack.c.b16 %v1586, %v1576
    %v2547 = vpack.c.b16 %v1597, %v1587
    %v2548 = vpack.c.b16 %v1598, %v1588
    %v2549 = vpack.c.b16 %v1599, %v1589
    %v2550 = vpack.c.b16 %v1600, %v1590
    %v2551 = vpack.c.b16 %v1601, %v1591
    %v2552 = vpack.c.b16 %v1602, %v1592
    %v2553 = vpack.c.b16 %v1603, %v1593
    %v2554 = vpack.c.b16 %v1604, %v1594
    %v2555 = vpack.c.b16 %v1605, %v1595
    %v2556 = vpack.c.b16 %v1606, %v1596
    %v2557 = vpack.c.b16 %v1617, %v1607
    %v2558 = vpack.c.b16 %v1618, %v1608
    %v2559 = vpack.c.b16 %v1619, %v1609
    %v2560 = vpack.c.b16 %v1620, %v1610
    %v2561 = vpack.c.b16 %v1621, %v1611
    %v2562 = vpack.c.b16 %v1622, %v1612
    %v2563 = vpack.c.b16 %v1623, %v1613
    %v2564 = vpack.c.b16 %v1624, %v1614
    %v2565 = vpack.c.b16 %v1625, %v1615
    %v2566 = vpack.c.b16 %v1626, %v1616
    %v2567 = vpack.c.b16 %v1637, %v1627
    %v2568 = vpack.c.b16 %v1638, %v1628
    %v2569 = vpack.c.b16 %v1639, %v1629
    %v2570 = vpack.c.b16 %v1640, %v1630
    %v2571 = vpack.c.b16 %v1641, %v1631
    %v2572 = vpack.c.b16 %v1642, %v1632
    %v2573 = vpack.c.b16 %v1643, %v1633
    %v2574 = vpack.c.b16 %v1644, %v1634
    %v2575 = vpack.c.b16 %v1645, %v1635
    %v2576 = vpack.c.b16 %v1646, %v1636
    %v2577 = vpack.c.b16 %v1657, %v1647
    %v2578 = vpack.c.b16 %v1658, %v1648
    %v2579 = vpack.c.b16 %v1659, %v1649
    %v2580 = vpack.c.b16 %v1660, %v1650
    %v2581 = vpack.c.b16 %v1661, %v1651
    %v2582 = vpack.c.b16 %v1662, %v1652
    %v2583 = vpack.c.b16 %v1663, %v1653
    %v2584 = vpack.c.b16 %v1664, %v1654
    %v2585 = vpack.c.b16 %v1665, %v1655
    %v2586 = vpack.c.b16 %v1666, %v1656
    %v2587 = vpack.c.b16 %v1677, %v1667
    %v2588 = vpack.c.b16 %v1678, %v1668
    %v2589 = vpack.c.b16 %v1679, %v1669
    %v2590 = vpack.c.b16 %v1680, %v1670
    %v2591 = vpack.c.b16 %v1681, %v1671
    %v2592 = vpack.c.b16 %v1682, %v1672
    %v2593 = vpack.c.b16 %v1683, %v1673
    %v2594 = vpack.c.b16 %v1684, %v1674
    %v2595 = vpack.c.b16 %v1685, %v1675
    %v2596 = vpack.c.b16 %v1686, %v1676
    %v2597 = vpack.c.b16 %v1697, %v1687
    %v2598 = vpack.c.b16 %v1698, %v1688
    %v2599 = vpack.c.b16 %v1699, %v1689
    %v2600 = vpack.c.b16 %v1700, %v1690
    %v2601 = vpack.c.b16 %v1701, %v1691
    %v2602 = vpack.c.b16 %v1702, %v1692
    %v2603 = vpack.c.b16 %v1703, %v1693
    %v2604 = vpack.c.b16 %v1704, %v1694
    %v2605 = vpack.c.b16 %v1705, %v1695
    %v2606 = vpack.c.b16 %v1706, %v1696
    %v2607 = vpack.c.b16 %v1717, %v1707
    %v2608 = vpack.c.b16 %v1718, %v1708
    %v2609 = vpack.c.b16 %v1719, %v1709
    %v2610 = vpack.c.b16 %v1720, %v1710
    %v2611 = vpack.c.b16 %v1721, %v1711
    %v2612 = vpack.c.b16 %v1722, %v1712
    %v2613 = vpack.c.b16 %v1723, %v1713
    %v2614 = vpack.c.b16 %v1724, %v1714
    %v2615 = vpack.c.b16 %v1725, %v1715
    %v2616 = vpack.c.b16 %v1726, %v1716
    %v2617 = vpack.c.b16 %v1737, %v1727
    %v2618 = vpack.c.b16 %v1738, %v1728
    %v2619 = vpack.c.b16 %v1739, %v1729
    %v2620 = vpack.c.b16 %v1740, %v1730
    %v2621 = vpack.c.b16 %v1741, %v1731
    %v2622 = vpack.c.b16 %v1742, %v1732
    %v2623 = vpack.c.b16 %v1743, %v1733
    %v2624 = vpack.c.b16 %v1744, %v1734
    %v2625 = vpack.c.b16 %v1745, %v1735
    %v2626 = vpack.c.b16 %v1746, %v1736
    %v2627 = vpack.c.b16 %v1757, %v1747
    %v2628 = vpack.c.b16 %v1758, %v1748
    %v2629 = vpack.c.b16 %v1759, %v1749
    %v2630 = vpack.c.b16 %v1760, %v1750
    %v2631 = vpack.c.b16 %v1761, %v1751
    %v2632 = vpack.c.b16 %v1762, %v1752
    %v2633 = vpack.c.b16 %v1763, %v1753
    %v2634 = vpack.c.b16 %v1764, %v1754
    %v2635 = vpack.c.b16 %v1765, %v1755
    %v2636 = vpack.c.b16 %v1766, %v1756
    %v2637 = vpack.c.b16 %v1777, %v1767
    %v2638 = vpack.c.b16 %v1778, %v1768
    %v2639 = vpack.c.b16 %v1779, %v1769
    %v2640 = vpack.c.b16 %v1780, %v1770
    %v2641 = vpack.c.b16 %v1781, %v1771
    %v2642 = vpack.c.b16 %v1782, %v1772
    %v2643 = vpack.c.b16 %v1783, %v1773
    %v2644 = vpack.c.b16 %v1784, %v1774
    %v2645 = vpack.c.b16 %v1785, %v1775
    %v2646 = vpack.c.b16 %v1786, %v1776
    %v2647 = vpack.c.b16 %v1797, %v1787
    %v2648 = vpack.c.b16 %v1798, %v1788
    %v2649 = vpack.c.b16 %v1799, %v1789
    %v2650 = vpack.c.b16 %v1800, %v1790
    %v2651 = vpack.c.b16 %v1801, %v1791
    %v2652 = vpack.c.b16 %v1802, %v1792
    %v2653 = vpack.c.b16 %v1803, %v1793
    %v2654 = vpack.c.b16 %v1804, %v1794
    %v2655 = vpack.c.b16 %v1805, %v1795
    %v2656 = vpack.c.b16 %v1806, %v1796
    %v2657 = vpack.c.b16 %v1817, %v1807
    %v2658 = vpack.c.b16 %v1818, %v1808
    %v2659 = vpack.c.b16 %v1819, %v1809
    %v2660 = vpack.c.b16 %v1820, %v1810
    %v2661 = vpack.c.b16 %v1821, %v1811
    %v2662 = vpack.c.b16 %v1822, %v1812
    %v2663 = vpack.c.b16 %v1823, %v1813
    %v2664 = vpack.c.b16 %v1824, %v1814
    %v2665 = vpack.c.b16 %v1825, %v1815
    %v2666 = vpack.c.b16 %v1826, %v1816
    %v2667 = vpack.c.b16 %v1837, %v1827
    %v2668 = vpack.c.b16 %v1838, %v1828
    %v2669 = vpack.c.b16 %v1839, %v1829
    %v2670 = vpack.c.b16 %v1840, %v1830
    %v2671 = vpack.c.b16 %v1841, %v1831
    %v2672 = vpack.c.b16 %v1842, %v1832
    %v2673 = vpack.c.b16 %v1843, %v1833
    %v2674 = vpack.c.b16 %v1844, %v1834
    %v2675 = vpack.c.b16 %v1845, %v1835
    %v2676 = vpack.c.b16 %v1846, %v1836
    %v2677 = vpack.c.b16 %v1857, %v1847
    %v2678 = vpack.c.b16 %v1858, %v1848
    %v2679 = vpack.c.b16 %v1859, %v1849
    %v2680 = vpack.c.b16 %v1860, %v1850
    %v2681 = vpack.c.b16 %v1861, %v1851
    %v2682 = vpack.c.b16 %v1862, %v1852
    %v2683 = vpack.c.b16 %v1863, %v1853
    %v2684 = vpack.c.b16 %v1864, %v1854
    %v2685 = vpack.c.b16 %v1865, %v1855
    %v2686 = vpack.c.b16 %v1866, %v1856
    %v2687 = vpack.c.b16 %v1877, %v1867
    %v2688 = vpack.c.b16 %v1878, %v1868
    %v2689 = vpack.c.b16 %v1879, %v1869
    %v2690 = vpack.c.b16 %v1880, %v1870
    %v2691 = vpack.c.b16 %v1881, %v1871
    %v2692 = vpack.c.b16 %v1882, %v1872
    %v2693 = vpack.c.b16 %v1883, %v1873
    %v2694 = vpack.c.b16 %v1884, %v1874
    %v2695 = vpack.c.b16 %v1885, %v1875
    %v2696 = vpack.c.b16 %v1886, %v1876
    %v2697 = vpack.c.b16 %v1897, %v1887
    %v2698 = vpack.c.b16 %v1898, %v1888
    %v2699 = vpack.c.b16 %v1899, %v1889
    %v2700 = vpack.c.b16 %v1900, %v1890
    %v2701 = vpack.c.b16 %v1901, %v1891
    %v2702 = vpack.c.b16 %v1902, %v1892
    %v2703 = vpack.c.b16 %v1903, %v1893
    %v2704 = vpack.c.b16 %v1904, %v1894
    %v2705 = vpack.c.b16 %v1905, %v1895
    %v2706 = vpack.c.b16 %v1906, %v1896
    %v2707 = vpack.c.b16 %v1917, %v1907
    %v2708 = vpack.c.b16 %v1918, %v1908
    %v2709 = vpack.c.b16 %v1919, %v1909
    %v2710 = vpack.c.b16 %v1920, %v1910
    %v2711 = vpack.c.b16 %v1921, %v1911
    %v2712 = vpack.c.b16 %v1922, %v1912
    %v2713 = vpack.c.b16 %v1923, %v1913
    %v2714 = vpack.c.b16 %v1924, %v1914
    %v2715 = vpack.c.b16 %v1925, %v1915
    %v2716 = vpack.c.b16 %v1926, %v1916
    %v2717 = vpack.c.b16 %v1937, %v1927
    %v2718 = vpack.c.b16 %v1938, %v1928
    %v2719 = vpack.c.b16 %v1939, %v1929
    %v2720 = vpack.c.b16 %v1940, %v1930
    %v2721 = vpack.c.b16 %v1941, %v1931
    %v2722 = vpack.c.b16 %v1942, %v1932
    %v2723 = vpack.c.b16 %v1943, %v1933
    %v2724 = vpack.c.b16 %v1944, %v1934
    %v2725 = vpack.c.b16 %v1945, %v1935
    %v2726 = vpack.c.b16 %v1946, %v1936
    %v2727 = vpack.c.b16 %v1957, %v1947
    %v2728 = vpack.c.b16 %v1958, %v1948
    %v2729 = vpack.c.b16 %v1959, %v1949
    %v2730 = vpack.c.b16 %v1960, %v1950
    %v2731 = vpack.c.b16 %v1961, %v1951
    %v2732 = vpack.c.b16 %v1962, %v1952
    %v2733 = vpack.c.b16 %v1963, %v1953
    %v2734 = vpack.c.b16 %v1964, %v1954
    %v2735 = vpack.c.b16 %v1965, %v1955
    %v2736 = vpack.c.b16 %v1966, %v1956
    %v2737 = vpack.c.b16 %v1977, %v1967
    %v2738 = vpack.c.b16 %v1978, %v1968
    %v2739 = vpack.c.b16 %v1979, %v1969
    %v2740 = vpack.c.b16 %v1980, %v1970
    %v2741 = vpack.c.b16 %v1981, %v1971
    %v2742 = vpack.c.b16 %v1982, %v1972
    %v2743 = vpack.c.b16 %v1983, %v1973
    %v2744 = vpack.c.b16 %v1984, %v1974
    %v2745 = vpack.c.b16 %v1985, %v1975
    %v2746 = vpack.c.b16 %v1986, %v1976
    %v2747 = vpack.c.b16 %v1997, %v1987
    %v2748 = vpack.c.b16 %v1998, %v1988
    %v2749 = vpack.c.b16 %v1999, %v1989
    %v2750 = vpack.c.b16 %v2000, %v1990
    %v2751 = vpack.c.b16 %v2001, %v1991
    %v2752 = vpack.c.b16 %v2002, %v1992
    %v2753 = vpack.c.b16 %v2003, %v1993
    %v2754 = vpack.c.b16 %v2004, %v1994
    %v2755 = vpack.c.b16 %v2005, %v1995
    %v2756 = vpack.c.b16 %v2006, %v1996
    %v2757 = vpack.c.b16 %v2017, %v2007
    %v2758 = vpack.c.b16 %v2018, %v2008
    %v2759 = vpack.c.b16 %v2019, %v2009
    %v2760 = vpack.c.b16 %v2020, %v2010
    %v2761 = vpack.c.b16 %v2021, %v2011
    %v2762 = vpack.c.b16 %v2022, %v2012
    %v2763 = vpack.c.b16 %v2023, %v2013
    %v2764 = vpack.c.b16 %v2024, %v2014
    %v2765 = vpack.c.b16 %v2025, %v2015
    %v2766 = vpack.c.b16 %v2026, %v2016
    %v2767 = vpack.c.b16 %v2037, %v2027
    %v2768 = vpack.c.b16 %v2038, %v2028
    %v2769 = vpack.c.b16 %v2039, %v2029
    %v2770 = vpack.c.b16 %v2040, %v2030
    %v2771 = vpack.c.b16 %v2041, %v2031
    %v2772 = vpack.c.b16 %v2042, %v2032
    %v2773 = vpack.c.b16 %v2043, %v2033
    %v2774 = vpack.c.b16 %v2044, %v2034
    %v2775 = vpack.c.b16 %v2045, %v2035
    %v2776 = vpack.c.b16 %v2046, %v2036
    %v2777 = vpack.c.b16 %v2057, %v2047
    %v2778 = vpack.c.b16 %v2058, %v2048
    %v2779 = vpack.c.b16 %v2059, %v2049
    %v2780 = vpack.c.b16 %v2060, %v2050
    %v2781 = vpack.c.b16 %v2061, %v2051
    %v2782 = vpack.c.b16 %v2062, %v2052
    %v2783 = vpack.c.b16 %v2063, %v2053
    %v2784 = vpack.c.b16 %v2064, %v2054
    %v2785 = vpack.c.b16 %v2065, %v2055
    %v2786 = vpack.c.b16 %v2066, %v2056
    %v2787 = vpack.c.b16 %v2077, %v2067
    %v2788 = vpack.c.b16 %v2078, %v2068
    %v2789 = vpack.c.b16 %v2079, %v2069
    %v2790 = vpack.c.b16 %v2080, %v2070
    %v2791 = vpack.c.b16 %v2081, %v2071
    %v2792 = vpack.c.b16 %v2082, %v2072
    %v2793 = vpack.c.b16 %v2083, %v2073
    %v2794 = vpack.c.b16 %v2084, %v2074
    %v2795 = vpack.c.b16 %v2085, %v2075
    %v2796 = vpack.c.b16 %v2086, %v2076
    %v2797 = vpack.c.b16 %v2097, %v2087
    %v2798 = vpack.c.b16 %v2098, %v2088
    %v2799 = vpack.c.b16 %v2099, %v2089
    %v2800 = vpack.c.b16 %v2100, %v2090
    %v2801 = vpack.c.b16 %v2101, %v2091
    %v2802 = vpack.c.b16 %v2102, %v2092
    %v2803 = vpack.c.b16 %v2103, %v2093
    %v2804 = vpack.c.b16 %v2104, %v2094
    %v2805 = vpack.c.b16 %v2105, %v2095
    %v2806 = vpack.c.b16 %v2106, %v2096
    %v2807 = vpack.c.b16 %v2117, %v2107
    %v2808 = vpack.c.b16 %v2118, %v2108
    %v2809 = vpack.c.b16 %v2119, %v2109
    %v2810 = vpack.c.b16 %v2120, %v2110
    %v2811 = vpack.c.b16 %v2121, %v2111
    %v2812 = vpack.c.b16 %v2122, %v2112
    %v2813 = vpack.c.b16 %v2123, %v2113
    %v2814 = vpack.c.b16 %v2124, %v2114
    %v2815 = vpack.c.b16 %v2125, %v2115
    %v2816 = vpack.c.b16 %v2126, %v2116
    %v2817 = vpack.c.b16 %v2137, %v2127
    %v2818 = vpack.c.b16 %v2138, %v2128
    %v2819 = vpack.c.b16 %v2139, %v2129
    %v2820 = vpack.c.b16 %v2140, %v2130
    %v2821 = vpack.c.b16 %v2141, %v2131
    %v2822 = vpack.c.b16 %v2142, %v2132
    %v2823 = vpack.c.b16 %v2143, %v2133
    %v2824 = vpack.c.b16 %v2144, %v2134
    %v2825 = vpack.c.b16 %v2145, %v2135
    %v2826 = vpack.c.b16 %v2146, %v2136
    %v2827 = vpack.c.b16 %v2157, %v2147
    %v2828 = vpack.c.b16 %v2158, %v2148
    %v2829 = vpack.c.b16 %v2159, %v2149
    %v2830 = vpack.c.b16 %v2160, %v2150
    %v2831 = vpack.c.b16 %v2161, %v2151
    %v2832 = vpack.c.b16 %v2162, %v2152
    %v2833 = vpack.c.b16 %v2163, %v2153
    %v2834 = vpack.c.b16 %v2164, %v2154
    %v2835 = vpack.c.b16 %v2165, %v2155
    %v2836 = vpack.c.b16 %v2166, %v2156
    %v2837 = vpack.c.b16 %v2177, %v2167
    %v2838 = vpack.c.b16 %v2178, %v2168
    %v2839 = vpack.c.b16 %v2179, %v2169
    %v2840 = vpack.c.b16 %v2180, %v2170
    %v2841 = vpack.c.b16 %v2181, %v2171
    %v2842 = vpack.c.b16 %v2182, %v2172
    %v2843 = vpack.c.b16 %v2183, %v2173
    %v2844 = vpack.c.b16 %v2184, %v2174
    %v2845 = vpack.c.b16 %v2185, %v2175
    %v2846 = vpack.c.b16 %v2186, %v2176
    %v2847 = vpack.c.b16 %v2197, %v2187
    %v2848 = vpack.c.b16 %v2198, %v2188
    %v2849 = vpack.c.b16 %v2199, %v2189
    %v2850 = vpack.c.b16 %v2200, %v2190
    %v2851 = vpack.c.b16 %v2201, %v2191
    %v2852 = vpack.c.b16 %v2202, %v2192
    %v2853 = vpack.c.b16 %v2203, %v2193
    %v2854 = vpack.c.b16 %v2204, %v2194
    %v2855 = vpack.c.b16 %v2205, %v2195
    %v2856 = vpack.c.b16 %v2206, %v2196
    %v2857 = vpack.c.b16 %v2217, %v2207
    %v2858 = vpack.c.b16 %v2218, %v2208
    %v2859 = vpack.c.b16 %v2219, %v2209
    %v2860 = vpack.c.b16 %v2220, %v2210
    %v2861 = vpack.c.b16 %v2221, %v2211
    %v2862 = vpack.c.b16 %v2222, %v2212
    %v2863 = vpack.c.b16 %v2223, %v2213
    %v2864 = vpack.c.b16 %v2224, %v2214
    %v2865 = vpack.c.b16 %v2225, %v2215
    %v2866 = vpack.c.b16 %v2226, %v2216
    %v2867 = vpack.c.b16 %v2237, %v2227
    %v2868 = vpack.c.b16 %v2238, %v2228
    %v2869 = vpack.c.b16 %v2239, %v2229
    %v2870 = vpack.c.b16 %v2240, %v2230
    %v2871 = vpack.c.b16 %v2241, %v2231
    %v2872 = vpack.c.b16 %v2242, %v2232
    %v2873 = vpack.c.b16 %v2243, %v2233
    %v2874 = vpack.c.b16 %v2244, %v2234
    %v2875 = vpack.c.b16 %v2245, %v2235
    %v2876 = vpack.c.b16 %v2246, %v2236
    %v2877 = vpack.c.b16 %v2257, %v2247
    %v2878 = vpack.c.b16 %v2258, %v2248
    %v2879 = vpack.c.b16 %v2259, %v2249
    %v2880 = vpack.c.b16 %v2260, %v2250
    %v2881 = vpack.c.b16 %v2261, %v2251
    %v2882 = vpack.c.b16 %v2262, %v2252
    %v2883 = vpack.c.b16 %v2263, %v2253
    %v2884 = vpack.c.b16 %v2264, %v2254
    %v2885 = vpack.c.b16 %v2265, %v2255
    %v2886 = vpack.c.b16 %v2266, %v2256
    %v2887 = vpack.c.b16 %v2277, %v2267
    %v2888 = vpack.c.b16 %v2278, %v2268
    %v2889 = vpack.c.b16 %v2279, %v2269
    %v2890 = vpack.c.b16 %v2280, %v2270
    %v2891 = vpack.c.b16 %v2281, %v2271
    %v2892 = vpack.c.b16 %v2282, %v2272
    %v2893 = vpack.c.b16 %v2283, %v2273
    %v2894 = vpack.c.b16 %v2284, %v2274
    %v2895 = vpack.c.b16 %v2285, %v2275
    %v2896 = vpack.c.b16 %v2286, %v2276
    %v2897 = vpack.c.b16 %v2297, %v2287
    %v2898 = vpack.c.b16 %v2298, %v2288
    %v2899 = vpack.c.b16 %v2299, %v2289
    %v2900 = vpack.c.b16 %v2300, %v2290
    %v2901 = vpack.c.b16 %v2301, %v2291
    %v2902 = vpack.c.b16 %v2302, %v2292
    %v2903 = vpack.c.b16 %v2303, %v2293
    %v2904 = vpack.c.b16 %v2304, %v2294
    %v2905 = vpack.c.b16 %v2305, %v2295
    %v2906 = vpack.c.b16 %v2306, %v2296
    %v2907 = vpack.c.b16 %v2317, %v2307
    %v2908 = vpack.c.b16 %v2318, %v2308
    %v2909 = vpack.c.b16 %v2319, %v2309
    %v2910 = vpack.c.b16 %v2320, %v2310
    %v2911 = vpack.c.b16 %v2321, %v2311
    %v2912 = vpack.c.b16 %v2322, %v2312
    %v2913 = vpack.c.b16 %v2323, %v2313
    %v2914 = vpack.c.b16 %v2324, %v2314
    %v2915 = vpack.c.b16 %v2325, %v2315
    %v2916 = vpack.c.b16 %v2326, %v2316
    %v2917 = vpack.c.b16 %v2337, %v2327
    %v2918 = vpack.c.b16 %v2338, %v2328
    %v2919 = vpack.c.b16 %v2339, %v2329
    %v2920 = vpack.c.b16 %v2340, %v2330
    %v2921 = vpack.c.b16 %v2341, %v2331
    %v2922 = vpack.c.b16 %v2342, %v2332
    %v2923 = vpack.c.b16 %v2343, %v2333
    %v2924 = vpack.c.b16 %v2344, %v2334
    %v2925 = vpack.c.b16 %v2345, %v2335
    %v2926 = vpack.c.b16 %v2346, %v2336
    %v2927 = vpack.c.b16 %v2357, %v2347
    %v2928 = vpack.c.b16 %v2358, %v2348
    %v2929 = vpack.c.b16 %v2359, %v2349
    %v2930 = vpack.c.b16 %v2360, %v2350
    %v2931 = vpack.c.b16 %v2361, %v2351
    %v2932 = vpack.c.b16 %v2362, %v2352
    %v2933 = vpack.c.b16 %v2363, %v2353
    %v2934 = vpack.c.b16 %v2364, %v2354
    %v2935 = vpack.c.b16 %v2365, %v2355
    %v2936 = vpack.c.b16 %v2366, %v2356
    %v2937 = vpack.c.b16 %v2377, %v2367
    %v2938 = vpack.c.b16 %v2378, %v2368
    %v2939 = vpack.c.b16 %v2379, %v2369
    %v2940 = vpack.c.b16 %v2380, %v2370
    %v2941 = vpack.c.b16 %v2381, %v2371
    %v2942 = vpack.c.b16 %v2382, %v2372
    %v2943 = vpack.c.b16 %v2383, %v2373
    %v2944 = vpack.c.b16 %v2384, %v2374
    %v2945 = vpack.c.b16 %v2385, %v2375
    %v2946 = vpack.c.b16 %v2386, %v2376
    %3507 = vmatpush.bf16.msra.mxu0 %v2457
    %3508 = vmatpush.bf16.msra.mxu0 %v2447
    %3509 = vmatpush.bf16.msra.mxu0 %v2437
    %3510 = vmatpush.bf16.msra.mxu0 %v2427
    %3511 = vmatpush.bf16.msra.mxu0 %v2417
    %3512 = vmatpush.bf16.msra.mxu0 %v2407
    %3513 = vmatpush.bf16.msra.mxu0 %v2397
    %3514 = vmatpush.bf16.msra.mxu0 %v2387
    %3515 = vmatmul.bf16.gmra.mxu0 %v693
    %v3516 = vpop.f32.mrf.mxu0
    %v3517 = vadd.f32 %v651, %v3516
    %v3518 = vpop.f32.mrf.mxu0
    %v3519 = vadd.f32 %v651, %v3518
    %3520 = vdwg.mxu0
    %3521 = vmatpush.bf16.msra.mxu0 %v2537
    %3522 = vmatpush.bf16.msra.mxu0 %v2527
    %3523 = vmatpush.bf16.msra.mxu0 %v2517
    %3524 = vmatpush.bf16.msra.mxu0 %v2507
    %3525 = vmatpush.bf16.msra.mxu0 %v2497
    %3526 = vmatpush.bf16.msra.mxu0 %v2487
    %3527 = vmatpush.bf16.msra.mxu0 %v2477
    %3528 = vmatpush.bf16.msra.mxu0 %v2467
    %3529 = vmatmul.bf16.gmra.mxu0 %v694
    %v3530 = vpop.f32.mrf.mxu0
    %v3531 = vadd.f32 %v3517, %v3530
    %v3532 = vpop.f32.mrf.mxu0
    %v3533 = vadd.f32 %v3519, %v3532
    %3534 = vdwg.mxu0
    %3535 = vmatpush.bf16.msra.mxu0 %v2617
    %3536 = vmatpush.bf16.msra.mxu0 %v2607
    %3537 = vmatpush.bf16.msra.mxu0 %v2597
    %3538 = vmatpush.bf16.msra.mxu0 %v2587
    %3539 = vmatpush.bf16.msra.mxu0 %v2577
    %3540 = vmatpush.bf16.msra.mxu0 %v2567
    %3541 = vmatpush.bf16.msra.mxu0 %v2557
    %3542 = vmatpush.bf16.msra.mxu0 %v2547
    %3543 = vmatmul.bf16.gmra.mxu0 %v695
    %v3544 = vpop.f32.mrf.mxu0
    %v3545 = vadd.f32 %v3531, %v3544
    %v3546 = vpop.f32.mrf.mxu0
    %v3547 = vadd.f32 %v3533, %v3546
    %3548 = vdwg.mxu0
    %3549 = vmatpush.bf16.msra.mxu0 %v2697
    %3550 = vmatpush.bf16.msra.mxu0 %v2687
    %3551 = vmatpush.bf16.msra.mxu0 %v2677
    %3552 = vmatpush.bf16.msra.mxu0 %v2667
    %3553 = vmatpush.bf16.msra.mxu0 %v2657
    %3554 = vmatpush.bf16.msra.mxu0 %v2647
    %3555 = vmatpush.bf16.msra.mxu0 %v2637
    %3556 = vmatpush.bf16.msra.mxu0 %v2627
    %3557 = vmatmul.bf16.gmra.mxu0 %v696
    %v3558 = vpop.f32.mrf.mxu0
    %v3559 = vadd.f32 %v3545, %v3558
    %v3560 = vpop.f32.mrf.mxu0
    %v3561 = vadd.f32 %v3547, %v3560
    %3562 = vdwg.mxu0
    %3563 = vmatpush.bf16.msra.mxu0 %v2777
    %3564 = vmatpush.bf16.msra.mxu0 %v2767
    %3565 = vmatpush.bf16.msra.mxu0 %v2757
    %3566 = vmatpush.bf16.msra.mxu0 %v2747
    %3567 = vmatpush.bf16.msra.mxu0 %v2737
    %3568 = vmatpush.bf16.msra.mxu0 %v2727
    %3569 = vmatpush.bf16.msra.mxu0 %v2717
    %3570 = vmatpush.bf16.msra.mxu0 %v2707
    %3571 = vmatmul.bf16.gmra.mxu0 %v697
    %v3572 = vpop.f32.mrf.mxu0
    %v3573 = vadd.f32 %v3559, %v3572
    %v3574 = vpop.f32.mrf.mxu0
    %v3575 = vadd.f32 %v3561, %v3574
    %3576 = vdwg.mxu0
    %3577 = vmatpush.bf16.msra.mxu0 %v2857
    %3578 = vmatpush.bf16.msra.mxu0 %v2847
    %3579 = vmatpush.bf16.msra.mxu0 %v2837
    %3580 = vmatpush.bf16.msra.mxu0 %v2827
    %3581 = vmatpush.bf16.msra.mxu0 %v2817
    %3582 = vmatpush.bf16.msra.mxu0 %v2807
    %3583 = vmatpush.bf16.msra.mxu0 %v2797
    %3584 = vmatpush.bf16.msra.mxu0 %v2787
    %3585 = vmatmul.bf16.gmra.mxu0 %v698
    %v3586 = vpop.f32.mrf.mxu0
    %v3587 = vadd.f32 %v3573, %v3586
    %v3588 = vpop.f32.mrf.mxu0
    %v3589 = vadd.f32 %v3575, %v3588
    %3590 = vdwg.mxu0
    %3591 = vmatpush.bf16.msra.mxu0 %v2937
    %3592 = vmatpush.bf16.msra.mxu0 %v2927
    %3593 = vmatpush.bf16.msra.mxu0 %v2917
    %3594 = vmatpush.bf16.msra.mxu0 %v2907
    %3595 = vmatpush.bf16.msra.mxu0 %v2897
    %3596 = vmatpush.bf16.msra.mxu0 %v2887
    %3597 = vmatpush.bf16.msra.mxu0 %v2877
    %3598 = vmatpush.bf16.msra.mxu0 %v2867
    %3599 = vmatmul.bf16.gmra.mxu0 %v699
    %v3600 = vpop.f32.mrf.mxu0
    %v3601 = vadd.f32 %v3587, %v3600
    %v3602 = vpop.f32.mrf.mxu0
    %v3603 = vadd.f32 %v3589, %v3602
    %3604 = vdwg.mxu0
    %3605 = vmatpush.bf16.msra.mxu0 %v2458
    %3606 = vmatpush.bf16.msra.mxu0 %v2448
    %3607 = vmatpush.bf16.msra.mxu0 %v2438
    %3608 = vmatpush.bf16.msra.mxu0 %v2428
    %3609 = vmatpush.bf16.msra.mxu0 %v2418
    %3610 = vmatpush.bf16.msra.mxu0 %v2408
    %3611 = vmatpush.bf16.msra.mxu0 %v2398
    %3612 = vmatpush.bf16.msra.mxu0 %v2388
    %3613 = vmatmul.bf16.gmra.mxu0 %v693
    %v3614 = vpop.f32.mrf.mxu0
    %v3615 = vadd.f32 %v652, %v3614
    %v3616 = vpop.f32.mrf.mxu0
    %v3617 = vadd.f32 %v652, %v3616
    %3618 = vdwg.mxu0
    %3619 = vmatpush.bf16.msra.mxu0 %v2538
    %3620 = vmatpush.bf16.msra.mxu0 %v2528
    %3621 = vmatpush.bf16.msra.mxu0 %v2518
    %3622 = vmatpush.bf16.msra.mxu0 %v2508
    %3623 = vmatpush.bf16.msra.mxu0 %v2498
    %3624 = vmatpush.bf16.msra.mxu0 %v2488
    %3625 = vmatpush.bf16.msra.mxu0 %v2478
    %3626 = vmatpush.bf16.msra.mxu0 %v2468
    %3627 = vmatmul.bf16.gmra.mxu0 %v694
    %v3628 = vpop.f32.mrf.mxu0
    %v3629 = vadd.f32 %v3615, %v3628
    %v3630 = vpop.f32.mrf.mxu0
    %v3631 = vadd.f32 %v3617, %v3630
    %3632 = vdwg.mxu0
    %3633 = vmatpush.bf16.msra.mxu0 %v2618
    %3634 = vmatpush.bf16.msra.mxu0 %v2608
    %3635 = vmatpush.bf16.msra.mxu0 %v2598
    %3636 = vmatpush.bf16.msra.mxu0 %v2588
    %3637 = vmatpush.bf16.msra.mxu0 %v2578
    %3638 = vmatpush.bf16.msra.mxu0 %v2568
    %3639 = vmatpush.bf16.msra.mxu0 %v2558
    %3640 = vmatpush.bf16.msra.mxu0 %v2548
    %3641 = vmatmul.bf16.gmra.mxu0 %v695
    %v3642 = vpop.f32.mrf.mxu0
    %v3643 = vadd.f32 %v3629, %v3642
    %v3644 = vpop.f32.mrf.mxu0
    %v3645 = vadd.f32 %v3631, %v3644
    %3646 = vdwg.mxu0
    %3647 = vmatpush.bf16.msra.mxu0 %v2698
    %3648 = vmatpush.bf16.msra.mxu0 %v2688
    %3649 = vmatpush.bf16.msra.mxu0 %v2678
    %3650 = vmatpush.bf16.msra.mxu0 %v2668
    %3651 = vmatpush.bf16.msra.mxu0 %v2658
    %3652 = vmatpush.bf16.msra.mxu0 %v2648
    %3653 = vmatpush.bf16.msra.mxu0 %v2638
    %3654 = vmatpush.bf16.msra.mxu0 %v2628
    %3655 = vmatmul.bf16.gmra.mxu0 %v696
    %v3656 = vpop.f32.mrf.mxu0
    %v3657 = vadd.f32 %v3643, %v3656
    %v3658 = vpop.f32.mrf.mxu0
    %v3659 = vadd.f32 %v3645, %v3658
    %3660 = vdwg.mxu0
    %3661 = vmatpush.bf16.msra.mxu0 %v2778
    %3662 = vmatpush.bf16.msra.mxu0 %v2768
    %3663 = vmatpush.bf16.msra.mxu0 %v2758
    %3664 = vmatpush.bf16.msra.mxu0 %v2748
    %3665 = vmatpush.bf16.msra.mxu0 %v2738
    %3666 = vmatpush.bf16.msra.mxu0 %v2728
    %3667 = vmatpush.bf16.msra.mxu0 %v2718
    %3668 = vmatpush.bf16.msra.mxu0 %v2708
    %3669 = vmatmul.bf16.gmra.mxu0 %v697
    %v3670 = vpop.f32.mrf.mxu0
    %v3671 = vadd.f32 %v3657, %v3670
    %v3672 = vpop.f32.mrf.mxu0
    %v3673 = vadd.f32 %v3659, %v3672
    %3674 = vdwg.mxu0
    %3675 = vmatpush.bf16.msra.mxu0 %v2858
    %3676 = vmatpush.bf16.msra.mxu0 %v2848
    %3677 = vmatpush.bf16.msra.mxu0 %v2838
    %3678 = vmatpush.bf16.msra.mxu0 %v2828
    %3679 = vmatpush.bf16.msra.mxu0 %v2818
    %3680 = vmatpush.bf16.msra.mxu0 %v2808
    %3681 = vmatpush.bf16.msra.mxu0 %v2798
    %3682 = vmatpush.bf16.msra.mxu0 %v2788
    %3683 = vmatmul.bf16.gmra.mxu0 %v698
    %v3684 = vpop.f32.mrf.mxu0
    %v3685 = vadd.f32 %v3671, %v3684
    %v3686 = vpop.f32.mrf.mxu0
    %v3687 = vadd.f32 %v3673, %v3686
    %3688 = vdwg.mxu0
    %3689 = vmatpush.bf16.msra.mxu0 %v2938
    %3690 = vmatpush.bf16.msra.mxu0 %v2928
    %3691 = vmatpush.bf16.msra.mxu0 %v2918
    %3692 = vmatpush.bf16.msra.mxu0 %v2908
    %3693 = vmatpush.bf16.msra.mxu0 %v2898
    %3694 = vmatpush.bf16.msra.mxu0 %v2888
    %3695 = vmatpush.bf16.msra.mxu0 %v2878
    %3696 = vmatpush.bf16.msra.mxu0 %v2868
    %3697 = vmatmul.bf16.gmra.mxu0 %v699
    %v3698 = vpop.f32.mrf.mxu0
    %v3699 = vadd.f32 %v3685, %v3698
    %v3700 = vpop.f32.mrf.mxu0
    %v3701 = vadd.f32 %v3687, %v3700
    %3702 = vdwg.mxu0
    %3703 = vmatpush.bf16.msra.mxu0 %v2459
    %3704 = vmatpush.bf16.msra.mxu0 %v2449
    %3705 = vmatpush.bf16.msra.mxu0 %v2439
    %3706 = vmatpush.bf16.msra.mxu0 %v2429
    %3707 = vmatpush.bf16.msra.mxu0 %v2419
    %3708 = vmatpush.bf16.msra.mxu0 %v2409
    %3709 = vmatpush.bf16.msra.mxu0 %v2399
    %3710 = vmatpush.bf16.msra.mxu0 %v2389
    %3711 = vmatmul.bf16.gmra.mxu0 %v693
    %v3712 = vpop.f32.mrf.mxu0
    %v3713 = vadd.f32 %v653, %v3712
    %v3714 = vpop.f32.mrf.mxu0
    %v3715 = vadd.f32 %v653, %v3714
    %3716 = vdwg.mxu0
    %3717 = vmatpush.bf16.msra.mxu0 %v2539
    %3718 = vmatpush.bf16.msra.mxu0 %v2529
    %3719 = vmatpush.bf16.msra.mxu0 %v2519
    %3720 = vmatpush.bf16.msra.mxu0 %v2509
    %3721 = vmatpush.bf16.msra.mxu0 %v2499
    %3722 = vmatpush.bf16.msra.mxu0 %v2489
    %3723 = vmatpush.bf16.msra.mxu0 %v2479
    %3724 = vmatpush.bf16.msra.mxu0 %v2469
    %3725 = vmatmul.bf16.gmra.mxu0 %v694
    %v3726 = vpop.f32.mrf.mxu0
    %v3727 = vadd.f32 %v3713, %v3726
    %v3728 = vpop.f32.mrf.mxu0
    %v3729 = vadd.f32 %v3715, %v3728
    %3730 = vdwg.mxu0
    %3731 = vmatpush.bf16.msra.mxu0 %v2619
    %3732 = vmatpush.bf16.msra.mxu0 %v2609
    %3733 = vmatpush.bf16.msra.mxu0 %v2599
    %3734 = vmatpush.bf16.msra.mxu0 %v2589
    %3735 = vmatpush.bf16.msra.mxu0 %v2579
    %3736 = vmatpush.bf16.msra.mxu0 %v2569
    %3737 = vmatpush.bf16.msra.mxu0 %v2559
    %3738 = vmatpush.bf16.msra.mxu0 %v2549
    %3739 = vmatmul.bf16.gmra.mxu0 %v695
    %v3740 = vpop.f32.mrf.mxu0
    %v3741 = vadd.f32 %v3727, %v3740
    %v3742 = vpop.f32.mrf.mxu0
    %v3743 = vadd.f32 %v3729, %v3742
    %3744 = vdwg.mxu0
    %3745 = vmatpush.bf16.msra.mxu0 %v2699
    %3746 = vmatpush.bf16.msra.mxu0 %v2689
    %3747 = vmatpush.bf16.msra.mxu0 %v2679
    %3748 = vmatpush.bf16.msra.mxu0 %v2669
    %3749 = vmatpush.bf16.msra.mxu0 %v2659
    %3750 = vmatpush.bf16.msra.mxu0 %v2649
    %3751 = vmatpush.bf16.msra.mxu0 %v2639
    %3752 = vmatpush.bf16.msra.mxu0 %v2629
    %3753 = vmatmul.bf16.gmra.mxu0 %v696
    %v3754 = vpop.f32.mrf.mxu0
    %v3755 = vadd.f32 %v3741, %v3754
    %v3756 = vpop.f32.mrf.mxu0
    %v3757 = vadd.f32 %v3743, %v3756
    %3758 = vdwg.mxu0
    %3759 = vmatpush.bf16.msra.mxu0 %v2779
    %3760 = vmatpush.bf16.msra.mxu0 %v2769
    %3761 = vmatpush.bf16.msra.mxu0 %v2759
    %3762 = vmatpush.bf16.msra.mxu0 %v2749
    %3763 = vmatpush.bf16.msra.mxu0 %v2739
    %3764 = vmatpush.bf16.msra.mxu0 %v2729
    %3765 = vmatpush.bf16.msra.mxu0 %v2719
    %3766 = vmatpush.bf16.msra.mxu0 %v2709
    %3767 = vmatmul.bf16.gmra.mxu0 %v697
    %v3768 = vpop.f32.mrf.mxu0
    %v3769 = vadd.f32 %v3755, %v3768
    %v3770 = vpop.f32.mrf.mxu0
    %v3771 = vadd.f32 %v3757, %v3770
    %3772 = vdwg.mxu0
    %3773 = vmatpush.bf16.msra.mxu0 %v2859
    %3774 = vmatpush.bf16.msra.mxu0 %v2849
    %3775 = vmatpush.bf16.msra.mxu0 %v2839
    %3776 = vmatpush.bf16.msra.mxu0 %v2829
    %3777 = vmatpush.bf16.msra.mxu0 %v2819
    %3778 = vmatpush.bf16.msra.mxu0 %v2809
    %3779 = vmatpush.bf16.msra.mxu0 %v2799
    %3780 = vmatpush.bf16.msra.mxu0 %v2789
    %3781 = vmatmul.bf16.gmra.mxu0 %v698
    %v3782 = vpop.f32.mrf.mxu0
    %v3783 = vadd.f32 %v3769, %v3782
    %v3784 = vpop.f32.mrf.mxu0
    %v3785 = vadd.f32 %v3771, %v3784
    %3786 = vdwg.mxu0
    %3787 = vmatpush.bf16.msra.mxu0 %v2939
    %3788 = vmatpush.bf16.msra.mxu0 %v2929
    %3789 = vmatpush.bf16.msra.mxu0 %v2919
    %3790 = vmatpush.bf16.msra.mxu0 %v2909
    %3791 = vmatpush.bf16.msra.mxu0 %v2899
    %3792 = vmatpush.bf16.msra.mxu0 %v2889
    %3793 = vmatpush.bf16.msra.mxu0 %v2879
    %3794 = vmatpush.bf16.msra.mxu0 %v2869
    %3795 = vmatmul.bf16.gmra.mxu0 %v699
    %v3796 = vpop.f32.mrf.mxu0
    %v3797 = vadd.f32 %v3783, %v3796
    %v3798 = vpop.f32.mrf.mxu0
    %v3799 = vadd.f32 %v3785, %v3798
    %3800 = vdwg.mxu0
    %3801 = vmatpush.bf16.msra.mxu0 %v2460
    %3802 = vmatpush.bf16.msra.mxu0 %v2450
    %3803 = vmatpush.bf16.msra.mxu0 %v2440
    %3804 = vmatpush.bf16.msra.mxu0 %v2430
    %3805 = vmatpush.bf16.msra.mxu0 %v2420
    %3806 = vmatpush.bf16.msra.mxu0 %v2410
    %3807 = vmatpush.bf16.msra.mxu0 %v2400
    %3808 = vmatpush.bf16.msra.mxu0 %v2390
    %3809 = vmatmul.bf16.gmra.mxu0 %v693
    %v3810 = vpop.f32.mrf.mxu0
    %v3811 = vadd.f32 %v654, %v3810
    %v3812 = vpop.f32.mrf.mxu0
    %v3813 = vadd.f32 %v654, %v3812
    %3814 = vdwg.mxu0
    %3815 = vmatpush.bf16.msra.mxu0 %v2540
    %3816 = vmatpush.bf16.msra.mxu0 %v2530
    %3817 = vmatpush.bf16.msra.mxu0 %v2520
    %3818 = vmatpush.bf16.msra.mxu0 %v2510
    %3819 = vmatpush.bf16.msra.mxu0 %v2500
    %3820 = vmatpush.bf16.msra.mxu0 %v2490
    %3821 = vmatpush.bf16.msra.mxu0 %v2480
    %3822 = vmatpush.bf16.msra.mxu0 %v2470
    %3823 = vmatmul.bf16.gmra.mxu0 %v694
    %v3824 = vpop.f32.mrf.mxu0
    %v3825 = vadd.f32 %v3811, %v3824
    %v3826 = vpop.f32.mrf.mxu0
    %v3827 = vadd.f32 %v3813, %v3826
    %3828 = vdwg.mxu0
    %3829 = vmatpush.bf16.msra.mxu0 %v2620
    %3830 = vmatpush.bf16.msra.mxu0 %v2610
    %3831 = vmatpush.bf16.msra.mxu0 %v2600
    %3832 = vmatpush.bf16.msra.mxu0 %v2590
    %3833 = vmatpush.bf16.msra.mxu0 %v2580
    %3834 = vmatpush.bf16.msra.mxu0 %v2570
    %3835 = vmatpush.bf16.msra.mxu0 %v2560
    %3836 = vmatpush.bf16.msra.mxu0 %v2550
    %3837 = vmatmul.bf16.gmra.mxu0 %v695
    %v3838 = vpop.f32.mrf.mxu0
    %v3839 = vadd.f32 %v3825, %v3838
    %v3840 = vpop.f32.mrf.mxu0
    %v3841 = vadd.f32 %v3827, %v3840
    %3842 = vdwg.mxu0
    %3843 = vmatpush.bf16.msra.mxu0 %v2700
    %3844 = vmatpush.bf16.msra.mxu0 %v2690
    %3845 = vmatpush.bf16.msra.mxu0 %v2680
    %3846 = vmatpush.bf16.msra.mxu0 %v2670
    %3847 = vmatpush.bf16.msra.mxu0 %v2660
    %3848 = vmatpush.bf16.msra.mxu0 %v2650
    %3849 = vmatpush.bf16.msra.mxu0 %v2640
    %3850 = vmatpush.bf16.msra.mxu0 %v2630
    %3851 = vmatmul.bf16.gmra.mxu0 %v696
    %v3852 = vpop.f32.mrf.mxu0
    %v3853 = vadd.f32 %v3839, %v3852
    %v3854 = vpop.f32.mrf.mxu0
    %v3855 = vadd.f32 %v3841, %v3854
    %3856 = vdwg.mxu0
    %3857 = vmatpush.bf16.msra.mxu0 %v2780
    %3858 = vmatpush.bf16.msra.mxu0 %v2770
    %3859 = vmatpush.bf16.msra.mxu0 %v2760
    %3860 = vmatpush.bf16.msra.mxu0 %v2750
    %3861 = vmatpush.bf16.msra.mxu0 %v2740
    %3862 = vmatpush.bf16.msra.mxu0 %v2730
    %3863 = vmatpush.bf16.msra.mxu0 %v2720
    %3864 = vmatpush.bf16.msra.mxu0 %v2710
    %3865 = vmatmul.bf16.gmra.mxu0 %v697
    %v3866 = vpop.f32.mrf.mxu0
    %v3867 = vadd.f32 %v3853, %v3866
    %v3868 = vpop.f32.mrf.mxu0
    %v3869 = vadd.f32 %v3855, %v3868
    %3870 = vdwg.mxu0
    %3871 = vmatpush.bf16.msra.mxu0 %v2860
    %3872 = vmatpush.bf16.msra.mxu0 %v2850
    %3873 = vmatpush.bf16.msra.mxu0 %v2840
    %3874 = vmatpush.bf16.msra.mxu0 %v2830
    %3875 = vmatpush.bf16.msra.mxu0 %v2820
    %3876 = vmatpush.bf16.msra.mxu0 %v2810
    %3877 = vmatpush.bf16.msra.mxu0 %v2800
    %3878 = vmatpush.bf16.msra.mxu0 %v2790
    %3879 = vmatmul.bf16.gmra.mxu0 %v698
    %v3880 = vpop.f32.mrf.mxu0
    %v3881 = vadd.f32 %v3867, %v3880
    %v3882 = vpop.f32.mrf.mxu0
    %v3883 = vadd.f32 %v3869, %v3882
    %3884 = vdwg.mxu0
    %3885 = vmatpush.bf16.msra.mxu0 %v2940
    %3886 = vmatpush.bf16.msra.mxu0 %v2930
    %3887 = vmatpush.bf16.msra.mxu0 %v2920
    %3888 = vmatpush.bf16.msra.mxu0 %v2910
    %3889 = vmatpush.bf16.msra.mxu0 %v2900
    %3890 = vmatpush.bf16.msra.mxu0 %v2890
    %3891 = vmatpush.bf16.msra.mxu0 %v2880
    %3892 = vmatpush.bf16.msra.mxu0 %v2870
    %3893 = vmatmul.bf16.gmra.mxu0 %v699
    %v3894 = vpop.f32.mrf.mxu0
    %v3895 = vadd.f32 %v3881, %v3894
    %v3896 = vpop.f32.mrf.mxu0
    %v3897 = vadd.f32 %v3883, %v3896
    %3898 = vdwg.mxu0
    %3899 = vmatpush.bf16.msra.mxu0 %v2461
    %3900 = vmatpush.bf16.msra.mxu0 %v2451
    %3901 = vmatpush.bf16.msra.mxu0 %v2441
    %3902 = vmatpush.bf16.msra.mxu0 %v2431
    %3903 = vmatpush.bf16.msra.mxu0 %v2421
    %3904 = vmatpush.bf16.msra.mxu0 %v2411
    %3905 = vmatpush.bf16.msra.mxu0 %v2401
    %3906 = vmatpush.bf16.msra.mxu0 %v2391
    %3907 = vmatmul.bf16.gmra.mxu0 %v693
    %v3908 = vpop.f32.mrf.mxu0
    %v3909 = vadd.f32 %v655, %v3908
    %v3910 = vpop.f32.mrf.mxu0
    %v3911 = vadd.f32 %v655, %v3910
    %3912 = vdwg.mxu0
    %3913 = vmatpush.bf16.msra.mxu0 %v2541
    %3914 = vmatpush.bf16.msra.mxu0 %v2531
    %3915 = vmatpush.bf16.msra.mxu0 %v2521
    %3916 = vmatpush.bf16.msra.mxu0 %v2511
    %3917 = vmatpush.bf16.msra.mxu0 %v2501
    %3918 = vmatpush.bf16.msra.mxu0 %v2491
    %3919 = vmatpush.bf16.msra.mxu0 %v2481
    %3920 = vmatpush.bf16.msra.mxu0 %v2471
    %3921 = vmatmul.bf16.gmra.mxu0 %v694
    %v3922 = vpop.f32.mrf.mxu0
    %v3923 = vadd.f32 %v3909, %v3922
    %v3924 = vpop.f32.mrf.mxu0
    %v3925 = vadd.f32 %v3911, %v3924
    %3926 = vdwg.mxu0
    %3927 = vmatpush.bf16.msra.mxu0 %v2621
    %3928 = vmatpush.bf16.msra.mxu0 %v2611
    %3929 = vmatpush.bf16.msra.mxu0 %v2601
    %3930 = vmatpush.bf16.msra.mxu0 %v2591
    %3931 = vmatpush.bf16.msra.mxu0 %v2581
    %3932 = vmatpush.bf16.msra.mxu0 %v2571
    %3933 = vmatpush.bf16.msra.mxu0 %v2561
    %3934 = vmatpush.bf16.msra.mxu0 %v2551
    %3935 = vmatmul.bf16.gmra.mxu0 %v695
    %v3936 = vpop.f32.mrf.mxu0
    %v3937 = vadd.f32 %v3923, %v3936
    %v3938 = vpop.f32.mrf.mxu0
    %v3939 = vadd.f32 %v3925, %v3938
    %3940 = vdwg.mxu0
    %3941 = vmatpush.bf16.msra.mxu0 %v2701
    %3942 = vmatpush.bf16.msra.mxu0 %v2691
    %3943 = vmatpush.bf16.msra.mxu0 %v2681
    %3944 = vmatpush.bf16.msra.mxu0 %v2671
    %3945 = vmatpush.bf16.msra.mxu0 %v2661
    %3946 = vmatpush.bf16.msra.mxu0 %v2651
    %3947 = vmatpush.bf16.msra.mxu0 %v2641
    %3948 = vmatpush.bf16.msra.mxu0 %v2631
    %3949 = vmatmul.bf16.gmra.mxu0 %v696
    %v3950 = vpop.f32.mrf.mxu0
    %v3951 = vadd.f32 %v3937, %v3950
    %v3952 = vpop.f32.mrf.mxu0
    %v3953 = vadd.f32 %v3939, %v3952
    %3954 = vdwg.mxu0
    %3955 = vmatpush.bf16.msra.mxu0 %v2781
    %3956 = vmatpush.bf16.msra.mxu0 %v2771
    %3957 = vmatpush.bf16.msra.mxu0 %v2761
    %3958 = vmatpush.bf16.msra.mxu0 %v2751
    %3959 = vmatpush.bf16.msra.mxu0 %v2741
    %3960 = vmatpush.bf16.msra.mxu0 %v2731
    %3961 = vmatpush.bf16.msra.mxu0 %v2721
    %3962 = vmatpush.bf16.msra.mxu0 %v2711
    %3963 = vmatmul.bf16.gmra.mxu0 %v697
    %v3964 = vpop.f32.mrf.mxu0
    %v3965 = vadd.f32 %v3951, %v3964
    %v3966 = vpop.f32.mrf.mxu0
    %v3967 = vadd.f32 %v3953, %v3966
    %3968 = vdwg.mxu0
    %3969 = vmatpush.bf16.msra.mxu0 %v2861
    %3970 = vmatpush.bf16.msra.mxu0 %v2851
    %3971 = vmatpush.bf16.msra.mxu0 %v2841
    %3972 = vmatpush.bf16.msra.mxu0 %v2831
    %3973 = vmatpush.bf16.msra.mxu0 %v2821
    %3974 = vmatpush.bf16.msra.mxu0 %v2811
    %3975 = vmatpush.bf16.msra.mxu0 %v2801
    %3976 = vmatpush.bf16.msra.mxu0 %v2791
    %3977 = vmatmul.bf16.gmra.mxu0 %v698
    %v3978 = vpop.f32.mrf.mxu0
    %v3979 = vadd.f32 %v3965, %v3978
    %v3980 = vpop.f32.mrf.mxu0
    %v3981 = vadd.f32 %v3967, %v3980
    %3982 = vdwg.mxu0
    %3983 = vmatpush.bf16.msra.mxu0 %v2941
    %3984 = vmatpush.bf16.msra.mxu0 %v2931
    %3985 = vmatpush.bf16.msra.mxu0 %v2921
    %3986 = vmatpush.bf16.msra.mxu0 %v2911
    %3987 = vmatpush.bf16.msra.mxu0 %v2901
    %3988 = vmatpush.bf16.msra.mxu0 %v2891
    %3989 = vmatpush.bf16.msra.mxu0 %v2881
    %3990 = vmatpush.bf16.msra.mxu0 %v2871
    %3991 = vmatmul.bf16.gmra.mxu0 %v699
    %v3992 = vpop.f32.mrf.mxu0
    %v3993 = vadd.f32 %v3979, %v3992
    %v3994 = vpop.f32.mrf.mxu0
    %v3995 = vadd.f32 %v3981, %v3994
    %3996 = vdwg.mxu0
    %3997 = vmatpush.bf16.msra.mxu0 %v2462
    %3998 = vmatpush.bf16.msra.mxu0 %v2452
    %3999 = vmatpush.bf16.msra.mxu0 %v2442
    %4000 = vmatpush.bf16.msra.mxu0 %v2432
    %4001 = vmatpush.bf16.msra.mxu0 %v2422
    %4002 = vmatpush.bf16.msra.mxu0 %v2412
    %4003 = vmatpush.bf16.msra.mxu0 %v2402
    %4004 = vmatpush.bf16.msra.mxu0 %v2392
    %4005 = vmatmul.bf16.gmra.mxu0 %v693
    %v4006 = vpop.f32.mrf.mxu0
    %v4007 = vadd.f32 %v656, %v4006
    %v4008 = vpop.f32.mrf.mxu0
    %v4009 = vadd.f32 %v656, %v4008
    %4010 = vdwg.mxu0
    %4011 = vmatpush.bf16.msra.mxu0 %v2542
    %4012 = vmatpush.bf16.msra.mxu0 %v2532
    %4013 = vmatpush.bf16.msra.mxu0 %v2522
    %4014 = vmatpush.bf16.msra.mxu0 %v2512
    %4015 = vmatpush.bf16.msra.mxu0 %v2502
    %4016 = vmatpush.bf16.msra.mxu0 %v2492
    %4017 = vmatpush.bf16.msra.mxu0 %v2482
    %4018 = vmatpush.bf16.msra.mxu0 %v2472
    %4019 = vmatmul.bf16.gmra.mxu0 %v694
    %v4020 = vpop.f32.mrf.mxu0
    %v4021 = vadd.f32 %v4007, %v4020
    %v4022 = vpop.f32.mrf.mxu0
    %v4023 = vadd.f32 %v4009, %v4022
    %4024 = vdwg.mxu0
    %4025 = vmatpush.bf16.msra.mxu0 %v2622
    %4026 = vmatpush.bf16.msra.mxu0 %v2612
    %4027 = vmatpush.bf16.msra.mxu0 %v2602
    %4028 = vmatpush.bf16.msra.mxu0 %v2592
    %4029 = vmatpush.bf16.msra.mxu0 %v2582
    %4030 = vmatpush.bf16.msra.mxu0 %v2572
    %4031 = vmatpush.bf16.msra.mxu0 %v2562
    %4032 = vmatpush.bf16.msra.mxu0 %v2552
    %4033 = vmatmul.bf16.gmra.mxu0 %v695
    %v4034 = vpop.f32.mrf.mxu0
    %v4035 = vadd.f32 %v4021, %v4034
    %v4036 = vpop.f32.mrf.mxu0
    %v4037 = vadd.f32 %v4023, %v4036
    %4038 = vdwg.mxu0
    %4039 = vmatpush.bf16.msra.mxu0 %v2702
    %4040 = vmatpush.bf16.msra.mxu0 %v2692
    %4041 = vmatpush.bf16.msra.mxu0 %v2682
    %4042 = vmatpush.bf16.msra.mxu0 %v2672
    %4043 = vmatpush.bf16.msra.mxu0 %v2662
    %4044 = vmatpush.bf16.msra.mxu0 %v2652
    %4045 = vmatpush.bf16.msra.mxu0 %v2642
    %4046 = vmatpush.bf16.msra.mxu0 %v2632
    %4047 = vmatmul.bf16.gmra.mxu0 %v696
    %v4048 = vpop.f32.mrf.mxu0
    %v4049 = vadd.f32 %v4035, %v4048
    %v4050 = vpop.f32.mrf.mxu0
    %v4051 = vadd.f32 %v4037, %v4050
    %4052 = vdwg.mxu0
    %4053 = vmatpush.bf16.msra.mxu0 %v2782
    %4054 = vmatpush.bf16.msra.mxu0 %v2772
    %4055 = vmatpush.bf16.msra.mxu0 %v2762
    %4056 = vmatpush.bf16.msra.mxu0 %v2752
    %4057 = vmatpush.bf16.msra.mxu0 %v2742
    %4058 = vmatpush.bf16.msra.mxu0 %v2732
    %4059 = vmatpush.bf16.msra.mxu0 %v2722
    %4060 = vmatpush.bf16.msra.mxu0 %v2712
    %4061 = vmatmul.bf16.gmra.mxu0 %v697
    %v4062 = vpop.f32.mrf.mxu0
    %v4063 = vadd.f32 %v4049, %v4062
    %v4064 = vpop.f32.mrf.mxu0
    %v4065 = vadd.f32 %v4051, %v4064
    %4066 = vdwg.mxu0
    %4067 = vmatpush.bf16.msra.mxu0 %v2862
    %4068 = vmatpush.bf16.msra.mxu0 %v2852
    %4069 = vmatpush.bf16.msra.mxu0 %v2842
    %4070 = vmatpush.bf16.msra.mxu0 %v2832
    %4071 = vmatpush.bf16.msra.mxu0 %v2822
    %4072 = vmatpush.bf16.msra.mxu0 %v2812
    %4073 = vmatpush.bf16.msra.mxu0 %v2802
    %4074 = vmatpush.bf16.msra.mxu0 %v2792
    %4075 = vmatmul.bf16.gmra.mxu0 %v698
    %v4076 = vpop.f32.mrf.mxu0
    %v4077 = vadd.f32 %v4063, %v4076
    %v4078 = vpop.f32.mrf.mxu0
    %v4079 = vadd.f32 %v4065, %v4078
    %4080 = vdwg.mxu0
    %4081 = vmatpush.bf16.msra.mxu0 %v2942
    %4082 = vmatpush.bf16.msra.mxu0 %v2932
    %4083 = vmatpush.bf16.msra.mxu0 %v2922
    %4084 = vmatpush.bf16.msra.mxu0 %v2912
    %4085 = vmatpush.bf16.msra.mxu0 %v2902
    %4086 = vmatpush.bf16.msra.mxu0 %v2892
    %4087 = vmatpush.bf16.msra.mxu0 %v2882
    %4088 = vmatpush.bf16.msra.mxu0 %v2872
    %4089 = vmatmul.bf16.gmra.mxu0 %v699
    %v4090 = vpop.f32.mrf.mxu0
    %v4091 = vadd.f32 %v4077, %v4090
    %v4092 = vpop.f32.mrf.mxu0
    %v4093 = vadd.f32 %v4079, %v4092
    %4094 = vdwg.mxu0
    %4095 = vmatpush.bf16.msra.mxu0 %v2463
    %4096 = vmatpush.bf16.msra.mxu0 %v2453
    %4097 = vmatpush.bf16.msra.mxu0 %v2443
    %4098 = vmatpush.bf16.msra.mxu0 %v2433
    %4099 = vmatpush.bf16.msra.mxu0 %v2423
    %4100 = vmatpush.bf16.msra.mxu0 %v2413
    %4101 = vmatpush.bf16.msra.mxu0 %v2403
    %4102 = vmatpush.bf16.msra.mxu0 %v2393
    %4103 = vmatmul.bf16.gmra.mxu0 %v693
    %v4104 = vpop.f32.mrf.mxu0
    %v4105 = vadd.f32 %v657, %v4104
    %v4106 = vpop.f32.mrf.mxu0
    %v4107 = vadd.f32 %v657, %v4106
    %4108 = vdwg.mxu0
    %4109 = vmatpush.bf16.msra.mxu0 %v2543
    %4110 = vmatpush.bf16.msra.mxu0 %v2533
    %4111 = vmatpush.bf16.msra.mxu0 %v2523
    %4112 = vmatpush.bf16.msra.mxu0 %v2513
    %4113 = vmatpush.bf16.msra.mxu0 %v2503
    %4114 = vmatpush.bf16.msra.mxu0 %v2493
    %4115 = vmatpush.bf16.msra.mxu0 %v2483
    %4116 = vmatpush.bf16.msra.mxu0 %v2473
    %4117 = vmatmul.bf16.gmra.mxu0 %v694
    %v4118 = vpop.f32.mrf.mxu0
    %v4119 = vadd.f32 %v4105, %v4118
    %v4120 = vpop.f32.mrf.mxu0
    %v4121 = vadd.f32 %v4107, %v4120
    %4122 = vdwg.mxu0
    %4123 = vmatpush.bf16.msra.mxu0 %v2623
    %4124 = vmatpush.bf16.msra.mxu0 %v2613
    %4125 = vmatpush.bf16.msra.mxu0 %v2603
    %4126 = vmatpush.bf16.msra.mxu0 %v2593
    %4127 = vmatpush.bf16.msra.mxu0 %v2583
    %4128 = vmatpush.bf16.msra.mxu0 %v2573
    %4129 = vmatpush.bf16.msra.mxu0 %v2563
    %4130 = vmatpush.bf16.msra.mxu0 %v2553
    %4131 = vmatmul.bf16.gmra.mxu0 %v695
    %v4132 = vpop.f32.mrf.mxu0
    %v4133 = vadd.f32 %v4119, %v4132
    %v4134 = vpop.f32.mrf.mxu0
    %v4135 = vadd.f32 %v4121, %v4134
    %4136 = vdwg.mxu0
    %4137 = vmatpush.bf16.msra.mxu0 %v2703
    %4138 = vmatpush.bf16.msra.mxu0 %v2693
    %4139 = vmatpush.bf16.msra.mxu0 %v2683
    %4140 = vmatpush.bf16.msra.mxu0 %v2673
    %4141 = vmatpush.bf16.msra.mxu0 %v2663
    %4142 = vmatpush.bf16.msra.mxu0 %v2653
    %4143 = vmatpush.bf16.msra.mxu0 %v2643
    %4144 = vmatpush.bf16.msra.mxu0 %v2633
    %4145 = vmatmul.bf16.gmra.mxu0 %v696
    %v4146 = vpop.f32.mrf.mxu0
    %v4147 = vadd.f32 %v4133, %v4146
    %v4148 = vpop.f32.mrf.mxu0
    %v4149 = vadd.f32 %v4135, %v4148
    %4150 = vdwg.mxu0
    %4151 = vmatpush.bf16.msra.mxu0 %v2783
    %4152 = vmatpush.bf16.msra.mxu0 %v2773
    %4153 = vmatpush.bf16.msra.mxu0 %v2763
    %4154 = vmatpush.bf16.msra.mxu0 %v2753
    %4155 = vmatpush.bf16.msra.mxu0 %v2743
    %4156 = vmatpush.bf16.msra.mxu0 %v2733
    %4157 = vmatpush.bf16.msra.mxu0 %v2723
    %4158 = vmatpush.bf16.msra.mxu0 %v2713
    %4159 = vmatmul.bf16.gmra.mxu0 %v697
    %v4160 = vpop.f32.mrf.mxu0
    %v4161 = vadd.f32 %v4147, %v4160
    %v4162 = vpop.f32.mrf.mxu0
    %v4163 = vadd.f32 %v4149, %v4162
    %4164 = vdwg.mxu0
    %4165 = vmatpush.bf16.msra.mxu0 %v2863
    %4166 = vmatpush.bf16.msra.mxu0 %v2853
    %4167 = vmatpush.bf16.msra.mxu0 %v2843
    %4168 = vmatpush.bf16.msra.mxu0 %v2833
    %4169 = vmatpush.bf16.msra.mxu0 %v2823
    %4170 = vmatpush.bf16.msra.mxu0 %v2813
    %4171 = vmatpush.bf16.msra.mxu0 %v2803
    %4172 = vmatpush.bf16.msra.mxu0 %v2793
    %4173 = vmatmul.bf16.gmra.mxu0 %v698
    %v4174 = vpop.f32.mrf.mxu0
    %v4175 = vadd.f32 %v4161, %v4174
    %v4176 = vpop.f32.mrf.mxu0
    %v4177 = vadd.f32 %v4163, %v4176
    %4178 = vdwg.mxu0
    %4179 = vmatpush.bf16.msra.mxu0 %v2943
    %4180 = vmatpush.bf16.msra.mxu0 %v2933
    %4181 = vmatpush.bf16.msra.mxu0 %v2923
    %4182 = vmatpush.bf16.msra.mxu0 %v2913
    %4183 = vmatpush.bf16.msra.mxu0 %v2903
    %4184 = vmatpush.bf16.msra.mxu0 %v2893
    %4185 = vmatpush.bf16.msra.mxu0 %v2883
    %4186 = vmatpush.bf16.msra.mxu0 %v2873
    %4187 = vmatmul.bf16.gmra.mxu0 %v699
    %v4188 = vpop.f32.mrf.mxu0
    %v4189 = vadd.f32 %v4175, %v4188
    %v4190 = vpop.f32.mrf.mxu0
    %v4191 = vadd.f32 %v4177, %v4190
    %4192 = vdwg.mxu0
    %4193 = vmatpush.bf16.msra.mxu0 %v2464
    %4194 = vmatpush.bf16.msra.mxu0 %v2454
    %4195 = vmatpush.bf16.msra.mxu0 %v2444
    %4196 = vmatpush.bf16.msra.mxu0 %v2434
    %4197 = vmatpush.bf16.msra.mxu0 %v2424
    %4198 = vmatpush.bf16.msra.mxu0 %v2414
    %4199 = vmatpush.bf16.msra.mxu0 %v2404
    %4200 = vmatpush.bf16.msra.mxu0 %v2394
    %4201 = vmatmul.bf16.gmra.mxu0 %v693
    %v4202 = vpop.f32.mrf.mxu0
    %v4203 = vadd.f32 %v658, %v4202
    %v4204 = vpop.f32.mrf.mxu0
    %v4205 = vadd.f32 %v658, %v4204
    %4206 = vdwg.mxu0
    %4207 = vmatpush.bf16.msra.mxu0 %v2544
    %4208 = vmatpush.bf16.msra.mxu0 %v2534
    %4209 = vmatpush.bf16.msra.mxu0 %v2524
    %4210 = vmatpush.bf16.msra.mxu0 %v2514
    %4211 = vmatpush.bf16.msra.mxu0 %v2504
    %4212 = vmatpush.bf16.msra.mxu0 %v2494
    %4213 = vmatpush.bf16.msra.mxu0 %v2484
    %4214 = vmatpush.bf16.msra.mxu0 %v2474
    %4215 = vmatmul.bf16.gmra.mxu0 %v694
    %v4216 = vpop.f32.mrf.mxu0
    %v4217 = vadd.f32 %v4203, %v4216
    %v4218 = vpop.f32.mrf.mxu0
    %v4219 = vadd.f32 %v4205, %v4218
    %4220 = vdwg.mxu0
    %4221 = vmatpush.bf16.msra.mxu0 %v2624
    %4222 = vmatpush.bf16.msra.mxu0 %v2614
    %4223 = vmatpush.bf16.msra.mxu0 %v2604
    %4224 = vmatpush.bf16.msra.mxu0 %v2594
    %4225 = vmatpush.bf16.msra.mxu0 %v2584
    %4226 = vmatpush.bf16.msra.mxu0 %v2574
    %4227 = vmatpush.bf16.msra.mxu0 %v2564
    %4228 = vmatpush.bf16.msra.mxu0 %v2554
    %4229 = vmatmul.bf16.gmra.mxu0 %v695
    %v4230 = vpop.f32.mrf.mxu0
    %v4231 = vadd.f32 %v4217, %v4230
    %v4232 = vpop.f32.mrf.mxu0
    %v4233 = vadd.f32 %v4219, %v4232
    %4234 = vdwg.mxu0
    %4235 = vmatpush.bf16.msra.mxu0 %v2704
    %4236 = vmatpush.bf16.msra.mxu0 %v2694
    %4237 = vmatpush.bf16.msra.mxu0 %v2684
    %4238 = vmatpush.bf16.msra.mxu0 %v2674
    %4239 = vmatpush.bf16.msra.mxu0 %v2664
    %4240 = vmatpush.bf16.msra.mxu0 %v2654
    %4241 = vmatpush.bf16.msra.mxu0 %v2644
    %4242 = vmatpush.bf16.msra.mxu0 %v2634
    %4243 = vmatmul.bf16.gmra.mxu0 %v696
    %v4244 = vpop.f32.mrf.mxu0
    %v4245 = vadd.f32 %v4231, %v4244
    %v4246 = vpop.f32.mrf.mxu0
    %v4247 = vadd.f32 %v4233, %v4246
    %4248 = vdwg.mxu0
    %4249 = vmatpush.bf16.msra.mxu0 %v2784
    %4250 = vmatpush.bf16.msra.mxu0 %v2774
    %4251 = vmatpush.bf16.msra.mxu0 %v2764
    %4252 = vmatpush.bf16.msra.mxu0 %v2754
    %4253 = vmatpush.bf16.msra.mxu0 %v2744
    %4254 = vmatpush.bf16.msra.mxu0 %v2734
    %4255 = vmatpush.bf16.msra.mxu0 %v2724
    %4256 = vmatpush.bf16.msra.mxu0 %v2714
    %4257 = vmatmul.bf16.gmra.mxu0 %v697
    %v4258 = vpop.f32.mrf.mxu0
    %v4259 = vadd.f32 %v4245, %v4258
    %v4260 = vpop.f32.mrf.mxu0
    %v4261 = vadd.f32 %v4247, %v4260
    %4262 = vdwg.mxu0
    %4263 = vmatpush.bf16.msra.mxu0 %v2864
    %4264 = vmatpush.bf16.msra.mxu0 %v2854
    %4265 = vmatpush.bf16.msra.mxu0 %v2844
    %4266 = vmatpush.bf16.msra.mxu0 %v2834
    %4267 = vmatpush.bf16.msra.mxu0 %v2824
    %4268 = vmatpush.bf16.msra.mxu0 %v2814
    %4269 = vmatpush.bf16.msra.mxu0 %v2804
    %4270 = vmatpush.bf16.msra.mxu0 %v2794
    %4271 = vmatmul.bf16.gmra.mxu0 %v698
    %v4272 = vpop.f32.mrf.mxu0
    %v4273 = vadd.f32 %v4259, %v4272
    %v4274 = vpop.f32.mrf.mxu0
    %v4275 = vadd.f32 %v4261, %v4274
    %4276 = vdwg.mxu0
    %4277 = vmatpush.bf16.msra.mxu0 %v2944
    %4278 = vmatpush.bf16.msra.mxu0 %v2934
    %4279 = vmatpush.bf16.msra.mxu0 %v2924
    %4280 = vmatpush.bf16.msra.mxu0 %v2914
    %4281 = vmatpush.bf16.msra.mxu0 %v2904
    %4282 = vmatpush.bf16.msra.mxu0 %v2894
    %4283 = vmatpush.bf16.msra.mxu0 %v2884
    %4284 = vmatpush.bf16.msra.mxu0 %v2874
    %4285 = vmatmul.bf16.gmra.mxu0 %v699
    %v4286 = vpop.f32.mrf.mxu0
    %v4287 = vadd.f32 %v4273, %v4286
    %v4288 = vpop.f32.mrf.mxu0
    %v4289 = vadd.f32 %v4275, %v4288
    %4290 = vdwg.mxu0
    %4291 = vmatpush.bf16.msra.mxu0 %v2465
    %4292 = vmatpush.bf16.msra.mxu0 %v2455
    %4293 = vmatpush.bf16.msra.mxu0 %v2445
    %4294 = vmatpush.bf16.msra.mxu0 %v2435
    %4295 = vmatpush.bf16.msra.mxu0 %v2425
    %4296 = vmatpush.bf16.msra.mxu0 %v2415
    %4297 = vmatpush.bf16.msra.mxu0 %v2405
    %4298 = vmatpush.bf16.msra.mxu0 %v2395
    %4299 = vmatmul.bf16.gmra.mxu0 %v693
    %v4300 = vpop.f32.mrf.mxu0
    %v4301 = vadd.f32 %v659, %v4300
    %v4302 = vpop.f32.mrf.mxu0
    %v4303 = vadd.f32 %v659, %v4302
    %4304 = vdwg.mxu0
    %4305 = vmatpush.bf16.msra.mxu0 %v2545
    %4306 = vmatpush.bf16.msra.mxu0 %v2535
    %4307 = vmatpush.bf16.msra.mxu0 %v2525
    %4308 = vmatpush.bf16.msra.mxu0 %v2515
    %4309 = vmatpush.bf16.msra.mxu0 %v2505
    %4310 = vmatpush.bf16.msra.mxu0 %v2495
    %4311 = vmatpush.bf16.msra.mxu0 %v2485
    %4312 = vmatpush.bf16.msra.mxu0 %v2475
    %4313 = vmatmul.bf16.gmra.mxu0 %v694
    %v4314 = vpop.f32.mrf.mxu0
    %v4315 = vadd.f32 %v4301, %v4314
    %v4316 = vpop.f32.mrf.mxu0
    %v4317 = vadd.f32 %v4303, %v4316
    %4318 = vdwg.mxu0
    %4319 = vmatpush.bf16.msra.mxu0 %v2625
    %4320 = vmatpush.bf16.msra.mxu0 %v2615
    %4321 = vmatpush.bf16.msra.mxu0 %v2605
    %4322 = vmatpush.bf16.msra.mxu0 %v2595
    %4323 = vmatpush.bf16.msra.mxu0 %v2585
    %4324 = vmatpush.bf16.msra.mxu0 %v2575
    %4325 = vmatpush.bf16.msra.mxu0 %v2565
    %4326 = vmatpush.bf16.msra.mxu0 %v2555
    %4327 = vmatmul.bf16.gmra.mxu0 %v695
    %v4328 = vpop.f32.mrf.mxu0
    %v4329 = vadd.f32 %v4315, %v4328
    %v4330 = vpop.f32.mrf.mxu0
    %v4331 = vadd.f32 %v4317, %v4330
    %4332 = vdwg.mxu0
    %4333 = vmatpush.bf16.msra.mxu0 %v2705
    %4334 = vmatpush.bf16.msra.mxu0 %v2695
    %4335 = vmatpush.bf16.msra.mxu0 %v2685
    %4336 = vmatpush.bf16.msra.mxu0 %v2675
    %4337 = vmatpush.bf16.msra.mxu0 %v2665
    %4338 = vmatpush.bf16.msra.mxu0 %v2655
    %4339 = vmatpush.bf16.msra.mxu0 %v2645
    %4340 = vmatpush.bf16.msra.mxu0 %v2635
    %4341 = vmatmul.bf16.gmra.mxu0 %v696
    %v4342 = vpop.f32.mrf.mxu0
    %v4343 = vadd.f32 %v4329, %v4342
    %v4344 = vpop.f32.mrf.mxu0
    %v4345 = vadd.f32 %v4331, %v4344
    %4346 = vdwg.mxu0
    %4347 = vmatpush.bf16.msra.mxu0 %v2785
    %4348 = vmatpush.bf16.msra.mxu0 %v2775
    %4349 = vmatpush.bf16.msra.mxu0 %v2765
    %4350 = vmatpush.bf16.msra.mxu0 %v2755
    %4351 = vmatpush.bf16.msra.mxu0 %v2745
    %4352 = vmatpush.bf16.msra.mxu0 %v2735
    %4353 = vmatpush.bf16.msra.mxu0 %v2725
    %4354 = vmatpush.bf16.msra.mxu0 %v2715
    %4355 = vmatmul.bf16.gmra.mxu0 %v697
    %v4356 = vpop.f32.mrf.mxu0
    %v4357 = vadd.f32 %v4343, %v4356
    %v4358 = vpop.f32.mrf.mxu0
    %v4359 = vadd.f32 %v4345, %v4358
    %4360 = vdwg.mxu0
    %4361 = vmatpush.bf16.msra.mxu0 %v2865
    %4362 = vmatpush.bf16.msra.mxu0 %v2855
    %4363 = vmatpush.bf16.msra.mxu0 %v2845
    %4364 = vmatpush.bf16.msra.mxu0 %v2835
    %4365 = vmatpush.bf16.msra.mxu0 %v2825
    %4366 = vmatpush.bf16.msra.mxu0 %v2815
    %4367 = vmatpush.bf16.msra.mxu0 %v2805
    %4368 = vmatpush.bf16.msra.mxu0 %v2795
    %4369 = vmatmul.bf16.gmra.mxu0 %v698
    %v4370 = vpop.f32.mrf.mxu0
    %v4371 = vadd.f32 %v4357, %v4370
    %v4372 = vpop.f32.mrf.mxu0
    %v4373 = vadd.f32 %v4359, %v4372
    %4374 = vdwg.mxu0
    %4375 = vmatpush.bf16.msra.mxu0 %v2945
    %4376 = vmatpush.bf16.msra.mxu0 %v2935
    %4377 = vmatpush.bf16.msra.mxu0 %v2925
    %4378 = vmatpush.bf16.msra.mxu0 %v2915
    %4379 = vmatpush.bf16.msra.mxu0 %v2905
    %4380 = vmatpush.bf16.msra.mxu0 %v2895
    %4381 = vmatpush.bf16.msra.mxu0 %v2885
    %4382 = vmatpush.bf16.msra.mxu0 %v2875
    %4383 = vmatmul.bf16.gmra.mxu0 %v699
    %v4384 = vpop.f32.mrf.mxu0
    %v4385 = vadd.f32 %v4371, %v4384
    %v4386 = vpop.f32.mrf.mxu0
    %v4387 = vadd.f32 %v4373, %v4386
    %4388 = vdwg.mxu0
    %4389 = vmatpush.bf16.msra.mxu0 %v2466
    %4390 = vmatpush.bf16.msra.mxu0 %v2456
    %4391 = vmatpush.bf16.msra.mxu0 %v2446
    %4392 = vmatpush.bf16.msra.mxu0 %v2436
    %4393 = vmatpush.bf16.msra.mxu0 %v2426
    %4394 = vmatpush.bf16.msra.mxu0 %v2416
    %4395 = vmatpush.bf16.msra.mxu0 %v2406
    %4396 = vmatpush.bf16.msra.mxu0 %v2396
    %4397 = vmatmul.bf16.gmra.mxu0 %v693
    %v4398 = vpop.f32.mrf.mxu0
    %v4399 = vadd.f32 %v660, %v4398
    %v4400 = vpop.f32.mrf.mxu0
    %v4401 = vadd.f32 %v660, %v4400
    %4402 = vdwg.mxu0
    %4403 = vmatpush.bf16.msra.mxu0 %v2546
    %4404 = vmatpush.bf16.msra.mxu0 %v2536
    %4405 = vmatpush.bf16.msra.mxu0 %v2526
    %4406 = vmatpush.bf16.msra.mxu0 %v2516
    %4407 = vmatpush.bf16.msra.mxu0 %v2506
    %4408 = vmatpush.bf16.msra.mxu0 %v2496
    %4409 = vmatpush.bf16.msra.mxu0 %v2486
    %4410 = vmatpush.bf16.msra.mxu0 %v2476
    %4411 = vmatmul.bf16.gmra.mxu0 %v694
    %v4412 = vpop.f32.mrf.mxu0
    %v4413 = vadd.f32 %v4399, %v4412
    %v4414 = vpop.f32.mrf.mxu0
    %v4415 = vadd.f32 %v4401, %v4414
    %4416 = vdwg.mxu0
    %4417 = vmatpush.bf16.msra.mxu0 %v2626
    %4418 = vmatpush.bf16.msra.mxu0 %v2616
    %4419 = vmatpush.bf16.msra.mxu0 %v2606
    %4420 = vmatpush.bf16.msra.mxu0 %v2596
    %4421 = vmatpush.bf16.msra.mxu0 %v2586
    %4422 = vmatpush.bf16.msra.mxu0 %v2576
    %4423 = vmatpush.bf16.msra.mxu0 %v2566
    %4424 = vmatpush.bf16.msra.mxu0 %v2556
    %4425 = vmatmul.bf16.gmra.mxu0 %v695
    %v4426 = vpop.f32.mrf.mxu0
    %v4427 = vadd.f32 %v4413, %v4426
    %v4428 = vpop.f32.mrf.mxu0
    %v4429 = vadd.f32 %v4415, %v4428
    %4430 = vdwg.mxu0
    %4431 = vmatpush.bf16.msra.mxu0 %v2706
    %4432 = vmatpush.bf16.msra.mxu0 %v2696
    %4433 = vmatpush.bf16.msra.mxu0 %v2686
    %4434 = vmatpush.bf16.msra.mxu0 %v2676
    %4435 = vmatpush.bf16.msra.mxu0 %v2666
    %4436 = vmatpush.bf16.msra.mxu0 %v2656
    %4437 = vmatpush.bf16.msra.mxu0 %v2646
    %4438 = vmatpush.bf16.msra.mxu0 %v2636
    %4439 = vmatmul.bf16.gmra.mxu0 %v696
    %v4440 = vpop.f32.mrf.mxu0
    %v4441 = vadd.f32 %v4427, %v4440
    %v4442 = vpop.f32.mrf.mxu0
    %v4443 = vadd.f32 %v4429, %v4442
    %4444 = vdwg.mxu0
    %4445 = vmatpush.bf16.msra.mxu0 %v2786
    %4446 = vmatpush.bf16.msra.mxu0 %v2776
    %4447 = vmatpush.bf16.msra.mxu0 %v2766
    %4448 = vmatpush.bf16.msra.mxu0 %v2756
    %4449 = vmatpush.bf16.msra.mxu0 %v2746
    %4450 = vmatpush.bf16.msra.mxu0 %v2736
    %4451 = vmatpush.bf16.msra.mxu0 %v2726
    %4452 = vmatpush.bf16.msra.mxu0 %v2716
    %4453 = vmatmul.bf16.gmra.mxu0 %v697
    %v4454 = vpop.f32.mrf.mxu0
    %v4455 = vadd.f32 %v4441, %v4454
    %v4456 = vpop.f32.mrf.mxu0
    %v4457 = vadd.f32 %v4443, %v4456
    %4458 = vdwg.mxu0
    %4459 = vmatpush.bf16.msra.mxu0 %v2866
    %4460 = vmatpush.bf16.msra.mxu0 %v2856
    %4461 = vmatpush.bf16.msra.mxu0 %v2846
    %4462 = vmatpush.bf16.msra.mxu0 %v2836
    %4463 = vmatpush.bf16.msra.mxu0 %v2826
    %4464 = vmatpush.bf16.msra.mxu0 %v2816
    %4465 = vmatpush.bf16.msra.mxu0 %v2806
    %4466 = vmatpush.bf16.msra.mxu0 %v2796
    %4467 = vmatmul.bf16.gmra.mxu0 %v698
    %v4468 = vpop.f32.mrf.mxu0
    %v4469 = vadd.f32 %v4455, %v4468
    %v4470 = vpop.f32.mrf.mxu0
    %v4471 = vadd.f32 %v4457, %v4470
    %4472 = vdwg.mxu0
    %4473 = vmatpush.bf16.msra.mxu0 %v2946
    %4474 = vmatpush.bf16.msra.mxu0 %v2936
    %4475 = vmatpush.bf16.msra.mxu0 %v2926
    %4476 = vmatpush.bf16.msra.mxu0 %v2916
    %4477 = vmatpush.bf16.msra.mxu0 %v2906
    %4478 = vmatpush.bf16.msra.mxu0 %v2896
    %4479 = vmatpush.bf16.msra.mxu0 %v2886
    %4480 = vmatpush.bf16.msra.mxu0 %v2876
    %4481 = vmatmul.bf16.gmra.mxu0 %v699
    %v4482 = vpop.f32.mrf.mxu0
    %v4483 = vadd.f32 %v4469, %v4482
    %v4484 = vpop.f32.mrf.mxu0
    %v4485 = vadd.f32 %v4471, %v4484
    %4486 = vdwg.mxu0
    %v4487 = vmul.f32 %v3601, 0.01
    %v4488 = vmul.f32 %v3699, 0.01
    %v4489 = vmul.f32 %v3797, 0.01
    %v4490 = vmul.f32 %v3895, 0.01
    %v4491 = vmul.f32 %v3993, 0.01
    %v4492 = vmul.f32 %v4091, 0.01
    %v4493 = vmul.f32 %v4189, 0.01
    %v4494 = vmul.f32 %v4287, 0.01
    %v4495 = vmul.f32 %v4385, 0.01
    %v4496 = vmul.f32 %v4483, 0.01
    %v4497 = vmul.f32 %v3603, 0.01
    %v4498 = vmul.f32 %v3701, 0.01
    %v4499 = vmul.f32 %v3799, 0.01
    %v4500 = vmul.f32 %v3897, 0.01
    %v4501 = vmul.f32 %v3995, 0.01
    %v4502 = vmul.f32 %v4093, 0.01
    %v4503 = vmul.f32 %v4191, 0.01
    %v4504 = vmul.f32 %v4289, 0.01
    %v4505 = vmul.f32 %v4387, 0.01
    %v4506 = vmul.f32 %v4485, 0.01
    %v4507 = vmax.f32 %v3601, %v4487
    %v4508 = vmax.f32 %v3699, %v4488
    %v4509 = vmax.f32 %v3797, %v4489
    %v4510 = vmax.f32 %v3895, %v4490
    %v4511 = vmax.f32 %v3993, %v4491
    %v4512 = vmax.f32 %v4091, %v4492
    %v4513 = vmax.f32 %v4189, %v4493
    %v4514 = vmax.f32 %v4287, %v4494
    %v4515 = vmax.f32 %v4385, %v4495
    %v4516 = vmax.f32 %v4483, %v4496
    %v4517 = vmax.f32 %v3603, %v4497
    %v4518 = vmax.f32 %v3701, %v4498
    %v4519 = vmax.f32 %v3799, %v4499
    %v4520 = vmax.f32 %v3897, %v4500
    %v4521 = vmax.f32 %v3995, %v4501
    %v4522 = vmax.f32 %v4093, %v4502
    %v4523 = vmax.f32 %v4191, %v4503
    %v4524 = vmax.f32 %v4289, %v4504
    %v4525 = vmax.f32 %v4387, %v4505
    %v4526 = vmax.f32 %v4485, %v4506
    %v4527 = vpack.c.bf16 %v4517, %v4507
    %v4528 = vpack.c.bf16 %v4518, %v4508
    %v4529 = vpack.c.bf16 %v4519, %v4509
    %v4530 = vpack.c.bf16 %v4520, %v4510
    %v4531 = vpack.c.bf16 %v4521, %v4511
    %v4532 = vpack.c.bf16 %v4522, %v4512
    %v4533 = vpack.c.bf16 %v4523, %v4513
    %v4534 = vpack.c.bf16 %v4524, %v4514
    %v4535 = vpack.c.bf16 %v4525, %v4515
    %v4536 = vpack.c.bf16 %v4526, %v4516
    %v4537 = vld [vmem:[#allocation6] sm:$0xff]
    %v4538 = vld [vmem:[#allocation6 + $0x8] sm:$0xff]
    %v4539 = vld [vmem:[#allocation6 + $0x10] sm:$0xff]
    %v4540 = vld [vmem:[#allocation6 + $0x18] sm:$0xf]
    %v4541 = vld [vmem:[#allocation6 + $0x1c] sm:$0xff]
    %v4542 = vld [vmem:[#allocation6 + $0x24] sm:$0xff]
    %v4543 = vld [vmem:[#allocation6 + $0x2c] sm:$0xff]
    %v4544 = vld [vmem:[#allocation6 + $0x34] sm:$0xf]
    %v4545 = vld [vmem:[#allocation6 + $0x38] sm:$0xff]
    %v4546 = vld [vmem:[#allocation6 + $0x40] sm:$0xff]
    %v4547 = vld [vmem:[#allocation6 + $0x48] sm:$0xff]
    %v4548 = vld [vmem:[#allocation6 + $0x50] sm:$0xf]
    %v4549 = vld [vmem:[#allocation6 + $0x54] sm:$0xff]
    %v4550 = vld [vmem:[#allocation6 + $0x5c] sm:$0xff]
    %v4551 = vld [vmem:[#allocation6 + $0x64] sm:$0xff]
    %v4552 = vld [vmem:[#allocation6 + $0x6c] sm:$0xf]
    %v4553 = vld [vmem:[#allocation6 + $0x70] sm:$0xff]
    %v4554 = vld [vmem:[#allocation6 + $0x78] sm:$0xff]
    %v4555 = vld [vmem:[#allocation6 + $0x80] sm:$0xff]
    %v4556 = vld [vmem:[#allocation6 + $0x88] sm:$0xf]
    %v4557 = vld [vmem:[#allocation6 + $0x8c] sm:$0xff]
    %v4558 = vld [vmem:[#allocation6 + $0x94] sm:$0xff]
    %v4559 = vld [vmem:[#allocation6 + $0x9c] sm:$0xff]
    %v4560 = vld [vmem:[#allocation6 + $0xa4] sm:$0xf]
    %v4561 = vld [vmem:[#allocation6 + $0xa8] sm:$0xff]
    %v4562 = vld [vmem:[#allocation6 + $0xb0] sm:$0xff]
    %v4563 = vld [vmem:[#allocation6 + $0xb8] sm:$0xff]
    %v4564 = vld [vmem:[#allocation6 + $0xc0] sm:$0xf]
    %v4565 = vld [vmem:[#allocation6 + $0xc4] sm:$0xff]
    %v4566 = vld [vmem:[#allocation6 + $0xcc] sm:$0xff]
    %v4567 = vld [vmem:[#allocation6 + $0xd4] sm:$0xff]
    %v4568 = vld [vmem:[#allocation6 + $0xdc] sm:$0xf]
    %v4569 = vld [vmem:[#allocation6 + $0xe0] sm:$0xff]
    %v4570 = vld [vmem:[#allocation6 + $0xe8] sm:$0xff]
    %v4571 = vld [vmem:[#allocation6 + $0xf0] sm:$0xff]
    %v4572 = vld [vmem:[#allocation6 + $0xf8] sm:$0xf]
    %v4573 = vld [vmem:[#allocation6 + $0xfc] sm:$0xff]
    %v4574 = vld [vmem:[#allocation6 + $0x104] sm:$0xff]
    %v4575 = vld [vmem:[#allocation6 + $0x10c] sm:$0xff]
    %v4576 = vld [vmem:[#allocation6 + $0x114] sm:$0xf]
    %v4577 = vld [vmem:[#allocation6 + $0x118] sm:$0xff]
    %v4578 = vld [vmem:[#allocation6 + $0x120] sm:$0xff]
    %v4579 = vld [vmem:[#allocation6 + $0x128] sm:$0xff]
    %v4580 = vld [vmem:[#allocation6 + $0x130] sm:$0xf]
    %v4581 = vld [vmem:[#allocation6 + $0x134] sm:$0xff]
    %v4582 = vld [vmem:[#allocation6 + $0x13c] sm:$0xff]
    %v4583 = vld [vmem:[#allocation6 + $0x144] sm:$0xff]
    %v4584 = vld [vmem:[#allocation6 + $0x14c] sm:$0xf]
    %v4585 = vld [vmem:[#allocation6 + $0x150] sm:$0xff]
    %v4586 = vld [vmem:[#allocation6 + $0x158] sm:$0xff]
    %v4587 = vld [vmem:[#allocation6 + $0x160] sm:$0xff]
    %v4588 = vld [vmem:[#allocation6 + $0x168] sm:$0xf]
    %v4589 = vld [vmem:[#allocation6 + $0x16c] sm:$0xff]
    %v4590 = vld [vmem:[#allocation6 + $0x174] sm:$0xff]
    %v4591 = vld [vmem:[#allocation6 + $0x17c] sm:$0xff]
    %v4592 = vld [vmem:[#allocation6 + $0x184] sm:$0xf]
    %v4593 = vld [vmem:[#allocation6 + $0x188] sm:$0xff]
    %v4594 = vld [vmem:[#allocation6 + $0x190] sm:$0xff]
    %v4595 = vld [vmem:[#allocation6 + $0x198] sm:$0xff]
    %v4596 = vld [vmem:[#allocation6 + $0x1a0] sm:$0xf]
    %v4597 = vld [vmem:[#allocation6 + $0x1a4] sm:$0xff]
    %v4598 = vld [vmem:[#allocation6 + $0x1ac] sm:$0xff]
    %v4599 = vld [vmem:[#allocation6 + $0x1b4] sm:$0xff]
    %v4600 = vld [vmem:[#allocation6 + $0x1bc] sm:$0xf]
    %v4601 = vld [vmem:[#allocation6 + $0x1c0] sm:$0xff]
    %v4602 = vld [vmem:[#allocation6 + $0x1c8] sm:$0xff]
    %v4603 = vld [vmem:[#allocation6 + $0x1d0] sm:$0xff]
    %v4604 = vld [vmem:[#allocation6 + $0x1d8] sm:$0xf]
    %v4605 = vld [vmem:[#allocation6 + $0x1dc] sm:$0xff]
    %v4606 = vld [vmem:[#allocation6 + $0x1e4] sm:$0xff]
    %v4607 = vld [vmem:[#allocation6 + $0x1ec] sm:$0xff]
    %v4608 = vld [vmem:[#allocation6 + $0x1f4] sm:$0xf]
    %v4609 = vld [vmem:[#allocation6 + $0x1f8] sm:$0xff]
    %v4610 = vld [vmem:[#allocation6 + $0x200] sm:$0xff]
    %v4611 = vld [vmem:[#allocation6 + $0x208] sm:$0xff]
    %v4612 = vld [vmem:[#allocation6 + $0x210] sm:$0xf]
    %v4613 = vld [vmem:[#allocation6 + $0x214] sm:$0xff]
    %v4614 = vld [vmem:[#allocation6 + $0x21c] sm:$0xff]
    %v4615 = vld [vmem:[#allocation6 + $0x224] sm:$0xff]
    %v4616 = vld [vmem:[#allocation6 + $0x22c] sm:$0xf]
    %v4617 = vld [vmem:[#allocation6 + $0x230] sm:$0xff]
    %v4618 = vld [vmem:[#allocation6 + $0x238] sm:$0xff]
    %v4619 = vld [vmem:[#allocation6 + $0x240] sm:$0xff]
    %v4620 = vld [vmem:[#allocation6 + $0x248] sm:$0xf]
    %v4621 = vld [vmem:[#allocation6 + $0x24c] sm:$0xff]
    %v4622 = vld [vmem:[#allocation6 + $0x254] sm:$0xff]
    %v4623 = vld [vmem:[#allocation6 + $0x25c] sm:$0xff]
    %v4624 = vld [vmem:[#allocation6 + $0x264] sm:$0xf]
    %v4625 = vld [vmem:[#allocation6 + $0x268] sm:$0xff]
    %v4626 = vld [vmem:[#allocation6 + $0x270] sm:$0xff]
    %v4627 = vld [vmem:[#allocation6 + $0x278] sm:$0xff]
    %v4628 = vld [vmem:[#allocation6 + $0x280] sm:$0xf]
    %v4629 = vld [vmem:[#allocation6 + $0x284] sm:$0xff]
    %v4630 = vld [vmem:[#allocation6 + $0x28c] sm:$0xff]
    %v4631 = vld [vmem:[#allocation6 + $0x294] sm:$0xff]
    %v4632 = vld [vmem:[#allocation6 + $0x29c] sm:$0xf]
    %v4633 = vld [vmem:[#allocation6 + $0x2a0] sm:$0xff]
    %v4634 = vld [vmem:[#allocation6 + $0x2a8] sm:$0xff]
    %v4635 = vld [vmem:[#allocation6 + $0x2b0] sm:$0xff]
    %v4636 = vld [vmem:[#allocation6 + $0x2b8] sm:$0xf]
    %v4637 = vld [vmem:[#allocation6 + $0x2bc] sm:$0xff]
    %v4638 = vld [vmem:[#allocation6 + $0x2c4] sm:$0xff]
    %v4639 = vld [vmem:[#allocation6 + $0x2cc] sm:$0xff]
    %v4640 = vld [vmem:[#allocation6 + $0x2d4] sm:$0xf]
    %v4641 = vld [vmem:[#allocation6 + $0x2d8] sm:$0xff]
    %v4642 = vld [vmem:[#allocation6 + $0x2e0] sm:$0xff]
    %v4643 = vld [vmem:[#allocation6 + $0x2e8] sm:$0xff]
    %v4644 = vld [vmem:[#allocation6 + $0x2f0] sm:$0xf]
    %v4645 = vld [vmem:[#allocation6 + $0x2f4] sm:$0xff]
    %v4646 = vld [vmem:[#allocation6 + $0x2fc] sm:$0xff]
    %v4647 = vld [vmem:[#allocation6 + $0x304] sm:$0xff]
    %v4648 = vld [vmem:[#allocation6 + $0x30c] sm:$0xf]
    %v4649 = vld [vmem:[#allocation6 + $0x310] sm:$0xff]
    %v4650 = vld [vmem:[#allocation6 + $0x318] sm:$0xff]
    %v4651 = vld [vmem:[#allocation6 + $0x320] sm:$0xff]
    %v4652 = vld [vmem:[#allocation6 + $0x328] sm:$0xf]
    %v4653 = vld [vmem:[#allocation6 + $0x32c] sm:$0xff]
    %v4654 = vld [vmem:[#allocation6 + $0x334] sm:$0xff]
    %v4655 = vld [vmem:[#allocation6 + $0x33c] sm:$0xff]
    %v4656 = vld [vmem:[#allocation6 + $0x344] sm:$0xf]
    %v4657 = vld [vmem:[#allocation6 + $0x348] sm:$0xff]
    %v4658 = vld [vmem:[#allocation6 + $0x350] sm:$0xff]
    %v4659 = vld [vmem:[#allocation6 + $0x358] sm:$0xff]
    %v4660 = vld [vmem:[#allocation6 + $0x360] sm:$0xf]
    %v4661 = vld [vmem:[#allocation6 + $0x364] sm:$0xff]
    %v4662 = vld [vmem:[#allocation6 + $0x36c] sm:$0xff]
    %v4663 = vld [vmem:[#allocation6 + $0x374] sm:$0xff]
    %v4664 = vld [vmem:[#allocation6 + $0x37c] sm:$0xf]
    %v4665 = vld [vmem:[#allocation6 + $0x380] sm:$0xff]
    %v4666 = vld [vmem:[#allocation6 + $0x388] sm:$0xff]
    %v4667 = vld [vmem:[#allocation6 + $0x390] sm:$0xff]
    %v4668 = vld [vmem:[#allocation6 + $0x398] sm:$0xf]
    %v4669 = vld [vmem:[#allocation6 + $0x39c] sm:$0xff]
    %v4670 = vld [vmem:[#allocation6 + $0x3a4] sm:$0xff]
    %v4671 = vld [vmem:[#allocation6 + $0x3ac] sm:$0xff]
    %v4672 = vld [vmem:[#allocation6 + $0x3b4] sm:$0xf]
    %v4673 = vld [vmem:[#allocation6 + $0x3b8] sm:$0xff]
    %v4674 = vld [vmem:[#allocation6 + $0x3c0] sm:$0xff]
    %v4675 = vld [vmem:[#allocation6 + $0x3c8] sm:$0xff]
    %v4676 = vld [vmem:[#allocation6 + $0x3d0] sm:$0xf]
    %v4677 = vld [vmem:[#allocation6 + $0x3d4] sm:$0xff]
    %v4678 = vld [vmem:[#allocation6 + $0x3dc] sm:$0xff]
    %v4679 = vld [vmem:[#allocation6 + $0x3e4] sm:$0xff]
    %v4680 = vld [vmem:[#allocation6 + $0x3ec] sm:$0xf]
    %v4681 = vld [vmem:[#allocation6 + $0x3f0] sm:$0xff]
    %v4682 = vld [vmem:[#allocation6 + $0x3f8] sm:$0xff]
    %v4683 = vld [vmem:[#allocation6 + $0x400] sm:$0xff]
    %v4684 = vld [vmem:[#allocation6 + $0x408] sm:$0xf]
    %v4685 = vld [vmem:[#allocation6 + $0x40c] sm:$0xff]
    %v4686 = vld [vmem:[#allocation6 + $0x414] sm:$0xff]
    %v4687 = vld [vmem:[#allocation6 + $0x41c] sm:$0xff]
    %v4688 = vld [vmem:[#allocation6 + $0x424] sm:$0xf]
    %v4689 = vld [vmem:[#allocation6 + $0x428] sm:$0xff]
    %v4690 = vld [vmem:[#allocation6 + $0x430] sm:$0xff]
    %v4691 = vld [vmem:[#allocation6 + $0x438] sm:$0xff]
    %v4692 = vld [vmem:[#allocation6 + $0x440] sm:$0xf]
    %v4693 = vld [vmem:[#allocation6 + $0x444] sm:$0xff]
    %v4694 = vld [vmem:[#allocation6 + $0x44c] sm:$0xff]
    %v4695 = vld [vmem:[#allocation6 + $0x454] sm:$0xff]
    %v4696 = vld [vmem:[#allocation6 + $0x45c] sm:$0xf]
    %v4697 = vld [vmem:[#allocation6 + $0x460] sm:$0xff]
    %v4698 = vld [vmem:[#allocation6 + $0x468] sm:$0xff]
    %v4699 = vld [vmem:[#allocation6 + $0x470] sm:$0xff]
    %v4700 = vld [vmem:[#allocation6 + $0x478] sm:$0xf]
    %v4701 = vld [vmem:[#allocation6 + $0x47c] sm:$0xff]
    %v4702 = vld [vmem:[#allocation6 + $0x484] sm:$0xff]
    %v4703 = vld [vmem:[#allocation6 + $0x48c] sm:$0xff]
    %v4704 = vld [vmem:[#allocation6 + $0x494] sm:$0xf]
    %v4705 = vld [vmem:[#allocation6 + $0x498] sm:$0xff]
    %v4706 = vld [vmem:[#allocation6 + $0x4a0] sm:$0xff]
    %v4707 = vld [vmem:[#allocation6 + $0x4a8] sm:$0xff]
    %v4708 = vld [vmem:[#allocation6 + $0x4b0] sm:$0xf]
    %v4709 = vld [vmem:[#allocation6 + $0x4b4] sm:$0xff]
    %v4710 = vld [vmem:[#allocation6 + $0x4bc] sm:$0xff]
    %v4711 = vld [vmem:[#allocation6 + $0x4c4] sm:$0xff]
    %v4712 = vld [vmem:[#allocation6 + $0x4cc] sm:$0xf]
    %v4713 = vld [vmem:[#allocation6 + $0x4d0] sm:$0xff]
    %v4714 = vld [vmem:[#allocation6 + $0x4d8] sm:$0xff]
    %v4715 = vld [vmem:[#allocation6 + $0x4e0] sm:$0xff]
    %v4716 = vld [vmem:[#allocation6 + $0x4e8] sm:$0xf]
    %v4717 = vld [vmem:[#allocation6 + $0x4ec] sm:$0xff]
    %v4718 = vld [vmem:[#allocation6 + $0x4f4] sm:$0xff]
    %v4719 = vld [vmem:[#allocation6 + $0x4fc] sm:$0xff]
    %v4720 = vld [vmem:[#allocation6 + $0x504] sm:$0xf]
    %v4721 = vld [vmem:[#allocation6 + $0x508] sm:$0xff]
    %v4722 = vld [vmem:[#allocation6 + $0x510] sm:$0xff]
    %v4723 = vld [vmem:[#allocation6 + $0x518] sm:$0xff]
    %v4724 = vld [vmem:[#allocation6 + $0x520] sm:$0xf]
    %v4725 = vld [vmem:[#allocation6 + $0x524] sm:$0xff]
    %v4726 = vld [vmem:[#allocation6 + $0x52c] sm:$0xff]
    %v4727 = vld [vmem:[#allocation6 + $0x534] sm:$0xff]
    %v4728 = vld [vmem:[#allocation6 + $0x53c] sm:$0xf]
    %v4729 = vld [vmem:[#allocation6 + $0x540] sm:$0xff]
    %v4730 = vld [vmem:[#allocation6 + $0x548] sm:$0xff]
    %v4731 = vld [vmem:[#allocation6 + $0x550] sm:$0xff]
    %v4732 = vld [vmem:[#allocation6 + $0x558] sm:$0xf]
    %v4733 = vld [vmem:[#allocation6 + $0x55c] sm:$0xff]
    %v4734 = vld [vmem:[#allocation6 + $0x564] sm:$0xff]
    %v4735 = vld [vmem:[#allocation6 + $0x56c] sm:$0xff]
    %v4736 = vld [vmem:[#allocation6 + $0x574] sm:$0xf]
    %v4737 = vld [vmem:[#allocation6 + $0x578] sm:$0xff]
    %v4738 = vld [vmem:[#allocation6 + $0x580] sm:$0xff]
    %v4739 = vld [vmem:[#allocation6 + $0x588] sm:$0xff]
    %v4740 = vld [vmem:[#allocation6 + $0x590] sm:$0xf]
    %v4741 = vld [vmem:[#allocation6 + $0x594] sm:$0xff]
    %v4742 = vld [vmem:[#allocation6 + $0x59c] sm:$0xff]
    %v4743 = vld [vmem:[#allocation6 + $0x5a4] sm:$0xff]
    %v4744 = vld [vmem:[#allocation6 + $0x5ac] sm:$0xf]
    %v4745 = vld [vmem:[#allocation6 + $0x5b0] sm:$0xff]
    %v4746 = vld [vmem:[#allocation6 + $0x5b8] sm:$0xff]
    %v4747 = vld [vmem:[#allocation6 + $0x5c0] sm:$0xff]
    %v4748 = vld [vmem:[#allocation6 + $0x5c8] sm:$0xf]
    %v4749 = vld [vmem:[#allocation6 + $0x5cc] sm:$0xff]
    %v4750 = vld [vmem:[#allocation6 + $0x5d4] sm:$0xff]
    %v4751 = vld [vmem:[#allocation6 + $0x5dc] sm:$0xff]
    %v4752 = vld [vmem:[#allocation6 + $0x5e4] sm:$0xf]
    %v4753 = vld [vmem:[#allocation6 + $0x5e8] sm:$0xff]
    %v4754 = vld [vmem:[#allocation6 + $0x5f0] sm:$0xff]
    %v4755 = vld [vmem:[#allocation6 + $0x5f8] sm:$0xff]
    %v4756 = vld [vmem:[#allocation6 + $0x600] sm:$0xf]
    %v4757 = vld [vmem:[#allocation6 + $0x604] sm:$0xff]
    %v4758 = vld [vmem:[#allocation6 + $0x60c] sm:$0xff]
    %v4759 = vld [vmem:[#allocation6 + $0x614] sm:$0xff]
    %v4760 = vld [vmem:[#allocation6 + $0x61c] sm:$0xf]
    %v4761 = vld [vmem:[#allocation6 + $0x620] sm:$0xff]
    %v4762 = vld [vmem:[#allocation6 + $0x628] sm:$0xff]
    %v4763 = vld [vmem:[#allocation6 + $0x630] sm:$0xff]
    %v4764 = vld [vmem:[#allocation6 + $0x638] sm:$0xf]
    %v4765 = vld [vmem:[#allocation6 + $0x63c] sm:$0xff]
    %v4766 = vld [vmem:[#allocation6 + $0x644] sm:$0xff]
    %v4767 = vld [vmem:[#allocation6 + $0x64c] sm:$0xff]
    %v4768 = vld [vmem:[#allocation6 + $0x654] sm:$0xf]
    %v4769 = vld [vmem:[#allocation6 + $0x658] sm:$0xff]
    %v4770 = vld [vmem:[#allocation6 + $0x660] sm:$0xff]
    %v4771 = vld [vmem:[#allocation6 + $0x668] sm:$0xff]
    %v4772 = vld [vmem:[#allocation6 + $0x670] sm:$0xf]
    %v4773 = vld [vmem:[#allocation6 + $0x674] sm:$0xff]
    %v4774 = vld [vmem:[#allocation6 + $0x67c] sm:$0xff]
    %v4775 = vld [vmem:[#allocation6 + $0x684] sm:$0xff]
    %v4776 = vld [vmem:[#allocation6 + $0x68c] sm:$0xf]
    %v4777 = vld [vmem:[#allocation6 + $0x690] sm:$0xff]
    %v4778 = vld [vmem:[#allocation6 + $0x698] sm:$0xff]
    %v4779 = vld [vmem:[#allocation6 + $0x6a0] sm:$0xff]
    %v4780 = vld [vmem:[#allocation6 + $0x6a8] sm:$0xf]
    %v4781 = vld [vmem:[#allocation6 + $0x6ac] sm:$0xff]
    %v4782 = vld [vmem:[#allocation6 + $0x6b4] sm:$0xff]
    %v4783 = vld [vmem:[#allocation6 + $0x6bc] sm:$0xff]
    %v4784 = vld [vmem:[#allocation6 + $0x6c4] sm:$0xf]
    %v4785 = vld [vmem:[#allocation6 + $0x6c8] sm:$0xff]
    %v4786 = vld [vmem:[#allocation6 + $0x6d0] sm:$0xff]
    %v4787 = vld [vmem:[#allocation6 + $0x6d8] sm:$0xff]
    %v4788 = vld [vmem:[#allocation6 + $0x6e0] sm:$0xf]
    %v4789 = vld [vmem:[#allocation6 + $0x6e4] sm:$0xff]
    %v4790 = vld [vmem:[#allocation6 + $0x6ec] sm:$0xff]
    %v4791 = vld [vmem:[#allocation6 + $0x6f4] sm:$0xff]
    %v4792 = vld [vmem:[#allocation6 + $0x6fc] sm:$0xf]
    %v4793 = vld [vmem:[#allocation6 + $0x700] sm:$0xff]
    %v4794 = vld [vmem:[#allocation6 + $0x708] sm:$0xff]
    %v4795 = vld [vmem:[#allocation6 + $0x710] sm:$0xff]
    %v4796 = vld [vmem:[#allocation6 + $0x718] sm:$0xf]
    %v4797 = vld [vmem:[#allocation6 + $0x71c] sm:$0xff]
    %v4798 = vld [vmem:[#allocation6 + $0x724] sm:$0xff]
    %v4799 = vld [vmem:[#allocation6 + $0x72c] sm:$0xff]
    %v4800 = vld [vmem:[#allocation6 + $0x734] sm:$0xf]
    %v4801 = vld [vmem:[#allocation6 + $0x738] sm:$0xff]
    %v4802 = vld [vmem:[#allocation6 + $0x740] sm:$0xff]
    %v4803 = vld [vmem:[#allocation6 + $0x748] sm:$0xff]
    %v4804 = vld [vmem:[#allocation6 + $0x750] sm:$0xf]
    %v4805 = vld [vmem:[#allocation6 + $0x754] sm:$0xff]
    %v4806 = vld [vmem:[#allocation6 + $0x75c] sm:$0xff]
    %v4807 = vld [vmem:[#allocation6 + $0x764] sm:$0xff]
    %v4808 = vld [vmem:[#allocation6 + $0x76c] sm:$0xf]
    %v4809 = vld [vmem:[#allocation6 + $0x770] sm:$0xff]
    %v4810 = vld [vmem:[#allocation6 + $0x778] sm:$0xff]
    %v4811 = vld [vmem:[#allocation6 + $0x780] sm:$0xff]
    %v4812 = vld [vmem:[#allocation6 + $0x788] sm:$0xf]
    %v4813 = vld [vmem:[#allocation6 + $0x78c] sm:$0xff]
    %v4814 = vld [vmem:[#allocation6 + $0x794] sm:$0xff]
    %v4815 = vld [vmem:[#allocation6 + $0x79c] sm:$0xff]
    %v4816 = vld [vmem:[#allocation6 + $0x7a4] sm:$0xf]
    %v4817 = vld [vmem:[#allocation6 + $0x7a8] sm:$0xff]
    %v4818 = vld [vmem:[#allocation6 + $0x7b0] sm:$0xff]
    %v4819 = vld [vmem:[#allocation6 + $0x7b8] sm:$0xff]
    %v4820 = vld [vmem:[#allocation6 + $0x7c0] sm:$0xf]
    %v4821 = vld [vmem:[#allocation6 + $0x7c4] sm:$0xff]
    %v4822 = vld [vmem:[#allocation6 + $0x7cc] sm:$0xff]
    %v4823 = vld [vmem:[#allocation6 + $0x7d4] sm:$0xff]
    %v4824 = vld [vmem:[#allocation6 + $0x7dc] sm:$0xf]
    %v4825 = vld [vmem:[#allocation6 + $0x7e0] sm:$0xff]
    %v4826 = vld [vmem:[#allocation6 + $0x7e8] sm:$0xff]
    %v4827 = vld [vmem:[#allocation6 + $0x7f0] sm:$0xff]
    %v4828 = vld [vmem:[#allocation6 + $0x7f8] sm:$0xf]
    %v4829 = vld [vmem:[#allocation6 + $0x7fc] sm:$0xff]
    %v4830 = vld [vmem:[#allocation6 + $0x804] sm:$0xff]
    %v4831 = vld [vmem:[#allocation6 + $0x80c] sm:$0xff]
    %v4832 = vld [vmem:[#allocation6 + $0x814] sm:$0xf]
    %v4833 = vld [vmem:[#allocation6 + $0x818] sm:$0xff]
    %v4834 = vld [vmem:[#allocation6 + $0x820] sm:$0xff]
    %v4835 = vld [vmem:[#allocation6 + $0x828] sm:$0xff]
    %v4836 = vld [vmem:[#allocation6 + $0x830] sm:$0xf]
    %v4837 = vld [vmem:[#allocation6 + $0x834] sm:$0xff]
    %v4838 = vld [vmem:[#allocation6 + $0x83c] sm:$0xff]
    %v4839 = vld [vmem:[#allocation6 + $0x844] sm:$0xff]
    %v4840 = vld [vmem:[#allocation6 + $0x84c] sm:$0xf]
    %v4841 = vld [vmem:[#allocation6 + $0x850] sm:$0xff]
    %v4842 = vld [vmem:[#allocation6 + $0x858] sm:$0xff]
    %v4843 = vld [vmem:[#allocation6 + $0x860] sm:$0xff]
    %v4844 = vld [vmem:[#allocation6 + $0x868] sm:$0xf]
    %v4845 = vld [vmem:[#allocation6 + $0x86c] sm:$0xff]
    %v4846 = vld [vmem:[#allocation6 + $0x874] sm:$0xff]
    %v4847 = vld [vmem:[#allocation6 + $0x87c] sm:$0xff]
    %v4848 = vld [vmem:[#allocation6 + $0x884] sm:$0xf]
    %v4849 = vld [vmem:[#allocation6 + $0x888] sm:$0xff]
    %v4850 = vld [vmem:[#allocation6 + $0x890] sm:$0xff]
    %v4851 = vld [vmem:[#allocation6 + $0x898] sm:$0xff]
    %v4852 = vld [vmem:[#allocation6 + $0x8a0] sm:$0xf]
    %v4853 = vld [vmem:[#allocation6 + $0x8a4] sm:$0xff]
    %v4854 = vld [vmem:[#allocation6 + $0x8ac] sm:$0xff]
    %v4855 = vld [vmem:[#allocation6 + $0x8b4] sm:$0xff]
    %v4856 = vld [vmem:[#allocation6 + $0x8bc] sm:$0xf]
    %v4857 = vld [vmem:[#allocation6 + $0x8c0] sm:$0xff]
    %v4858 = vld [vmem:[#allocation6 + $0x8c8] sm:$0xff]
    %v4859 = vld [vmem:[#allocation6 + $0x8d0] sm:$0xff]
    %v4860 = vld [vmem:[#allocation6 + $0x8d8] sm:$0xf]
    %v4861 = vld [vmem:[#allocation6 + $0x8dc] sm:$0xff]
    %v4862 = vld [vmem:[#allocation6 + $0x8e4] sm:$0xff]
    %v4863 = vld [vmem:[#allocation6 + $0x8ec] sm:$0xff]
    %v4864 = vld [vmem:[#allocation6 + $0x8f4] sm:$0xf]
    %v4865 = vld [vmem:[#allocation6 + $0x8f8] sm:$0xff]
    %v4866 = vld [vmem:[#allocation6 + $0x900] sm:$0xff]
    %v4867 = vld [vmem:[#allocation6 + $0x908] sm:$0xff]
    %v4868 = vld [vmem:[#allocation6 + $0x910] sm:$0xf]
    %v4869 = vld [vmem:[#allocation6 + $0x914] sm:$0xff]
    %v4870 = vld [vmem:[#allocation6 + $0x91c] sm:$0xff]
    %v4871 = vld [vmem:[#allocation6 + $0x924] sm:$0xff]
    %v4872 = vld [vmem:[#allocation6 + $0x92c] sm:$0xf]
    %v4873 = vld [vmem:[#allocation6 + $0x930] sm:$0xff]
    %v4874 = vld [vmem:[#allocation6 + $0x938] sm:$0xff]
    %v4875 = vld [vmem:[#allocation6 + $0x940] sm:$0xff]
    %v4876 = vld [vmem:[#allocation6 + $0x948] sm:$0xf]
    %v4877 = vld [vmem:[#allocation6 + $0x94c] sm:$0xff]
    %v4878 = vld [vmem:[#allocation6 + $0x954] sm:$0xff]
    %v4879 = vld [vmem:[#allocation6 + $0x95c] sm:$0xff]
    %v4880 = vld [vmem:[#allocation6 + $0x964] sm:$0xf]
    %v4881 = vld [vmem:[#allocation6 + $0x968] sm:$0xff]
    %v4882 = vld [vmem:[#allocation6 + $0x970] sm:$0xff]
    %v4883 = vld [vmem:[#allocation6 + $0x978] sm:$0xff]
    %v4884 = vld [vmem:[#allocation6 + $0x980] sm:$0xf]
    %v4885 = vld [vmem:[#allocation6 + $0x984] sm:$0xff]
    %v4886 = vld [vmem:[#allocation6 + $0x98c] sm:$0xff]
    %v4887 = vld [vmem:[#allocation6 + $0x994] sm:$0xff]
    %v4888 = vld [vmem:[#allocation6 + $0x99c] sm:$0xf]
    %v4889 = vld [vmem:[#allocation6 + $0x9a0] sm:$0xff]
    %v4890 = vld [vmem:[#allocation6 + $0x9a8] sm:$0xff]
    %v4891 = vld [vmem:[#allocation6 + $0x9b0] sm:$0xff]
    %v4892 = vld [vmem:[#allocation6 + $0x9b8] sm:$0xf]
    %v4893 = vld [vmem:[#allocation6 + $0x9bc] sm:$0xff]
    %v4894 = vld [vmem:[#allocation6 + $0x9c4] sm:$0xff]
    %v4895 = vld [vmem:[#allocation6 + $0x9cc] sm:$0xff]
    %v4896 = vld [vmem:[#allocation6 + $0x9d4] sm:$0xf]
    %v4897 = vld [vmem:[#allocation6 + $0x9d8] sm:$0xff]
    %v4898 = vld [vmem:[#allocation6 + $0x9e0] sm:$0xff]
    %v4899 = vld [vmem:[#allocation6 + $0x9e8] sm:$0xff]
    %v4900 = vld [vmem:[#allocation6 + $0x9f0] sm:$0xf]
    %v4901 = vld [vmem:[#allocation6 + $0x9f4] sm:$0xff]
    %v4902 = vld [vmem:[#allocation6 + $0x9fc] sm:$0xff]
    %v4903 = vld [vmem:[#allocation6 + $0xa04] sm:$0xff]
    %v4904 = vld [vmem:[#allocation6 + $0xa0c] sm:$0xf]
    %v4905 = vld [vmem:[#allocation6 + $0xa10] sm:$0xff]
    %v4906 = vld [vmem:[#allocation6 + $0xa18] sm:$0xff]
    %v4907 = vld [vmem:[#allocation6 + $0xa20] sm:$0xff]
    %v4908 = vld [vmem:[#allocation6 + $0xa28] sm:$0xf]
    %v4909 = vld [vmem:[#allocation6 + $0xa2c] sm:$0xff]
    %v4910 = vld [vmem:[#allocation6 + $0xa34] sm:$0xff]
    %v4911 = vld [vmem:[#allocation6 + $0xa3c] sm:$0xff]
    %v4912 = vld [vmem:[#allocation6 + $0xa44] sm:$0xf]
    %v4913 = vld [vmem:[#allocation6 + $0xa48] sm:$0xff]
    %v4914 = vld [vmem:[#allocation6 + $0xa50] sm:$0xff]
    %v4915 = vld [vmem:[#allocation6 + $0xa58] sm:$0xff]
    %v4916 = vld [vmem:[#allocation6 + $0xa60] sm:$0xf]
    %v4917 = vld [vmem:[#allocation6 + $0xa64] sm:$0xff]
    %v4918 = vld [vmem:[#allocation6 + $0xa6c] sm:$0xff]
    %v4919 = vld [vmem:[#allocation6 + $0xa74] sm:$0xff]
    %v4920 = vld [vmem:[#allocation6 + $0xa7c] sm:$0xf]
    %v4921 = vld [vmem:[#allocation6 + $0xa80] sm:$0xff]
    %v4922 = vld [vmem:[#allocation6 + $0xa88] sm:$0xff]
    %v4923 = vld [vmem:[#allocation6 + $0xa90] sm:$0xff]
    %v4924 = vld [vmem:[#allocation6 + $0xa98] sm:$0xf]
    %v4925 = vld [vmem:[#allocation6 + $0xa9c] sm:$0xff]
    %v4926 = vld [vmem:[#allocation6 + $0xaa4] sm:$0xff]
    %v4927 = vld [vmem:[#allocation6 + $0xaac] sm:$0xff]
    %v4928 = vld [vmem:[#allocation6 + $0xab4] sm:$0xf]
    %v4929 = vld [vmem:[#allocation6 + $0xab8] sm:$0xff]
    %v4930 = vld [vmem:[#allocation6 + $0xac0] sm:$0xff]
    %v4931 = vld [vmem:[#allocation6 + $0xac8] sm:$0xff]
    %v4932 = vld [vmem:[#allocation6 + $0xad0] sm:$0xf]
    %v4933 = vld [vmem:[#allocation6 + $0xad4] sm:$0xff]
    %v4934 = vld [vmem:[#allocation6 + $0xadc] sm:$0xff]
    %v4935 = vld [vmem:[#allocation6 + $0xae4] sm:$0xff]
    %v4936 = vld [vmem:[#allocation6 + $0xaec] sm:$0xf]
    %v4937 = vld [vmem:[#allocation6 + $0xaf0] sm:$0xff]
    %v4938 = vld [vmem:[#allocation6 + $0xaf8] sm:$0xff]
    %v4939 = vld [vmem:[#allocation6 + $0xb00] sm:$0xff]
    %v4940 = vld [vmem:[#allocation6 + $0xb08] sm:$0xf]
    %v4941 = vld [vmem:[#allocation6 + $0xb0c] sm:$0xff]
    %v4942 = vld [vmem:[#allocation6 + $0xb14] sm:$0xff]
    %v4943 = vld [vmem:[#allocation6 + $0xb1c] sm:$0xff]
    %v4944 = vld [vmem:[#allocation6 + $0xb24] sm:$0xf]
    %v4945 = vld [vmem:[#allocation6 + $0xb28] sm:$0xff]
    %v4946 = vld [vmem:[#allocation6 + $0xb30] sm:$0xff]
    %v4947 = vld [vmem:[#allocation6 + $0xb38] sm:$0xff]
    %v4948 = vld [vmem:[#allocation6 + $0xb40] sm:$0xf]
    %v4949 = vld [vmem:[#allocation6 + $0xb44] sm:$0xff]
    %v4950 = vld [vmem:[#allocation6 + $0xb4c] sm:$0xff]
    %v4951 = vld [vmem:[#allocation6 + $0xb54] sm:$0xff]
    %v4952 = vld [vmem:[#allocation6 + $0xb5c] sm:$0xf]
    %v4953 = vld [vmem:[#allocation6 + $0xb60] sm:$0xff]
    %v4954 = vld [vmem:[#allocation6 + $0xb68] sm:$0xff]
    %v4955 = vld [vmem:[#allocation6 + $0xb70] sm:$0xff]
    %v4956 = vld [vmem:[#allocation6 + $0xb78] sm:$0xf]
    %v4957 = vld [vmem:[#allocation6 + $0xb7c] sm:$0xff]
    %v4958 = vld [vmem:[#allocation6 + $0xb84] sm:$0xff]
    %v4959 = vld [vmem:[#allocation6 + $0xb8c] sm:$0xff]
    %v4960 = vld [vmem:[#allocation6 + $0xb94] sm:$0xf]
    %v4961 = vld [vmem:[#allocation6 + $0xb98] sm:$0xff]
    %v4962 = vld [vmem:[#allocation6 + $0xba0] sm:$0xff]
    %v4963 = vld [vmem:[#allocation6 + $0xba8] sm:$0xff]
    %v4964 = vld [vmem:[#allocation6 + $0xbb0] sm:$0xf]
    %v4965 = vld [vmem:[#allocation6 + $0xbb4] sm:$0xff]
    %v4966 = vld [vmem:[#allocation6 + $0xbbc] sm:$0xff]
    %v4967 = vld [vmem:[#allocation6 + $0xbc4] sm:$0xff]
    %v4968 = vld [vmem:[#allocation6 + $0xbcc] sm:$0xf]
    %v4969 = vld [vmem:[#allocation6 + $0xbd0] sm:$0xff]
    %v4970 = vld [vmem:[#allocation6 + $0xbd8] sm:$0xff]
    %v4971 = vld [vmem:[#allocation6 + $0xbe0] sm:$0xff]
    %v4972 = vld [vmem:[#allocation6 + $0xbe8] sm:$0xf]
    %v4973 = vld [vmem:[#allocation6 + $0xbec] sm:$0xff]
    %v4974 = vld [vmem:[#allocation6 + $0xbf4] sm:$0xff]
    %v4975 = vld [vmem:[#allocation6 + $0xbfc] sm:$0xff]
    %v4976 = vld [vmem:[#allocation6 + $0xc04] sm:$0xf]
    %v4977 = vld [vmem:[#allocation6 + $0xc08] sm:$0xff]
    %v4978 = vld [vmem:[#allocation6 + $0xc10] sm:$0xff]
    %v4979 = vld [vmem:[#allocation6 + $0xc18] sm:$0xff]
    %v4980 = vld [vmem:[#allocation6 + $0xc20] sm:$0xf]
    %v4981 = vld [vmem:[#allocation6 + $0xc24] sm:$0xff]
    %v4982 = vld [vmem:[#allocation6 + $0xc2c] sm:$0xff]
    %v4983 = vld [vmem:[#allocation6 + $0xc34] sm:$0xff]
    %v4984 = vld [vmem:[#allocation6 + $0xc3c] sm:$0xf]
    %v4985 = vld [vmem:[#allocation6 + $0xc40] sm:$0xff]
    %v4986 = vld [vmem:[#allocation6 + $0xc48] sm:$0xff]
    %v4987 = vld [vmem:[#allocation6 + $0xc50] sm:$0xff]
    %v4988 = vld [vmem:[#allocation6 + $0xc58] sm:$0xf]
    %v4989 = vld [vmem:[#allocation6 + $0xc5c] sm:$0xff]
    %v4990 = vld [vmem:[#allocation6 + $0xc64] sm:$0xff]
    %v4991 = vld [vmem:[#allocation6 + $0xc6c] sm:$0xff]
    %v4992 = vld [vmem:[#allocation6 + $0xc74] sm:$0xf]
    %v4993 = vld [vmem:[#allocation6 + $0xc78] sm:$0xff]
    %v4994 = vld [vmem:[#allocation6 + $0xc80] sm:$0xff]
    %v4995 = vld [vmem:[#allocation6 + $0xc88] sm:$0xff]
    %v4996 = vld [vmem:[#allocation6 + $0xc90] sm:$0xf]
    %v4997 = vld [vmem:[#allocation6 + $0xc94] sm:$0xff]
    %v4998 = vld [vmem:[#allocation6 + $0xc9c] sm:$0xff]
    %v4999 = vld [vmem:[#allocation6 + $0xca4] sm:$0xff]
    %v5000 = vld [vmem:[#allocation6 + $0xcac] sm:$0xf]
    %v5001 = vld [vmem:[#allocation6 + $0xcb0] sm:$0xff]
    %v5002 = vld [vmem:[#allocation6 + $0xcb8] sm:$0xff]
    %v5003 = vld [vmem:[#allocation6 + $0xcc0] sm:$0xff]
    %v5004 = vld [vmem:[#allocation6 + $0xcc8] sm:$0xf]
    %v5005 = vld [vmem:[#allocation6 + $0xccc] sm:$0xff]
    %v5006 = vld [vmem:[#allocation6 + $0xcd4] sm:$0xff]
    %v5007 = vld [vmem:[#allocation6 + $0xcdc] sm:$0xff]
    %v5008 = vld [vmem:[#allocation6 + $0xce4] sm:$0xf]
    %v5009 = vld [vmem:[#allocation6 + $0xce8] sm:$0xff]
    %v5010 = vld [vmem:[#allocation6 + $0xcf0] sm:$0xff]
    %v5011 = vld [vmem:[#allocation6 + $0xcf8] sm:$0xff]
    %v5012 = vld [vmem:[#allocation6 + $0xd00] sm:$0xf]
    %v5013 = vld [vmem:[#allocation6 + $0xd04] sm:$0xff]
    %v5014 = vld [vmem:[#allocation6 + $0xd0c] sm:$0xff]
    %v5015 = vld [vmem:[#allocation6 + $0xd14] sm:$0xff]
    %v5016 = vld [vmem:[#allocation6 + $0xd1c] sm:$0xf]
    %v5017 = vld [vmem:[#allocation6 + $0xd20] sm:$0xff]
    %v5018 = vld [vmem:[#allocation6 + $0xd28] sm:$0xff]
    %v5019 = vld [vmem:[#allocation6 + $0xd30] sm:$0xff]
    %v5020 = vld [vmem:[#allocation6 + $0xd38] sm:$0xf]
    %v5021 = vld [vmem:[#allocation6 + $0xd3c] sm:$0xff]
    %v5022 = vld [vmem:[#allocation6 + $0xd44] sm:$0xff]
    %v5023 = vld [vmem:[#allocation6 + $0xd4c] sm:$0xff]
    %v5024 = vld [vmem:[#allocation6 + $0xd54] sm:$0xf]
    %v5025 = vld [vmem:[#allocation6 + $0xd58] sm:$0xff]
    %v5026 = vld [vmem:[#allocation6 + $0xd60] sm:$0xff]
    %v5027 = vld [vmem:[#allocation6 + $0xd68] sm:$0xff]
    %v5028 = vld [vmem:[#allocation6 + $0xd70] sm:$0xf]
    %v5029 = vld [vmem:[#allocation6 + $0xd74] sm:$0xff]
    %v5030 = vld [vmem:[#allocation6 + $0xd7c] sm:$0xff]
    %v5031 = vld [vmem:[#allocation6 + $0xd84] sm:$0xff]
    %v5032 = vld [vmem:[#allocation6 + $0xd8c] sm:$0xf]
    %v5033 = vld [vmem:[#allocation6 + $0xd90] sm:$0xff]
    %v5034 = vld [vmem:[#allocation6 + $0xd98] sm:$0xff]
    %v5035 = vld [vmem:[#allocation6 + $0xda0] sm:$0xff]
    %v5036 = vld [vmem:[#allocation6 + $0xda8] sm:$0xf]
    %v5037 = vld [vmem:[#allocation6 + $0xdac] sm:$0xff]
    %v5038 = vld [vmem:[#allocation6 + $0xdb4] sm:$0xff]
    %v5039 = vld [vmem:[#allocation6 + $0xdbc] sm:$0xff]
    %v5040 = vld [vmem:[#allocation6 + $0xdc4] sm:$0xf]
    %v5041 = vld [vmem:[#allocation6 + $0xdc8] sm:$0xff]
    %v5042 = vld [vmem:[#allocation6 + $0xdd0] sm:$0xff]
    %v5043 = vld [vmem:[#allocation6 + $0xdd8] sm:$0xff]
    %v5044 = vld [vmem:[#allocation6 + $0xde0] sm:$0xf]
    %v5045 = vld [vmem:[#allocation6 + $0xde4] sm:$0xff]
    %v5046 = vld [vmem:[#allocation6 + $0xdec] sm:$0xff]
    %v5047 = vld [vmem:[#allocation6 + $0xdf4] sm:$0xff]
    %v5048 = vld [vmem:[#allocation6 + $0xdfc] sm:$0xf]
    %v5049 = vld [vmem:[#allocation6 + $0xe00] sm:$0xff]
    %v5050 = vld [vmem:[#allocation6 + $0xe08] sm:$0xff]
    %v5051 = vld [vmem:[#allocation6 + $0xe10] sm:$0xff]
    %v5052 = vld [vmem:[#allocation6 + $0xe18] sm:$0xf]
    %v5053 = vld [vmem:[#allocation6 + $0xe1c] sm:$0xff]
    %v5054 = vld [vmem:[#allocation6 + $0xe24] sm:$0xff]
    %v5055 = vld [vmem:[#allocation6 + $0xe2c] sm:$0xff]
    %v5056 = vld [vmem:[#allocation6 + $0xe34] sm:$0xf]
    %v5057 = vld [vmem:[#allocation6 + $0xe38] sm:$0xff]
    %v5058 = vld [vmem:[#allocation6 + $0xe40] sm:$0xff]
    %v5059 = vld [vmem:[#allocation6 + $0xe48] sm:$0xff]
    %v5060 = vld [vmem:[#allocation6 + $0xe50] sm:$0xf]
    %v5061 = vld [vmem:[#allocation6 + $0xe54] sm:$0xff]
    %v5062 = vld [vmem:[#allocation6 + $0xe5c] sm:$0xff]
    %v5063 = vld [vmem:[#allocation6 + $0xe64] sm:$0xff]
    %v5064 = vld [vmem:[#allocation6 + $0xe6c] sm:$0xf]
    %v5065 = vld [vmem:[#allocation6 + $0xe70] sm:$0xff]
    %v5066 = vld [vmem:[#allocation6 + $0xe78] sm:$0xff]
    %v5067 = vld [vmem:[#allocation6 + $0xe80] sm:$0xff]
    %v5068 = vld [vmem:[#allocation6 + $0xe88] sm:$0xf]
    %v5069 = vld [vmem:[#allocation6 + $0xe8c] sm:$0xff]
    %v5070 = vld [vmem:[#allocation6 + $0xe94] sm:$0xff]
    %v5071 = vld [vmem:[#allocation6 + $0xe9c] sm:$0xff]
    %v5072 = vld [vmem:[#allocation6 + $0xea4] sm:$0xf]
    %v5073 = vld [vmem:[#allocation6 + $0xea8] sm:$0xff]
    %v5074 = vld [vmem:[#allocation6 + $0xeb0] sm:$0xff]
    %v5075 = vld [vmem:[#allocation6 + $0xeb8] sm:$0xff]
    %v5076 = vld [vmem:[#allocation6 + $0xec0] sm:$0xf]
    %v5077 = vld [vmem:[#allocation6 + $0xec4] sm:$0xff]
    %v5078 = vld [vmem:[#allocation6 + $0xecc] sm:$0xff]
    %v5079 = vld [vmem:[#allocation6 + $0xed4] sm:$0xff]
    %v5080 = vld [vmem:[#allocation6 + $0xedc] sm:$0xf]
    %v5081 = vld [vmem:[#allocation6 + $0xee0] sm:$0xff]
    %v5082 = vld [vmem:[#allocation6 + $0xee8] sm:$0xff]
    %v5083 = vld [vmem:[#allocation6 + $0xef0] sm:$0xff]
    %v5084 = vld [vmem:[#allocation6 + $0xef8] sm:$0xf]
    %v5085 = vld [vmem:[#allocation6 + $0xefc] sm:$0xff]
    %v5086 = vld [vmem:[#allocation6 + $0xf04] sm:$0xff]
    %v5087 = vld [vmem:[#allocation6 + $0xf0c] sm:$0xff]
    %v5088 = vld [vmem:[#allocation6 + $0xf14] sm:$0xf]
    %v5089 = vld [vmem:[#allocation6 + $0xf18] sm:$0xff]
    %v5090 = vld [vmem:[#allocation6 + $0xf20] sm:$0xff]
    %v5091 = vld [vmem:[#allocation6 + $0xf28] sm:$0xff]
    %v5092 = vld [vmem:[#allocation6 + $0xf30] sm:$0xf]
    %v5093 = vld [vmem:[#allocation6 + $0xf34] sm:$0xff]
    %v5094 = vld [vmem:[#allocation6 + $0xf3c] sm:$0xff]
    %v5095 = vld [vmem:[#allocation6 + $0xf44] sm:$0xff]
    %v5096 = vld [vmem:[#allocation6 + $0xf4c] sm:$0xf]
    %v5097 = vld [vmem:[#allocation6 + $0xf50] sm:$0xff]
    %v5098 = vld [vmem:[#allocation6 + $0xf58] sm:$0xff]
    %v5099 = vld [vmem:[#allocation6 + $0xf60] sm:$0xff]
    %v5100 = vld [vmem:[#allocation6 + $0xf68] sm:$0xf]
    %v5101 = vld [vmem:[#allocation6 + $0xf6c] sm:$0xff]
    %v5102 = vld [vmem:[#allocation6 + $0xf74] sm:$0xff]
    %v5103 = vld [vmem:[#allocation6 + $0xf7c] sm:$0xff]
    %v5104 = vld [vmem:[#allocation6 + $0xf84] sm:$0xf]
    %v5105 = vld [vmem:[#allocation6 + $0xf88] sm:$0xff]
    %v5106 = vld [vmem:[#allocation6 + $0xf90] sm:$0xff]
    %v5107 = vld [vmem:[#allocation6 + $0xf98] sm:$0xff]
    %v5108 = vld [vmem:[#allocation6 + $0xfa0] sm:$0xf]
    %v5109 = vld [vmem:[#allocation6 + $0xfa4] sm:$0xff]
    %v5110 = vld [vmem:[#allocation6 + $0xfac] sm:$0xff]
    %v5111 = vld [vmem:[#allocation6 + $0xfb4] sm:$0xff]
    %v5112 = vld [vmem:[#allocation6 + $0xfbc] sm:$0xf]
    %v5113 = vld [vmem:[#allocation6 + $0xfc0] sm:$0xff]
    %v5114 = vld [vmem:[#allocation6 + $0xfc8] sm:$0xff]
    %v5115 = vld [vmem:[#allocation6 + $0xfd0] sm:$0xff]
    %v5116 = vld [vmem:[#allocation6 + $0xfd8] sm:$0xf]
    %v5117 = vld [vmem:[#allocation6 + $0xfdc] sm:$0xff]
    %v5118 = vld [vmem:[#allocation6 + $0xfe4] sm:$0xff]
    %v5119 = vld [vmem:[#allocation6 + $0xfec] sm:$0xff]
    %v5120 = vld [vmem:[#allocation6 + $0xff4] sm:$0xf]
    %v5121 = vld [vmem:[#allocation6 + $0xff8] sm:$0xff]
    %v5122 = vld [vmem:[#allocation6 + $0x1000] sm:$0xff]
    %v5123 = vld [vmem:[#allocation6 + $0x1008] sm:$0xff]
    %v5124 = vld [vmem:[#allocation6 + $0x1010] sm:$0xf]
    %v5125 = vld [vmem:[#allocation6 + $0x1014] sm:$0xff]
    %v5126 = vld [vmem:[#allocation6 + $0x101c] sm:$0xff]
    %v5127 = vld [vmem:[#allocation6 + $0x1024] sm:$0xff]
    %v5128 = vld [vmem:[#allocation6 + $0x102c] sm:$0xf]
    %v5129 = vld [vmem:[#allocation6 + $0x1030] sm:$0xff]
    %v5130 = vld [vmem:[#allocation6 + $0x1038] sm:$0xff]
    %v5131 = vld [vmem:[#allocation6 + $0x1040] sm:$0xff]
    %v5132 = vld [vmem:[#allocation6 + $0x1048] sm:$0xf]
    %v5133 = vld [vmem:[#allocation6 + $0x104c] sm:$0xff]
    %v5134 = vld [vmem:[#allocation6 + $0x1054] sm:$0xff]
    %v5135 = vld [vmem:[#allocation6 + $0x105c] sm:$0xff]
    %v5136 = vld [vmem:[#allocation6 + $0x1064] sm:$0xf]
    %v5137 = vld [vmem:[#allocation6 + $0x1068] sm:$0xff]
    %v5138 = vld [vmem:[#allocation6 + $0x1070] sm:$0xff]
    %v5139 = vld [vmem:[#allocation6 + $0x1078] sm:$0xff]
    %v5140 = vld [vmem:[#allocation6 + $0x1080] sm:$0xf]
    %v5141 = vld [vmem:[#allocation6 + $0x1084] sm:$0xff]
    %v5142 = vld [vmem:[#allocation6 + $0x108c] sm:$0xff]
    %v5143 = vld [vmem:[#allocation6 + $0x1094] sm:$0xff]
    %v5144 = vld [vmem:[#allocation6 + $0x109c] sm:$0xf]
    %v5145 = vld [vmem:[#allocation6 + $0x10a0] sm:$0xff]
    %v5146 = vld [vmem:[#allocation6 + $0x10a8] sm:$0xff]
    %v5147 = vld [vmem:[#allocation6 + $0x10b0] sm:$0xff]
    %v5148 = vld [vmem:[#allocation6 + $0x10b8] sm:$0xf]
    %v5149 = vld [vmem:[#allocation6 + $0x10bc] sm:$0xff]
    %v5150 = vld [vmem:[#allocation6 + $0x10c4] sm:$0xff]
    %v5151 = vld [vmem:[#allocation6 + $0x10cc] sm:$0xff]
    %v5152 = vld [vmem:[#allocation6 + $0x10d4] sm:$0xf]
    %v5153 = vld [vmem:[#allocation6 + $0x10d8] sm:$0xff]
    %v5154 = vld [vmem:[#allocation6 + $0x10e0] sm:$0xff]
    %v5155 = vld [vmem:[#allocation6 + $0x10e8] sm:$0xff]
    %v5156 = vld [vmem:[#allocation6 + $0x10f0] sm:$0xf]
    %v5157 = vld [vmem:[#allocation6 + $0x10f4] sm:$0xff]
    %v5158 = vld [vmem:[#allocation6 + $0x10fc] sm:$0xff]
    %v5159 = vld [vmem:[#allocation6 + $0x1104] sm:$0xff]
    %v5160 = vld [vmem:[#allocation6 + $0x110c] sm:$0xf]
    %v5161 = vld [vmem:[#allocation6 + $0x1110] sm:$0xff]
    %v5162 = vld [vmem:[#allocation6 + $0x1118] sm:$0xff]
    %v5163 = vld [vmem:[#allocation6 + $0x1120] sm:$0xff]
    %v5164 = vld [vmem:[#allocation6 + $0x1128] sm:$0xf]
    %v5165 = vld [vmem:[#allocation6 + $0x112c] sm:$0xff]
    %v5166 = vld [vmem:[#allocation6 + $0x1134] sm:$0xff]
    %v5167 = vld [vmem:[#allocation6 + $0x113c] sm:$0xff]
    %v5168 = vld [vmem:[#allocation6 + $0x1144] sm:$0xf]
    %v5169 = vld [vmem:[#allocation6 + $0x1148] sm:$0xff]
    %v5170 = vld [vmem:[#allocation6 + $0x1150] sm:$0xff]
    %v5171 = vld [vmem:[#allocation6 + $0x1158] sm:$0xff]
    %v5172 = vld [vmem:[#allocation6 + $0x1160] sm:$0xf]
    %v5173 = vld [vmem:[#allocation6 + $0x1164] sm:$0xff]
    %v5174 = vld [vmem:[#allocation6 + $0x116c] sm:$0xff]
    %v5175 = vld [vmem:[#allocation6 + $0x1174] sm:$0xff]
    %v5176 = vld [vmem:[#allocation6 + $0x117c] sm:$0xf]
    %v5177 = vld [vmem:[#allocation7] sm:$0xff]
    %v5179 = vperm.slane %v5177, 0
    %v5180 = vperm.slane %v5177, 1
    %v5181 = vperm.slane %v5177, 2
    %v5182 = vperm.slane %v5177, 3
    %v5183 = vperm.slane %v5177, 4
    %v5184 = vperm.slane %v5177, 5
    %v5185 = vperm.slane %v5177, 6
    %v5833 = vunpack.c.l.b16 %v4537
    %v5834 = vunpack.c.h.b16 %v4537
    %v5835 = vunpack.c.l.b16 %v4538
    %v5836 = vunpack.c.h.b16 %v4538
    %v5837 = vunpack.c.l.b16 %v4539
    %v5838 = vunpack.c.h.b16 %v4539
    %v5839 = vunpack.c.l.b16 %v4540
    %v5840 = vunpack.c.l.b16 %v4541
    %v5841 = vunpack.c.h.b16 %v4541
    %v5842 = vunpack.c.l.b16 %v4542
    %v5843 = vunpack.c.h.b16 %v4542
    %v5844 = vunpack.c.l.b16 %v4543
    %v5845 = vunpack.c.h.b16 %v4543
    %v5846 = vunpack.c.l.b16 %v4544
    %v5847 = vunpack.c.l.b16 %v4545
    %v5848 = vunpack.c.h.b16 %v4545
    %v5849 = vunpack.c.l.b16 %v4546
    %v5850 = vunpack.c.h.b16 %v4546
    %v5851 = vunpack.c.l.b16 %v4547
    %v5852 = vunpack.c.h.b16 %v4547
    %v5853 = vunpack.c.l.b16 %v4548
    %v5854 = vunpack.c.l.b16 %v4549
    %v5855 = vunpack.c.h.b16 %v4549
    %v5856 = vunpack.c.l.b16 %v4550
    %v5857 = vunpack.c.h.b16 %v4550
    %v5858 = vunpack.c.l.b16 %v4551
    %v5859 = vunpack.c.h.b16 %v4551
    %v5860 = vunpack.c.l.b16 %v4552
    %v5861 = vunpack.c.l.b16 %v4553
    %v5862 = vunpack.c.h.b16 %v4553
    %v5863 = vunpack.c.l.b16 %v4554
    %v5864 = vunpack.c.h.b16 %v4554
    %v5865 = vunpack.c.l.b16 %v4555
    %v5866 = vunpack.c.h.b16 %v4555
    %v5867 = vunpack.c.l.b16 %v4556
    %v5868 = vunpack.c.l.b16 %v4557
    %v5869 = vunpack.c.h.b16 %v4557
    %v5870 = vunpack.c.l.b16 %v4558
    %v5871 = vunpack.c.h.b16 %v4558
    %v5872 = vunpack.c.l.b16 %v4559
    %v5873 = vunpack.c.h.b16 %v4559
    %v5874 = vunpack.c.l.b16 %v4560
    %v5875 = vunpack.c.l.b16 %v4561
    %v5876 = vunpack.c.h.b16 %v4561
    %v5877 = vunpack.c.l.b16 %v4562
    %v5878 = vunpack.c.h.b16 %v4562
    %v5879 = vunpack.c.l.b16 %v4563
    %v5880 = vunpack.c.h.b16 %v4563
    %v5881 = vunpack.c.l.b16 %v4564
    %v5882 = vunpack.c.l.b16 %v4565
    %v5883 = vunpack.c.h.b16 %v4565
    %v5884 = vunpack.c.l.b16 %v4566
    %v5885 = vunpack.c.h.b16 %v4566
    %v5886 = vunpack.c.l.b16 %v4567
    %v5887 = vunpack.c.h.b16 %v4567
    %v5888 = vunpack.c.l.b16 %v4568
    %v5889 = vunpack.c.l.b16 %v4569
    %v5890 = vunpack.c.h.b16 %v4569
    %v5891 = vunpack.c.l.b16 %v4570
    %v5892 = vunpack.c.h.b16 %v4570
    %v5893 = vunpack.c.l.b16 %v4571
    %v5894 = vunpack.c.h.b16 %v4571
    %v5895 = vunpack.c.l.b16 %v4572
    %v5896 = vunpack.c.l.b16 %v4573
    %v5897 = vunpack.c.h.b16 %v4573
    %v5898 = vunpack.c.l.b16 %v4574
    %v5899 = vunpack.c.h.b16 %v4574
    %v5900 = vunpack.c.l.b16 %v4575
    %v5901 = vunpack.c.h.b16 %v4575
    %v5902 = vunpack.c.l.b16 %v4576
    %v5903 = vunpack.c.l.b16 %v4577
    %v5904 = vunpack.c.h.b16 %v4577
    %v5905 = vunpack.c.l.b16 %v4578
    %v5906 = vunpack.c.h.b16 %v4578
    %v5907 = vunpack.c.l.b16 %v4579
    %v5908 = vunpack.c.h.b16 %v4579
    %v5909 = vunpack.c.l.b16 %v4580
    %v5910 = vunpack.c.l.b16 %v4581
    %v5911 = vunpack.c.h.b16 %v4581
    %v5912 = vunpack.c.l.b16 %v4582
    %v5913 = vunpack.c.h.b16 %v4582
    %v5914 = vunpack.c.l.b16 %v4583
    %v5915 = vunpack.c.h.b16 %v4583
    %v5916 = vunpack.c.l.b16 %v4584
    %v5917 = vunpack.c.l.b16 %v4585
    %v5918 = vunpack.c.h.b16 %v4585
    %v5919 = vunpack.c.l.b16 %v4586
    %v5920 = vunpack.c.h.b16 %v4586
    %v5921 = vunpack.c.l.b16 %v4587
    %v5922 = vunpack.c.h.b16 %v4587
    %v5923 = vunpack.c.l.b16 %v4588
    %v5924 = vunpack.c.l.b16 %v4589
    %v5925 = vunpack.c.h.b16 %v4589
    %v5926 = vunpack.c.l.b16 %v4590
    %v5927 = vunpack.c.h.b16 %v4590
    %v5928 = vunpack.c.l.b16 %v4591
    %v5929 = vunpack.c.h.b16 %v4591
    %v5930 = vunpack.c.l.b16 %v4592
    %v5931 = vunpack.c.l.b16 %v4593
    %v5932 = vunpack.c.h.b16 %v4593
    %v5933 = vunpack.c.l.b16 %v4594
    %v5934 = vunpack.c.h.b16 %v4594
    %v5935 = vunpack.c.l.b16 %v4595
    %v5936 = vunpack.c.h.b16 %v4595
    %v5937 = vunpack.c.l.b16 %v4596
    %v5938 = vunpack.c.l.b16 %v4597
    %v5939 = vunpack.c.h.b16 %v4597
    %v5940 = vunpack.c.l.b16 %v4598
    %v5941 = vunpack.c.h.b16 %v4598
    %v5942 = vunpack.c.l.b16 %v4599
    %v5943 = vunpack.c.h.b16 %v4599
    %v5944 = vunpack.c.l.b16 %v4600
    %v5945 = vunpack.c.l.b16 %v4601
    %v5946 = vunpack.c.h.b16 %v4601
    %v5947 = vunpack.c.l.b16 %v4602
    %v5948 = vunpack.c.h.b16 %v4602
    %v5949 = vunpack.c.l.b16 %v4603
    %v5950 = vunpack.c.h.b16 %v4603
    %v5951 = vunpack.c.l.b16 %v4604
    %v5952 = vunpack.c.l.b16 %v4605
    %v5953 = vunpack.c.h.b16 %v4605
    %v5954 = vunpack.c.l.b16 %v4606
    %v5955 = vunpack.c.h.b16 %v4606
    %v5956 = vunpack.c.l.b16 %v4607
    %v5957 = vunpack.c.h.b16 %v4607
    %v5958 = vunpack.c.l.b16 %v4608
    %v5959 = vunpack.c.l.b16 %v4609
    %v5960 = vunpack.c.h.b16 %v4609
    %v5961 = vunpack.c.l.b16 %v4610
    %v5962 = vunpack.c.h.b16 %v4610
    %v5963 = vunpack.c.l.b16 %v4611
    %v5964 = vunpack.c.h.b16 %v4611
    %v5965 = vunpack.c.l.b16 %v4612
    %v5966 = vunpack.c.l.b16 %v4613
    %v5967 = vunpack.c.h.b16 %v4613
    %v5968 = vunpack.c.l.b16 %v4614
    %v5969 = vunpack.c.h.b16 %v4614
    %v5970 = vunpack.c.l.b16 %v4615
    %v5971 = vunpack.c.h.b16 %v4615
    %v5972 = vunpack.c.l.b16 %v4616
    %v5973 = vunpack.c.l.b16 %v4617
    %v5974 = vunpack.c.h.b16 %v4617
    %v5975 = vunpack.c.l.b16 %v4618
    %v5976 = vunpack.c.h.b16 %v4618
    %v5977 = vunpack.c.l.b16 %v4619
    %v5978 = vunpack.c.h.b16 %v4619
    %v5979 = vunpack.c.l.b16 %v4620
    %v5980 = vunpack.c.l.b16 %v4621
    %v5981 = vunpack.c.h.b16 %v4621
    %v5982 = vunpack.c.l.b16 %v4622
    %v5983 = vunpack.c.h.b16 %v4622
    %v5984 = vunpack.c.l.b16 %v4623
    %v5985 = vunpack.c.h.b16 %v4623
    %v5986 = vunpack.c.l.b16 %v4624
    %v5987 = vunpack.c.l.b16 %v4625
    %v5988 = vunpack.c.h.b16 %v4625
    %v5989 = vunpack.c.l.b16 %v4626
    %v5990 = vunpack.c.h.b16 %v4626
    %v5991 = vunpack.c.l.b16 %v4627
    %v5992 = vunpack.c.h.b16 %v4627
    %v5993 = vunpack.c.l.b16 %v4628
    %v5994 = vunpack.c.l.b16 %v4629
    %v5995 = vunpack.c.h.b16 %v4629
    %v5996 = vunpack.c.l.b16 %v4630
    %v5997 = vunpack.c.h.b16 %v4630
    %v5998 = vunpack.c.l.b16 %v4631
    %v5999 = vunpack.c.h.b16 %v4631
    %v6000 = vunpack.c.l.b16 %v4632
    %v6001 = vunpack.c.l.b16 %v4633
    %v6002 = vunpack.c.h.b16 %v4633
    %v6003 = vunpack.c.l.b16 %v4634
    %v6004 = vunpack.c.h.b16 %v4634
    %v6005 = vunpack.c.l.b16 %v4635
    %v6006 = vunpack.c.h.b16 %v4635
    %v6007 = vunpack.c.l.b16 %v4636
    %v6008 = vunpack.c.l.b16 %v4637
    %v6009 = vunpack.c.h.b16 %v4637
    %v6010 = vunpack.c.l.b16 %v4638
    %v6011 = vunpack.c.h.b16 %v4638
    %v6012 = vunpack.c.l.b16 %v4639
    %v6013 = vunpack.c.h.b16 %v4639
    %v6014 = vunpack.c.l.b16 %v4640
    %v6015 = vunpack.c.l.b16 %v4641
    %v6016 = vunpack.c.h.b16 %v4641
    %v6017 = vunpack.c.l.b16 %v4642
    %v6018 = vunpack.c.h.b16 %v4642
    %v6019 = vunpack.c.l.b16 %v4643
    %v6020 = vunpack.c.h.b16 %v4643
    %v6021 = vunpack.c.l.b16 %v4644
    %v6022 = vunpack.c.l.b16 %v4645
    %v6023 = vunpack.c.h.b16 %v4645
    %v6024 = vunpack.c.l.b16 %v4646
    %v6025 = vunpack.c.h.b16 %v4646
    %v6026 = vunpack.c.l.b16 %v4647
    %v6027 = vunpack.c.h.b16 %v4647
    %v6028 = vunpack.c.l.b16 %v4648
    %v6029 = vunpack.c.l.b16 %v4649
    %v6030 = vunpack.c.h.b16 %v4649
    %v6031 = vunpack.c.l.b16 %v4650
    %v6032 = vunpack.c.h.b16 %v4650
    %v6033 = vunpack.c.l.b16 %v4651
    %v6034 = vunpack.c.h.b16 %v4651
    %v6035 = vunpack.c.l.b16 %v4652
    %v6036 = vunpack.c.l.b16 %v4653
    %v6037 = vunpack.c.h.b16 %v4653
    %v6038 = vunpack.c.l.b16 %v4654
    %v6039 = vunpack.c.h.b16 %v4654
    %v6040 = vunpack.c.l.b16 %v4655
    %v6041 = vunpack.c.h.b16 %v4655
    %v6042 = vunpack.c.l.b16 %v4656
    %v6043 = vunpack.c.l.b16 %v4657
    %v6044 = vunpack.c.h.b16 %v4657
    %v6045 = vunpack.c.l.b16 %v4658
    %v6046 = vunpack.c.h.b16 %v4658
    %v6047 = vunpack.c.l.b16 %v4659
    %v6048 = vunpack.c.h.b16 %v4659
    %v6049 = vunpack.c.l.b16 %v4660
    %v6050 = vunpack.c.l.b16 %v4661
    %v6051 = vunpack.c.h.b16 %v4661
    %v6052 = vunpack.c.l.b16 %v4662
    %v6053 = vunpack.c.h.b16 %v4662
    %v6054 = vunpack.c.l.b16 %v4663
    %v6055 = vunpack.c.h.b16 %v4663
    %v6056 = vunpack.c.l.b16 %v4664
    %v6057 = vunpack.c.l.b16 %v4665
    %v6058 = vunpack.c.h.b16 %v4665
    %v6059 = vunpack.c.l.b16 %v4666
    %v6060 = vunpack.c.h.b16 %v4666
    %v6061 = vunpack.c.l.b16 %v4667
    %v6062 = vunpack.c.h.b16 %v4667
    %v6063 = vunpack.c.l.b16 %v4668
    %v6064 = vunpack.c.l.b16 %v4669
    %v6065 = vunpack.c.h.b16 %v4669
    %v6066 = vunpack.c.l.b16 %v4670
    %v6067 = vunpack.c.h.b16 %v4670
    %v6068 = vunpack.c.l.b16 %v4671
    %v6069 = vunpack.c.h.b16 %v4671
    %v6070 = vunpack.c.l.b16 %v4672
    %v6071 = vunpack.c.l.b16 %v4673
    %v6072 = vunpack.c.h.b16 %v4673
    %v6073 = vunpack.c.l.b16 %v4674
    %v6074 = vunpack.c.h.b16 %v4674
    %v6075 = vunpack.c.l.b16 %v4675
    %v6076 = vunpack.c.h.b16 %v4675
    %v6077 = vunpack.c.l.b16 %v4676
    %v6078 = vunpack.c.l.b16 %v4677
    %v6079 = vunpack.c.h.b16 %v4677
    %v6080 = vunpack.c.l.b16 %v4678
    %v6081 = vunpack.c.h.b16 %v4678
    %v6082 = vunpack.c.l.b16 %v4679
    %v6083 = vunpack.c.h.b16 %v4679
    %v6084 = vunpack.c.l.b16 %v4680
    %v6085 = vunpack.c.l.b16 %v4681
    %v6086 = vunpack.c.h.b16 %v4681
    %v6087 = vunpack.c.l.b16 %v4682
    %v6088 = vunpack.c.h.b16 %v4682
    %v6089 = vunpack.c.l.b16 %v4683
    %v6090 = vunpack.c.h.b16 %v4683
    %v6091 = vunpack.c.l.b16 %v4684
    %v6092 = vunpack.c.l.b16 %v4685
    %v6093 = vunpack.c.h.b16 %v4685
    %v6094 = vunpack.c.l.b16 %v4686
    %v6095 = vunpack.c.h.b16 %v4686
    %v6096 = vunpack.c.l.b16 %v4687
    %v6097 = vunpack.c.h.b16 %v4687
    %v6098 = vunpack.c.l.b16 %v4688
    %v6099 = vunpack.c.l.b16 %v4689
    %v6100 = vunpack.c.h.b16 %v4689
    %v6101 = vunpack.c.l.b16 %v4690
    %v6102 = vunpack.c.h.b16 %v4690
    %v6103 = vunpack.c.l.b16 %v4691
    %v6104 = vunpack.c.h.b16 %v4691
    %v6105 = vunpack.c.l.b16 %v4692
    %v6106 = vunpack.c.l.b16 %v4693
    %v6107 = vunpack.c.h.b16 %v4693
    %v6108 = vunpack.c.l.b16 %v4694
    %v6109 = vunpack.c.h.b16 %v4694
    %v6110 = vunpack.c.l.b16 %v4695
    %v6111 = vunpack.c.h.b16 %v4695
    %v6112 = vunpack.c.l.b16 %v4696
    %v6113 = vunpack.c.l.b16 %v4697
    %v6114 = vunpack.c.h.b16 %v4697
    %v6115 = vunpack.c.l.b16 %v4698
    %v6116 = vunpack.c.h.b16 %v4698
    %v6117 = vunpack.c.l.b16 %v4699
    %v6118 = vunpack.c.h.b16 %v4699
    %v6119 = vunpack.c.l.b16 %v4700
    %v6120 = vunpack.c.l.b16 %v4701
    %v6121 = vunpack.c.h.b16 %v4701
    %v6122 = vunpack.c.l.b16 %v4702
    %v6123 = vunpack.c.h.b16 %v4702
    %v6124 = vunpack.c.l.b16 %v4703
    %v6125 = vunpack.c.h.b16 %v4703
    %v6126 = vunpack.c.l.b16 %v4704
    %v6127 = vunpack.c.l.b16 %v4705
    %v6128 = vunpack.c.h.b16 %v4705
    %v6129 = vunpack.c.l.b16 %v4706
    %v6130 = vunpack.c.h.b16 %v4706
    %v6131 = vunpack.c.l.b16 %v4707
    %v6132 = vunpack.c.h.b16 %v4707
    %v6133 = vunpack.c.l.b16 %v4708
    %v6134 = vunpack.c.l.b16 %v4709
    %v6135 = vunpack.c.h.b16 %v4709
    %v6136 = vunpack.c.l.b16 %v4710
    %v6137 = vunpack.c.h.b16 %v4710
    %v6138 = vunpack.c.l.b16 %v4711
    %v6139 = vunpack.c.h.b16 %v4711
    %v6140 = vunpack.c.l.b16 %v4712
    %v6141 = vunpack.c.l.b16 %v4713
    %v6142 = vunpack.c.h.b16 %v4713
    %v6143 = vunpack.c.l.b16 %v4714
    %v6144 = vunpack.c.h.b16 %v4714
    %v6145 = vunpack.c.l.b16 %v4715
    %v6146 = vunpack.c.h.b16 %v4715
    %v6147 = vunpack.c.l.b16 %v4716
    %v6148 = vunpack.c.l.b16 %v4717
    %v6149 = vunpack.c.h.b16 %v4717
    %v6150 = vunpack.c.l.b16 %v4718
    %v6151 = vunpack.c.h.b16 %v4718
    %v6152 = vunpack.c.l.b16 %v4719
    %v6153 = vunpack.c.h.b16 %v4719
    %v6154 = vunpack.c.l.b16 %v4720
    %v6155 = vunpack.c.l.b16 %v4721
    %v6156 = vunpack.c.h.b16 %v4721
    %v6157 = vunpack.c.l.b16 %v4722
    %v6158 = vunpack.c.h.b16 %v4722
    %v6159 = vunpack.c.l.b16 %v4723
    %v6160 = vunpack.c.h.b16 %v4723
    %v6161 = vunpack.c.l.b16 %v4724
    %v6162 = vunpack.c.l.b16 %v4725
    %v6163 = vunpack.c.h.b16 %v4725
    %v6164 = vunpack.c.l.b16 %v4726
    %v6165 = vunpack.c.h.b16 %v4726
    %v6166 = vunpack.c.l.b16 %v4727
    %v6167 = vunpack.c.h.b16 %v4727
    %v6168 = vunpack.c.l.b16 %v4728
    %v6169 = vunpack.c.l.b16 %v4729
    %v6170 = vunpack.c.h.b16 %v4729
    %v6171 = vunpack.c.l.b16 %v4730
    %v6172 = vunpack.c.h.b16 %v4730
    %v6173 = vunpack.c.l.b16 %v4731
    %v6174 = vunpack.c.h.b16 %v4731
    %v6175 = vunpack.c.l.b16 %v4732
    %v6176 = vunpack.c.l.b16 %v4733
    %v6177 = vunpack.c.h.b16 %v4733
    %v6178 = vunpack.c.l.b16 %v4734
    %v6179 = vunpack.c.h.b16 %v4734
    %v6180 = vunpack.c.l.b16 %v4735
    %v6181 = vunpack.c.h.b16 %v4735
    %v6182 = vunpack.c.l.b16 %v4736
    %v6183 = vunpack.c.l.b16 %v4737
    %v6184 = vunpack.c.h.b16 %v4737
    %v6185 = vunpack.c.l.b16 %v4738
    %v6186 = vunpack.c.h.b16 %v4738
    %v6187 = vunpack.c.l.b16 %v4739
    %v6188 = vunpack.c.h.b16 %v4739
    %v6189 = vunpack.c.l.b16 %v4740
    %v6190 = vunpack.c.l.b16 %v4741
    %v6191 = vunpack.c.h.b16 %v4741
    %v6192 = vunpack.c.l.b16 %v4742
    %v6193 = vunpack.c.h.b16 %v4742
    %v6194 = vunpack.c.l.b16 %v4743
    %v6195 = vunpack.c.h.b16 %v4743
    %v6196 = vunpack.c.l.b16 %v4744
    %v6197 = vunpack.c.l.b16 %v4745
    %v6198 = vunpack.c.h.b16 %v4745
    %v6199 = vunpack.c.l.b16 %v4746
    %v6200 = vunpack.c.h.b16 %v4746
    %v6201 = vunpack.c.l.b16 %v4747
    %v6202 = vunpack.c.h.b16 %v4747
    %v6203 = vunpack.c.l.b16 %v4748
    %v6204 = vunpack.c.l.b16 %v4749
    %v6205 = vunpack.c.h.b16 %v4749
    %v6206 = vunpack.c.l.b16 %v4750
    %v6207 = vunpack.c.h.b16 %v4750
    %v6208 = vunpack.c.l.b16 %v4751
    %v6209 = vunpack.c.h.b16 %v4751
    %v6210 = vunpack.c.l.b16 %v4752
    %v6211 = vunpack.c.l.b16 %v4753
    %v6212 = vunpack.c.h.b16 %v4753
    %v6213 = vunpack.c.l.b16 %v4754
    %v6214 = vunpack.c.h.b16 %v4754
    %v6215 = vunpack.c.l.b16 %v4755
    %v6216 = vunpack.c.h.b16 %v4755
    %v6217 = vunpack.c.l.b16 %v4756
    %v6218 = vunpack.c.l.b16 %v4757
    %v6219 = vunpack.c.h.b16 %v4757
    %v6220 = vunpack.c.l.b16 %v4758
    %v6221 = vunpack.c.h.b16 %v4758
    %v6222 = vunpack.c.l.b16 %v4759
    %v6223 = vunpack.c.h.b16 %v4759
    %v6224 = vunpack.c.l.b16 %v4760
    %v6225 = vunpack.c.l.b16 %v4761
    %v6226 = vunpack.c.h.b16 %v4761
    %v6227 = vunpack.c.l.b16 %v4762
    %v6228 = vunpack.c.h.b16 %v4762
    %v6229 = vunpack.c.l.b16 %v4763
    %v6230 = vunpack.c.h.b16 %v4763
    %v6231 = vunpack.c.l.b16 %v4764
    %v6232 = vunpack.c.l.b16 %v4765
    %v6233 = vunpack.c.h.b16 %v4765
    %v6234 = vunpack.c.l.b16 %v4766
    %v6235 = vunpack.c.h.b16 %v4766
    %v6236 = vunpack.c.l.b16 %v4767
    %v6237 = vunpack.c.h.b16 %v4767
    %v6238 = vunpack.c.l.b16 %v4768
    %v6239 = vunpack.c.l.b16 %v4769
    %v6240 = vunpack.c.h.b16 %v4769
    %v6241 = vunpack.c.l.b16 %v4770
    %v6242 = vunpack.c.h.b16 %v4770
    %v6243 = vunpack.c.l.b16 %v4771
    %v6244 = vunpack.c.h.b16 %v4771
    %v6245 = vunpack.c.l.b16 %v4772
    %v6246 = vunpack.c.l.b16 %v4773
    %v6247 = vunpack.c.h.b16 %v4773
    %v6248 = vunpack.c.l.b16 %v4774
    %v6249 = vunpack.c.h.b16 %v4774
    %v6250 = vunpack.c.l.b16 %v4775
    %v6251 = vunpack.c.h.b16 %v4775
    %v6252 = vunpack.c.l.b16 %v4776
    %v6253 = vunpack.c.l.b16 %v4777
    %v6254 = vunpack.c.h.b16 %v4777
    %v6255 = vunpack.c.l.b16 %v4778
    %v6256 = vunpack.c.h.b16 %v4778
    %v6257 = vunpack.c.l.b16 %v4779
    %v6258 = vunpack.c.h.b16 %v4779
    %v6259 = vunpack.c.l.b16 %v4780
    %v6260 = vunpack.c.l.b16 %v4781
    %v6261 = vunpack.c.h.b16 %v4781
    %v6262 = vunpack.c.l.b16 %v4782
    %v6263 = vunpack.c.h.b16 %v4782
    %v6264 = vunpack.c.l.b16 %v4783
    %v6265 = vunpack.c.h.b16 %v4783
    %v6266 = vunpack.c.l.b16 %v4784
    %v6267 = vunpack.c.l.b16 %v4785
    %v6268 = vunpack.c.h.b16 %v4785
    %v6269 = vunpack.c.l.b16 %v4786
    %v6270 = vunpack.c.h.b16 %v4786
    %v6271 = vunpack.c.l.b16 %v4787
    %v6272 = vunpack.c.h.b16 %v4787
    %v6273 = vunpack.c.l.b16 %v4788
    %v6274 = vunpack.c.l.b16 %v4789
    %v6275 = vunpack.c.h.b16 %v4789
    %v6276 = vunpack.c.l.b16 %v4790
    %v6277 = vunpack.c.h.b16 %v4790
    %v6278 = vunpack.c.l.b16 %v4791
    %v6279 = vunpack.c.h.b16 %v4791
    %v6280 = vunpack.c.l.b16 %v4792
    %v6281 = vunpack.c.l.b16 %v4793
    %v6282 = vunpack.c.h.b16 %v4793
    %v6283 = vunpack.c.l.b16 %v4794
    %v6284 = vunpack.c.h.b16 %v4794
    %v6285 = vunpack.c.l.b16 %v4795
    %v6286 = vunpack.c.h.b16 %v4795
    %v6287 = vunpack.c.l.b16 %v4796
    %v6288 = vunpack.c.l.b16 %v4797
    %v6289 = vunpack.c.h.b16 %v4797
    %v6290 = vunpack.c.l.b16 %v4798
    %v6291 = vunpack.c.h.b16 %v4798
    %v6292 = vunpack.c.l.b16 %v4799
    %v6293 = vunpack.c.h.b16 %v4799
    %v6294 = vunpack.c.l.b16 %v4800
    %v6295 = vunpack.c.l.b16 %v4801
    %v6296 = vunpack.c.h.b16 %v4801
    %v6297 = vunpack.c.l.b16 %v4802
    %v6298 = vunpack.c.h.b16 %v4802
    %v6299 = vunpack.c.l.b16 %v4803
    %v6300 = vunpack.c.h.b16 %v4803
    %v6301 = vunpack.c.l.b16 %v4804
    %v6302 = vunpack.c.l.b16 %v4805
    %v6303 = vunpack.c.h.b16 %v4805
    %v6304 = vunpack.c.l.b16 %v4806
    %v6305 = vunpack.c.h.b16 %v4806
    %v6306 = vunpack.c.l.b16 %v4807
    %v6307 = vunpack.c.h.b16 %v4807
    %v6308 = vunpack.c.l.b16 %v4808
    %v6309 = vunpack.c.l.b16 %v4809
    %v6310 = vunpack.c.h.b16 %v4809
    %v6311 = vunpack.c.l.b16 %v4810
    %v6312 = vunpack.c.h.b16 %v4810
    %v6313 = vunpack.c.l.b16 %v4811
    %v6314 = vunpack.c.h.b16 %v4811
    %v6315 = vunpack.c.l.b16 %v4812
    %v6316 = vunpack.c.l.b16 %v4813
    %v6317 = vunpack.c.h.b16 %v4813
    %v6318 = vunpack.c.l.b16 %v4814
    %v6319 = vunpack.c.h.b16 %v4814
    %v6320 = vunpack.c.l.b16 %v4815
    %v6321 = vunpack.c.h.b16 %v4815
    %v6322 = vunpack.c.l.b16 %v4816
    %v6323 = vunpack.c.l.b16 %v4817
    %v6324 = vunpack.c.h.b16 %v4817
    %v6325 = vunpack.c.l.b16 %v4818
    %v6326 = vunpack.c.h.b16 %v4818
    %v6327 = vunpack.c.l.b16 %v4819
    %v6328 = vunpack.c.h.b16 %v4819
    %v6329 = vunpack.c.l.b16 %v4820
    %v6330 = vunpack.c.l.b16 %v4821
    %v6331 = vunpack.c.h.b16 %v4821
    %v6332 = vunpack.c.l.b16 %v4822
    %v6333 = vunpack.c.h.b16 %v4822
    %v6334 = vunpack.c.l.b16 %v4823
    %v6335 = vunpack.c.h.b16 %v4823
    %v6336 = vunpack.c.l.b16 %v4824
    %v6337 = vunpack.c.l.b16 %v4825
    %v6338 = vunpack.c.h.b16 %v4825
    %v6339 = vunpack.c.l.b16 %v4826
    %v6340 = vunpack.c.h.b16 %v4826
    %v6341 = vunpack.c.l.b16 %v4827
    %v6342 = vunpack.c.h.b16 %v4827
    %v6343 = vunpack.c.l.b16 %v4828
    %v6344 = vunpack.c.l.b16 %v4829
    %v6345 = vunpack.c.h.b16 %v4829
    %v6346 = vunpack.c.l.b16 %v4830
    %v6347 = vunpack.c.h.b16 %v4830
    %v6348 = vunpack.c.l.b16 %v4831
    %v6349 = vunpack.c.h.b16 %v4831
    %v6350 = vunpack.c.l.b16 %v4832
    %v6351 = vunpack.c.l.b16 %v4833
    %v6352 = vunpack.c.h.b16 %v4833
    %v6353 = vunpack.c.l.b16 %v4834
    %v6354 = vunpack.c.h.b16 %v4834
    %v6355 = vunpack.c.l.b16 %v4835
    %v6356 = vunpack.c.h.b16 %v4835
    %v6357 = vunpack.c.l.b16 %v4836
    %v6358 = vunpack.c.l.b16 %v4837
    %v6359 = vunpack.c.h.b16 %v4837
    %v6360 = vunpack.c.l.b16 %v4838
    %v6361 = vunpack.c.h.b16 %v4838
    %v6362 = vunpack.c.l.b16 %v4839
    %v6363 = vunpack.c.h.b16 %v4839
    %v6364 = vunpack.c.l.b16 %v4840
    %v6365 = vunpack.c.l.b16 %v4841
    %v6366 = vunpack.c.h.b16 %v4841
    %v6367 = vunpack.c.l.b16 %v4842
    %v6368 = vunpack.c.h.b16 %v4842
    %v6369 = vunpack.c.l.b16 %v4843
    %v6370 = vunpack.c.h.b16 %v4843
    %v6371 = vunpack.c.l.b16 %v4844
    %v6372 = vunpack.c.l.b16 %v4845
    %v6373 = vunpack.c.h.b16 %v4845
    %v6374 = vunpack.c.l.b16 %v4846
    %v6375 = vunpack.c.h.b16 %v4846
    %v6376 = vunpack.c.l.b16 %v4847
    %v6377 = vunpack.c.h.b16 %v4847
    %v6378 = vunpack.c.l.b16 %v4848
    %v6379 = vunpack.c.l.b16 %v4849
    %v6380 = vunpack.c.h.b16 %v4849
    %v6381 = vunpack.c.l.b16 %v4850
    %v6382 = vunpack.c.h.b16 %v4850
    %v6383 = vunpack.c.l.b16 %v4851
    %v6384 = vunpack.c.h.b16 %v4851
    %v6385 = vunpack.c.l.b16 %v4852
    %v6386 = vunpack.c.l.b16 %v4853
    %v6387 = vunpack.c.h.b16 %v4853
    %v6388 = vunpack.c.l.b16 %v4854
    %v6389 = vunpack.c.h.b16 %v4854
    %v6390 = vunpack.c.l.b16 %v4855
    %v6391 = vunpack.c.h.b16 %v4855
    %v6392 = vunpack.c.l.b16 %v4856
    %v6393 = vunpack.c.l.b16 %v4857
    %v6394 = vunpack.c.h.b16 %v4857
    %v6395 = vunpack.c.l.b16 %v4858
    %v6396 = vunpack.c.h.b16 %v4858
    %v6397 = vunpack.c.l.b16 %v4859
    %v6398 = vunpack.c.h.b16 %v4859
    %v6399 = vunpack.c.l.b16 %v4860
    %v6400 = vunpack.c.l.b16 %v4861
    %v6401 = vunpack.c.h.b16 %v4861
    %v6402 = vunpack.c.l.b16 %v4862
    %v6403 = vunpack.c.h.b16 %v4862
    %v6404 = vunpack.c.l.b16 %v4863
    %v6405 = vunpack.c.h.b16 %v4863
    %v6406 = vunpack.c.l.b16 %v4864
    %v6407 = vunpack.c.l.b16 %v4865
    %v6408 = vunpack.c.h.b16 %v4865
    %v6409 = vunpack.c.l.b16 %v4866
    %v6410 = vunpack.c.h.b16 %v4866
    %v6411 = vunpack.c.l.b16 %v4867
    %v6412 = vunpack.c.h.b16 %v4867
    %v6413 = vunpack.c.l.b16 %v4868
    %v6414 = vunpack.c.l.b16 %v4869
    %v6415 = vunpack.c.h.b16 %v4869
    %v6416 = vunpack.c.l.b16 %v4870
    %v6417 = vunpack.c.h.b16 %v4870
    %v6418 = vunpack.c.l.b16 %v4871
    %v6419 = vunpack.c.h.b16 %v4871
    %v6420 = vunpack.c.l.b16 %v4872
    %v6421 = vunpack.c.l.b16 %v4873
    %v6422 = vunpack.c.h.b16 %v4873
    %v6423 = vunpack.c.l.b16 %v4874
    %v6424 = vunpack.c.h.b16 %v4874
    %v6425 = vunpack.c.l.b16 %v4875
    %v6426 = vunpack.c.h.b16 %v4875
    %v6427 = vunpack.c.l.b16 %v4876
    %v6428 = vunpack.c.l.b16 %v4877
    %v6429 = vunpack.c.h.b16 %v4877
    %v6430 = vunpack.c.l.b16 %v4878
    %v6431 = vunpack.c.h.b16 %v4878
    %v6432 = vunpack.c.l.b16 %v4879
    %v6433 = vunpack.c.h.b16 %v4879
    %v6434 = vunpack.c.l.b16 %v4880
    %v6435 = vunpack.c.l.b16 %v4881
    %v6436 = vunpack.c.h.b16 %v4881
    %v6437 = vunpack.c.l.b16 %v4882
    %v6438 = vunpack.c.h.b16 %v4882
    %v6439 = vunpack.c.l.b16 %v4883
    %v6440 = vunpack.c.h.b16 %v4883
    %v6441 = vunpack.c.l.b16 %v4884
    %v6442 = vunpack.c.l.b16 %v4885
    %v6443 = vunpack.c.h.b16 %v4885
    %v6444 = vunpack.c.l.b16 %v4886
    %v6445 = vunpack.c.h.b16 %v4886
    %v6446 = vunpack.c.l.b16 %v4887
    %v6447 = vunpack.c.h.b16 %v4887
    %v6448 = vunpack.c.l.b16 %v4888
    %v6449 = vunpack.c.l.b16 %v4889
    %v6450 = vunpack.c.h.b16 %v4889
    %v6451 = vunpack.c.l.b16 %v4890
    %v6452 = vunpack.c.h.b16 %v4890
    %v6453 = vunpack.c.l.b16 %v4891
    %v6454 = vunpack.c.h.b16 %v4891
    %v6455 = vunpack.c.l.b16 %v4892
    %v6456 = vunpack.c.l.b16 %v4893
    %v6457 = vunpack.c.h.b16 %v4893
    %v6458 = vunpack.c.l.b16 %v4894
    %v6459 = vunpack.c.h.b16 %v4894
    %v6460 = vunpack.c.l.b16 %v4895
    %v6461 = vunpack.c.h.b16 %v4895
    %v6462 = vunpack.c.l.b16 %v4896
    %v6463 = vunpack.c.l.b16 %v4897
    %v6464 = vunpack.c.h.b16 %v4897
    %v6465 = vunpack.c.l.b16 %v4898
    %v6466 = vunpack.c.h.b16 %v4898
    %v6467 = vunpack.c.l.b16 %v4899
    %v6468 = vunpack.c.h.b16 %v4899
    %v6469 = vunpack.c.l.b16 %v4900
    %v6470 = vunpack.c.l.b16 %v4901
    %v6471 = vunpack.c.h.b16 %v4901
    %v6472 = vunpack.c.l.b16 %v4902
    %v6473 = vunpack.c.h.b16 %v4902
    %v6474 = vunpack.c.l.b16 %v4903
    %v6475 = vunpack.c.h.b16 %v4903
    %v6476 = vunpack.c.l.b16 %v4904
    %v6477 = vunpack.c.l.b16 %v4905
    %v6478 = vunpack.c.h.b16 %v4905
    %v6479 = vunpack.c.l.b16 %v4906
    %v6480 = vunpack.c.h.b16 %v4906
    %v6481 = vunpack.c.l.b16 %v4907
    %v6482 = vunpack.c.h.b16 %v4907
    %v6483 = vunpack.c.l.b16 %v4908
    %v6484 = vunpack.c.l.b16 %v4909
    %v6485 = vunpack.c.h.b16 %v4909
    %v6486 = vunpack.c.l.b16 %v4910
    %v6487 = vunpack.c.h.b16 %v4910
    %v6488 = vunpack.c.l.b16 %v4911
    %v6489 = vunpack.c.h.b16 %v4911
    %v6490 = vunpack.c.l.b16 %v4912
    %v6491 = vunpack.c.l.b16 %v4913
    %v6492 = vunpack.c.h.b16 %v4913
    %v6493 = vunpack.c.l.b16 %v4914
    %v6494 = vunpack.c.h.b16 %v4914
    %v6495 = vunpack.c.l.b16 %v4915
    %v6496 = vunpack.c.h.b16 %v4915
    %v6497 = vunpack.c.l.b16 %v4916
    %v6498 = vunpack.c.l.b16 %v4917
    %v6499 = vunpack.c.h.b16 %v4917
    %v6500 = vunpack.c.l.b16 %v4918
    %v6501 = vunpack.c.h.b16 %v4918
    %v6502 = vunpack.c.l.b16 %v4919
    %v6503 = vunpack.c.h.b16 %v4919
    %v6504 = vunpack.c.l.b16 %v4920
    %v6505 = vunpack.c.l.b16 %v4921
    %v6506 = vunpack.c.h.b16 %v4921
    %v6507 = vunpack.c.l.b16 %v4922
    %v6508 = vunpack.c.h.b16 %v4922
    %v6509 = vunpack.c.l.b16 %v4923
    %v6510 = vunpack.c.h.b16 %v4923
    %v6511 = vunpack.c.l.b16 %v4924
    %v6512 = vunpack.c.l.b16 %v4925
    %v6513 = vunpack.c.h.b16 %v4925
    %v6514 = vunpack.c.l.b16 %v4926
    %v6515 = vunpack.c.h.b16 %v4926
    %v6516 = vunpack.c.l.b16 %v4927
    %v6517 = vunpack.c.h.b16 %v4927
    %v6518 = vunpack.c.l.b16 %v4928
    %v6519 = vunpack.c.l.b16 %v4929
    %v6520 = vunpack.c.h.b16 %v4929
    %v6521 = vunpack.c.l.b16 %v4930
    %v6522 = vunpack.c.h.b16 %v4930
    %v6523 = vunpack.c.l.b16 %v4931
    %v6524 = vunpack.c.h.b16 %v4931
    %v6525 = vunpack.c.l.b16 %v4932
    %v6526 = vunpack.c.l.b16 %v4933
    %v6527 = vunpack.c.h.b16 %v4933
    %v6528 = vunpack.c.l.b16 %v4934
    %v6529 = vunpack.c.h.b16 %v4934
    %v6530 = vunpack.c.l.b16 %v4935
    %v6531 = vunpack.c.h.b16 %v4935
    %v6532 = vunpack.c.l.b16 %v4936
    %v6533 = vunpack.c.l.b16 %v4937
    %v6534 = vunpack.c.h.b16 %v4937
    %v6535 = vunpack.c.l.b16 %v4938
    %v6536 = vunpack.c.h.b16 %v4938
    %v6537 = vunpack.c.l.b16 %v4939
    %v6538 = vunpack.c.h.b16 %v4939
    %v6539 = vunpack.c.l.b16 %v4940
    %v6540 = vunpack.c.l.b16 %v4941
    %v6541 = vunpack.c.h.b16 %v4941
    %v6542 = vunpack.c.l.b16 %v4942
    %v6543 = vunpack.c.h.b16 %v4942
    %v6544 = vunpack.c.l.b16 %v4943
    %v6545 = vunpack.c.h.b16 %v4943
    %v6546 = vunpack.c.l.b16 %v4944
    %v6547 = vunpack.c.l.b16 %v4945
    %v6548 = vunpack.c.h.b16 %v4945
    %v6549 = vunpack.c.l.b16 %v4946
    %v6550 = vunpack.c.h.b16 %v4946
    %v6551 = vunpack.c.l.b16 %v4947
    %v6552 = vunpack.c.h.b16 %v4947
    %v6553 = vunpack.c.l.b16 %v4948
    %v6554 = vunpack.c.l.b16 %v4949
    %v6555 = vunpack.c.h.b16 %v4949
    %v6556 = vunpack.c.l.b16 %v4950
    %v6557 = vunpack.c.h.b16 %v4950
    %v6558 = vunpack.c.l.b16 %v4951
    %v6559 = vunpack.c.h.b16 %v4951
    %v6560 = vunpack.c.l.b16 %v4952
    %v6561 = vunpack.c.l.b16 %v4953
    %v6562 = vunpack.c.h.b16 %v4953
    %v6563 = vunpack.c.l.b16 %v4954
    %v6564 = vunpack.c.h.b16 %v4954
    %v6565 = vunpack.c.l.b16 %v4955
    %v6566 = vunpack.c.h.b16 %v4955
    %v6567 = vunpack.c.l.b16 %v4956
    %v6568 = vunpack.c.l.b16 %v4957
    %v6569 = vunpack.c.h.b16 %v4957
    %v6570 = vunpack.c.l.b16 %v4958
    %v6571 = vunpack.c.h.b16 %v4958
    %v6572 = vunpack.c.l.b16 %v4959
    %v6573 = vunpack.c.h.b16 %v4959
    %v6574 = vunpack.c.l.b16 %v4960
    %v6575 = vunpack.c.l.b16 %v4961
    %v6576 = vunpack.c.h.b16 %v4961
    %v6577 = vunpack.c.l.b16 %v4962
    %v6578 = vunpack.c.h.b16 %v4962
    %v6579 = vunpack.c.l.b16 %v4963
    %v6580 = vunpack.c.h.b16 %v4963
    %v6581 = vunpack.c.l.b16 %v4964
    %v6582 = vunpack.c.l.b16 %v4965
    %v6583 = vunpack.c.h.b16 %v4965
    %v6584 = vunpack.c.l.b16 %v4966
    %v6585 = vunpack.c.h.b16 %v4966
    %v6586 = vunpack.c.l.b16 %v4967
    %v6587 = vunpack.c.h.b16 %v4967
    %v6588 = vunpack.c.l.b16 %v4968
    %v6589 = vunpack.c.l.b16 %v4969
    %v6590 = vunpack.c.h.b16 %v4969
    %v6591 = vunpack.c.l.b16 %v4970
    %v6592 = vunpack.c.h.b16 %v4970
    %v6593 = vunpack.c.l.b16 %v4971
    %v6594 = vunpack.c.h.b16 %v4971
    %v6595 = vunpack.c.l.b16 %v4972
    %v6596 = vunpack.c.l.b16 %v4973
    %v6597 = vunpack.c.h.b16 %v4973
    %v6598 = vunpack.c.l.b16 %v4974
    %v6599 = vunpack.c.h.b16 %v4974
    %v6600 = vunpack.c.l.b16 %v4975
    %v6601 = vunpack.c.h.b16 %v4975
    %v6602 = vunpack.c.l.b16 %v4976
    %v6603 = vunpack.c.l.b16 %v4977
    %v6604 = vunpack.c.h.b16 %v4977
    %v6605 = vunpack.c.l.b16 %v4978
    %v6606 = vunpack.c.h.b16 %v4978
    %v6607 = vunpack.c.l.b16 %v4979
    %v6608 = vunpack.c.h.b16 %v4979
    %v6609 = vunpack.c.l.b16 %v4980
    %v6610 = vunpack.c.l.b16 %v4981
    %v6611 = vunpack.c.h.b16 %v4981
    %v6612 = vunpack.c.l.b16 %v4982
    %v6613 = vunpack.c.h.b16 %v4982
    %v6614 = vunpack.c.l.b16 %v4983
    %v6615 = vunpack.c.h.b16 %v4983
    %v6616 = vunpack.c.l.b16 %v4984
    %v6617 = vunpack.c.l.b16 %v4985
    %v6618 = vunpack.c.h.b16 %v4985
    %v6619 = vunpack.c.l.b16 %v4986
    %v6620 = vunpack.c.h.b16 %v4986
    %v6621 = vunpack.c.l.b16 %v4987
    %v6622 = vunpack.c.h.b16 %v4987
    %v6623 = vunpack.c.l.b16 %v4988
    %v6624 = vunpack.c.l.b16 %v4989
    %v6625 = vunpack.c.h.b16 %v4989
    %v6626 = vunpack.c.l.b16 %v4990
    %v6627 = vunpack.c.h.b16 %v4990
    %v6628 = vunpack.c.l.b16 %v4991
    %v6629 = vunpack.c.h.b16 %v4991
    %v6630 = vunpack.c.l.b16 %v4992
    %v6631 = vunpack.c.l.b16 %v4993
    %v6632 = vunpack.c.h.b16 %v4993
    %v6633 = vunpack.c.l.b16 %v4994
    %v6634 = vunpack.c.h.b16 %v4994
    %v6635 = vunpack.c.l.b16 %v4995
    %v6636 = vunpack.c.h.b16 %v4995
    %v6637 = vunpack.c.l.b16 %v4996
    %v6638 = vunpack.c.l.b16 %v4997
    %v6639 = vunpack.c.h.b16 %v4997
    %v6640 = vunpack.c.l.b16 %v4998
    %v6641 = vunpack.c.h.b16 %v4998
    %v6642 = vunpack.c.l.b16 %v4999
    %v6643 = vunpack.c.h.b16 %v4999
    %v6644 = vunpack.c.l.b16 %v5000
    %v6645 = vunpack.c.l.b16 %v5001
    %v6646 = vunpack.c.h.b16 %v5001
    %v6647 = vunpack.c.l.b16 %v5002
    %v6648 = vunpack.c.h.b16 %v5002
    %v6649 = vunpack.c.l.b16 %v5003
    %v6650 = vunpack.c.h.b16 %v5003
    %v6651 = vunpack.c.l.b16 %v5004
    %v6652 = vunpack.c.l.b16 %v5005
    %v6653 = vunpack.c.h.b16 %v5005
    %v6654 = vunpack.c.l.b16 %v5006
    %v6655 = vunpack.c.h.b16 %v5006
    %v6656 = vunpack.c.l.b16 %v5007
    %v6657 = vunpack.c.h.b16 %v5007
    %v6658 = vunpack.c.l.b16 %v5008
    %v6659 = vunpack.c.l.b16 %v5009
    %v6660 = vunpack.c.h.b16 %v5009
    %v6661 = vunpack.c.l.b16 %v5010
    %v6662 = vunpack.c.h.b16 %v5010
    %v6663 = vunpack.c.l.b16 %v5011
    %v6664 = vunpack.c.h.b16 %v5011
    %v6665 = vunpack.c.l.b16 %v5012
    %v6666 = vunpack.c.l.b16 %v5013
    %v6667 = vunpack.c.h.b16 %v5013
    %v6668 = vunpack.c.l.b16 %v5014
    %v6669 = vunpack.c.h.b16 %v5014
    %v6670 = vunpack.c.l.b16 %v5015
    %v6671 = vunpack.c.h.b16 %v5015
    %v6672 = vunpack.c.l.b16 %v5016
    %v6673 = vunpack.c.l.b16 %v5017
    %v6674 = vunpack.c.h.b16 %v5017
    %v6675 = vunpack.c.l.b16 %v5018
    %v6676 = vunpack.c.h.b16 %v5018
    %v6677 = vunpack.c.l.b16 %v5019
    %v6678 = vunpack.c.h.b16 %v5019
    %v6679 = vunpack.c.l.b16 %v5020
    %v6680 = vunpack.c.l.b16 %v5021
    %v6681 = vunpack.c.h.b16 %v5021
    %v6682 = vunpack.c.l.b16 %v5022
    %v6683 = vunpack.c.h.b16 %v5022
    %v6684 = vunpack.c.l.b16 %v5023
    %v6685 = vunpack.c.h.b16 %v5023
    %v6686 = vunpack.c.l.b16 %v5024
    %v6687 = vunpack.c.l.b16 %v5025
    %v6688 = vunpack.c.h.b16 %v5025
    %v6689 = vunpack.c.l.b16 %v5026
    %v6690 = vunpack.c.h.b16 %v5026
    %v6691 = vunpack.c.l.b16 %v5027
    %v6692 = vunpack.c.h.b16 %v5027
    %v6693 = vunpack.c.l.b16 %v5028
    %v6694 = vunpack.c.l.b16 %v5029
    %v6695 = vunpack.c.h.b16 %v5029
    %v6696 = vunpack.c.l.b16 %v5030
    %v6697 = vunpack.c.h.b16 %v5030
    %v6698 = vunpack.c.l.b16 %v5031
    %v6699 = vunpack.c.h.b16 %v5031
    %v6700 = vunpack.c.l.b16 %v5032
    %v6701 = vunpack.c.l.b16 %v5033
    %v6702 = vunpack.c.h.b16 %v5033
    %v6703 = vunpack.c.l.b16 %v5034
    %v6704 = vunpack.c.h.b16 %v5034
    %v6705 = vunpack.c.l.b16 %v5035
    %v6706 = vunpack.c.h.b16 %v5035
    %v6707 = vunpack.c.l.b16 %v5036
    %v6708 = vunpack.c.l.b16 %v5037
    %v6709 = vunpack.c.h.b16 %v5037
    %v6710 = vunpack.c.l.b16 %v5038
    %v6711 = vunpack.c.h.b16 %v5038
    %v6712 = vunpack.c.l.b16 %v5039
    %v6713 = vunpack.c.h.b16 %v5039
    %v6714 = vunpack.c.l.b16 %v5040
    %v6715 = vunpack.c.l.b16 %v5041
    %v6716 = vunpack.c.h.b16 %v5041
    %v6717 = vunpack.c.l.b16 %v5042
    %v6718 = vunpack.c.h.b16 %v5042
    %v6719 = vunpack.c.l.b16 %v5043
    %v6720 = vunpack.c.h.b16 %v5043
    %v6721 = vunpack.c.l.b16 %v5044
    %v6722 = vunpack.c.l.b16 %v5045
    %v6723 = vunpack.c.h.b16 %v5045
    %v6724 = vunpack.c.l.b16 %v5046
    %v6725 = vunpack.c.h.b16 %v5046
    %v6726 = vunpack.c.l.b16 %v5047
    %v6727 = vunpack.c.h.b16 %v5047
    %v6728 = vunpack.c.l.b16 %v5048
    %v6729 = vunpack.c.l.b16 %v5049
    %v6730 = vunpack.c.h.b16 %v5049
    %v6731 = vunpack.c.l.b16 %v5050
    %v6732 = vunpack.c.h.b16 %v5050
    %v6733 = vunpack.c.l.b16 %v5051
    %v6734 = vunpack.c.h.b16 %v5051
    %v6735 = vunpack.c.l.b16 %v5052
    %v6736 = vunpack.c.l.b16 %v5053
    %v6737 = vunpack.c.h.b16 %v5053
    %v6738 = vunpack.c.l.b16 %v5054
    %v6739 = vunpack.c.h.b16 %v5054
    %v6740 = vunpack.c.l.b16 %v5055
    %v6741 = vunpack.c.h.b16 %v5055
    %v6742 = vunpack.c.l.b16 %v5056
    %v6743 = vunpack.c.l.b16 %v5057
    %v6744 = vunpack.c.h.b16 %v5057
    %v6745 = vunpack.c.l.b16 %v5058
    %v6746 = vunpack.c.h.b16 %v5058
    %v6747 = vunpack.c.l.b16 %v5059
    %v6748 = vunpack.c.h.b16 %v5059
    %v6749 = vunpack.c.l.b16 %v5060
    %v6750 = vunpack.c.l.b16 %v5061
    %v6751 = vunpack.c.h.b16 %v5061
    %v6752 = vunpack.c.l.b16 %v5062
    %v6753 = vunpack.c.h.b16 %v5062
    %v6754 = vunpack.c.l.b16 %v5063
    %v6755 = vunpack.c.h.b16 %v5063
    %v6756 = vunpack.c.l.b16 %v5064
    %v6757 = vunpack.c.l.b16 %v5065
    %v6758 = vunpack.c.h.b16 %v5065
    %v6759 = vunpack.c.l.b16 %v5066
    %v6760 = vunpack.c.h.b16 %v5066
    %v6761 = vunpack.c.l.b16 %v5067
    %v6762 = vunpack.c.h.b16 %v5067
    %v6763 = vunpack.c.l.b16 %v5068
    %v6764 = vunpack.c.l.b16 %v5069
    %v6765 = vunpack.c.h.b16 %v5069
    %v6766 = vunpack.c.l.b16 %v5070
    %v6767 = vunpack.c.h.b16 %v5070
    %v6768 = vunpack.c.l.b16 %v5071
    %v6769 = vunpack.c.h.b16 %v5071
    %v6770 = vunpack.c.l.b16 %v5072
    %v6771 = vunpack.c.l.b16 %v5073
    %v6772 = vunpack.c.h.b16 %v5073
    %v6773 = vunpack.c.l.b16 %v5074
    %v6774 = vunpack.c.h.b16 %v5074
    %v6775 = vunpack.c.l.b16 %v5075
    %v6776 = vunpack.c.h.b16 %v5075
    %v6777 = vunpack.c.l.b16 %v5076
    %v6778 = vunpack.c.l.b16 %v5077
    %v6779 = vunpack.c.h.b16 %v5077
    %v6780 = vunpack.c.l.b16 %v5078
    %v6781 = vunpack.c.h.b16 %v5078
    %v6782 = vunpack.c.l.b16 %v5079
    %v6783 = vunpack.c.h.b16 %v5079
    %v6784 = vunpack.c.l.b16 %v5080
    %v6785 = vunpack.c.l.b16 %v5081
    %v6786 = vunpack.c.h.b16 %v5081
    %v6787 = vunpack.c.l.b16 %v5082
    %v6788 = vunpack.c.h.b16 %v5082
    %v6789 = vunpack.c.l.b16 %v5083
    %v6790 = vunpack.c.h.b16 %v5083
    %v6791 = vunpack.c.l.b16 %v5084
    %v6792 = vunpack.c.l.b16 %v5085
    %v6793 = vunpack.c.h.b16 %v5085
    %v6794 = vunpack.c.l.b16 %v5086
    %v6795 = vunpack.c.h.b16 %v5086
    %v6796 = vunpack.c.l.b16 %v5087
    %v6797 = vunpack.c.h.b16 %v5087
    %v6798 = vunpack.c.l.b16 %v5088
    %v6799 = vunpack.c.l.b16 %v5089
    %v6800 = vunpack.c.h.b16 %v5089
    %v6801 = vunpack.c.l.b16 %v5090
    %v6802 = vunpack.c.h.b16 %v5090
    %v6803 = vunpack.c.l.b16 %v5091
    %v6804 = vunpack.c.h.b16 %v5091
    %v6805 = vunpack.c.l.b16 %v5092
    %v6806 = vunpack.c.l.b16 %v5093
    %v6807 = vunpack.c.h.b16 %v5093
    %v6808 = vunpack.c.l.b16 %v5094
    %v6809 = vunpack.c.h.b16 %v5094
    %v6810 = vunpack.c.l.b16 %v5095
    %v6811 = vunpack.c.h.b16 %v5095
    %v6812 = vunpack.c.l.b16 %v5096
    %v6813 = vunpack.c.l.b16 %v5097
    %v6814 = vunpack.c.h.b16 %v5097
    %v6815 = vunpack.c.l.b16 %v5098
    %v6816 = vunpack.c.h.b16 %v5098
    %v6817 = vunpack.c.l.b16 %v5099
    %v6818 = vunpack.c.h.b16 %v5099
    %v6819 = vunpack.c.l.b16 %v5100
    %v6820 = vunpack.c.l.b16 %v5101
    %v6821 = vunpack.c.h.b16 %v5101
    %v6822 = vunpack.c.l.b16 %v5102
    %v6823 = vunpack.c.h.b16 %v5102
    %v6824 = vunpack.c.l.b16 %v5103
    %v6825 = vunpack.c.h.b16 %v5103
    %v6826 = vunpack.c.l.b16 %v5104
    %v6827 = vunpack.c.l.b16 %v5105
    %v6828 = vunpack.c.h.b16 %v5105
    %v6829 = vunpack.c.l.b16 %v5106
    %v6830 = vunpack.c.h.b16 %v5106
    %v6831 = vunpack.c.l.b16 %v5107
    %v6832 = vunpack.c.h.b16 %v5107
    %v6833 = vunpack.c.l.b16 %v5108
    %v6834 = vunpack.c.l.b16 %v5109
    %v6835 = vunpack.c.h.b16 %v5109
    %v6836 = vunpack.c.l.b16 %v5110
    %v6837 = vunpack.c.h.b16 %v5110
    %v6838 = vunpack.c.l.b16 %v5111
    %v6839 = vunpack.c.h.b16 %v5111
    %v6840 = vunpack.c.l.b16 %v5112
    %v6841 = vunpack.c.l.b16 %v5113
    %v6842 = vunpack.c.h.b16 %v5113
    %v6843 = vunpack.c.l.b16 %v5114
    %v6844 = vunpack.c.h.b16 %v5114
    %v6845 = vunpack.c.l.b16 %v5115
    %v6846 = vunpack.c.h.b16 %v5115
    %v6847 = vunpack.c.l.b16 %v5116
    %v6848 = vunpack.c.l.b16 %v5117
    %v6849 = vunpack.c.h.b16 %v5117
    %v6850 = vunpack.c.l.b16 %v5118
    %v6851 = vunpack.c.h.b16 %v5118
    %v6852 = vunpack.c.l.b16 %v5119
    %v6853 = vunpack.c.h.b16 %v5119
    %v6854 = vunpack.c.l.b16 %v5120
    %v6855 = vunpack.c.l.b16 %v5121
    %v6856 = vunpack.c.h.b16 %v5121
    %v6857 = vunpack.c.l.b16 %v5122
    %v6858 = vunpack.c.h.b16 %v5122
    %v6859 = vunpack.c.l.b16 %v5123
    %v6860 = vunpack.c.h.b16 %v5123
    %v6861 = vunpack.c.l.b16 %v5124
    %v6862 = vunpack.c.l.b16 %v5125
    %v6863 = vunpack.c.h.b16 %v5125
    %v6864 = vunpack.c.l.b16 %v5126
    %v6865 = vunpack.c.h.b16 %v5126
    %v6866 = vunpack.c.l.b16 %v5127
    %v6867 = vunpack.c.h.b16 %v5127
    %v6868 = vunpack.c.l.b16 %v5128
    %v6869 = vunpack.c.l.b16 %v5129
    %v6870 = vunpack.c.h.b16 %v5129
    %v6871 = vunpack.c.l.b16 %v5130
    %v6872 = vunpack.c.h.b16 %v5130
    %v6873 = vunpack.c.l.b16 %v5131
    %v6874 = vunpack.c.h.b16 %v5131
    %v6875 = vunpack.c.l.b16 %v5132
    %v6876 = vunpack.c.l.b16 %v5133
    %v6877 = vunpack.c.h.b16 %v5133
    %v6878 = vunpack.c.l.b16 %v5134
    %v6879 = vunpack.c.h.b16 %v5134
    %v6880 = vunpack.c.l.b16 %v5135
    %v6881 = vunpack.c.h.b16 %v5135
    %v6882 = vunpack.c.l.b16 %v5136
    %v6883 = vunpack.c.l.b16 %v5137
    %v6884 = vunpack.c.h.b16 %v5137
    %v6885 = vunpack.c.l.b16 %v5138
    %v6886 = vunpack.c.h.b16 %v5138
    %v6887 = vunpack.c.l.b16 %v5139
    %v6888 = vunpack.c.h.b16 %v5139
    %v6889 = vunpack.c.l.b16 %v5140
    %v6890 = vunpack.c.l.b16 %v5141
    %v6891 = vunpack.c.h.b16 %v5141
    %v6892 = vunpack.c.l.b16 %v5142
    %v6893 = vunpack.c.h.b16 %v5142
    %v6894 = vunpack.c.l.b16 %v5143
    %v6895 = vunpack.c.h.b16 %v5143
    %v6896 = vunpack.c.l.b16 %v5144
    %v6897 = vunpack.c.l.b16 %v5145
    %v6898 = vunpack.c.h.b16 %v5145
    %v6899 = vunpack.c.l.b16 %v5146
    %v6900 = vunpack.c.h.b16 %v5146
    %v6901 = vunpack.c.l.b16 %v5147
    %v6902 = vunpack.c.h.b16 %v5147
    %v6903 = vunpack.c.l.b16 %v5148
    %v6904 = vunpack.c.l.b16 %v5149
    %v6905 = vunpack.c.h.b16 %v5149
    %v6906 = vunpack.c.l.b16 %v5150
    %v6907 = vunpack.c.h.b16 %v5150
    %v6908 = vunpack.c.l.b16 %v5151
    %v6909 = vunpack.c.h.b16 %v5151
    %v6910 = vunpack.c.l.b16 %v5152
    %v6911 = vunpack.c.l.b16 %v5153
    %v6912 = vunpack.c.h.b16 %v5153
    %v6913 = vunpack.c.l.b16 %v5154
    %v6914 = vunpack.c.h.b16 %v5154
    %v6915 = vunpack.c.l.b16 %v5155
    %v6916 = vunpack.c.h.b16 %v5155
    %v6917 = vunpack.c.l.b16 %v5156
    %v6918 = vunpack.c.l.b16 %v5157
    %v6919 = vunpack.c.h.b16 %v5157
    %v6920 = vunpack.c.l.b16 %v5158
    %v6921 = vunpack.c.h.b16 %v5158
    %v6922 = vunpack.c.l.b16 %v5159
    %v6923 = vunpack.c.h.b16 %v5159
    %v6924 = vunpack.c.l.b16 %v5160
    %v6925 = vunpack.c.l.b16 %v5161
    %v6926 = vunpack.c.h.b16 %v5161
    %v6927 = vunpack.c.l.b16 %v5162
    %v6928 = vunpack.c.h.b16 %v5162
    %v6929 = vunpack.c.l.b16 %v5163
    %v6930 = vunpack.c.h.b16 %v5163
    %v6931 = vunpack.c.l.b16 %v5164
    %v6932 = vunpack.c.l.b16 %v5165
    %v6933 = vunpack.c.h.b16 %v5165
    %v6934 = vunpack.c.l.b16 %v5166
    %v6935 = vunpack.c.h.b16 %v5166
    %v6936 = vunpack.c.l.b16 %v5167
    %v6937 = vunpack.c.h.b16 %v5167
    %v6938 = vunpack.c.l.b16 %v5168
    %v6939 = vunpack.c.l.b16 %v5169
    %v6940 = vunpack.c.h.b16 %v5169
    %v6941 = vunpack.c.l.b16 %v5170
    %v6942 = vunpack.c.h.b16 %v5170
    %v6943 = vunpack.c.l.b16 %v5171
    %v6944 = vunpack.c.h.b16 %v5171
    %v6945 = vunpack.c.l.b16 %v5172
    %v6946 = vunpack.c.l.b16 %v5173
    %v6947 = vunpack.c.h.b16 %v5173
    %v6948 = vunpack.c.l.b16 %v5174
    %v6949 = vunpack.c.h.b16 %v5174
    %v6950 = vunpack.c.l.b16 %v5175
    %v6951 = vunpack.c.h.b16 %v5175
    %v6952 = vunpack.c.l.b16 %v5176
    %v6953 = vpack.c.b16 %v5840, %v5833
    %v6954 = vpack.c.b16 %v5841, %v5834
    %v6955 = vpack.c.b16 %v5842, %v5835
    %v6956 = vpack.c.b16 %v5843, %v5836
    %v6957 = vpack.c.b16 %v5844, %v5837
    %v6958 = vpack.c.b16 %v5845, %v5838
    %v6959 = vpack.c.b16 %v5846, %v5839
    %v6960 = vpack.c.b16 %v5854, %v5847
    %v6961 = vpack.c.b16 %v5855, %v5848
    %v6962 = vpack.c.b16 %v5856, %v5849
    %v6963 = vpack.c.b16 %v5857, %v5850
    %v6964 = vpack.c.b16 %v5858, %v5851
    %v6965 = vpack.c.b16 %v5859, %v5852
    %v6966 = vpack.c.b16 %v5860, %v5853
    %v6967 = vpack.c.b16 %v5868, %v5861
    %v6968 = vpack.c.b16 %v5869, %v5862
    %v6969 = vpack.c.b16 %v5870, %v5863
    %v6970 = vpack.c.b16 %v5871, %v5864
    %v6971 = vpack.c.b16 %v5872, %v5865
    %v6972 = vpack.c.b16 %v5873, %v5866
    %v6973 = vpack.c.b16 %v5874, %v5867
    %v6974 = vpack.c.b16 %v5882, %v5875
    %v6975 = vpack.c.b16 %v5883, %v5876
    %v6976 = vpack.c.b16 %v5884, %v5877
    %v6977 = vpack.c.b16 %v5885, %v5878
    %v6978 = vpack.c.b16 %v5886, %v5879
    %v6979 = vpack.c.b16 %v5887, %v5880
    %v6980 = vpack.c.b16 %v5888, %v5881
    %v6981 = vpack.c.b16 %v5896, %v5889
    %v6982 = vpack.c.b16 %v5897, %v5890
    %v6983 = vpack.c.b16 %v5898, %v5891
    %v6984 = vpack.c.b16 %v5899, %v5892
    %v6985 = vpack.c.b16 %v5900, %v5893
    %v6986 = vpack.c.b16 %v5901, %v5894
    %v6987 = vpack.c.b16 %v5902, %v5895
    %v6988 = vpack.c.b16 %v5910, %v5903
    %v6989 = vpack.c.b16 %v5911, %v5904
    %v6990 = vpack.c.b16 %v5912, %v5905
    %v6991 = vpack.c.b16 %v5913, %v5906
    %v6992 = vpack.c.b16 %v5914, %v5907
    %v6993 = vpack.c.b16 %v5915, %v5908
    %v6994 = vpack.c.b16 %v5916, %v5909
    %v6995 = vpack.c.b16 %v5924, %v5917
    %v6996 = vpack.c.b16 %v5925, %v5918
    %v6997 = vpack.c.b16 %v5926, %v5919
    %v6998 = vpack.c.b16 %v5927, %v5920
    %v6999 = vpack.c.b16 %v5928, %v5921
    %v7000 = vpack.c.b16 %v5929, %v5922
    %v7001 = vpack.c.b16 %v5930, %v5923
    %v7002 = vpack.c.b16 %v5938, %v5931
    %v7003 = vpack.c.b16 %v5939, %v5932
    %v7004 = vpack.c.b16 %v5940, %v5933
    %v7005 = vpack.c.b16 %v5941, %v5934
    %v7006 = vpack.c.b16 %v5942, %v5935
    %v7007 = vpack.c.b16 %v5943, %v5936
    %v7008 = vpack.c.b16 %v5944, %v5937
    %v7009 = vpack.c.b16 %v5952, %v5945
    %v7010 = vpack.c.b16 %v5953, %v5946
    %v7011 = vpack.c.b16 %v5954, %v5947
    %v7012 = vpack.c.b16 %v5955, %v5948
    %v7013 = vpack.c.b16 %v5956, %v5949
    %v7014 = vpack.c.b16 %v5957, %v5950
    %v7015 = vpack.c.b16 %v5958, %v5951
    %v7016 = vpack.c.b16 %v5966, %v5959
    %v7017 = vpack.c.b16 %v5967, %v5960
    %v7018 = vpack.c.b16 %v5968, %v5961
    %v7019 = vpack.c.b16 %v5969, %v5962
    %v7020 = vpack.c.b16 %v5970, %v5963
    %v7021 = vpack.c.b16 %v5971, %v5964
    %v7022 = vpack.c.b16 %v5972, %v5965
    %v7023 = vpack.c.b16 %v5980, %v5973
    %v7024 = vpack.c.b16 %v5981, %v5974
    %v7025 = vpack.c.b16 %v5982, %v5975
    %v7026 = vpack.c.b16 %v5983, %v5976
    %v7027 = vpack.c.b16 %v5984, %v5977
    %v7028 = vpack.c.b16 %v5985, %v5978
    %v7029 = vpack.c.b16 %v5986, %v5979
    %v7030 = vpack.c.b16 %v5994, %v5987
    %v7031 = vpack.c.b16 %v5995, %v5988
    %v7032 = vpack.c.b16 %v5996, %v5989
    %v7033 = vpack.c.b16 %v5997, %v5990
    %v7034 = vpack.c.b16 %v5998, %v5991
    %v7035 = vpack.c.b16 %v5999, %v5992
    %v7036 = vpack.c.b16 %v6000, %v5993
    %v7037 = vpack.c.b16 %v6008, %v6001
    %v7038 = vpack.c.b16 %v6009, %v6002
    %v7039 = vpack.c.b16 %v6010, %v6003
    %v7040 = vpack.c.b16 %v6011, %v6004
    %v7041 = vpack.c.b16 %v6012, %v6005
    %v7042 = vpack.c.b16 %v6013, %v6006
    %v7043 = vpack.c.b16 %v6014, %v6007
    %v7044 = vpack.c.b16 %v6022, %v6015
    %v7045 = vpack.c.b16 %v6023, %v6016
    %v7046 = vpack.c.b16 %v6024, %v6017
    %v7047 = vpack.c.b16 %v6025, %v6018
    %v7048 = vpack.c.b16 %v6026, %v6019
    %v7049 = vpack.c.b16 %v6027, %v6020
    %v7050 = vpack.c.b16 %v6028, %v6021
    %v7051 = vpack.c.b16 %v6036, %v6029
    %v7052 = vpack.c.b16 %v6037, %v6030
    %v7053 = vpack.c.b16 %v6038, %v6031
    %v7054 = vpack.c.b16 %v6039, %v6032
    %v7055 = vpack.c.b16 %v6040, %v6033
    %v7056 = vpack.c.b16 %v6041, %v6034
    %v7057 = vpack.c.b16 %v6042, %v6035
    %v7058 = vpack.c.b16 %v6050, %v6043
    %v7059 = vpack.c.b16 %v6051, %v6044
    %v7060 = vpack.c.b16 %v6052, %v6045
    %v7061 = vpack.c.b16 %v6053, %v6046
    %v7062 = vpack.c.b16 %v6054, %v6047
    %v7063 = vpack.c.b16 %v6055, %v6048
    %v7064 = vpack.c.b16 %v6056, %v6049
    %v7065 = vpack.c.b16 %v6064, %v6057
    %v7066 = vpack.c.b16 %v6065, %v6058
    %v7067 = vpack.c.b16 %v6066, %v6059
    %v7068 = vpack.c.b16 %v6067, %v6060
    %v7069 = vpack.c.b16 %v6068, %v6061
    %v7070 = vpack.c.b16 %v6069, %v6062
    %v7071 = vpack.c.b16 %v6070, %v6063
    %v7072 = vpack.c.b16 %v6078, %v6071
    %v7073 = vpack.c.b16 %v6079, %v6072
    %v7074 = vpack.c.b16 %v6080, %v6073
    %v7075 = vpack.c.b16 %v6081, %v6074
    %v7076 = vpack.c.b16 %v6082, %v6075
    %v7077 = vpack.c.b16 %v6083, %v6076
    %v7078 = vpack.c.b16 %v6084, %v6077
    %v7079 = vpack.c.b16 %v6092, %v6085
    %v7080 = vpack.c.b16 %v6093, %v6086
    %v7081 = vpack.c.b16 %v6094, %v6087
    %v7082 = vpack.c.b16 %v6095, %v6088
    %v7083 = vpack.c.b16 %v6096, %v6089
    %v7084 = vpack.c.b16 %v6097, %v6090
    %v7085 = vpack.c.b16 %v6098, %v6091
    %v7086 = vpack.c.b16 %v6106, %v6099
    %v7087 = vpack.c.b16 %v6107, %v6100
    %v7088 = vpack.c.b16 %v6108, %v6101
    %v7089 = vpack.c.b16 %v6109, %v6102
    %v7090 = vpack.c.b16 %v6110, %v6103
    %v7091 = vpack.c.b16 %v6111, %v6104
    %v7092 = vpack.c.b16 %v6112, %v6105
    %v7093 = vpack.c.b16 %v6120, %v6113
    %v7094 = vpack.c.b16 %v6121, %v6114
    %v7095 = vpack.c.b16 %v6122, %v6115
    %v7096 = vpack.c.b16 %v6123, %v6116
    %v7097 = vpack.c.b16 %v6124, %v6117
    %v7098 = vpack.c.b16 %v6125, %v6118
    %v7099 = vpack.c.b16 %v6126, %v6119
    %v7100 = vpack.c.b16 %v6134, %v6127
    %v7101 = vpack.c.b16 %v6135, %v6128
    %v7102 = vpack.c.b16 %v6136, %v6129
    %v7103 = vpack.c.b16 %v6137, %v6130
    %v7104 = vpack.c.b16 %v6138, %v6131
    %v7105 = vpack.c.b16 %v6139, %v6132
    %v7106 = vpack.c.b16 %v6140, %v6133
    %v7107 = vpack.c.b16 %v6148, %v6141
    %v7108 = vpack.c.b16 %v6149, %v6142
    %v7109 = vpack.c.b16 %v6150, %v6143
    %v7110 = vpack.c.b16 %v6151, %v6144
    %v7111 = vpack.c.b16 %v6152, %v6145
    %v7112 = vpack.c.b16 %v6153, %v6146
    %v7113 = vpack.c.b16 %v6154, %v6147
    %v7114 = vpack.c.b16 %v6162, %v6155
    %v7115 = vpack.c.b16 %v6163, %v6156
    %v7116 = vpack.c.b16 %v6164, %v6157
    %v7117 = vpack.c.b16 %v6165, %v6158
    %v7118 = vpack.c.b16 %v6166, %v6159
    %v7119 = vpack.c.b16 %v6167, %v6160
    %v7120 = vpack.c.b16 %v6168, %v6161
    %v7121 = vpack.c.b16 %v6176, %v6169
    %v7122 = vpack.c.b16 %v6177, %v6170
    %v7123 = vpack.c.b16 %v6178, %v6171
    %v7124 = vpack.c.b16 %v6179, %v6172
    %v7125 = vpack.c.b16 %v6180, %v6173
    %v7126 = vpack.c.b16 %v6181, %v6174
    %v7127 = vpack.c.b16 %v6182, %v6175
    %v7128 = vpack.c.b16 %v6190, %v6183
    %v7129 = vpack.c.b16 %v6191, %v6184
    %v7130 = vpack.c.b16 %v6192, %v6185
    %v7131 = vpack.c.b16 %v6193, %v6186
    %v7132 = vpack.c.b16 %v6194, %v6187
    %v7133 = vpack.c.b16 %v6195, %v6188
    %v7134 = vpack.c.b16 %v6196, %v6189
    %v7135 = vpack.c.b16 %v6204, %v6197
    %v7136 = vpack.c.b16 %v6205, %v6198
    %v7137 = vpack.c.b16 %v6206, %v6199
    %v7138 = vpack.c.b16 %v6207, %v6200
    %v7139 = vpack.c.b16 %v6208, %v6201
    %v7140 = vpack.c.b16 %v6209, %v6202
    %v7141 = vpack.c.b16 %v6210, %v6203
    %v7142 = vpack.c.b16 %v6218, %v6211
    %v7143 = vpack.c.b16 %v6219, %v6212
    %v7144 = vpack.c.b16 %v6220, %v6213
    %v7145 = vpack.c.b16 %v6221, %v6214
    %v7146 = vpack.c.b16 %v6222, %v6215
    %v7147 = vpack.c.b16 %v6223, %v6216
    %v7148 = vpack.c.b16 %v6224, %v6217
    %v7149 = vpack.c.b16 %v6232, %v6225
    %v7150 = vpack.c.b16 %v6233, %v6226
    %v7151 = vpack.c.b16 %v6234, %v6227
    %v7152 = vpack.c.b16 %v6235, %v6228
    %v7153 = vpack.c.b16 %v6236, %v6229
    %v7154 = vpack.c.b16 %v6237, %v6230
    %v7155 = vpack.c.b16 %v6238, %v6231
    %v7156 = vpack.c.b16 %v6246, %v6239
    %v7157 = vpack.c.b16 %v6247, %v6240
    %v7158 = vpack.c.b16 %v6248, %v6241
    %v7159 = vpack.c.b16 %v6249, %v6242
    %v7160 = vpack.c.b16 %v6250, %v6243
    %v7161 = vpack.c.b16 %v6251, %v6244
    %v7162 = vpack.c.b16 %v6252, %v6245
    %v7163 = vpack.c.b16 %v6260, %v6253
    %v7164 = vpack.c.b16 %v6261, %v6254
    %v7165 = vpack.c.b16 %v6262, %v6255
    %v7166 = vpack.c.b16 %v6263, %v6256
    %v7167 = vpack.c.b16 %v6264, %v6257
    %v7168 = vpack.c.b16 %v6265, %v6258
    %v7169 = vpack.c.b16 %v6266, %v6259
    %v7170 = vpack.c.b16 %v6274, %v6267
    %v7171 = vpack.c.b16 %v6275, %v6268
    %v7172 = vpack.c.b16 %v6276, %v6269
    %v7173 = vpack.c.b16 %v6277, %v6270
    %v7174 = vpack.c.b16 %v6278, %v6271
    %v7175 = vpack.c.b16 %v6279, %v6272
    %v7176 = vpack.c.b16 %v6280, %v6273
    %v7177 = vpack.c.b16 %v6288, %v6281
    %v7178 = vpack.c.b16 %v6289, %v6282
    %v7179 = vpack.c.b16 %v6290, %v6283
    %v7180 = vpack.c.b16 %v6291, %v6284
    %v7181 = vpack.c.b16 %v6292, %v6285
    %v7182 = vpack.c.b16 %v6293, %v6286
    %v7183 = vpack.c.b16 %v6294, %v6287
    %v7184 = vpack.c.b16 %v6302, %v6295
    %v7185 = vpack.c.b16 %v6303, %v6296
    %v7186 = vpack.c.b16 %v6304, %v6297
    %v7187 = vpack.c.b16 %v6305, %v6298
    %v7188 = vpack.c.b16 %v6306, %v6299
    %v7189 = vpack.c.b16 %v6307, %v6300
    %v7190 = vpack.c.b16 %v6308, %v6301
    %v7191 = vpack.c.b16 %v6316, %v6309
    %v7192 = vpack.c.b16 %v6317, %v6310
    %v7193 = vpack.c.b16 %v6318, %v6311
    %v7194 = vpack.c.b16 %v6319, %v6312
    %v7195 = vpack.c.b16 %v6320, %v6313
    %v7196 = vpack.c.b16 %v6321, %v6314
    %v7197 = vpack.c.b16 %v6322, %v6315
    %v7198 = vpack.c.b16 %v6330, %v6323
    %v7199 = vpack.c.b16 %v6331, %v6324
    %v7200 = vpack.c.b16 %v6332, %v6325
    %v7201 = vpack.c.b16 %v6333, %v6326
    %v7202 = vpack.c.b16 %v6334, %v6327
    %v7203 = vpack.c.b16 %v6335, %v6328
    %v7204 = vpack.c.b16 %v6336, %v6329
    %v7205 = vpack.c.b16 %v6344, %v6337
    %v7206 = vpack.c.b16 %v6345, %v6338
    %v7207 = vpack.c.b16 %v6346, %v6339
    %v7208 = vpack.c.b16 %v6347, %v6340
    %v7209 = vpack.c.b16 %v6348, %v6341
    %v7210 = vpack.c.b16 %v6349, %v6342
    %v7211 = vpack.c.b16 %v6350, %v6343
    %v7212 = vpack.c.b16 %v6358, %v6351
    %v7213 = vpack.c.b16 %v6359, %v6352
    %v7214 = vpack.c.b16 %v6360, %v6353
    %v7215 = vpack.c.b16 %v6361, %v6354
    %v7216 = vpack.c.b16 %v6362, %v6355
    %v7217 = vpack.c.b16 %v6363, %v6356
    %v7218 = vpack.c.b16 %v6364, %v6357
    %v7219 = vpack.c.b16 %v6372, %v6365
    %v7220 = vpack.c.b16 %v6373, %v6366
    %v7221 = vpack.c.b16 %v6374, %v6367
    %v7222 = vpack.c.b16 %v6375, %v6368
    %v7223 = vpack.c.b16 %v6376, %v6369
    %v7224 = vpack.c.b16 %v6377, %v6370
    %v7225 = vpack.c.b16 %v6378, %v6371
    %v7226 = vpack.c.b16 %v6386, %v6379
    %v7227 = vpack.c.b16 %v6387, %v6380
    %v7228 = vpack.c.b16 %v6388, %v6381
    %v7229 = vpack.c.b16 %v6389, %v6382
    %v7230 = vpack.c.b16 %v6390, %v6383
    %v7231 = vpack.c.b16 %v6391, %v6384
    %v7232 = vpack.c.b16 %v6392, %v6385
    %v7233 = vpack.c.b16 %v6400, %v6393
    %v7234 = vpack.c.b16 %v6401, %v6394
    %v7235 = vpack.c.b16 %v6402, %v6395
    %v7236 = vpack.c.b16 %v6403, %v6396
    %v7237 = vpack.c.b16 %v6404, %v6397
    %v7238 = vpack.c.b16 %v6405, %v6398
    %v7239 = vpack.c.b16 %v6406, %v6399
    %v7240 = vpack.c.b16 %v6414, %v6407
    %v7241 = vpack.c.b16 %v6415, %v6408
    %v7242 = vpack.c.b16 %v6416, %v6409
    %v7243 = vpack.c.b16 %v6417, %v6410
    %v7244 = vpack.c.b16 %v6418, %v6411
    %v7245 = vpack.c.b16 %v6419, %v6412
    %v7246 = vpack.c.b16 %v6420, %v6413
    %v7247 = vpack.c.b16 %v6428, %v6421
    %v7248 = vpack.c.b16 %v6429, %v6422
    %v7249 = vpack.c.b16 %v6430, %v6423
    %v7250 = vpack.c.b16 %v6431, %v6424
    %v7251 = vpack.c.b16 %v6432, %v6425
    %v7252 = vpack.c.b16 %v6433, %v6426
    %v7253 = vpack.c.b16 %v6434, %v6427
    %v7254 = vpack.c.b16 %v6442, %v6435
    %v7255 = vpack.c.b16 %v6443, %v6436
    %v7256 = vpack.c.b16 %v6444, %v6437
    %v7257 = vpack.c.b16 %v6445, %v6438
    %v7258 = vpack.c.b16 %v6446, %v6439
    %v7259 = vpack.c.b16 %v6447, %v6440
    %v7260 = vpack.c.b16 %v6448, %v6441
    %v7261 = vpack.c.b16 %v6456, %v6449
    %v7262 = vpack.c.b16 %v6457, %v6450
    %v7263 = vpack.c.b16 %v6458, %v6451
    %v7264 = vpack.c.b16 %v6459, %v6452
    %v7265 = vpack.c.b16 %v6460, %v6453
    %v7266 = vpack.c.b16 %v6461, %v6454
    %v7267 = vpack.c.b16 %v6462, %v6455
    %v7268 = vpack.c.b16 %v6470, %v6463
    %v7269 = vpack.c.b16 %v6471, %v6464
    %v7270 = vpack.c.b16 %v6472, %v6465
    %v7271 = vpack.c.b16 %v6473, %v6466
    %v7272 = vpack.c.b16 %v6474, %v6467
    %v7273 = vpack.c.b16 %v6475, %v6468
    %v7274 = vpack.c.b16 %v6476, %v6469
    %v7275 = vpack.c.b16 %v6484, %v6477
    %v7276 = vpack.c.b16 %v6485, %v6478
    %v7277 = vpack.c.b16 %v6486, %v6479
    %v7278 = vpack.c.b16 %v6487, %v6480
    %v7279 = vpack.c.b16 %v6488, %v6481
    %v7280 = vpack.c.b16 %v6489, %v6482
    %v7281 = vpack.c.b16 %v6490, %v6483
    %v7282 = vpack.c.b16 %v6498, %v6491
    %v7283 = vpack.c.b16 %v6499, %v6492
    %v7284 = vpack.c.b16 %v6500, %v6493
    %v7285 = vpack.c.b16 %v6501, %v6494
    %v7286 = vpack.c.b16 %v6502, %v6495
    %v7287 = vpack.c.b16 %v6503, %v6496
    %v7288 = vpack.c.b16 %v6504, %v6497
    %v7289 = vpack.c.b16 %v6512, %v6505
    %v7290 = vpack.c.b16 %v6513, %v6506
    %v7291 = vpack.c.b16 %v6514, %v6507
    %v7292 = vpack.c.b16 %v6515, %v6508
    %v7293 = vpack.c.b16 %v6516, %v6509
    %v7294 = vpack.c.b16 %v6517, %v6510
    %v7295 = vpack.c.b16 %v6518, %v6511
    %v7296 = vpack.c.b16 %v6526, %v6519
    %v7297 = vpack.c.b16 %v6527, %v6520
    %v7298 = vpack.c.b16 %v6528, %v6521
    %v7299 = vpack.c.b16 %v6529, %v6522
    %v7300 = vpack.c.b16 %v6530, %v6523
    %v7301 = vpack.c.b16 %v6531, %v6524
    %v7302 = vpack.c.b16 %v6532, %v6525
    %v7303 = vpack.c.b16 %v6540, %v6533
    %v7304 = vpack.c.b16 %v6541, %v6534
    %v7305 = vpack.c.b16 %v6542, %v6535
    %v7306 = vpack.c.b16 %v6543, %v6536
    %v7307 = vpack.c.b16 %v6544, %v6537
    %v7308 = vpack.c.b16 %v6545, %v6538
    %v7309 = vpack.c.b16 %v6546, %v6539
    %v7310 = vpack.c.b16 %v6554, %v6547
    %v7311 = vpack.c.b16 %v6555, %v6548
    %v7312 = vpack.c.b16 %v6556, %v6549
    %v7313 = vpack.c.b16 %v6557, %v6550
    %v7314 = vpack.c.b16 %v6558, %v6551
    %v7315 = vpack.c.b16 %v6559, %v6552
    %v7316 = vpack.c.b16 %v6560, %v6553
    %v7317 = vpack.c.b16 %v6568, %v6561
    %v7318 = vpack.c.b16 %v6569, %v6562
    %v7319 = vpack.c.b16 %v6570, %v6563
    %v7320 = vpack.c.b16 %v6571, %v6564
    %v7321 = vpack.c.b16 %v6572, %v6565
    %v7322 = vpack.c.b16 %v6573, %v6566
    %v7323 = vpack.c.b16 %v6574, %v6567
    %v7324 = vpack.c.b16 %v6582, %v6575
    %v7325 = vpack.c.b16 %v6583, %v6576
    %v7326 = vpack.c.b16 %v6584, %v6577
    %v7327 = vpack.c.b16 %v6585, %v6578
    %v7328 = vpack.c.b16 %v6586, %v6579
    %v7329 = vpack.c.b16 %v6587, %v6580
    %v7330 = vpack.c.b16 %v6588, %v6581
    %v7331 = vpack.c.b16 %v6596, %v6589
    %v7332 = vpack.c.b16 %v6597, %v6590
    %v7333 = vpack.c.b16 %v6598, %v6591
    %v7334 = vpack.c.b16 %v6599, %v6592
    %v7335 = vpack.c.b16 %v6600, %v6593
    %v7336 = vpack.c.b16 %v6601, %v6594
    %v7337 = vpack.c.b16 %v6602, %v6595
    %v7338 = vpack.c.b16 %v6610, %v6603
    %v7339 = vpack.c.b16 %v6611, %v6604
    %v7340 = vpack.c.b16 %v6612, %v6605
    %v7341 = vpack.c.b16 %v6613, %v6606
    %v7342 = vpack.c.b16 %v6614, %v6607
    %v7343 = vpack.c.b16 %v6615, %v6608
    %v7344 = vpack.c.b16 %v6616, %v6609
    %v7345 = vpack.c.b16 %v6624, %v6617
    %v7346 = vpack.c.b16 %v6625, %v6618
    %v7347 = vpack.c.b16 %v6626, %v6619
    %v7348 = vpack.c.b16 %v6627, %v6620
    %v7349 = vpack.c.b16 %v6628, %v6621
    %v7350 = vpack.c.b16 %v6629, %v6622
    %v7351 = vpack.c.b16 %v6630, %v6623
    %v7352 = vpack.c.b16 %v6638, %v6631
    %v7353 = vpack.c.b16 %v6639, %v6632
    %v7354 = vpack.c.b16 %v6640, %v6633
    %v7355 = vpack.c.b16 %v6641, %v6634
    %v7356 = vpack.c.b16 %v6642, %v6635
    %v7357 = vpack.c.b16 %v6643, %v6636
    %v7358 = vpack.c.b16 %v6644, %v6637
    %v7359 = vpack.c.b16 %v6652, %v6645
    %v7360 = vpack.c.b16 %v6653, %v6646
    %v7361 = vpack.c.b16 %v6654, %v6647
    %v7362 = vpack.c.b16 %v6655, %v6648
    %v7363 = vpack.c.b16 %v6656, %v6649
    %v7364 = vpack.c.b16 %v6657, %v6650
    %v7365 = vpack.c.b16 %v6658, %v6651
    %v7366 = vpack.c.b16 %v6666, %v6659
    %v7367 = vpack.c.b16 %v6667, %v6660
    %v7368 = vpack.c.b16 %v6668, %v6661
    %v7369 = vpack.c.b16 %v6669, %v6662
    %v7370 = vpack.c.b16 %v6670, %v6663
    %v7371 = vpack.c.b16 %v6671, %v6664
    %v7372 = vpack.c.b16 %v6672, %v6665
    %v7373 = vpack.c.b16 %v6680, %v6673
    %v7374 = vpack.c.b16 %v6681, %v6674
    %v7375 = vpack.c.b16 %v6682, %v6675
    %v7376 = vpack.c.b16 %v6683, %v6676
    %v7377 = vpack.c.b16 %v6684, %v6677
    %v7378 = vpack.c.b16 %v6685, %v6678
    %v7379 = vpack.c.b16 %v6686, %v6679
    %v7380 = vpack.c.b16 %v6694, %v6687
    %v7381 = vpack.c.b16 %v6695, %v6688
    %v7382 = vpack.c.b16 %v6696, %v6689
    %v7383 = vpack.c.b16 %v6697, %v6690
    %v7384 = vpack.c.b16 %v6698, %v6691
    %v7385 = vpack.c.b16 %v6699, %v6692
    %v7386 = vpack.c.b16 %v6700, %v6693
    %v7387 = vpack.c.b16 %v6708, %v6701
    %v7388 = vpack.c.b16 %v6709, %v6702
    %v7389 = vpack.c.b16 %v6710, %v6703
    %v7390 = vpack.c.b16 %v6711, %v6704
    %v7391 = vpack.c.b16 %v6712, %v6705
    %v7392 = vpack.c.b16 %v6713, %v6706
    %v7393 = vpack.c.b16 %v6714, %v6707
    %v7394 = vpack.c.b16 %v6722, %v6715
    %v7395 = vpack.c.b16 %v6723, %v6716
    %v7396 = vpack.c.b16 %v6724, %v6717
    %v7397 = vpack.c.b16 %v6725, %v6718
    %v7398 = vpack.c.b16 %v6726, %v6719
    %v7399 = vpack.c.b16 %v6727, %v6720
    %v7400 = vpack.c.b16 %v6728, %v6721
    %v7401 = vpack.c.b16 %v6736, %v6729
    %v7402 = vpack.c.b16 %v6737, %v6730
    %v7403 = vpack.c.b16 %v6738, %v6731
    %v7404 = vpack.c.b16 %v6739, %v6732
    %v7405 = vpack.c.b16 %v6740, %v6733
    %v7406 = vpack.c.b16 %v6741, %v6734
    %v7407 = vpack.c.b16 %v6742, %v6735
    %v7408 = vpack.c.b16 %v6750, %v6743
    %v7409 = vpack.c.b16 %v6751, %v6744
    %v7410 = vpack.c.b16 %v6752, %v6745
    %v7411 = vpack.c.b16 %v6753, %v6746
    %v7412 = vpack.c.b16 %v6754, %v6747
    %v7413 = vpack.c.b16 %v6755, %v6748
    %v7414 = vpack.c.b16 %v6756, %v6749
    %v7415 = vpack.c.b16 %v6764, %v6757
    %v7416 = vpack.c.b16 %v6765, %v6758
    %v7417 = vpack.c.b16 %v6766, %v6759
    %v7418 = vpack.c.b16 %v6767, %v6760
    %v7419 = vpack.c.b16 %v6768, %v6761
    %v7420 = vpack.c.b16 %v6769, %v6762
    %v7421 = vpack.c.b16 %v6770, %v6763
    %v7422 = vpack.c.b16 %v6778, %v6771
    %v7423 = vpack.c.b16 %v6779, %v6772
    %v7424 = vpack.c.b16 %v6780, %v6773
    %v7425 = vpack.c.b16 %v6781, %v6774
    %v7426 = vpack.c.b16 %v6782, %v6775
    %v7427 = vpack.c.b16 %v6783, %v6776
    %v7428 = vpack.c.b16 %v6784, %v6777
    %v7429 = vpack.c.b16 %v6792, %v6785
    %v7430 = vpack.c.b16 %v6793, %v6786
    %v7431 = vpack.c.b16 %v6794, %v6787
    %v7432 = vpack.c.b16 %v6795, %v6788
    %v7433 = vpack.c.b16 %v6796, %v6789
    %v7434 = vpack.c.b16 %v6797, %v6790
    %v7435 = vpack.c.b16 %v6798, %v6791
    %v7436 = vpack.c.b16 %v6806, %v6799
    %v7437 = vpack.c.b16 %v6807, %v6800
    %v7438 = vpack.c.b16 %v6808, %v6801
    %v7439 = vpack.c.b16 %v6809, %v6802
    %v7440 = vpack.c.b16 %v6810, %v6803
    %v7441 = vpack.c.b16 %v6811, %v6804
    %v7442 = vpack.c.b16 %v6812, %v6805
    %v7443 = vpack.c.b16 %v6820, %v6813
    %v7444 = vpack.c.b16 %v6821, %v6814
    %v7445 = vpack.c.b16 %v6822, %v6815
    %v7446 = vpack.c.b16 %v6823, %v6816
    %v7447 = vpack.c.b16 %v6824, %v6817
    %v7448 = vpack.c.b16 %v6825, %v6818
    %v7449 = vpack.c.b16 %v6826, %v6819
    %v7450 = vpack.c.b16 %v6834, %v6827
    %v7451 = vpack.c.b16 %v6835, %v6828
    %v7452 = vpack.c.b16 %v6836, %v6829
    %v7453 = vpack.c.b16 %v6837, %v6830
    %v7454 = vpack.c.b16 %v6838, %v6831
    %v7455 = vpack.c.b16 %v6839, %v6832
    %v7456 = vpack.c.b16 %v6840, %v6833
    %v7457 = vpack.c.b16 %v6848, %v6841
    %v7458 = vpack.c.b16 %v6849, %v6842
    %v7459 = vpack.c.b16 %v6850, %v6843
    %v7460 = vpack.c.b16 %v6851, %v6844
    %v7461 = vpack.c.b16 %v6852, %v6845
    %v7462 = vpack.c.b16 %v6853, %v6846
    %v7463 = vpack.c.b16 %v6854, %v6847
    %v7464 = vpack.c.b16 %v6862, %v6855
    %v7465 = vpack.c.b16 %v6863, %v6856
    %v7466 = vpack.c.b16 %v6864, %v6857
    %v7467 = vpack.c.b16 %v6865, %v6858
    %v7468 = vpack.c.b16 %v6866, %v6859
    %v7469 = vpack.c.b16 %v6867, %v6860
    %v7470 = vpack.c.b16 %v6868, %v6861
    %v7471 = vpack.c.b16 %v6876, %v6869
    %v7472 = vpack.c.b16 %v6877, %v6870
    %v7473 = vpack.c.b16 %v6878, %v6871
    %v7474 = vpack.c.b16 %v6879, %v6872
    %v7475 = vpack.c.b16 %v6880, %v6873
    %v7476 = vpack.c.b16 %v6881, %v6874
    %v7477 = vpack.c.b16 %v6882, %v6875
    %v7478 = vpack.c.b16 %v6890, %v6883
    %v7479 = vpack.c.b16 %v6891, %v6884
    %v7480 = vpack.c.b16 %v6892, %v6885
    %v7481 = vpack.c.b16 %v6893, %v6886
    %v7482 = vpack.c.b16 %v6894, %v6887
    %v7483 = vpack.c.b16 %v6895, %v6888
    %v7484 = vpack.c.b16 %v6896, %v6889
    %v7485 = vpack.c.b16 %v6904, %v6897
    %v7486 = vpack.c.b16 %v6905, %v6898
    %v7487 = vpack.c.b16 %v6906, %v6899
    %v7488 = vpack.c.b16 %v6907, %v6900
    %v7489 = vpack.c.b16 %v6908, %v6901
    %v7490 = vpack.c.b16 %v6909, %v6902
    %v7491 = vpack.c.b16 %v6910, %v6903
    %v7492 = vpack.c.b16 %v6918, %v6911
    %v7493 = vpack.c.b16 %v6919, %v6912
    %v7494 = vpack.c.b16 %v6920, %v6913
    %v7495 = vpack.c.b16 %v6921, %v6914
    %v7496 = vpack.c.b16 %v6922, %v6915
    %v7497 = vpack.c.b16 %v6923, %v6916
    %v7498 = vpack.c.b16 %v6924, %v6917
    %v7499 = vpack.c.b16 %v6932, %v6925
    %v7500 = vpack.c.b16 %v6933, %v6926
    %v7501 = vpack.c.b16 %v6934, %v6927
    %v7502 = vpack.c.b16 %v6935, %v6928
    %v7503 = vpack.c.b16 %v6936, %v6929
    %v7504 = vpack.c.b16 %v6937, %v6930
    %v7505 = vpack.c.b16 %v6938, %v6931
    %v7506 = vpack.c.b16 %v6946, %v6939
    %v7507 = vpack.c.b16 %v6947, %v6940
    %v7508 = vpack.c.b16 %v6948, %v6941
    %v7509 = vpack.c.b16 %v6949, %v6942
    %v7510 = vpack.c.b16 %v6950, %v6943
    %v7511 = vpack.c.b16 %v6951, %v6944
    %v7512 = vpack.c.b16 %v6952, %v6945
    %8073 = vmatpush.bf16.msra.mxu0 %v7002
    %8074 = vmatpush.bf16.msra.mxu0 %v6995
    %8075 = vmatpush.bf16.msra.mxu0 %v6988
    %8076 = vmatpush.bf16.msra.mxu0 %v6981
    %8077 = vmatpush.bf16.msra.mxu0 %v6974
    %8078 = vmatpush.bf16.msra.mxu0 %v6967
    %8079 = vmatpush.bf16.msra.mxu0 %v6960
    %8080 = vmatpush.bf16.msra.mxu0 %v6953
    %8081 = vmatmul.bf16.gmra.mxu0 %v4527
    %v8082 = vpop.f32.mrf.mxu0
    %v8083 = vadd.f32 %v5179, %v8082
    %v8084 = vpop.f32.mrf.mxu0
    %v8085 = vadd.f32 %v5179, %v8084
    %8086 = vdwg.mxu0
    %8087 = vmatpush.bf16.msra.mxu0 %v7058
    %8088 = vmatpush.bf16.msra.mxu0 %v7051
    %8089 = vmatpush.bf16.msra.mxu0 %v7044
    %8090 = vmatpush.bf16.msra.mxu0 %v7037
    %8091 = vmatpush.bf16.msra.mxu0 %v7030
    %8092 = vmatpush.bf16.msra.mxu0 %v7023
    %8093 = vmatpush.bf16.msra.mxu0 %v7016
    %8094 = vmatpush.bf16.msra.mxu0 %v7009
    %8095 = vmatmul.bf16.gmra.mxu0 %v4528
    %v8096 = vpop.f32.mrf.mxu0
    %v8097 = vadd.f32 %v8083, %v8096
    %v8098 = vpop.f32.mrf.mxu0
    %v8099 = vadd.f32 %v8085, %v8098
    %8100 = vdwg.mxu0
    %8101 = vmatpush.bf16.msra.mxu0 %v7114
    %8102 = vmatpush.bf16.msra.mxu0 %v7107
    %8103 = vmatpush.bf16.msra.mxu0 %v7100
    %8104 = vmatpush.bf16.msra.mxu0 %v7093
    %8105 = vmatpush.bf16.msra.mxu0 %v7086
    %8106 = vmatpush.bf16.msra.mxu0 %v7079
    %8107 = vmatpush.bf16.msra.mxu0 %v7072
    %8108 = vmatpush.bf16.msra.mxu0 %v7065
    %8109 = vmatmul.bf16.gmra.mxu0 %v4529
    %v8110 = vpop.f32.mrf.mxu0
    %v8111 = vadd.f32 %v8097, %v8110
    %v8112 = vpop.f32.mrf.mxu0
    %v8113 = vadd.f32 %v8099, %v8112
    %8114 = vdwg.mxu0
    %8115 = vmatpush.bf16.msra.mxu0 %v7170
    %8116 = vmatpush.bf16.msra.mxu0 %v7163
    %8117 = vmatpush.bf16.msra.mxu0 %v7156
    %8118 = vmatpush.bf16.msra.mxu0 %v7149
    %8119 = vmatpush.bf16.msra.mxu0 %v7142
    %8120 = vmatpush.bf16.msra.mxu0 %v7135
    %8121 = vmatpush.bf16.msra.mxu0 %v7128
    %8122 = vmatpush.bf16.msra.mxu0 %v7121
    %8123 = vmatmul.bf16.gmra.mxu0 %v4530
    %v8124 = vpop.f32.mrf.mxu0
    %v8125 = vadd.f32 %v8111, %v8124
    %v8126 = vpop.f32.mrf.mxu0
    %v8127 = vadd.f32 %v8113, %v8126
    %8128 = vdwg.mxu0
    %8129 = vmatpush.bf16.msra.mxu0 %v7226
    %8130 = vmatpush.bf16.msra.mxu0 %v7219
    %8131 = vmatpush.bf16.msra.mxu0 %v7212
    %8132 = vmatpush.bf16.msra.mxu0 %v7205
    %8133 = vmatpush.bf16.msra.mxu0 %v7198
    %8134 = vmatpush.bf16.msra.mxu0 %v7191
    %8135 = vmatpush.bf16.msra.mxu0 %v7184
    %8136 = vmatpush.bf16.msra.mxu0 %v7177
    %8137 = vmatmul.bf16.gmra.mxu0 %v4531
    %v8138 = vpop.f32.mrf.mxu0
    %v8139 = vadd.f32 %v8125, %v8138
    %v8140 = vpop.f32.mrf.mxu0
    %v8141 = vadd.f32 %v8127, %v8140
    %8142 = vdwg.mxu0
    %8143 = vmatpush.bf16.msra.mxu0 %v7282
    %8144 = vmatpush.bf16.msra.mxu0 %v7275
    %8145 = vmatpush.bf16.msra.mxu0 %v7268
    %8146 = vmatpush.bf16.msra.mxu0 %v7261
    %8147 = vmatpush.bf16.msra.mxu0 %v7254
    %8148 = vmatpush.bf16.msra.mxu0 %v7247
    %8149 = vmatpush.bf16.msra.mxu0 %v7240
    %8150 = vmatpush.bf16.msra.mxu0 %v7233
    %8151 = vmatmul.bf16.gmra.mxu0 %v4532
    %v8152 = vpop.f32.mrf.mxu0
    %v8153 = vadd.f32 %v8139, %v8152
    %v8154 = vpop.f32.mrf.mxu0
    %v8155 = vadd.f32 %v8141, %v8154
    %8156 = vdwg.mxu0
    %8157 = vmatpush.bf16.msra.mxu0 %v7338
    %8158 = vmatpush.bf16.msra.mxu0 %v7331
    %8159 = vmatpush.bf16.msra.mxu0 %v7324
    %8160 = vmatpush.bf16.msra.mxu0 %v7317
    %8161 = vmatpush.bf16.msra.mxu0 %v7310
    %8162 = vmatpush.bf16.msra.mxu0 %v7303
    %8163 = vmatpush.bf16.msra.mxu0 %v7296
    %8164 = vmatpush.bf16.msra.mxu0 %v7289
    %8165 = vmatmul.bf16.gmra.mxu0 %v4533
    %v8166 = vpop.f32.mrf.mxu0
    %v8167 = vadd.f32 %v8153, %v8166
    %v8168 = vpop.f32.mrf.mxu0
    %v8169 = vadd.f32 %v8155, %v8168
    %8170 = vdwg.mxu0
    %8171 = vmatpush.bf16.msra.mxu0 %v7394
    %8172 = vmatpush.bf16.msra.mxu0 %v7387
    %8173 = vmatpush.bf16.msra.mxu0 %v7380
    %8174 = vmatpush.bf16.msra.mxu0 %v7373
    %8175 = vmatpush.bf16.msra.mxu0 %v7366
    %8176 = vmatpush.bf16.msra.mxu0 %v7359
    %8177 = vmatpush.bf16.msra.mxu0 %v7352
    %8178 = vmatpush.bf16.msra.mxu0 %v7345
    %8179 = vmatmul.bf16.gmra.mxu0 %v4534
    %v8180 = vpop.f32.mrf.mxu0
    %v8181 = vadd.f32 %v8167, %v8180
    %v8182 = vpop.f32.mrf.mxu0
    %v8183 = vadd.f32 %v8169, %v8182
    %8184 = vdwg.mxu0
    %8185 = vmatpush.bf16.msra.mxu0 %v7450
    %8186 = vmatpush.bf16.msra.mxu0 %v7443
    %8187 = vmatpush.bf16.msra.mxu0 %v7436
    %8188 = vmatpush.bf16.msra.mxu0 %v7429
    %8189 = vmatpush.bf16.msra.mxu0 %v7422
    %8190 = vmatpush.bf16.msra.mxu0 %v7415
    %8191 = vmatpush.bf16.msra.mxu0 %v7408
    %8192 = vmatpush.bf16.msra.mxu0 %v7401
    %8193 = vmatmul.bf16.gmra.mxu0 %v4535
    %v8194 = vpop.f32.mrf.mxu0
    %v8195 = vadd.f32 %v8181, %v8194
    %v8196 = vpop.f32.mrf.mxu0
    %v8197 = vadd.f32 %v8183, %v8196
    %8198 = vdwg.mxu0
    %8199 = vmatpush.bf16.msra.mxu0 %v7506
    %8200 = vmatpush.bf16.msra.mxu0 %v7499
    %8201 = vmatpush.bf16.msra.mxu0 %v7492
    %8202 = vmatpush.bf16.msra.mxu0 %v7485
    %8203 = vmatpush.bf16.msra.mxu0 %v7478
    %8204 = vmatpush.bf16.msra.mxu0 %v7471
    %8205 = vmatpush.bf16.msra.mxu0 %v7464
    %8206 = vmatpush.bf16.msra.mxu0 %v7457
    %8207 = vmatmul.bf16.gmra.mxu0 %v4536
    %v8208 = vpop.f32.mrf.mxu0
    %v8209 = vadd.f32 %v8195, %v8208
    %v8210 = vpop.f32.mrf.mxu0
    %v8211 = vadd.f32 %v8197, %v8210
    %8212 = vdwg.mxu0
    %8213 = vmatpush.bf16.msra.mxu0 %v7003
    %8214 = vmatpush.bf16.msra.mxu0 %v6996
    %8215 = vmatpush.bf16.msra.mxu0 %v6989
    %8216 = vmatpush.bf16.msra.mxu0 %v6982
    %8217 = vmatpush.bf16.msra.mxu0 %v6975
    %8218 = vmatpush.bf16.msra.mxu0 %v6968
    %8219 = vmatpush.bf16.msra.mxu0 %v6961
    %8220 = vmatpush.bf16.msra.mxu0 %v6954
    %8221 = vmatmul.bf16.gmra.mxu0 %v4527
    %v8222 = vpop.f32.mrf.mxu0
    %v8223 = vadd.f32 %v5180, %v8222
    %v8224 = vpop.f32.mrf.mxu0
    %v8225 = vadd.f32 %v5180, %v8224
    %8226 = vdwg.mxu0
    %8227 = vmatpush.bf16.msra.mxu0 %v7059
    %8228 = vmatpush.bf16.msra.mxu0 %v7052
    %8229 = vmatpush.bf16.msra.mxu0 %v7045
    %8230 = vmatpush.bf16.msra.mxu0 %v7038
    %8231 = vmatpush.bf16.msra.mxu0 %v7031
    %8232 = vmatpush.bf16.msra.mxu0 %v7024
    %8233 = vmatpush.bf16.msra.mxu0 %v7017
    %8234 = vmatpush.bf16.msra.mxu0 %v7010
    %8235 = vmatmul.bf16.gmra.mxu0 %v4528
    %v8236 = vpop.f32.mrf.mxu0
    %v8237 = vadd.f32 %v8223, %v8236
    %v8238 = vpop.f32.mrf.mxu0
    %v8239 = vadd.f32 %v8225, %v8238
    %8240 = vdwg.mxu0
    %8241 = vmatpush.bf16.msra.mxu0 %v7115
    %8242 = vmatpush.bf16.msra.mxu0 %v7108
    %8243 = vmatpush.bf16.msra.mxu0 %v7101
    %8244 = vmatpush.bf16.msra.mxu0 %v7094
    %8245 = vmatpush.bf16.msra.mxu0 %v7087
    %8246 = vmatpush.bf16.msra.mxu0 %v7080
    %8247 = vmatpush.bf16.msra.mxu0 %v7073
    %8248 = vmatpush.bf16.msra.mxu0 %v7066
    %8249 = vmatmul.bf16.gmra.mxu0 %v4529
    %v8250 = vpop.f32.mrf.mxu0
    %v8251 = vadd.f32 %v8237, %v8250
    %v8252 = vpop.f32.mrf.mxu0
    %v8253 = vadd.f32 %v8239, %v8252
    %8254 = vdwg.mxu0
    %8255 = vmatpush.bf16.msra.mxu0 %v7171
    %8256 = vmatpush.bf16.msra.mxu0 %v7164
    %8257 = vmatpush.bf16.msra.mxu0 %v7157
    %8258 = vmatpush.bf16.msra.mxu0 %v7150
    %8259 = vmatpush.bf16.msra.mxu0 %v7143
    %8260 = vmatpush.bf16.msra.mxu0 %v7136
    %8261 = vmatpush.bf16.msra.mxu0 %v7129
    %8262 = vmatpush.bf16.msra.mxu0 %v7122
    %8263 = vmatmul.bf16.gmra.mxu0 %v4530
    %v8264 = vpop.f32.mrf.mxu0
    %v8265 = vadd.f32 %v8251, %v8264
    %v8266 = vpop.f32.mrf.mxu0
    %v8267 = vadd.f32 %v8253, %v8266
    %8268 = vdwg.mxu0
    %8269 = vmatpush.bf16.msra.mxu0 %v7227
    %8270 = vmatpush.bf16.msra.mxu0 %v7220
    %8271 = vmatpush.bf16.msra.mxu0 %v7213
    %8272 = vmatpush.bf16.msra.mxu0 %v7206
    %8273 = vmatpush.bf16.msra.mxu0 %v7199
    %8274 = vmatpush.bf16.msra.mxu0 %v7192
    %8275 = vmatpush.bf16.msra.mxu0 %v7185
    %8276 = vmatpush.bf16.msra.mxu0 %v7178
    %8277 = vmatmul.bf16.gmra.mxu0 %v4531
    %v8278 = vpop.f32.mrf.mxu0
    %v8279 = vadd.f32 %v8265, %v8278
    %v8280 = vpop.f32.mrf.mxu0
    %v8281 = vadd.f32 %v8267, %v8280
    %8282 = vdwg.mxu0
    %8283 = vmatpush.bf16.msra.mxu0 %v7283
    %8284 = vmatpush.bf16.msra.mxu0 %v7276
    %8285 = vmatpush.bf16.msra.mxu0 %v7269
    %8286 = vmatpush.bf16.msra.mxu0 %v7262
    %8287 = vmatpush.bf16.msra.mxu0 %v7255
    %8288 = vmatpush.bf16.msra.mxu0 %v7248
    %8289 = vmatpush.bf16.msra.mxu0 %v7241
    %8290 = vmatpush.bf16.msra.mxu0 %v7234
    %8291 = vmatmul.bf16.gmra.mxu0 %v4532
    %v8292 = vpop.f32.mrf.mxu0
    %v8293 = vadd.f32 %v8279, %v8292
    %v8294 = vpop.f32.mrf.mxu0
    %v8295 = vadd.f32 %v8281, %v8294
    %8296 = vdwg.mxu0
    %8297 = vmatpush.bf16.msra.mxu0 %v7339
    %8298 = vmatpush.bf16.msra.mxu0 %v7332
    %8299 = vmatpush.bf16.msra.mxu0 %v7325
    %8300 = vmatpush.bf16.msra.mxu0 %v7318
    %8301 = vmatpush.bf16.msra.mxu0 %v7311
    %8302 = vmatpush.bf16.msra.mxu0 %v7304
    %8303 = vmatpush.bf16.msra.mxu0 %v7297
    %8304 = vmatpush.bf16.msra.mxu0 %v7290
    %8305 = vmatmul.bf16.gmra.mxu0 %v4533
    %v8306 = vpop.f32.mrf.mxu0
    %v8307 = vadd.f32 %v8293, %v8306
    %v8308 = vpop.f32.mrf.mxu0
    %v8309 = vadd.f32 %v8295, %v8308
    %8310 = vdwg.mxu0
    %8311 = vmatpush.bf16.msra.mxu0 %v7395
    %8312 = vmatpush.bf16.msra.mxu0 %v7388
    %8313 = vmatpush.bf16.msra.mxu0 %v7381
    %8314 = vmatpush.bf16.msra.mxu0 %v7374
    %8315 = vmatpush.bf16.msra.mxu0 %v7367
    %8316 = vmatpush.bf16.msra.mxu0 %v7360
    %8317 = vmatpush.bf16.msra.mxu0 %v7353
    %8318 = vmatpush.bf16.msra.mxu0 %v7346
    %8319 = vmatmul.bf16.gmra.mxu0 %v4534
    %v8320 = vpop.f32.mrf.mxu0
    %v8321 = vadd.f32 %v8307, %v8320
    %v8322 = vpop.f32.mrf.mxu0
    %v8323 = vadd.f32 %v8309, %v8322
    %8324 = vdwg.mxu0
    %8325 = vmatpush.bf16.msra.mxu0 %v7451
    %8326 = vmatpush.bf16.msra.mxu0 %v7444
    %8327 = vmatpush.bf16.msra.mxu0 %v7437
    %8328 = vmatpush.bf16.msra.mxu0 %v7430
    %8329 = vmatpush.bf16.msra.mxu0 %v7423
    %8330 = vmatpush.bf16.msra.mxu0 %v7416
    %8331 = vmatpush.bf16.msra.mxu0 %v7409
    %8332 = vmatpush.bf16.msra.mxu0 %v7402
    %8333 = vmatmul.bf16.gmra.mxu0 %v4535
    %v8334 = vpop.f32.mrf.mxu0
    %v8335 = vadd.f32 %v8321, %v8334
    %v8336 = vpop.f32.mrf.mxu0
    %v8337 = vadd.f32 %v8323, %v8336
    %8338 = vdwg.mxu0
    %8339 = vmatpush.bf16.msra.mxu0 %v7507
    %8340 = vmatpush.bf16.msra.mxu0 %v7500
    %8341 = vmatpush.bf16.msra.mxu0 %v7493
    %8342 = vmatpush.bf16.msra.mxu0 %v7486
    %8343 = vmatpush.bf16.msra.mxu0 %v7479
    %8344 = vmatpush.bf16.msra.mxu0 %v7472
    %8345 = vmatpush.bf16.msra.mxu0 %v7465
    %8346 = vmatpush.bf16.msra.mxu0 %v7458
    %8347 = vmatmul.bf16.gmra.mxu0 %v4536
    %v8348 = vpop.f32.mrf.mxu0
    %v8349 = vadd.f32 %v8335, %v8348
    %v8350 = vpop.f32.mrf.mxu0
    %v8351 = vadd.f32 %v8337, %v8350
    %8352 = vdwg.mxu0
    %8353 = vmatpush.bf16.msra.mxu0 %v7004
    %8354 = vmatpush.bf16.msra.mxu0 %v6997
    %8355 = vmatpush.bf16.msra.mxu0 %v6990
    %8356 = vmatpush.bf16.msra.mxu0 %v6983
    %8357 = vmatpush.bf16.msra.mxu0 %v6976
    %8358 = vmatpush.bf16.msra.mxu0 %v6969
    %8359 = vmatpush.bf16.msra.mxu0 %v6962
    %8360 = vmatpush.bf16.msra.mxu0 %v6955
    %8361 = vmatmul.bf16.gmra.mxu0 %v4527
    %v8362 = vpop.f32.mrf.mxu0
    %v8363 = vadd.f32 %v5181, %v8362
    %v8364 = vpop.f32.mrf.mxu0
    %v8365 = vadd.f32 %v5181, %v8364
    %8366 = vdwg.mxu0
    %8367 = vmatpush.bf16.msra.mxu0 %v7060
    %8368 = vmatpush.bf16.msra.mxu0 %v7053
    %8369 = vmatpush.bf16.msra.mxu0 %v7046
    %8370 = vmatpush.bf16.msra.mxu0 %v7039
    %8371 = vmatpush.bf16.msra.mxu0 %v7032
    %8372 = vmatpush.bf16.msra.mxu0 %v7025
    %8373 = vmatpush.bf16.msra.mxu0 %v7018
    %8374 = vmatpush.bf16.msra.mxu0 %v7011
    %8375 = vmatmul.bf16.gmra.mxu0 %v4528
    %v8376 = vpop.f32.mrf.mxu0
    %v8377 = vadd.f32 %v8363, %v8376
    %v8378 = vpop.f32.mrf.mxu0
    %v8379 = vadd.f32 %v8365, %v8378
    %8380 = vdwg.mxu0
    %8381 = vmatpush.bf16.msra.mxu0 %v7116
    %8382 = vmatpush.bf16.msra.mxu0 %v7109
    %8383 = vmatpush.bf16.msra.mxu0 %v7102
    %8384 = vmatpush.bf16.msra.mxu0 %v7095
    %8385 = vmatpush.bf16.msra.mxu0 %v7088
    %8386 = vmatpush.bf16.msra.mxu0 %v7081
    %8387 = vmatpush.bf16.msra.mxu0 %v7074
    %8388 = vmatpush.bf16.msra.mxu0 %v7067
    %8389 = vmatmul.bf16.gmra.mxu0 %v4529
    %v8390 = vpop.f32.mrf.mxu0
    %v8391 = vadd.f32 %v8377, %v8390
    %v8392 = vpop.f32.mrf.mxu0
    %v8393 = vadd.f32 %v8379, %v8392
    %8394 = vdwg.mxu0
    %8395 = vmatpush.bf16.msra.mxu0 %v7172
    %8396 = vmatpush.bf16.msra.mxu0 %v7165
    %8397 = vmatpush.bf16.msra.mxu0 %v7158
    %8398 = vmatpush.bf16.msra.mxu0 %v7151
    %8399 = vmatpush.bf16.msra.mxu0 %v7144
    %8400 = vmatpush.bf16.msra.mxu0 %v7137
    %8401 = vmatpush.bf16.msra.mxu0 %v7130
    %8402 = vmatpush.bf16.msra.mxu0 %v7123
    %8403 = vmatmul.bf16.gmra.mxu0 %v4530
    %v8404 = vpop.f32.mrf.mxu0
    %v8405 = vadd.f32 %v8391, %v8404
    %v8406 = vpop.f32.mrf.mxu0
    %v8407 = vadd.f32 %v8393, %v8406
    %8408 = vdwg.mxu0
    %8409 = vmatpush.bf16.msra.mxu0 %v7228
    %8410 = vmatpush.bf16.msra.mxu0 %v7221
    %8411 = vmatpush.bf16.msra.mxu0 %v7214
    %8412 = vmatpush.bf16.msra.mxu0 %v7207
    %8413 = vmatpush.bf16.msra.mxu0 %v7200
    %8414 = vmatpush.bf16.msra.mxu0 %v7193
    %8415 = vmatpush.bf16.msra.mxu0 %v7186
    %8416 = vmatpush.bf16.msra.mxu0 %v7179
    %8417 = vmatmul.bf16.gmra.mxu0 %v4531
    %v8418 = vpop.f32.mrf.mxu0
    %v8419 = vadd.f32 %v8405, %v8418
    %v8420 = vpop.f32.mrf.mxu0
    %v8421 = vadd.f32 %v8407, %v8420
    %8422 = vdwg.mxu0
    %8423 = vmatpush.bf16.msra.mxu0 %v7284
    %8424 = vmatpush.bf16.msra.mxu0 %v7277
    %8425 = vmatpush.bf16.msra.mxu0 %v7270
    %8426 = vmatpush.bf16.msra.mxu0 %v7263
    %8427 = vmatpush.bf16.msra.mxu0 %v7256
    %8428 = vmatpush.bf16.msra.mxu0 %v7249
    %8429 = vmatpush.bf16.msra.mxu0 %v7242
    %8430 = vmatpush.bf16.msra.mxu0 %v7235
    %8431 = vmatmul.bf16.gmra.mxu0 %v4532
    %v8432 = vpop.f32.mrf.mxu0
    %v8433 = vadd.f32 %v8419, %v8432
    %v8434 = vpop.f32.mrf.mxu0
    %v8435 = vadd.f32 %v8421, %v8434
    %8436 = vdwg.mxu0
    %8437 = vmatpush.bf16.msra.mxu0 %v7340
    %8438 = vmatpush.bf16.msra.mxu0 %v7333
    %8439 = vmatpush.bf16.msra.mxu0 %v7326
    %8440 = vmatpush.bf16.msra.mxu0 %v7319
    %8441 = vmatpush.bf16.msra.mxu0 %v7312
    %8442 = vmatpush.bf16.msra.mxu0 %v7305
    %8443 = vmatpush.bf16.msra.mxu0 %v7298
    %8444 = vmatpush.bf16.msra.mxu0 %v7291
    %8445 = vmatmul.bf16.gmra.mxu0 %v4533
    %v8446 = vpop.f32.mrf.mxu0
    %v8447 = vadd.f32 %v8433, %v8446
    %v8448 = vpop.f32.mrf.mxu0
    %v8449 = vadd.f32 %v8435, %v8448
    %8450 = vdwg.mxu0
    %8451 = vmatpush.bf16.msra.mxu0 %v7396
    %8452 = vmatpush.bf16.msra.mxu0 %v7389
    %8453 = vmatpush.bf16.msra.mxu0 %v7382
    %8454 = vmatpush.bf16.msra.mxu0 %v7375
    %8455 = vmatpush.bf16.msra.mxu0 %v7368
    %8456 = vmatpush.bf16.msra.mxu0 %v7361
    %8457 = vmatpush.bf16.msra.mxu0 %v7354
    %8458 = vmatpush.bf16.msra.mxu0 %v7347
    %8459 = vmatmul.bf16.gmra.mxu0 %v4534
    %v8460 = vpop.f32.mrf.mxu0
    %v8461 = vadd.f32 %v8447, %v8460
    %v8462 = vpop.f32.mrf.mxu0
    %v8463 = vadd.f32 %v8449, %v8462
    %8464 = vdwg.mxu0
    %8465 = vmatpush.bf16.msra.mxu0 %v7452
    %8466 = vmatpush.bf16.msra.mxu0 %v7445
    %8467 = vmatpush.bf16.msra.mxu0 %v7438
    %8468 = vmatpush.bf16.msra.mxu0 %v7431
    %8469 = vmatpush.bf16.msra.mxu0 %v7424
    %8470 = vmatpush.bf16.msra.mxu0 %v7417
    %8471 = vmatpush.bf16.msra.mxu0 %v7410
    %8472 = vmatpush.bf16.msra.mxu0 %v7403
    %8473 = vmatmul.bf16.gmra.mxu0 %v4535
    %v8474 = vpop.f32.mrf.mxu0
    %v8475 = vadd.f32 %v8461, %v8474
    %v8476 = vpop.f32.mrf.mxu0
    %v8477 = vadd.f32 %v8463, %v8476
    %8478 = vdwg.mxu0
    %8479 = vmatpush.bf16.msra.mxu0 %v7508
    %8480 = vmatpush.bf16.msra.mxu0 %v7501
    %8481 = vmatpush.bf16.msra.mxu0 %v7494
    %8482 = vmatpush.bf16.msra.mxu0 %v7487
    %8483 = vmatpush.bf16.msra.mxu0 %v7480
    %8484 = vmatpush.bf16.msra.mxu0 %v7473
    %8485 = vmatpush.bf16.msra.mxu0 %v7466
    %8486 = vmatpush.bf16.msra.mxu0 %v7459
    %8487 = vmatmul.bf16.gmra.mxu0 %v4536
    %v8488 = vpop.f32.mrf.mxu0
    %v8489 = vadd.f32 %v8475, %v8488
    %v8490 = vpop.f32.mrf.mxu0
    %v8491 = vadd.f32 %v8477, %v8490
    %8492 = vdwg.mxu0
    %8493 = vmatpush.bf16.msra.mxu0 %v7005
    %8494 = vmatpush.bf16.msra.mxu0 %v6998
    %8495 = vmatpush.bf16.msra.mxu0 %v6991
    %8496 = vmatpush.bf16.msra.mxu0 %v6984
    %8497 = vmatpush.bf16.msra.mxu0 %v6977
    %8498 = vmatpush.bf16.msra.mxu0 %v6970
    %8499 = vmatpush.bf16.msra.mxu0 %v6963
    %8500 = vmatpush.bf16.msra.mxu0 %v6956
    %8501 = vmatmul.bf16.gmra.mxu0 %v4527
    %v8502 = vpop.f32.mrf.mxu0
    %v8503 = vadd.f32 %v5182, %v8502
    %v8504 = vpop.f32.mrf.mxu0
    %v8505 = vadd.f32 %v5182, %v8504
    %8506 = vdwg.mxu0
    %8507 = vmatpush.bf16.msra.mxu0 %v7061
    %8508 = vmatpush.bf16.msra.mxu0 %v7054
    %8509 = vmatpush.bf16.msra.mxu0 %v7047
    %8510 = vmatpush.bf16.msra.mxu0 %v7040
    %8511 = vmatpush.bf16.msra.mxu0 %v7033
    %8512 = vmatpush.bf16.msra.mxu0 %v7026
    %8513 = vmatpush.bf16.msra.mxu0 %v7019
    %8514 = vmatpush.bf16.msra.mxu0 %v7012
    %8515 = vmatmul.bf16.gmra.mxu0 %v4528
    %v8516 = vpop.f32.mrf.mxu0
    %v8517 = vadd.f32 %v8503, %v8516
    %v8518 = vpop.f32.mrf.mxu0
    %v8519 = vadd.f32 %v8505, %v8518
    %8520 = vdwg.mxu0
    %8521 = vmatpush.bf16.msra.mxu0 %v7117
    %8522 = vmatpush.bf16.msra.mxu0 %v7110
    %8523 = vmatpush.bf16.msra.mxu0 %v7103
    %8524 = vmatpush.bf16.msra.mxu0 %v7096
    %8525 = vmatpush.bf16.msra.mxu0 %v7089
    %8526 = vmatpush.bf16.msra.mxu0 %v7082
    %8527 = vmatpush.bf16.msra.mxu0 %v7075
    %8528 = vmatpush.bf16.msra.mxu0 %v7068
    %8529 = vmatmul.bf16.gmra.mxu0 %v4529
    %v8530 = vpop.f32.mrf.mxu0
    %v8531 = vadd.f32 %v8517, %v8530
    %v8532 = vpop.f32.mrf.mxu0
    %v8533 = vadd.f32 %v8519, %v8532
    %8534 = vdwg.mxu0
    %8535 = vmatpush.bf16.msra.mxu0 %v7173
    %8536 = vmatpush.bf16.msra.mxu0 %v7166
    %8537 = vmatpush.bf16.msra.mxu0 %v7159
    %8538 = vmatpush.bf16.msra.mxu0 %v7152
    %8539 = vmatpush.bf16.msra.mxu0 %v7145
    %8540 = vmatpush.bf16.msra.mxu0 %v7138
    %8541 = vmatpush.bf16.msra.mxu0 %v7131
    %8542 = vmatpush.bf16.msra.mxu0 %v7124
    %8543 = vmatmul.bf16.gmra.mxu0 %v4530
    %v8544 = vpop.f32.mrf.mxu0
    %v8545 = vadd.f32 %v8531, %v8544
    %v8546 = vpop.f32.mrf.mxu0
    %v8547 = vadd.f32 %v8533, %v8546
    %8548 = vdwg.mxu0
    %8549 = vmatpush.bf16.msra.mxu0 %v7229
    %8550 = vmatpush.bf16.msra.mxu0 %v7222
    %8551 = vmatpush.bf16.msra.mxu0 %v7215
    %8552 = vmatpush.bf16.msra.mxu0 %v7208
    %8553 = vmatpush.bf16.msra.mxu0 %v7201
    %8554 = vmatpush.bf16.msra.mxu0 %v7194
    %8555 = vmatpush.bf16.msra.mxu0 %v7187
    %8556 = vmatpush.bf16.msra.mxu0 %v7180
    %8557 = vmatmul.bf16.gmra.mxu0 %v4531
    %v8558 = vpop.f32.mrf.mxu0
    %v8559 = vadd.f32 %v8545, %v8558
    %v8560 = vpop.f32.mrf.mxu0
    %v8561 = vadd.f32 %v8547, %v8560
    %8562 = vdwg.mxu0
    %8563 = vmatpush.bf16.msra.mxu0 %v7285
    %8564 = vmatpush.bf16.msra.mxu0 %v7278
    %8565 = vmatpush.bf16.msra.mxu0 %v7271
    %8566 = vmatpush.bf16.msra.mxu0 %v7264
    %8567 = vmatpush.bf16.msra.mxu0 %v7257
    %8568 = vmatpush.bf16.msra.mxu0 %v7250
    %8569 = vmatpush.bf16.msra.mxu0 %v7243
    %8570 = vmatpush.bf16.msra.mxu0 %v7236
    %8571 = vmatmul.bf16.gmra.mxu0 %v4532
    %v8572 = vpop.f32.mrf.mxu0
    %v8573 = vadd.f32 %v8559, %v8572
    %v8574 = vpop.f32.mrf.mxu0
    %v8575 = vadd.f32 %v8561, %v8574
    %8576 = vdwg.mxu0
    %8577 = vmatpush.bf16.msra.mxu0 %v7341
    %8578 = vmatpush.bf16.msra.mxu0 %v7334
    %8579 = vmatpush.bf16.msra.mxu0 %v7327
    %8580 = vmatpush.bf16.msra.mxu0 %v7320
    %8581 = vmatpush.bf16.msra.mxu0 %v7313
    %8582 = vmatpush.bf16.msra.mxu0 %v7306
    %8583 = vmatpush.bf16.msra.mxu0 %v7299
    %8584 = vmatpush.bf16.msra.mxu0 %v7292
    %8585 = vmatmul.bf16.gmra.mxu0 %v4533
    %v8586 = vpop.f32.mrf.mxu0
    %v8587 = vadd.f32 %v8573, %v8586
    %v8588 = vpop.f32.mrf.mxu0
    %v8589 = vadd.f32 %v8575, %v8588
    %8590 = vdwg.mxu0
    %8591 = vmatpush.bf16.msra.mxu0 %v7397
    %8592 = vmatpush.bf16.msra.mxu0 %v7390
    %8593 = vmatpush.bf16.msra.mxu0 %v7383
    %8594 = vmatpush.bf16.msra.mxu0 %v7376
    %8595 = vmatpush.bf16.msra.mxu0 %v7369
    %8596 = vmatpush.bf16.msra.mxu0 %v7362
    %8597 = vmatpush.bf16.msra.mxu0 %v7355
    %8598 = vmatpush.bf16.msra.mxu0 %v7348
    %8599 = vmatmul.bf16.gmra.mxu0 %v4534
    %v8600 = vpop.f32.mrf.mxu0
    %v8601 = vadd.f32 %v8587, %v8600
    %v8602 = vpop.f32.mrf.mxu0
    %v8603 = vadd.f32 %v8589, %v8602
    %8604 = vdwg.mxu0
    %8605 = vmatpush.bf16.msra.mxu0 %v7453
    %8606 = vmatpush.bf16.msra.mxu0 %v7446
    %8607 = vmatpush.bf16.msra.mxu0 %v7439
    %8608 = vmatpush.bf16.msra.mxu0 %v7432
    %8609 = vmatpush.bf16.msra.mxu0 %v7425
    %8610 = vmatpush.bf16.msra.mxu0 %v7418
    %8611 = vmatpush.bf16.msra.mxu0 %v7411
    %8612 = vmatpush.bf16.msra.mxu0 %v7404
    %8613 = vmatmul.bf16.gmra.mxu0 %v4535
    %v8614 = vpop.f32.mrf.mxu0
    %v8615 = vadd.f32 %v8601, %v8614
    %v8616 = vpop.f32.mrf.mxu0
    %v8617 = vadd.f32 %v8603, %v8616
    %8618 = vdwg.mxu0
    %8619 = vmatpush.bf16.msra.mxu0 %v7509
    %8620 = vmatpush.bf16.msra.mxu0 %v7502
    %8621 = vmatpush.bf16.msra.mxu0 %v7495
    %8622 = vmatpush.bf16.msra.mxu0 %v7488
    %8623 = vmatpush.bf16.msra.mxu0 %v7481
    %8624 = vmatpush.bf16.msra.mxu0 %v7474
    %8625 = vmatpush.bf16.msra.mxu0 %v7467
    %8626 = vmatpush.bf16.msra.mxu0 %v7460
    %8627 = vmatmul.bf16.gmra.mxu0 %v4536
    %v8628 = vpop.f32.mrf.mxu0
    %v8629 = vadd.f32 %v8615, %v8628
    %v8630 = vpop.f32.mrf.mxu0
    %v8631 = vadd.f32 %v8617, %v8630
    %8632 = vdwg.mxu0
    %8633 = vmatpush.bf16.msra.mxu0 %v7006
    %8634 = vmatpush.bf16.msra.mxu0 %v6999
    %8635 = vmatpush.bf16.msra.mxu0 %v6992
    %8636 = vmatpush.bf16.msra.mxu0 %v6985
    %8637 = vmatpush.bf16.msra.mxu0 %v6978
    %8638 = vmatpush.bf16.msra.mxu0 %v6971
    %8639 = vmatpush.bf16.msra.mxu0 %v6964
    %8640 = vmatpush.bf16.msra.mxu0 %v6957
    %8641 = vmatmul.bf16.gmra.mxu0 %v4527
    %v8642 = vpop.f32.mrf.mxu0
    %v8643 = vadd.f32 %v5183, %v8642
    %v8644 = vpop.f32.mrf.mxu0
    %v8645 = vadd.f32 %v5183, %v8644
    %8646 = vdwg.mxu0
    %8647 = vmatpush.bf16.msra.mxu0 %v7062
    %8648 = vmatpush.bf16.msra.mxu0 %v7055
    %8649 = vmatpush.bf16.msra.mxu0 %v7048
    %8650 = vmatpush.bf16.msra.mxu0 %v7041
    %8651 = vmatpush.bf16.msra.mxu0 %v7034
    %8652 = vmatpush.bf16.msra.mxu0 %v7027
    %8653 = vmatpush.bf16.msra.mxu0 %v7020
    %8654 = vmatpush.bf16.msra.mxu0 %v7013
    %8655 = vmatmul.bf16.gmra.mxu0 %v4528
    %v8656 = vpop.f32.mrf.mxu0
    %v8657 = vadd.f32 %v8643, %v8656
    %v8658 = vpop.f32.mrf.mxu0
    %v8659 = vadd.f32 %v8645, %v8658
    %8660 = vdwg.mxu0
    %8661 = vmatpush.bf16.msra.mxu0 %v7118
    %8662 = vmatpush.bf16.msra.mxu0 %v7111
    %8663 = vmatpush.bf16.msra.mxu0 %v7104
    %8664 = vmatpush.bf16.msra.mxu0 %v7097
    %8665 = vmatpush.bf16.msra.mxu0 %v7090
    %8666 = vmatpush.bf16.msra.mxu0 %v7083
    %8667 = vmatpush.bf16.msra.mxu0 %v7076
    %8668 = vmatpush.bf16.msra.mxu0 %v7069
    %8669 = vmatmul.bf16.gmra.mxu0 %v4529
    %v8670 = vpop.f32.mrf.mxu0
    %v8671 = vadd.f32 %v8657, %v8670
    %v8672 = vpop.f32.mrf.mxu0
    %v8673 = vadd.f32 %v8659, %v8672
    %8674 = vdwg.mxu0
    %8675 = vmatpush.bf16.msra.mxu0 %v7174
    %8676 = vmatpush.bf16.msra.mxu0 %v7167
    %8677 = vmatpush.bf16.msra.mxu0 %v7160
    %8678 = vmatpush.bf16.msra.mxu0 %v7153
    %8679 = vmatpush.bf16.msra.mxu0 %v7146
    %8680 = vmatpush.bf16.msra.mxu0 %v7139
    %8681 = vmatpush.bf16.msra.mxu0 %v7132
    %8682 = vmatpush.bf16.msra.mxu0 %v7125
    %8683 = vmatmul.bf16.gmra.mxu0 %v4530
    %v8684 = vpop.f32.mrf.mxu0
    %v8685 = vadd.f32 %v8671, %v8684
    %v8686 = vpop.f32.mrf.mxu0
    %v8687 = vadd.f32 %v8673, %v8686
    %8688 = vdwg.mxu0
    %8689 = vmatpush.bf16.msra.mxu0 %v7230
    %8690 = vmatpush.bf16.msra.mxu0 %v7223
    %8691 = vmatpush.bf16.msra.mxu0 %v7216
    %8692 = vmatpush.bf16.msra.mxu0 %v7209
    %8693 = vmatpush.bf16.msra.mxu0 %v7202
    %8694 = vmatpush.bf16.msra.mxu0 %v7195
    %8695 = vmatpush.bf16.msra.mxu0 %v7188
    %8696 = vmatpush.bf16.msra.mxu0 %v7181
    %8697 = vmatmul.bf16.gmra.mxu0 %v4531
    %v8698 = vpop.f32.mrf.mxu0
    %v8699 = vadd.f32 %v8685, %v8698
    %v8700 = vpop.f32.mrf.mxu0
    %v8701 = vadd.f32 %v8687, %v8700
    %8702 = vdwg.mxu0
    %8703 = vmatpush.bf16.msra.mxu0 %v7286
    %8704 = vmatpush.bf16.msra.mxu0 %v7279
    %8705 = vmatpush.bf16.msra.mxu0 %v7272
    %8706 = vmatpush.bf16.msra.mxu0 %v7265
    %8707 = vmatpush.bf16.msra.mxu0 %v7258
    %8708 = vmatpush.bf16.msra.mxu0 %v7251
    %8709 = vmatpush.bf16.msra.mxu0 %v7244
    %8710 = vmatpush.bf16.msra.mxu0 %v7237
    %8711 = vmatmul.bf16.gmra.mxu0 %v4532
    %v8712 = vpop.f32.mrf.mxu0
    %v8713 = vadd.f32 %v8699, %v8712
    %v8714 = vpop.f32.mrf.mxu0
    %v8715 = vadd.f32 %v8701, %v8714
    %8716 = vdwg.mxu0
    %8717 = vmatpush.bf16.msra.mxu0 %v7342
    %8718 = vmatpush.bf16.msra.mxu0 %v7335
    %8719 = vmatpush.bf16.msra.mxu0 %v7328
    %8720 = vmatpush.bf16.msra.mxu0 %v7321
    %8721 = vmatpush.bf16.msra.mxu0 %v7314
    %8722 = vmatpush.bf16.msra.mxu0 %v7307
    %8723 = vmatpush.bf16.msra.mxu0 %v7300
    %8724 = vmatpush.bf16.msra.mxu0 %v7293
    %8725 = vmatmul.bf16.gmra.mxu0 %v4533
    %v8726 = vpop.f32.mrf.mxu0
    %v8727 = vadd.f32 %v8713, %v8726
    %v8728 = vpop.f32.mrf.mxu0
    %v8729 = vadd.f32 %v8715, %v8728
    %8730 = vdwg.mxu0
    %8731 = vmatpush.bf16.msra.mxu0 %v7398
    %8732 = vmatpush.bf16.msra.mxu0 %v7391
    %8733 = vmatpush.bf16.msra.mxu0 %v7384
    %8734 = vmatpush.bf16.msra.mxu0 %v7377
    %8735 = vmatpush.bf16.msra.mxu0 %v7370
    %8736 = vmatpush.bf16.msra.mxu0 %v7363
    %8737 = vmatpush.bf16.msra.mxu0 %v7356
    %8738 = vmatpush.bf16.msra.mxu0 %v7349
    %8739 = vmatmul.bf16.gmra.mxu0 %v4534
    %v8740 = vpop.f32.mrf.mxu0
    %v8741 = vadd.f32 %v8727, %v8740
    %v8742 = vpop.f32.mrf.mxu0
    %v8743 = vadd.f32 %v8729, %v8742
    %8744 = vdwg.mxu0
    %8745 = vmatpush.bf16.msra.mxu0 %v7454
    %8746 = vmatpush.bf16.msra.mxu0 %v7447
    %8747 = vmatpush.bf16.msra.mxu0 %v7440
    %8748 = vmatpush.bf16.msra.mxu0 %v7433
    %8749 = vmatpush.bf16.msra.mxu0 %v7426
    %8750 = vmatpush.bf16.msra.mxu0 %v7419
    %8751 = vmatpush.bf16.msra.mxu0 %v7412
    %8752 = vmatpush.bf16.msra.mxu0 %v7405
    %8753 = vmatmul.bf16.gmra.mxu0 %v4535
    %v8754 = vpop.f32.mrf.mxu0
    %v8755 = vadd.f32 %v8741, %v8754
    %v8756 = vpop.f32.mrf.mxu0
    %v8757 = vadd.f32 %v8743, %v8756
    %8758 = vdwg.mxu0
    %8759 = vmatpush.bf16.msra.mxu0 %v7510
    %8760 = vmatpush.bf16.msra.mxu0 %v7503
    %8761 = vmatpush.bf16.msra.mxu0 %v7496
    %8762 = vmatpush.bf16.msra.mxu0 %v7489
    %8763 = vmatpush.bf16.msra.mxu0 %v7482
    %8764 = vmatpush.bf16.msra.mxu0 %v7475
    %8765 = vmatpush.bf16.msra.mxu0 %v7468
    %8766 = vmatpush.bf16.msra.mxu0 %v7461
    %8767 = vmatmul.bf16.gmra.mxu0 %v4536
    %v8768 = vpop.f32.mrf.mxu0
    %v8769 = vadd.f32 %v8755, %v8768
    %v8770 = vpop.f32.mrf.mxu0
    %v8771 = vadd.f32 %v8757, %v8770
    %8772 = vdwg.mxu0
    %8773 = vmatpush.bf16.msra.mxu0 %v7007
    %8774 = vmatpush.bf16.msra.mxu0 %v7000
    %8775 = vmatpush.bf16.msra.mxu0 %v6993
    %8776 = vmatpush.bf16.msra.mxu0 %v6986
    %8777 = vmatpush.bf16.msra.mxu0 %v6979
    %8778 = vmatpush.bf16.msra.mxu0 %v6972
    %8779 = vmatpush.bf16.msra.mxu0 %v6965
    %8780 = vmatpush.bf16.msra.mxu0 %v6958
    %8781 = vmatmul.bf16.gmra.mxu0 %v4527
    %v8782 = vpop.f32.mrf.mxu0
    %v8783 = vadd.f32 %v5184, %v8782
    %v8784 = vpop.f32.mrf.mxu0
    %v8785 = vadd.f32 %v5184, %v8784
    %8786 = vdwg.mxu0
    %8787 = vmatpush.bf16.msra.mxu0 %v7063
    %8788 = vmatpush.bf16.msra.mxu0 %v7056
    %8789 = vmatpush.bf16.msra.mxu0 %v7049
    %8790 = vmatpush.bf16.msra.mxu0 %v7042
    %8791 = vmatpush.bf16.msra.mxu0 %v7035
    %8792 = vmatpush.bf16.msra.mxu0 %v7028
    %8793 = vmatpush.bf16.msra.mxu0 %v7021
    %8794 = vmatpush.bf16.msra.mxu0 %v7014
    %8795 = vmatmul.bf16.gmra.mxu0 %v4528
    %v8796 = vpop.f32.mrf.mxu0
    %v8797 = vadd.f32 %v8783, %v8796
    %v8798 = vpop.f32.mrf.mxu0
    %v8799 = vadd.f32 %v8785, %v8798
    %8800 = vdwg.mxu0
    %8801 = vmatpush.bf16.msra.mxu0 %v7119
    %8802 = vmatpush.bf16.msra.mxu0 %v7112
    %8803 = vmatpush.bf16.msra.mxu0 %v7105
    %8804 = vmatpush.bf16.msra.mxu0 %v7098
    %8805 = vmatpush.bf16.msra.mxu0 %v7091
    %8806 = vmatpush.bf16.msra.mxu0 %v7084
    %8807 = vmatpush.bf16.msra.mxu0 %v7077
    %8808 = vmatpush.bf16.msra.mxu0 %v7070
    %8809 = vmatmul.bf16.gmra.mxu0 %v4529
    %v8810 = vpop.f32.mrf.mxu0
    %v8811 = vadd.f32 %v8797, %v8810
    %v8812 = vpop.f32.mrf.mxu0
    %v8813 = vadd.f32 %v8799, %v8812
    %8814 = vdwg.mxu0
    %8815 = vmatpush.bf16.msra.mxu0 %v7175
    %8816 = vmatpush.bf16.msra.mxu0 %v7168
    %8817 = vmatpush.bf16.msra.mxu0 %v7161
    %8818 = vmatpush.bf16.msra.mxu0 %v7154
    %8819 = vmatpush.bf16.msra.mxu0 %v7147
    %8820 = vmatpush.bf16.msra.mxu0 %v7140
    %8821 = vmatpush.bf16.msra.mxu0 %v7133
    %8822 = vmatpush.bf16.msra.mxu0 %v7126
    %8823 = vmatmul.bf16.gmra.mxu0 %v4530
    %v8824 = vpop.f32.mrf.mxu0
    %v8825 = vadd.f32 %v8811, %v8824
    %v8826 = vpop.f32.mrf.mxu0
    %v8827 = vadd.f32 %v8813, %v8826
    %8828 = vdwg.mxu0
    %8829 = vmatpush.bf16.msra.mxu0 %v7231
    %8830 = vmatpush.bf16.msra.mxu0 %v7224
    %8831 = vmatpush.bf16.msra.mxu0 %v7217
    %8832 = vmatpush.bf16.msra.mxu0 %v7210
    %8833 = vmatpush.bf16.msra.mxu0 %v7203
    %8834 = vmatpush.bf16.msra.mxu0 %v7196
    %8835 = vmatpush.bf16.msra.mxu0 %v7189
    %8836 = vmatpush.bf16.msra.mxu0 %v7182
    %8837 = vmatmul.bf16.gmra.mxu0 %v4531
    %v8838 = vpop.f32.mrf.mxu0
    %v8839 = vadd.f32 %v8825, %v8838
    %v8840 = vpop.f32.mrf.mxu0
    %v8841 = vadd.f32 %v8827, %v8840
    %8842 = vdwg.mxu0
    %8843 = vmatpush.bf16.msra.mxu0 %v7287
    %8844 = vmatpush.bf16.msra.mxu0 %v7280
    %8845 = vmatpush.bf16.msra.mxu0 %v7273
    %8846 = vmatpush.bf16.msra.mxu0 %v7266
    %8847 = vmatpush.bf16.msra.mxu0 %v7259
    %8848 = vmatpush.bf16.msra.mxu0 %v7252
    %8849 = vmatpush.bf16.msra.mxu0 %v7245
    %8850 = vmatpush.bf16.msra.mxu0 %v7238
    %8851 = vmatmul.bf16.gmra.mxu0 %v4532
    %v8852 = vpop.f32.mrf.mxu0
    %v8853 = vadd.f32 %v8839, %v8852
    %v8854 = vpop.f32.mrf.mxu0
    %v8855 = vadd.f32 %v8841, %v8854
    %8856 = vdwg.mxu0
    %8857 = vmatpush.bf16.msra.mxu0 %v7343
    %8858 = vmatpush.bf16.msra.mxu0 %v7336
    %8859 = vmatpush.bf16.msra.mxu0 %v7329
    %8860 = vmatpush.bf16.msra.mxu0 %v7322
    %8861 = vmatpush.bf16.msra.mxu0 %v7315
    %8862 = vmatpush.bf16.msra.mxu0 %v7308
    %8863 = vmatpush.bf16.msra.mxu0 %v7301
    %8864 = vmatpush.bf16.msra.mxu0 %v7294
    %8865 = vmatmul.bf16.gmra.mxu0 %v4533
    %v8866 = vpop.f32.mrf.mxu0
    %v8867 = vadd.f32 %v8853, %v8866
    %v8868 = vpop.f32.mrf.mxu0
    %v8869 = vadd.f32 %v8855, %v8868
    %8870 = vdwg.mxu0
    %8871 = vmatpush.bf16.msra.mxu0 %v7399
    %8872 = vmatpush.bf16.msra.mxu0 %v7392
    %8873 = vmatpush.bf16.msra.mxu0 %v7385
    %8874 = vmatpush.bf16.msra.mxu0 %v7378
    %8875 = vmatpush.bf16.msra.mxu0 %v7371
    %8876 = vmatpush.bf16.msra.mxu0 %v7364
    %8877 = vmatpush.bf16.msra.mxu0 %v7357
    %8878 = vmatpush.bf16.msra.mxu0 %v7350
    %8879 = vmatmul.bf16.gmra.mxu0 %v4534
    %v8880 = vpop.f32.mrf.mxu0
    %v8881 = vadd.f32 %v8867, %v8880
    %v8882 = vpop.f32.mrf.mxu0
    %v8883 = vadd.f32 %v8869, %v8882
    %8884 = vdwg.mxu0
    %8885 = vmatpush.bf16.msra.mxu0 %v7455
    %8886 = vmatpush.bf16.msra.mxu0 %v7448
    %8887 = vmatpush.bf16.msra.mxu0 %v7441
    %8888 = vmatpush.bf16.msra.mxu0 %v7434
    %8889 = vmatpush.bf16.msra.mxu0 %v7427
    %8890 = vmatpush.bf16.msra.mxu0 %v7420
    %8891 = vmatpush.bf16.msra.mxu0 %v7413
    %8892 = vmatpush.bf16.msra.mxu0 %v7406
    %8893 = vmatmul.bf16.gmra.mxu0 %v4535
    %v8894 = vpop.f32.mrf.mxu0
    %v8895 = vadd.f32 %v8881, %v8894
    %v8896 = vpop.f32.mrf.mxu0
    %v8897 = vadd.f32 %v8883, %v8896
    %8898 = vdwg.mxu0
    %8899 = vmatpush.bf16.msra.mxu0 %v7511
    %8900 = vmatpush.bf16.msra.mxu0 %v7504
    %8901 = vmatpush.bf16.msra.mxu0 %v7497
    %8902 = vmatpush.bf16.msra.mxu0 %v7490
    %8903 = vmatpush.bf16.msra.mxu0 %v7483
    %8904 = vmatpush.bf16.msra.mxu0 %v7476
    %8905 = vmatpush.bf16.msra.mxu0 %v7469
    %8906 = vmatpush.bf16.msra.mxu0 %v7462
    %8907 = vmatmul.bf16.gmra.mxu0 %v4536
    %v8908 = vpop.f32.mrf.mxu0
    %v8909 = vadd.f32 %v8895, %v8908
    %v8910 = vpop.f32.mrf.mxu0
    %v8911 = vadd.f32 %v8897, %v8910
    %8912 = vdwg.mxu0
    %8913 = vmatpush.bf16.msra.mxu0 %v7008
    %8914 = vmatpush.bf16.msra.mxu0 %v7001
    %8915 = vmatpush.bf16.msra.mxu0 %v6994
    %8916 = vmatpush.bf16.msra.mxu0 %v6987
    %8917 = vmatpush.bf16.msra.mxu0 %v6980
    %8918 = vmatpush.bf16.msra.mxu0 %v6973
    %8919 = vmatpush.bf16.msra.mxu0 %v6966
    %8920 = vmatpush.bf16.msra.mxu0 %v6959
    %8921 = vmatmul.bf16.gmra.mxu0 %v4527
    %v8922 = vpop.f32.mrf.mxu0
    %v8923 = vadd.f32 %v5185, %v8922
    %v8924 = vpop.f32.mrf.mxu0
    %v8925 = vadd.f32 %v5185, %v8924
    %8926 = vdwg.mxu0
    %8927 = vmatpush.bf16.msra.mxu0 %v7064
    %8928 = vmatpush.bf16.msra.mxu0 %v7057
    %8929 = vmatpush.bf16.msra.mxu0 %v7050
    %8930 = vmatpush.bf16.msra.mxu0 %v7043
    %8931 = vmatpush.bf16.msra.mxu0 %v7036
    %8932 = vmatpush.bf16.msra.mxu0 %v7029
    %8933 = vmatpush.bf16.msra.mxu0 %v7022
    %8934 = vmatpush.bf16.msra.mxu0 %v7015
    %8935 = vmatmul.bf16.gmra.mxu0 %v4528
    %v8936 = vpop.f32.mrf.mxu0
    %v8937 = vadd.f32 %v8923, %v8936
    %v8938 = vpop.f32.mrf.mxu0
    %v8939 = vadd.f32 %v8925, %v8938
    %8940 = vdwg.mxu0
    %8941 = vmatpush.bf16.msra.mxu0 %v7120
    %8942 = vmatpush.bf16.msra.mxu0 %v7113
    %8943 = vmatpush.bf16.msra.mxu0 %v7106
    %8944 = vmatpush.bf16.msra.mxu0 %v7099
    %8945 = vmatpush.bf16.msra.mxu0 %v7092
    %8946 = vmatpush.bf16.msra.mxu0 %v7085
    %8947 = vmatpush.bf16.msra.mxu0 %v7078
    %8948 = vmatpush.bf16.msra.mxu0 %v7071
    %8949 = vmatmul.bf16.gmra.mxu0 %v4529
    %v8950 = vpop.f32.mrf.mxu0
    %v8951 = vadd.f32 %v8937, %v8950
    %v8952 = vpop.f32.mrf.mxu0
    %v8953 = vadd.f32 %v8939, %v8952
    %8954 = vdwg.mxu0
    %8955 = vmatpush.bf16.msra.mxu0 %v7176
    %8956 = vmatpush.bf16.msra.mxu0 %v7169
    %8957 = vmatpush.bf16.msra.mxu0 %v7162
    %8958 = vmatpush.bf16.msra.mxu0 %v7155
    %8959 = vmatpush.bf16.msra.mxu0 %v7148
    %8960 = vmatpush.bf16.msra.mxu0 %v7141
    %8961 = vmatpush.bf16.msra.mxu0 %v7134
    %8962 = vmatpush.bf16.msra.mxu0 %v7127
    %8963 = vmatmul.bf16.gmra.mxu0 %v4530
    %v8964 = vpop.f32.mrf.mxu0
    %v8965 = vadd.f32 %v8951, %v8964
    %v8966 = vpop.f32.mrf.mxu0
    %v8967 = vadd.f32 %v8953, %v8966
    %8968 = vdwg.mxu0
    %8969 = vmatpush.bf16.msra.mxu0 %v7232
    %8970 = vmatpush.bf16.msra.mxu0 %v7225
    %8971 = vmatpush.bf16.msra.mxu0 %v7218
    %8972 = vmatpush.bf16.msra.mxu0 %v7211
    %8973 = vmatpush.bf16.msra.mxu0 %v7204
    %8974 = vmatpush.bf16.msra.mxu0 %v7197
    %8975 = vmatpush.bf16.msra.mxu0 %v7190
    %8976 = vmatpush.bf16.msra.mxu0 %v7183
    %8977 = vmatmul.bf16.gmra.mxu0 %v4531
    %v8978 = vpop.f32.mrf.mxu0
    %v8979 = vadd.f32 %v8965, %v8978
    %v8980 = vpop.f32.mrf.mxu0
    %v8981 = vadd.f32 %v8967, %v8980
    %8982 = vdwg.mxu0
    %8983 = vmatpush.bf16.msra.mxu0 %v7288
    %8984 = vmatpush.bf16.msra.mxu0 %v7281
    %8985 = vmatpush.bf16.msra.mxu0 %v7274
    %8986 = vmatpush.bf16.msra.mxu0 %v7267
    %8987 = vmatpush.bf16.msra.mxu0 %v7260
    %8988 = vmatpush.bf16.msra.mxu0 %v7253
    %8989 = vmatpush.bf16.msra.mxu0 %v7246
    %8990 = vmatpush.bf16.msra.mxu0 %v7239
    %8991 = vmatmul.bf16.gmra.mxu0 %v4532
    %v8992 = vpop.f32.mrf.mxu0
    %v8993 = vadd.f32 %v8979, %v8992
    %v8994 = vpop.f32.mrf.mxu0
    %v8995 = vadd.f32 %v8981, %v8994
    %8996 = vdwg.mxu0
    %8997 = vmatpush.bf16.msra.mxu0 %v7344
    %8998 = vmatpush.bf16.msra.mxu0 %v7337
    %8999 = vmatpush.bf16.msra.mxu0 %v7330
    %9000 = vmatpush.bf16.msra.mxu0 %v7323
    %9001 = vmatpush.bf16.msra.mxu0 %v7316
    %9002 = vmatpush.bf16.msra.mxu0 %v7309
    %9003 = vmatpush.bf16.msra.mxu0 %v7302
    %9004 = vmatpush.bf16.msra.mxu0 %v7295
    %9005 = vmatmul.bf16.gmra.mxu0 %v4533
    %v9006 = vpop.f32.mrf.mxu0
    %v9007 = vadd.f32 %v8993, %v9006
    %v9008 = vpop.f32.mrf.mxu0
    %v9009 = vadd.f32 %v8995, %v9008
    %9010 = vdwg.mxu0
    %9011 = vmatpush.bf16.msra.mxu0 %v7400
    %9012 = vmatpush.bf16.msra.mxu0 %v7393
    %9013 = vmatpush.bf16.msra.mxu0 %v7386
    %9014 = vmatpush.bf16.msra.mxu0 %v7379
    %9015 = vmatpush.bf16.msra.mxu0 %v7372
    %9016 = vmatpush.bf16.msra.mxu0 %v7365
    %9017 = vmatpush.bf16.msra.mxu0 %v7358
    %9018 = vmatpush.bf16.msra.mxu0 %v7351
    %9019 = vmatmul.bf16.gmra.mxu0 %v4534
    %v9020 = vpop.f32.mrf.mxu0
    %v9021 = vadd.f32 %v9007, %v9020
    %v9022 = vpop.f32.mrf.mxu0
    %v9023 = vadd.f32 %v9009, %v9022
    %9024 = vdwg.mxu0
    %9025 = vmatpush.bf16.msra.mxu0 %v7456
    %9026 = vmatpush.bf16.msra.mxu0 %v7449
    %9027 = vmatpush.bf16.msra.mxu0 %v7442
    %9028 = vmatpush.bf16.msra.mxu0 %v7435
    %9029 = vmatpush.bf16.msra.mxu0 %v7428
    %9030 = vmatpush.bf16.msra.mxu0 %v7421
    %9031 = vmatpush.bf16.msra.mxu0 %v7414
    %9032 = vmatpush.bf16.msra.mxu0 %v7407
    %9033 = vmatmul.bf16.gmra.mxu0 %v4535
    %v9034 = vpop.f32.mrf.mxu0
    %v9035 = vadd.f32 %v9021, %v9034
    %v9036 = vpop.f32.mrf.mxu0
    %v9037 = vadd.f32 %v9023, %v9036
    %9038 = vdwg.mxu0
    %9039 = vmatpush.bf16.msra.mxu0 %v7512
    %9040 = vmatpush.bf16.msra.mxu0 %v7505
    %9041 = vmatpush.bf16.msra.mxu0 %v7498
    %9042 = vmatpush.bf16.msra.mxu0 %v7491
    %9043 = vmatpush.bf16.msra.mxu0 %v7484
    %9044 = vmatpush.bf16.msra.mxu0 %v7477
    %9045 = vmatpush.bf16.msra.mxu0 %v7470
    %9046 = vmatpush.bf16.msra.mxu0 %v7463
    %9047 = vmatmul.bf16.gmra.mxu0 %v4536
    %v9048 = vpop.f32.mrf.mxu0
    %v9049 = vadd.f32 %v9035, %v9048
    %v9050 = vpop.f32.mrf.mxu0
    %v9051 = vadd.f32 %v9037, %v9050
    %9052 = vdwg.mxu0
    %v9053 = vmul.f32 %v8209, 0.5
    %v9054 = vmul.f32 %v8349, 0.5
    %v9055 = vmul.f32 %v8489, 0.5
    %v9056 = vmul.f32 %v8629, 0.5
    %v9057 = vmul.f32 %v8769, 0.5
    %v9058 = vmul.f32 %v8909, 0.5
    %v9059 = vmul.f32 %v9049, 0.5
    %v9060 = vmul.f32 %v8211, 0.5
    %v9061 = vmul.f32 %v8351, 0.5
    %v9062 = vmul.f32 %v8491, 0.5
    %v9063 = vmul.f32 %v8631, 0.5
    %v9064 = vmul.f32 %v8771, 0.5
    %v9065 = vmul.f32 %v8911, 0.5
    %v9066 = vmul.f32 %v9051, 0.5
    %v9067 = vtanh.pop %v9053
    %v9068 = vtanh.pop %v9054
    %v9069 = vtanh.pop %v9055
    %v9070 = vtanh.pop %v9056
    %v9071 = vtanh.pop %v9057
    %v9072 = vtanh.pop %v9058
    %v9073 = vtanh.pop %v9059
    %v9074 = vtanh.pop %v9060
    %v9075 = vtanh.pop %v9061
    %v9076 = vtanh.pop %v9062
    %v9077 = vtanh.pop %v9063
    %v9078 = vtanh.pop %v9064
    %v9079 = vtanh.pop %v9065
    %v9080 = vtanh.pop %v9066
    %v9081 = vmul.f32 %v9067, 0.5
    %v9082 = vmul.f32 %v9068, 0.5
    %v9083 = vmul.f32 %v9069, 0.5
    %v9084 = vmul.f32 %v9070, 0.5
    %v9085 = vmul.f32 %v9071, 0.5
    %v9086 = vmul.f32 %v9072, 0.5
    %v9087 = vmul.f32 %v9073, 0.5
    %v9088 = vmul.f32 %v9074, 0.5
    %v9089 = vmul.f32 %v9075, 0.5
    %v9090 = vmul.f32 %v9076, 0.5
    %v9091 = vmul.f32 %v9077, 0.5
    %v9092 = vmul.f32 %v9078, 0.5
    %v9093 = vmul.f32 %v9079, 0.5
    %v9094 = vmul.f32 %v9080, 0.5
    %v9095 = vadd.f32 %v9081, 0.5
    %v9096 = vadd.f32 %v9082, 0.5
    %v9097 = vadd.f32 %v9083, 0.5
    %v9098 = vadd.f32 %v9084, 0.5
    %v9099 = vadd.f32 %v9085, 0.5
    %v9100 = vadd.f32 %v9086, 0.5
    %v9101 = vadd.f32 %v9087, 0.5
    %v9102 = vadd.f32 %v9088, 0.5
    %v9103 = vadd.f32 %v9089, 0.5
    %v9104 = vadd.f32 %v9090, 0.5
    %v9105 = vadd.f32 %v9091, 0.5
    %v9106 = vadd.f32 %v9092, 0.5
    %v9107 = vadd.f32 %v9093, 0.5
    %v9108 = vadd.f32 %v9094, 0.5
    %9109 = vst [vmem:[%s5] sm:$0xff] %v9095
    %9110 = vst [vmem:[%s5 + $0x8] sm:$0xff] %v9096
    %9111 = vst [vmem:[%s5 + $0x10] sm:$0xff] %v9097
    %9112 = vst [vmem:[%s5 + $0x18] sm:$0xff] %v9098
    %9113 = vst [vmem:[%s5 + $0x20] sm:$0xff] %v9099
    %9114 = vst [vmem:[%s5 + $0x28] sm:$0xff] %v9100
    %9115 = vst [vmem:[%s5 + $0x30] sm:$0xff] %v9101
    %9116 = vst [vmem:[%s5 + $0x38] sm:$0xff] %v9102
    %9117 = vst [vmem:[%s5 + $0x40] sm:$0xff] %v9103
    %9118 = vst [vmem:[%s5 + $0x48] sm:$0xff] %v9104
    %9119 = vst [vmem:[%s5 + $0x50] sm:$0xff] %v9105
    %9120 = vst [vmem:[%s5 + $0x58] sm:$0xff] %v9106
    %9121 = vst [vmem:[%s5 + $0x60] sm:$0xff] %v9107
    %9122 = vst [vmem:[%s5 + $0x68] sm:$0xff] %v9108
    // Predicated region
    $region38: #{_forward_padded.1} parent=1 // pred_check
      _
    $region39: #{_forward_padded.1} parent=1 // pred_check_branch
      %9124 = sbr.rel (0) target = $region41
    $region40: #{_forward_padded.1} parent=1 // pred_region
      _
    $region41: #{_forward_padded.1} parent=1 // pred_fallthru
      _
    // Predicated region
    $region42: #{_forward_padded.1} parent=1 // pred_check
      _
    $region43: #{_forward_padded.1} parent=1 // pred_check_branch
      %9126 = sbr.rel (0) target = $region45
    $region44: #{_forward_padded.1} parent=1 // pred_region
      _
    $region45: #{_forward_padded.1} parent=1 // pred_fallthru
      _
    %9127 = vsyncpa [#allocation3], 1
    %9128 = vsyncpa [#allocation5], 1
    %9129 = vsyncpa [#allocation8], 1

</llo_original>
